<compile_context>
chip_gen: v7x
topology: tpu7x:2x2x1
jax: 0.10.0
libtpu: 0.0.40
codegen_flags: <defaults>
</compile_context>

<pallas_src>
import functools

import numpy as np

import jax
import jax.numpy as jnp
from jax.experimental import pallas as pl
from jax.experimental.pallas import tpu as pltpu

BN_EPS = 1e-5


def _round_up(x, m):
    return (x + m - 1) // m * m


def _pf_geom(h, w):
    """Padded-flat geometry: (#rows rounded to 16, row pitch) for an HxW image."""
    wp = w + 2
    return _round_up((h + 2) * wp, 16), wp


def _selection_matrix(h_out, w_out, dst_pitch, dst_rows, src_pitch, src_rows,
                      stride, src_offset=0):
    """0/1 matrix mapping flat-conv rows (pitch src_pitch, stride-1 positions) to the
    padded-flat layout of the (possibly strided) output.  Padding / garbage rows map
    to all-zero rows, so one bf16 matmul does subsample + re-pitch + mask + zero-pad."""
    s = np.zeros((dst_rows, src_rows), np.float32)
    for h in range(h_out):
        for w in range(w_out):
            rd = (h + 1) * dst_pitch + (w + 1)
            rs = stride * h * src_pitch + stride * w + src_offset
            s[rd, rs] = 1.0
    return jnp.asarray(s).astype(jnp.bfloat16)


# ------------------------------ Pallas kernels ------------------------------

def _conv_accum(src, w_ref, offsets, length):
    """3x3 conv via the flat-row window trick: sum_k src[d_k:d_k+length] @ w[k]."""
    acc = jnp.dot(src[offsets[0]:offsets[0] + length, :], w_ref[0],
                  preferred_element_type=jnp.float32)
    for k in range(1, len(offsets)):
        d = offsets[k]
        acc = acc + jnp.dot(src[d:d + length, :], w_ref[k],
                            preferred_element_type=jnp.float32)
    return acc


def _basic_block_kernel(x_ref, w1_ref, b1_ref, w2_ref, b2_ref, s1_ref, s2_ref,
                        o_ref, *, off1, len1, off2, len2):
    """Fused BasicBlock (identity residual): conv1+BN+ReLU -> conv2+BN -> +x -> ReLU.
    The conv1 output ("mid") stays in VMEM/registers in padded-flat layout."""
    acc1 = _conv_accum(x_ref, w1_ref, off1, len1)
    t1 = jnp.maximum(acc1 + b1_ref[...], 0.0).astype(jnp.bfloat16)
    mid = jnp.dot(s1_ref[...], t1,
                  preferred_element_type=jnp.float32).astype(jnp.bfloat16)
    acc2 = _conv_accum(mid, w2_ref, off2, len2)
    t2 = (acc2 + b2_ref[...]).astype(jnp.bfloat16)
    main = jnp.dot(s2_ref[...], t2, preferred_element_type=jnp.float32)
    out = jnp.maximum(main + x_ref[...].astype(jnp.float32), 0.0)
    o_ref[...] = out.astype(o_ref.dtype)


def _basic_block_ds_kernel(x_ref, w1_ref, b1_ref, w2_ref, b2_ref, s1_ref, s2_ref,
                           sd_ref, wd_ref, o_ref, *, off1, len1, off2, len2):
    """Fused BasicBlock with fused 1x1/stride downsample projection as the residual.
    The strided projection input is selected in-kernel (sd) -- no wrapper gather."""
    acc1 = _conv_accum(x_ref, w1_ref, off1, len1)
    t1 = jnp.maximum(acc1 + b1_ref[...], 0.0).astype(jnp.bfloat16)
    mid = jnp.dot(s1_ref[...], t1,
                  preferred_element_type=jnp.float32).astype(jnp.bfloat16)
    acc2 = _conv_accum(mid, w2_ref, off2, len2)
    t2 = (acc2 + b2_ref[...]).astype(jnp.bfloat16)
    main = jnp.dot(s2_ref[...], t2, preferred_element_type=jnp.float32)
    xsel = jnp.dot(sd_ref[...], x_ref[...],
                   preferred_element_type=jnp.float32).astype(jnp.bfloat16)
    res = jnp.dot(xsel, wd_ref[...], preferred_element_type=jnp.float32)
    out = jnp.maximum(main + res, 0.0)
    o_ref[...] = out.astype(o_ref.dtype)


def _stem_pool_kernel(p_ref, w_ref, b_ref, mask_ref, spool_ref, o_ref, *,
                      pool_off, pool_len):
    """Fused stem: 7x7/s2 conv (as one dense matmul over space-to-depth patches) +
    folded BN + ReLU + 3x3/s2/p1 maxpool, output already in padded-flat layout."""
    y = jnp.dot(p_ref[...], w_ref[...], preferred_element_type=jnp.float32)
    # mask zeroes the padding rows (ReLU(bias) must not leak into the pool padding)
    y = jnp.maximum(y + b_ref[...], 0.0) * mask_ref[...]
    m = y[pool_off[0]:pool_off[0] + pool_len, :]
    for d in pool_off[1:]:
        m = jnp.maximum(m, y[d:d + pool_len, :])
    out = jnp.dot(spool_ref[...], m.astype(jnp.bfloat16),
                  preferred_element_type=jnp.float32)
    o_ref[...] = out.astype(o_ref.dtype)


# ------------------------------ parameters ------------------------------

def _bn_fold(c):
    # fresh nn.BatchNorm2d, eval-mode fold: gamma=1, beta=0, running stats (0, 1)
    gamma = np.ones((c,), np.float32)
    beta = np.zeros((c,), np.float32)
    mean = np.zeros((c,), np.float32)
    var = np.ones((c,), np.float32)
    scale = gamma / np.sqrt(var + BN_EPS)
    bias = beta - mean * scale
    return scale, bias


def _kaiming_hwio(key, kh, kw, cin, cout):
    # kaiming_normal_(mode='fan_out', nonlinearity='relu'): std = sqrt(2 / (cout*kh*kw))
    fan_out = cout * kh * kw
    std = (2.0 / fan_out) ** 0.5
    return jax.random.normal(key, (kh, kw, cin, cout), jnp.float32) * std


def build_resnet_params(key, initial_filters, layers, input_channels=1):
    """BN-folded f32 HWIO parameters (source of truth for both Pallas and reference)."""
    keys = iter(jax.random.split(key, 64))
    s0, b0 = _bn_fold(initial_filters)
    params = {
        "initial_filters": initial_filters,
        "input_channels": input_channels,
        "stem": {"w": _kaiming_hwio(next(keys), 7, 7, input_channels,
                                    initial_filters) * s0,
                 "b": jnp.asarray(b0)},
        "blocks": [],
    }
    inplanes = initial_filters
    for i, n_blocks in enumerate(layers):
        planes = initial_filters * (2 ** i)
        first_stride = 1 if i == 0 else 2
        for b in range(n_blocks):
            stride = first_stride if b == 0 else 1
            sc1, bb1 = _bn_fold(planes)
            sc2, bb2 = _bn_fold(planes)
            blk = {
                "cin": inplanes, "cout": planes, "stride": stride,
                "w1": _kaiming_hwio(next(keys), 3, 3, inplanes, planes) * sc1,
                "b1": jnp.asarray(bb1),
                "w2": _kaiming_hwio(next(keys), 3, 3, planes, planes) * sc2,
                "b2": jnp.asarray(bb2),
            }
            if stride != 1 or inplanes != planes:      # BasicBlock.expansion == 1
                scd, bbd = _bn_fold(planes)
                blk["wd"] = _kaiming_hwio(next(keys), 1, 1, inplanes, planes) * scd
                blk["bd"] = jnp.asarray(bbd)
            else:
                blk["wd"] = None
                blk["bd"] = None
            params["blocks"].append(blk)
            inplanes = planes
    return params


# ------------------------------ Pallas plan (built once, host side) ------------------------------

def _plan_stem(params, h, w):
    cin = params["input_channels"]
    c0 = params["initial_filters"]
    hs, ws = (h - 1) // 2 + 1, (w - 1) // 2 + 1          # 7x7 / s2 / p3 output
    rpf_s, wp_s = _pf_geom(hs, ws)                        # padded-flat stem output
    hq, wq = (hs - 1) // 2 + 1, (ws - 1) // 2 + 1         # maxpool 3x3 / s2 / p1 output
    rpf_p, wp_p = _pf_geom(hq, wq)

    pool_off = tuple(i * wp_s + j for i in range(3) for j in range(3))
    pool_len = 2 * (hq - 1) * wp_s + 2 * (wq - 1) + 1
    spool = _selection_matrix(hq, wq, wp_p, rpf_p, wp_s, pool_len, 2)

    # 7x7 weight -> dense patch weight over the 2x2 space-to-depth representation.
    w7 = np.asarray(params["stem"]["w"])                  # (7, 7, cin, c0), BN folded
    k = 64 * cin
    wpatch = np.zeros((k, c0), np.float32)
    for i in range(7):
        for j in range(7):
            col = ((i // 2) * 4 + (j // 2)) * 4 + (i % 2) * 2 + (j % 2)
            wpatch[col * cin:(col + 1) * cin, :] = w7[i, j]

    mask = np.zeros((rpf_s, 1), np.float32)
    for hh in range(hs):
        for ww in range(ws):
            mask[(hh + 1) * wp_s + (ww + 1), 0] = 1.0

    return dict(hs=hs, ws=ws, hq=hq, wq=wq, k=k, c0=c0,
                rpf_s=rpf_s, wp_s=wp_s, rpf_p=rpf_p,
                pool_off=pool_off, pool_len=pool_len,
                wpatch=jnp.asarray(wpatch).astype(jnp.bfloat16),
                bias=jnp.asarray(params["stem"]["b"]).reshape(1, c0).astype(jnp.float32),
                mask=jnp.asarray(mask),
                spool=spool)


def _plan_block(blk, h, w):
    cin, cout, stride = blk["cin"], blk["cout"], blk["stride"]
    assert h % stride == 0 and w % stride == 0
    rpf_in, wp_in = _pf_geom(h, w)
    ho, wo = h // stride, w // stride
    rpf_out, wp_out = _pf_geom(ho, wo)

    off1 = tuple(i * wp_in + j for i in range(3) for j in range(3))
    len1 = stride * (ho - 1) * wp_in + stride * (wo - 1) + 1
    off2 = tuple(i * wp_out + j for i in range(3) for j in range(3))
    len2 = (ho - 1) * wp_out + wo

    plan = dict(h=h, w=w, ho=ho, wo=wo, cin=cin, cout=cout, stride=stride,
                rpf_in=rpf_in, rpf_out=rpf_out,
                off1=off1, len1=len1, off2=off2, len2=len2,
                w1=jnp.asarray(blk["w1"]).reshape(9, cin, cout).astype(jnp.bfloat16),
                b1=jnp.asarray(blk["b1"]).reshape(1, cout).astype(jnp.float32),
                w2=jnp.asarray(blk["w2"]).reshape(9, cout, cout).astype(jnp.bfloat16),
                s1=_selection_matrix(ho, wo, wp_out, rpf_out, wp_in, len1, stride),
                s2=_selection_matrix(ho, wo, wp_out, rpf_out, wp_out, len2, 1))
    if blk["wd"] is not None:
        # conv2-BN bias and downsample-BN bias are both pre-ReLU -> fold together
        plan["b2"] = jnp.asarray(blk["b2"] + blk["bd"]).reshape(1, cout).astype(jnp.float32)
        plan["wd"] = jnp.asarray(blk["wd"]).reshape(cin, cout).astype(jnp.bfloat16)
        plan["sd"] = _selection_matrix(ho, wo, wp_out, rpf_out, wp_in, rpf_in,
                                       stride, src_offset=wp_in + 1)
    else:
        plan["b2"] = jnp.asarray(blk["b2"]).reshape(1, cout).astype(jnp.float32)
        plan["wd"] = None
    return plan


def build_pallas_plan(params, image_hw):
    h, w = image_hw
    assert h % 2 == 0 and w % 2 == 0, "even input spatial dims expected"
    plan = {"stem": _plan_stem(params, h, w), "blocks": []}
    ch, cw = plan["stem"]["hq"], plan["stem"]["wq"]
    for blk in params["blocks"]:
        bp = _plan_block(blk, ch, cw)
        plan["blocks"].append(bp)
        ch, cw = bp["ho"], bp["wo"]
    plan["out_hw"] = (ch, cw)
    plan["out_channels"] = params["blocks"][-1]["cout"]
    return plan


# ------------------------------ forward (Pallas) ------------------------------

def _operand_bytes(operands, out_elems, out_itemsize):
    return int(sum(int(np.prod(o.shape)) * o.dtype.itemsize for o in operands)
               + out_elems * out_itemsize)


def _run_stem(plan, x_nhwc):
    n, h, w, cin = x_nhwc.shape
    hs, ws, k, c0 = plan["hs"], plan["ws"], plan["k"], plan["c0"]
    rpf_s, rpf_p = plan["rpf_s"], plan["rpf_p"]

    # 2x2 space-to-depth, then 4x4-neighbourhood patches (16 contiguous slices).
    xp = jnp.pad(x_nhwc, ((0, 0), (3, 3), (3, 3), (0, 0)))
    h2, w2 = (h + 6) // 2, (w + 6) // 2
    s2d = xp.reshape(n, h2, 2, w2, 2, cin).transpose(0, 1, 3, 2, 4, 5)
    s2d = s2d.reshape(n, h2, w2, 4 * cin)
    cols = [s2d[:, a:a + hs, b:b + ws, :] for a in range(4) for b in range(4)]
    patches = jnp.concatenate(cols, axis=-1)                    # (n, hs, ws, 64*cin)
    # scatter patch rows into the padded-flat row order of the stem output
    pfp = jnp.pad(patches, ((0, 0), (1, 1), (1, 1), (0, 0)))
    pfp = pfp.reshape(n, (hs + 2) * (ws + 2), k)
    pfp = jnp.pad(pfp, ((0, 0), (0, rpf_s - (hs + 2) * (ws + 2)), (0, 0)))
    pfp = pfp.astype(jnp.bfloat16)

    kernel = functools.partial(_stem_pool_kernel, pool_off=plan["pool_off"],
                               pool_len=plan["pool_len"])
    operands = (pfp, plan["wpatch"], plan["bias"], plan["mask"], plan["spool"])
    in_specs = [pl.BlockSpec((None, rpf_s, k), lambda i: (i, 0, 0)),
                pl.BlockSpec((k, c0), lambda i: (0, 0)),
                pl.BlockSpec((1, c0), lambda i: (0, 0)),
                pl.BlockSpec((rpf_s, 1), lambda i: (0, 0)),
                pl.BlockSpec(plan["spool"].shape, lambda i: (0, 0))]
    flops = n * (2 * rpf_s * k * c0 + 2 * rpf_p * plan["pool_len"] * c0)
    cost = pl.CostEstimate(flops=int(flops), transcendentals=0,
                           bytes_accessed=_operand_bytes(operands, n * rpf_p * c0, 2))
    return pl.pallas_call(
        kernel,
        out_shape=jax.ShapeDtypeStruct((n, rpf_p, c0), jnp.bfloat16),
        grid=(n,),
        in_specs=in_specs,
        out_specs=pl.BlockSpec((None, rpf_p, c0), lambda i: (i, 0, 0)),
        compiler_params=pltpu.CompilerParams(dimension_semantics=("parallel",)),
        cost_estimate=cost,
    )(*operands)


def _run_block(a, bp):
    n = a.shape[0]
    cin, cout = bp["cin"], bp["cout"]
    rpf_in, rpf_out = bp["rpf_in"], bp["rpf_out"]
    len1, len2 = bp["len1"], bp["len2"]

    x_spec = pl.BlockSpec((None, rpf_in, cin), lambda i: (i, 0, 0))
    o_spec = pl.BlockSpec((None, rpf_out, cout), lambda i: (i, 0, 0))

    def c2(shape):
        return pl.BlockSpec(shape, lambda i: (0, 0))

    def c3(shape):
        return pl.BlockSpec(shape, lambda i: (0, 0, 0))

    if bp["wd"] is None:
        kernel = functools.partial(_basic_block_kernel, off1=bp["off1"], len1=len1,
                                   off2=bp["off2"], len2=len2)
        operands = (a, bp["w1"], bp["b1"], bp["w2"], bp["b2"], bp["s1"], bp["s2"])
        in_specs = [x_spec, c3((9, cin, cout)), c2((1, cout)),
                    c3((9, cout, cout)), c2((1, cout)),
                    c2(bp["s1"].shape), c2(bp["s2"].shape)]
        extra = 0
    else:
        kernel = functools.partial(_basic_block_ds_kernel, off1=bp["off1"], len1=len1,
                                   off2=bp["off2"], len2=len2)
        operands = (a, bp["w1"], bp["b1"], bp["w2"], bp["b2"], bp["s1"], bp["s2"],
                    bp["sd"], bp["wd"])
        in_specs = [x_spec, c3((9, cin, cout)), c2((1, cout)),
                    c3((9, cout, cout)), c2((1, cout)),
                    c2(bp["s1"].shape), c2(bp["s2"].shape),
                    c2(bp["sd"].shape), c2((cin, cout))]
        extra = 2 * rpf_out * rpf_in * cin + 2 * rpf_out * cin * cout

    flops = n * (2 * 9 * len1 * cin * cout + 2 * rpf_out * len1 * cout
                 + 2 * 9 * len2 * cout * cout + 2 * rpf_out * len2 * cout + extra)
    cost = pl.CostEstimate(flops=int(flops), transcendentals=0,
                           bytes_accessed=_operand_bytes(operands, n * rpf_out * cout, 2))
    return pl.pallas_call(
        kernel,
        out_shape=jax.ShapeDtypeStruct((n, rpf_out, cout), jnp.bfloat16),
        grid=(n,),
        in_specs=in_specs,
        out_specs=o_spec,
        compiler_params=pltpu.CompilerParams(dimension_semantics=("parallel",)),
        cost_estimate=cost,
    )(*operands)


def pallas_forward(plan, x_nchw):
    x = jnp.transpose(x_nchw, (0, 2, 3, 1)).astype(jnp.float32)   # NCHW -> NHWC
    a = _run_stem(plan["stem"], x)                                # PF layout, bf16
    for bp in plan["blocks"]:
        a = _run_block(a, bp)
    ho, wo = plan["out_hw"]
    c = plan["out_channels"]
    wp = wo + 2
    n = a.shape[0]
    y = a[:, :(ho + 2) * wp, :].astype(jnp.float32).reshape(n, ho + 2, wp, c)
    y = y[:, 1:1 + ho, 1:1 + wo, :]                               # single final un-pad
    return jnp.transpose(y, (0, 3, 1, 2))                         # NHWC -> NCHW


# ------------------------------ pure-JAX reference (same folded params) ------------------------------

def reference_forward(params, x_nchw):
    dn = ("NHWC", "HWIO", "NHWC")
    x = jnp.transpose(x_nchw, (0, 2, 3, 1)).astype(jnp.float32)
    y = jax.lax.conv_general_dilated(x, params["stem"]["w"], (2, 2), ((3, 3), (3, 3)),
                                     dimension_numbers=dn)
    y = jnp.maximum(y + params["stem"]["b"], 0.0)
    y = jax.lax.reduce_window(y, -jnp.inf, jax.lax.max, (1, 3, 3, 1), (1, 2, 2, 1),
                              ((0, 0), (1, 1), (1, 1), (0, 0)))
    for blk in params["blocks"]:
        s = blk["stride"]
        t = jax.lax.conv_general_dilated(y, blk["w1"], (s, s), ((1, 1), (1, 1)),
                                         dimension_numbers=dn)
        t = jnp.maximum(t + blk["b1"], 0.0)
        t = jax.lax.conv_general_dilated(t, blk["w2"], (1, 1), ((1, 1), (1, 1)),
                                         dimension_numbers=dn)
        t = t + blk["b2"]
        if blk["wd"] is not None:
            r = jax.lax.conv_general_dilated(y, blk["wd"], (s, s), ((0, 0), (0, 0)),
                                             dimension_numbers=dn) + blk["bd"]
        else:
            r = y
        y = jnp.maximum(t + r, 0.0)
    return jnp.transpose(y, (0, 3, 1, 2))


if __name__ == "__main__":
    key = jax.random.PRNGKey(0)
    pkey, xkey = jax.random.split(key)

    initial_filters = 8
    layers = (2, 2)          # two stages, BasicBlock x2 each
    input_channels = 1

    params = build_resnet_params(pkey, initial_filters, layers, input_channels)
    x = jax.random.normal(xkey, (2, input_channels, 32, 32), jnp.float32)  # NCHW

    plan = build_pallas_plan(params, (32, 32))
    fwd = jax.jit(lambda xx: pallas_forward(plan, xx))
    out = fwd(x)
    jax.block_until_ready(out)

    # 32 -> conv1(s2) 16 -> maxpool(s2) 8 -> layer1(s1) 8 -> layer2(s2) 4 ; channels 16
    assert out.shape == (2, 16, 4, 4), out.shape
    assert bool(jnp.all(jnp.isfinite(out)))

    # bf16 Pallas path vs f32 pure-JAX reference using the same folded parameters
    ref = reference_forward(params, x)
    max_ref = float(jnp.max(jnp.abs(ref)))
    max_err = float(jnp.max(jnp.abs(out - ref)))
    assert max_err <= 0.05 * max(1.0, max_ref), (max_err, max_ref)

    print("KERNEL_OK")
</pallas_src>

<mosaic_0001>
module attributes {stable_mosaic.version = 11 : i64} {
  func.func @_stem_pool_kernel(%arg0: i32, %arg1: memref<1x336x64xbf16, #tpu.memory_space<vmem>>, %arg2: memref<64x8xbf16, #tpu.memory_space<vmem>>, %arg3: memref<1x8xf32, #tpu.memory_space<vmem>>, %arg4: memref<336x1xf32, #tpu.memory_space<vmem>>, %arg5: memref<112x267xbf16, #tpu.memory_space<vmem>>, %arg6: memref<1x112x8xbf16, #tpu.memory_space<vmem>>) attributes {dimension_semantics = [#tpu.dimension_semantics<parallel>], iteration_bounds = array<i64: 2>, scalar_prefetch = 0 : i64, scratch_operands = 0 : i64, tpu.core_type = #tpu.core_type<tc>, window_params = [{transform_indices = @transform_0, window_bounds = array<i64: 1, 336, 64>}, {pipeline_mode = #tpu.pipeline_mode<synchronous>, transform_indices = @transform_1, window_bounds = array<i64: 64, 8>}, {pipeline_mode = #tpu.pipeline_mode<synchronous>, transform_indices = @transform_2, window_bounds = array<i64: 1, 8>}, {pipeline_mode = #tpu.pipeline_mode<synchronous>, transform_indices = @transform_3, window_bounds = array<i64: 336, 1>}, {pipeline_mode = #tpu.pipeline_mode<synchronous>, transform_indices = @transform_4, window_bounds = array<i64: 112, 267>}, {transform_indices = @transform_5, window_bounds = array<i64: 1, 112, 8>}]} {
    %c0 = arith.constant 0 : index
    %c0_0 = arith.constant 0 : index
    %c0_1 = arith.constant 0 : index
    %0 = vector.load %arg1[%c0, %c0_0, %c0_1] : memref<1x336x64xbf16, #tpu.memory_space<vmem>>, vector<1x336x64xbf16>
    %1 = vector.shape_cast %0 : vector<1x336x64xbf16> to vector<336x64xbf16>
    %c0_2 = arith.constant 0 : index
    %c0_3 = arith.constant 0 : index
    %2 = vector.load %arg2[%c0_2, %c0_3] : memref<64x8xbf16, #tpu.memory_space<vmem>>, vector<64x8xbf16>
    %cst = arith.constant dense<0.000000e+00> : vector<336x8xf32>
    %3 = tpu.matmul %1, %2, %cst {dimension_numbers = #tpu.dot_dimension_numbers<[1], [0], [0], [1], [0, 0, 1, 1], [], []>} : vector<336x64xbf16>, vector<64x8xbf16>, vector<336x8xf32> -> vector<336x8xf32>
    %c0_4 = arith.constant 0 : index
    %c0_5 = arith.constant 0 : index
    %4 = vector.load %arg3[%c0_4, %c0_5] : memref<1x8xf32, #tpu.memory_space<vmem>>, vector<1x8xf32>
    %5 = vector.broadcast %4 : vector<1x8xf32> to vector<336x8xf32>
    %6 = arith.addf %3, %5 : vector<336x8xf32>
    %cst_6 = arith.constant 0.000000e+00 : f32
    %7 = vector.broadcast %cst_6 : f32 to vector<336x8xf32>
    %8 = arith.maximumf %6, %7 : vector<336x8xf32>
    %c0_7 = arith.constant 0 : index
    %c0_8 = arith.constant 0 : index
    %9 = vector.load %arg4[%c0_7, %c0_8] : memref<336x1xf32, #tpu.memory_space<vmem>>, vector<336x1xf32>
    %10 = vector.broadcast %9 : vector<336x1xf32> to vector<336x8xf32>
    %11 = arith.mulf %8, %10 : vector<336x8xf32>
    %12 = vector.extract_strided_slice %11 {offsets = [0, 0], sizes = [267, 8], strides = [1, 1]} : vector<336x8xf32> to vector<267x8xf32>
    %13 = vector.extract_strided_slice %11 {offsets = [1, 0], sizes = [267, 8], strides = [1, 1]} : vector<336x8xf32> to vector<267x8xf32>
    %14 = arith.maximumf %12, %13 : vector<267x8xf32>
    %15 = vector.extract_strided_slice %11 {offsets = [2, 0], sizes = [267, 8], strides = [1, 1]} : vector<336x8xf32> to vector<267x8xf32>
    %16 = arith.maximumf %14, %15 : vector<267x8xf32>
    %17 = vector.extract_strided_slice %11 {offsets = [18, 0], sizes = [267, 8], strides = [1, 1]} : vector<336x8xf32> to vector<267x8xf32>
    %18 = arith.maximumf %16, %17 : vector<267x8xf32>
    %19 = vector.extract_strided_slice %11 {offsets = [19, 0], sizes = [267, 8], strides = [1, 1]} : vector<336x8xf32> to vector<267x8xf32>
    %20 = arith.maximumf %18, %19 : vector<267x8xf32>
    %21 = vector.extract_strided_slice %11 {offsets = [20, 0], sizes = [267, 8], strides = [1, 1]} : vector<336x8xf32> to vector<267x8xf32>
    %22 = arith.maximumf %20, %21 : vector<267x8xf32>
    %23 = vector.extract_strided_slice %11 {offsets = [36, 0], sizes = [267, 8], strides = [1, 1]} : vector<336x8xf32> to vector<267x8xf32>
    %24 = arith.maximumf %22, %23 : vector<267x8xf32>
    %25 = vector.extract_strided_slice %11 {offsets = [37, 0], sizes = [267, 8], strides = [1, 1]} : vector<336x8xf32> to vector<267x8xf32>
    %26 = arith.maximumf %24, %25 : vector<267x8xf32>
    %27 = vector.extract_strided_slice %11 {offsets = [38, 0], sizes = [267, 8], strides = [1, 1]} : vector<336x8xf32> to vector<267x8xf32>
    %28 = arith.maximumf %26, %27 : vector<267x8xf32>
    %c0_9 = arith.constant 0 : index
    %c0_10 = arith.constant 0 : index
    %29 = vector.load %arg5[%c0_9, %c0_10] : memref<112x267xbf16, #tpu.memory_space<vmem>>, vector<112x267xbf16>
    %30 = arith.truncf %28 : vector<267x8xf32> to vector<267x8xbf16>
    %cst_11 = arith.constant dense<0.000000e+00> : vector<112x8xf32>
    %31 = tpu.matmul %29, %30, %cst_11 {dimension_numbers = #tpu.dot_dimension_numbers<[1], [0], [0], [1], [0, 0, 1, 1], [], []>} : vector<112x267xbf16>, vector<267x8xbf16>, vector<112x8xf32> -> vector<112x8xf32>
    %32 = arith.truncf %31 : vector<112x8xf32> to vector<112x8xbf16>
    %c0_12 = arith.constant 0 : index
    %c0_13 = arith.constant 0 : index
    %c0_14 = arith.constant 0 : index
    %33 = vector.load %arg6[%c0_12, %c0_13, %c0_14] : memref<1x112x8xbf16, #tpu.memory_space<vmem>>, vector<1x112x8xbf16>
    %34 = vector.shape_cast %33 : vector<1x112x8xbf16> to vector<112x8xbf16>
    %35 = vector.shape_cast %32 : vector<112x8xbf16> to vector<1x112x8xbf16>
    tpu.vector_store %arg6[%c0_12, %c0_13, %c0_14], %35 {strides = array<i32>} : memref<1x112x8xbf16, #tpu.memory_space<vmem>>, vector<1x112x8xbf16>,
    return
  }
  func.func @transform_0(%arg0: i32) -> (i32, i32, i32) {
    %c0_i32 = arith.constant 0 : i32
    %c0_i32_0 = arith.constant 0 : i32
    %c0_i32_1 = arith.constant 0 : i32
    return %arg0, %c0_i32, %c0_i32_0 : i32, i32, i32
  }
  func.func @transform_1(%arg0: i32) -> (i32, i32) {
    %c0_i32 = arith.constant 0 : i32
    %c0_i32_0 = arith.constant 0 : i32
    %c0_i32_1 = arith.constant 0 : i32
    return %c0_i32, %c0_i32_0 : i32, i32
  }
  func.func @transform_2(%arg0: i32) -> (i32, i32) {
    %c0_i32 = arith.constant 0 : i32
    %c0_i32_0 = arith.constant 0 : i32
    %c0_i32_1 = arith.constant 0 : i32
    return %c0_i32, %c0_i32_0 : i32, i32
  }
  func.func @transform_3(%arg0: i32) -> (i32, i32) {
    %c0_i32 = arith.constant 0 : i32
    %c0_i32_0 = arith.constant 0 : i32
    %c0_i32_1 = arith.constant 0 : i32
    return %c0_i32, %c0_i32_0 : i32, i32
  }
  func.func @transform_4(%arg0: i32) -> (i32, i32) {
    %c0_i32 = arith.constant 0 : i32
    %c0_i32_0 = arith.constant 0 : i32
    %c0_i32_1 = arith.constant 0 : i32
    return %c0_i32, %c0_i32_0 : i32, i32
  }
  func.func @transform_5(%arg0: i32) -> (i32, i32, i32) {
    %c0_i32 = arith.constant 0 : i32
    %c0_i32_0 = arith.constant 0 : i32
    %c0_i32_1 = arith.constant 0 : i32
    return %arg0, %c0_i32, %c0_i32_0 : i32, i32, i32
  }
}

module attributes {stable_mosaic.version = 11 : i64} {
  func.func @_basic_block_ds_kernel(%arg0: i32, %arg1: memref<1x112x8xbf16, #tpu.memory_space<vmem>>, %arg2: memref<9x8x16xbf16, #tpu.memory_space<vmem>>, %arg3: memref<1x16xf32, #tpu.memory_space<vmem>>, %arg4: memref<9x16x16xbf16, #tpu.memory_space<vmem>>, %arg5: memref<1x16xf32, #tpu.memory_space<vmem>>, %arg6: memref<48x67xbf16, #tpu.memory_space<vmem>>, %arg7: memref<48x22xbf16, #tpu.memory_space<vmem>>, %arg8: memref<48x112xbf16, #tpu.memory_space<vmem>>, %arg9: memref<8x16xbf16, #tpu.memory_space<vmem>>, %arg10: memref<1x48x16xbf16, #tpu.memory_space<vmem>>) attributes {dimension_semantics = [#tpu.dimension_semantics<parallel>], iteration_bounds = array<i64: 2>, scalar_prefetch = 0 : i64, scratch_operands = 0 : i64, tpu.core_type = #tpu.core_type<tc>, window_params = [{transform_indices = @transform_0, window_bounds = array<i64: 1, 112, 8>}, {pipeline_mode = #tpu.pipeline_mode<synchronous>, transform_indices = @transform_1, window_bounds = array<i64: 9, 8, 16>}, {pipeline_mode = #tpu.pipeline_mode<synchronous>, transform_indices = @transform_2, window_bounds = array<i64: 1, 16>}, {pipeline_mode = #tpu.pipeline_mode<synchronous>, transform_indices = @transform_3, window_bounds = array<i64: 9, 16, 16>}, {pipeline_mode = #tpu.pipeline_mode<synchronous>, transform_indices = @transform_4, window_bounds = array<i64: 1, 16>}, {pipeline_mode = #tpu.pipeline_mode<synchronous>, transform_indices = @transform_5, window_bounds = array<i64: 48, 67>}, {pipeline_mode = #tpu.pipeline_mode<synchronous>, transform_indices = @transform_6, window_bounds = array<i64: 48, 22>}, {pipeline_mode = #tpu.pipeline_mode<synchronous>, transform_indices = @transform_7, window_bounds = array<i64: 48, 112>}, {pipeline_mode = #tpu.pipeline_mode<synchronous>, transform_indices = @transform_8, window_bounds = array<i64: 8, 16>}, {transform_indices = @transform_9, window_bounds = array<i64: 1, 48, 16>}]} {
    %c0 = arith.constant 0 : index
    %c0_0 = arith.constant 0 : index
    %c0_1 = arith.constant 0 : index
    %0 = vector.load %arg1[%c0, %c0_0, %c0_1] : memref<1x112x8xbf16, #tpu.memory_space<vmem>>, vector<1x67x8xbf16>
    %1 = vector.shape_cast %0 : vector<1x67x8xbf16> to vector<67x8xbf16>
    %c0_2 = arith.constant 0 : index
    %c0_3 = arith.constant 0 : index
    %c0_4 = arith.constant 0 : index
    %2 = vector.load %arg2[%c0_2, %c0_3, %c0_4] : memref<9x8x16xbf16, #tpu.memory_space<vmem>>, vector<1x8x16xbf16>
    %3 = vector.shape_cast %2 : vector<1x8x16xbf16> to vector<8x16xbf16>
    %cst = arith.constant dense<0.000000e+00> : vector<67x16xf32>
    %4 = tpu.matmul %1, %3, %cst {dimension_numbers = #tpu.dot_dimension_numbers<[1], [0], [0], [1], [0, 0, 1, 1], [], []>} : vector<67x8xbf16>, vector<8x16xbf16>, vector<67x16xf32> -> vector<67x16xf32>
    %c0_5 = arith.constant 0 : index
    %c1 = arith.constant 1 : index
    %c0_6 = arith.constant 0 : index
    %5 = vector.load %arg1[%c0_5, %c1, %c0_6] : memref<1x112x8xbf16, #tpu.memory_space<vmem>>, vector<1x67x8xbf16>
    %6 = vector.shape_cast %5 : vector<1x67x8xbf16> to vector<67x8xbf16>
    %c1_7 = arith.constant 1 : index
    %c0_8 = arith.constant 0 : index
    %c0_9 = arith.constant 0 : index
    %7 = vector.load %arg2[%c1_7, %c0_8, %c0_9] : memref<9x8x16xbf16, #tpu.memory_space<vmem>>, vector<1x8x16xbf16>
    %8 = vector.shape_cast %7 : vector<1x8x16xbf16> to vector<8x16xbf16>
    %cst_10 = arith.constant dense<0.000000e+00> : vector<67x16xf32>
    %9 = tpu.matmul %6, %8, %cst_10 {dimension_numbers = #tpu.dot_dimension_numbers<[1], [0], [0], [1], [0, 0, 1, 1], [], []>} : vector<67x8xbf16>, vector<8x16xbf16>, vector<67x16xf32> -> vector<67x16xf32>
    %10 = arith.addf %4, %9 : vector<67x16xf32>
    %c0_11 = arith.constant 0 : index
    %c2 = arith.constant 2 : index
    %c0_12 = arith.constant 0 : index
    %11 = vector.load %arg1[%c0_11, %c2, %c0_12] : memref<1x112x8xbf16, #tpu.memory_space<vmem>>, vector<1x67x8xbf16>
    %12 = vector.shape_cast %11 : vector<1x67x8xbf16> to vector<67x8xbf16>
    %c2_13 = arith.constant 2 : index
    %c0_14 = arith.constant 0 : index
    %c0_15 = arith.constant 0 : index
    %13 = vector.load %arg2[%c2_13, %c0_14, %c0_15] : memref<9x8x16xbf16, #tpu.memory_space<vmem>>, vector<1x8x16xbf16>
    %14 = vector.shape_cast %13 : vector<1x8x16xbf16> to vector<8x16xbf16>
    %cst_16 = arith.constant dense<0.000000e+00> : vector<67x16xf32>
    %15 = tpu.matmul %12, %14, %cst_16 {dimension_numbers = #tpu.dot_dimension_numbers<[1], [0], [0], [1], [0, 0, 1, 1], [], []>} : vector<67x8xbf16>, vector<8x16xbf16>, vector<67x16xf32> -> vector<67x16xf32>
    %16 = arith.addf %10, %15 : vector<67x16xf32>
    %c0_17 = arith.constant 0 : index
    %c10 = arith.constant 10 : index
    %c0_18 = arith.constant 0 : index
    %17 = vector.load %arg1[%c0_17, %c10, %c0_18] : memref<1x112x8xbf16, #tpu.memory_space<vmem>>, vector<1x67x8xbf16>
    %18 = vector.shape_cast %17 : vector<1x67x8xbf16> to vector<67x8xbf16>
    %c3 = arith.constant 3 : index
    %c0_19 = arith.constant 0 : index
    %c0_20 = arith.constant 0 : index
    %19 = vector.load %arg2[%c3, %c0_19, %c0_20] : memref<9x8x16xbf16, #tpu.memory_space<vmem>>, vector<1x8x16xbf16>
    %20 = vector.shape_cast %19 : vector<1x8x16xbf16> to vector<8x16xbf16>
    %cst_21 = arith.constant dense<0.000000e+00> : vector<67x16xf32>
    %21 = tpu.matmul %18, %20, %cst_21 {dimension_numbers = #tpu.dot_dimension_numbers<[1], [0], [0], [1], [0, 0, 1, 1], [], []>} : vector<67x8xbf16>, vector<8x16xbf16>, vector<67x16xf32> -> vector<67x16xf32>
    %22 = arith.addf %16, %21 : vector<67x16xf32>
    %c0_22 = arith.constant 0 : index
    %c11 = arith.constant 11 : index
    %c0_23 = arith.constant 0 : index
    %23 = vector.load %arg1[%c0_22, %c11, %c0_23] : memref<1x112x8xbf16, #tpu.memory_space<vmem>>, vector<1x67x8xbf16>
    %24 = vector.shape_cast %23 : vector<1x67x8xbf16> to vector<67x8xbf16>
    %c4 = arith.constant 4 : index
    %c0_24 = arith.constant 0 : index
    %c0_25 = arith.constant 0 : index
    %25 = vector.load %arg2[%c4, %c0_24, %c0_25] : memref<9x8x16xbf16, #tpu.memory_space<vmem>>, vector<1x8x16xbf16>
    %26 = vector.shape_cast %25 : vector<1x8x16xbf16> to vector<8x16xbf16>
    %cst_26 = arith.constant dense<0.000000e+00> : vector<67x16xf32>
    %27 = tpu.matmul %24, %26, %cst_26 {dimension_numbers = #tpu.dot_dimension_numbers<[1], [0], [0], [1], [0, 0, 1, 1], [], []>} : vector<67x8xbf16>, vector<8x16xbf16>, vector<67x16xf32> -> vector<67x16xf32>
    %28 = arith.addf %22, %27 : vector<67x16xf32>
    %c0_27 = arith.constant 0 : index
    %c12 = arith.constant 12 : index
    %c0_28 = arith.constant 0 : index
    %29 = vector.load %arg1[%c0_27, %c12, %c0_28] : memref<1x112x8xbf16, #tpu.memory_space<vmem>>, vector<1x67x8xbf16>
    %30 = vector.shape_cast %29 : vector<1x67x8xbf16> to vector<67x8xbf16>
    %c5 = arith.constant 5 : index
    %c0_29 = arith.constant 0 : index
    %c0_30 = arith.constant 0 : index
    %31 = vector.load %arg2[%c5, %c0_29, %c0_30] : memref<9x8x16xbf16, #tpu.memory_space<vmem>>, vector<1x8x16xbf16>
    %32 = vector.shape_cast %31 : vector<1x8x16xbf16> to vector<8x16xbf16>
    %cst_31 = arith.constant dense<0.000000e+00> : vector<67x16xf32>
    %33 = tpu.matmul %30, %32, %cst_31 {dimension_numbers = #tpu.dot_dimension_numbers<[1], [0], [0], [1], [0, 0, 1, 1], [], []>} : vector<67x8xbf16>, vector<8x16xbf16>, vector<67x16xf32> -> vector<67x16xf32>
    %34 = arith.addf %28, %33 : vector<67x16xf32>
    %c0_32 = arith.constant 0 : index
    %c20 = arith.constant 20 : index
    %c0_33 = arith.constant 0 : index
    %35 = vector.load %arg1[%c0_32, %c20, %c0_33] : memref<1x112x8xbf16, #tpu.memory_space<vmem>>, vector<1x67x8xbf16>
    %36 = vector.shape_cast %35 : vector<1x67x8xbf16> to vector<67x8xbf16>
    %c6 = arith.constant 6 : index
    %c0_34 = arith.constant 0 : index
    %c0_35 = arith.constant 0 : index
    %37 = vector.load %arg2[%c6, %c0_34, %c0_35] : memref<9x8x16xbf16, #tpu.memory_space<vmem>>, vector<1x8x16xbf16>
    %38 = vector.shape_cast %37 : vector<1x8x16xbf16> to vector<8x16xbf16>
    %cst_36 = arith.constant dense<0.000000e+00> : vector<67x16xf32>
    %39 = tpu.matmul %36, %38, %cst_36 {dimension_numbers = #tpu.dot_dimension_numbers<[1], [0], [0], [1], [0, 0, 1, 1], [], []>} : vector<67x8xbf16>, vector<8x16xbf16>, vector<67x16xf32> -> vector<67x16xf32>
    %40 = arith.addf %34, %39 : vector<67x16xf32>
    %c0_37 = arith.constant 0 : index
    %c21 = arith.constant 21 : index
    %c0_38 = arith.constant 0 : index
    %41 = vector.load %arg1[%c0_37, %c21, %c0_38] : memref<1x112x8xbf16, #tpu.memory_space<vmem>>, vector<1x67x8xbf16>
    %42 = vector.shape_cast %41 : vector<1x67x8xbf16> to vector<67x8xbf16>
    %c7 = arith.constant 7 : index
    %c0_39 = arith.constant 0 : index
    %c0_40 = arith.constant 0 : index
    %43 = vector.load %arg2[%c7, %c0_39, %c0_40] : memref<9x8x16xbf16, #tpu.memory_space<vmem>>, vector<1x8x16xbf16>
    %44 = vector.shape_cast %43 : vector<1x8x16xbf16> to vector<8x16xbf16>
    %cst_41 = arith.constant dense<0.000000e+00> : vector<67x16xf32>
    %45 = tpu.matmul %42, %44, %cst_41 {dimension_numbers = #tpu.dot_dimension_numbers<[1], [0], [0], [1], [0, 0, 1, 1], [], []>} : vector<67x8xbf16>, vector<8x16xbf16>, vector<67x16xf32> -> vector<67x16xf32>
    %46 = arith.addf %40, %45 : vector<67x16xf32>
    %c0_42 = arith.constant 0 : index
    %c22 = arith.constant 22 : index
    %c0_43 = arith.constant 0 : index
    %47 = vector.load %arg1[%c0_42, %c22, %c0_43] : memref<1x112x8xbf16, #tpu.memory_space<vmem>>, vector<1x67x8xbf16>
    %48 = vector.shape_cast %47 : vector<1x67x8xbf16> to vector<67x8xbf16>
    %c8 = arith.constant 8 : index
    %c0_44 = arith.constant 0 : index
    %c0_45 = arith.constant 0 : index
    %49 = vector.load %arg2[%c8, %c0_44, %c0_45] : memref<9x8x16xbf16, #tpu.memory_space<vmem>>, vector<1x8x16xbf16>
    %50 = vector.shape_cast %49 : vector<1x8x16xbf16> to vector<8x16xbf16>
    %cst_46 = arith.constant dense<0.000000e+00> : vector<67x16xf32>
    %51 = tpu.matmul %48, %50, %cst_46 {dimension_numbers = #tpu.dot_dimension_numbers<[1], [0], [0], [1], [0, 0, 1, 1], [], []>} : vector<67x8xbf16>, vector<8x16xbf16>, vector<67x16xf32> -> vector<67x16xf32>
    %52 = arith.addf %46, %51 : vector<67x16xf32>
    %c0_47 = arith.constant 0 : index
    %c0_48 = arith.constant 0 : index
    %53 = vector.load %arg3[%c0_47, %c0_48] : memref<1x16xf32, #tpu.memory_space<vmem>>, vector<1x16xf32>
    %54 = vector.broadcast %53 : vector<1x16xf32> to vector<67x16xf32>
    %55 = arith.addf %52, %54 : vector<67x16xf32>
    %cst_49 = arith.constant 0.000000e+00 : f32
    %56 = vector.broadcast %cst_49 : f32 to vector<67x16xf32>
    %57 = arith.maximumf %55, %56 : vector<67x16xf32>
    %58 = arith.truncf %57 : vector<67x16xf32> to vector<67x16xbf16>
    %c0_50 = arith.constant 0 : index
    %c0_51 = arith.constant 0 : index
    %59 = vector.load %arg6[%c0_50, %c0_51] : memref<48x67xbf16, #tpu.memory_space<vmem>>, vector<48x67xbf16>
    %cst_52 = arith.constant dense<0.000000e+00> : vector<48x16xf32>
    %60 = tpu.matmul %59, %58, %cst_52 {dimension_numbers = #tpu.dot_dimension_numbers<[1], [0], [0], [1], [0, 0, 1, 1], [], []>} : vector<48x67xbf16>, vector<67x16xbf16>, vector<48x16xf32> -> vector<48x16xf32>
    %61 = arith.truncf %60 : vector<48x16xf32> to vector<48x16xbf16>
    %62 = vector.extract_strided_slice %61 {offsets = [0, 0], sizes = [22, 16], strides = [1, 1]} : vector<48x16xbf16> to vector<22x16xbf16>
    %c0_53 = arith.constant 0 : index
    %c0_54 = arith.constant 0 : index
    %c0_55 = arith.constant 0 : index
    %63 = vector.load %arg4[%c0_53, %c0_54, %c0_55] : memref<9x16x16xbf16, #tpu.memory_space<vmem>>, vector<1x16x16xbf16>
    %64 = vector.shape_cast %63 : vector<1x16x16xbf16> to vector<16x16xbf16>
    %cst_56 = arith.constant dense<0.000000e+00> : vector<22x16xf32>
    %65 = tpu.matmul %62, %64, %cst_56 {dimension_numbers = #tpu.dot_dimension_numbers<[1], [0], [0], [1], [0, 0, 1, 1], [], []>} : vector<22x16xbf16>, vector<16x16xbf16>, vector<22x16xf32> -> vector<22x16xf32>
    %66 = vector.extract_strided_slice %61 {offsets = [1, 0], sizes = [22, 16], strides = [1, 1]} : vector<48x16xbf16> to vector<22x16xbf16>
    %c1_57 = arith.constant 1 : index
    %c0_58 = arith.constant 0 : index
    %c0_59 = arith.constant 0 : index
    %67 = vector.load %arg4[%c1_57, %c0_58, %c0_59] : memref<9x16x16xbf16, #tpu.memory_space<vmem>>, vector<1x16x16xbf16>
    %68 = vector.shape_cast %67 : vector<1x16x16xbf16> to vector<16x16xbf16>
    %cst_60 = arith.constant dense<0.000000e+00> : vector<22x16xf32>
    %69 = tpu.matmul %66, %68, %cst_60 {dimension_numbers = #tpu.dot_dimension_numbers<[1], [0], [0], [1], [0, 0, 1, 1], [], []>} : vector<22x16xbf16>, vector<16x16xbf16>, vector<22x16xf32> -> vector<22x16xf32>
    %70 = arith.addf %65, %69 : vector<22x16xf32>
    %71 = vector.extract_strided_slice %61 {offsets = [2, 0], sizes = [22, 16], strides = [1, 1]} : vector<48x16xbf16> to vector<22x16xbf16>
    %c2_61 = arith.constant 2 : index
    %c0_62 = arith.constant 0 : index
    %c0_63 = arith.constant 0 : index
    %72 = vector.load %arg4[%c2_61, %c0_62, %c0_63] : memref<9x16x16xbf16, #tpu.memory_space<vmem>>, vector<1x16x16xbf16>
    %73 = vector.shape_cast %72 : vector<1x16x16xbf16> to vector<16x16xbf16>
    %cst_64 = arith.constant dense<0.000000e+00> : vector<22x16xf32>
    %74 = tpu.matmul %71, %73, %cst_64 {dimension_numbers = #tpu.dot_dimension_numbers<[1], [0], [0], [1], [0, 0, 1, 1], [], []>} : vector<22x16xbf16>, vector<16x16xbf16>, vector<22x16xf32> -> vector<22x16xf32>
    %75 = arith.addf %70, %74 : vector<22x16xf32>
    %76 = vector.extract_strided_slice %61 {offsets = [6, 0], sizes = [22, 16], strides = [1, 1]} : vector<48x16xbf16> to vector<22x16xbf16>
    %c3_65 = arith.constant 3 : index
    %c0_66 = arith.constant 0 : index
    %c0_67 = arith.constant 0 : index
    %77 = vector.load %arg4[%c3_65, %c0_66, %c0_67] : memref<9x16x16xbf16, #tpu.memory_space<vmem>>, vector<1x16x16xbf16>
    %78 = vector.shape_cast %77 : vector<1x16x16xbf16> to vector<16x16xbf16>
    %cst_68 = arith.constant dense<0.000000e+00> : vector<22x16xf32>
    %79 = tpu.matmul %76, %78, %cst_68 {dimension_numbers = #tpu.dot_dimension_numbers<[1], [0], [0], [1], [0, 0, 1, 1], [], []>} : vector<22x16xbf16>, vector<16x16xbf16>, vector<22x16xf32> -> vector<22x16xf32>
    %80 = arith.addf %75, %79 : vector<22x16xf32>
    %81 = vector.extract_strided_slice %61 {offsets = [7, 0], sizes = [22, 16], strides = [1, 1]} : vector<48x16xbf16> to vector<22x16xbf16>
    %c4_69 = arith.constant 4 : index
    %c0_70 = arith.constant 0 : index
    %c0_71 = arith.constant 0 : index
    %82 = vector.load %arg4[%c4_69, %c0_70, %c0_71] : memref<9x16x16xbf16, #tpu.memory_space<vmem>>, vector<1x16x16xbf16>
    %83 = vector.shape_cast %82 : vector<1x16x16xbf16> to vector<16x16xbf16>
    %cst_72 = arith.constant dense<0.000000e+00> : vector<22x16xf32>
    %84 = tpu.matmul %81, %83, %cst_72 {dimension_numbers = #tpu.dot_dimension_numbers<[1], [0], [0], [1], [0, 0, 1, 1], [], []>} : vector<22x16xbf16>, vector<16x16xbf16>, vector<22x16xf32> -> vector<22x16xf32>
    %85 = arith.addf %80, %84 : vector<22x16xf32>
    %86 = vector.extract_strided_slice %61 {offsets = [8, 0], sizes = [22, 16], strides = [1, 1]} : vector<48x16xbf16> to vector<22x16xbf16>
    %c5_73 = arith.constant 5 : index
    %c0_74 = arith.constant 0 : index
    %c0_75 = arith.constant 0 : index
    %87 = vector.load %arg4[%c5_73, %c0_74, %c0_75] : memref<9x16x16xbf16, #tpu.memory_space<vmem>>, vector<1x16x16xbf16>
    %88 = vector.shape_cast %87 : vector<1x16x16xbf16> to vector<16x16xbf16>
    %cst_76 = arith.constant dense<0.000000e+00> : vector<22x16xf32>
    %89 = tpu.matmul %86, %88, %cst_76 {dimension_numbers = #tpu.dot_dimension_numbers<[1], [0], [0], [1], [0, 0, 1, 1], [], []>} : vector<22x16xbf16>, vector<16x16xbf16>, vector<22x16xf32> -> vector<22x16xf32>
    %90 = arith.addf %85, %89 : vector<22x16xf32>
    %91 = vector.extract_strided_slice %61 {offsets = [12, 0], sizes = [22, 16], strides = [1, 1]} : vector<48x16xbf16> to vector<22x16xbf16>
    %c6_77 = arith.constant 6 : index
    %c0_78 = arith.constant 0 : index
    %c0_79 = arith.constant 0 : index
    %92 = vector.load %arg4[%c6_77, %c0_78, %c0_79] : memref<9x16x16xbf16, #tpu.memory_space<vmem>>, vector<1x16x16xbf16>
    %93 = vector.shape_cast %92 : vector<1x16x16xbf16> to vector<16x16xbf16>
    %cst_80 = arith.constant dense<0.000000e+00> : vector<22x16xf32>
    %94 = tpu.matmul %91, %93, %cst_80 {dimension_numbers = #tpu.dot_dimension_numbers<[1], [0], [0], [1], [0, 0, 1, 1], [], []>} : vector<22x16xbf16>, vector<16x16xbf16>, vector<22x16xf32> -> vector<22x16xf32>
    %95 = arith.addf %90, %94 : vector<22x16xf32>
    %96 = vector.extract_strided_slice %61 {offsets = [13, 0], sizes = [22, 16], strides = [1, 1]} : vector<48x16xbf16> to vector<22x16xbf16>
    %c7_81 = arith.constant 7 : index
    %c0_82 = arith.constant 0 : index
    %c0_83 = arith.constant 0 : index
    %97 = vector.load %arg4[%c7_81, %c0_82, %c0_83] : memref<9x16x16xbf16, #tpu.memory_space<vmem>>, vector<1x16x16xbf16>
    %98 = vector.shape_cast %97 : vector<1x16x16xbf16> to vector<16x16xbf16>
    %cst_84 = arith.constant dense<0.000000e+00> : vector<22x16xf32>
    %99 = tpu.matmul %96, %98, %cst_84 {dimension_numbers = #tpu.dot_dimension_numbers<[1], [0], [0], [1], [0, 0, 1, 1], [], []>} : vector<22x16xbf16>, vector<16x16xbf16>, vector<22x16xf32> -> vector<22x16xf32>
    %100 = arith.addf %95, %99 : vector<22x16xf32>
    %101 = vector.extract_strided_slice %61 {offsets = [14, 0], sizes = [22, 16], strides = [1, 1]} : vector<48x16xbf16> to vector<22x16xbf16>
    %c8_85 = arith.constant 8 : index
    %c0_86 = arith.constant 0 : index
    %c0_87 = arith.constant 0 : index
    %102 = vector.load %arg4[%c8_85, %c0_86, %c0_87] : memref<9x16x16xbf16, #tpu.memory_space<vmem>>, vector<1x16x16xbf16>
    %103 = vector.shape_cast %102 : vector<1x16x16xbf16> to vector<16x16xbf16>
    %cst_88 = arith.constant dense<0.000000e+00> : vector<22x16xf32>
    %104 = tpu.matmul %101, %103, %cst_88 {dimension_numbers = #tpu.dot_dimension_numbers<[1], [0], [0], [1], [0, 0, 1, 1], [], []>} : vector<22x16xbf16>, vector<16x16xbf16>, vector<22x16xf32> -> vector<22x16xf32>
    %105 = arith.addf %100, %104 : vector<22x16xf32>
    %c0_89 = arith.constant 0 : index
    %c0_90 = arith.constant 0 : index
    %106 = vector.load %arg5[%c0_89, %c0_90] : memref<1x16xf32, #tpu.memory_space<vmem>>, vector<1x16xf32>
    %107 = vector.broadcast %106 : vector<1x16xf32> to vector<22x16xf32>
    %108 = arith.addf %105, %107 : vector<22x16xf32>
    %109 = arith.truncf %108 : vector<22x16xf32> to vector<22x16xbf16>
    %c0_91 = arith.constant 0 : index
    %c0_92 = arith.constant 0 : index
    %110 = vector.load %arg7[%c0_91, %c0_92] : memref<48x22xbf16, #tpu.memory_space<vmem>>, vector<48x22xbf16>
    %cst_93 = arith.constant dense<0.000000e+00> : vector<48x16xf32>
    %111 = tpu.matmul %110, %109, %cst_93 {dimension_numbers = #tpu.dot_dimension_numbers<[1], [0], [0], [1], [0, 0, 1, 1], [], []>} : vector<48x22xbf16>, vector<22x16xbf16>, vector<48x16xf32> -> vector<48x16xf32>
    %c0_94 = arith.constant 0 : index
    %c0_95 = arith.constant 0 : index
    %112 = vector.load %arg8[%c0_94, %c0_95] : memref<48x112xbf16, #tpu.memory_space<vmem>>, vector<48x112xbf16>
    %c0_96 = arith.constant 0 : index
    %c0_97 = arith.constant 0 : index
    %c0_98 = arith.constant 0 : index
    %113 = vector.load %arg1[%c0_96, %c0_97, %c0_98] : memref<1x112x8xbf16, #tpu.memory_space<vmem>>, vector<1x112x8xbf16>
    %114 = vector.shape_cast %113 : vector<1x112x8xbf16> to vector<112x8xbf16>
    %cst_99 = arith.constant dense<0.000000e+00> : vector<48x8xf32>
    %115 = tpu.matmul %112, %114, %cst_99 {dimension_numbers = #tpu.dot_dimension_numbers<[1], [0], [0], [1], [0, 0, 1, 1], [], []>} : vector<48x112xbf16>, vector<112x8xbf16>, vector<48x8xf32> -> vector<48x8xf32>
    %116 = arith.truncf %115 : vector<48x8xf32> to vector<48x8xbf16>
    %c0_100 = arith.constant 0 : index
    %c0_101 = arith.constant 0 : index
    %117 = vector.load %arg9[%c0_100, %c0_101] : memref<8x16xbf16, #tpu.memory_space<vmem>>, vector<8x16xbf16>
    %cst_102 = arith.constant dense<0.000000e+00> : vector<48x16xf32>
    %118 = tpu.matmul %116, %117, %cst_102 {dimension_numbers = #tpu.dot_dimension_numbers<[1], [0], [0], [1], [0, 0, 1, 1], [], []>} : vector<48x8xbf16>, vector<8x16xbf16>, vector<48x16xf32> -> vector<48x16xf32>
    %119 = arith.addf %111, %118 : vector<48x16xf32>
    %cst_103 = arith.constant 0.000000e+00 : f32
    %120 = vector.broadcast %cst_103 : f32 to vector<48x16xf32>
    %121 = arith.maximumf %119, %120 : vector<48x16xf32>
    %122 = arith.truncf %121 : vector<48x16xf32> to vector<48x16xbf16>
    %c0_104 = arith.constant 0 : index
    %c0_105 = arith.constant 0 : index
    %c0_106 = arith.constant 0 : index
    %123 = vector.load %arg10[%c0_104, %c0_105, %c0_106] : memref<1x48x16xbf16, #tpu.memory_space<vmem>>, vector<1x48x16xbf16>
    %124 = vector.shape_cast %123 : vector<1x48x16xbf16> to vector<48x16xbf16>
    %125 = vector.shape_cast %122 : vector<48x16xbf16> to vector<1x48x16xbf16>
    tpu.vector_store %arg10[%c0_104, %c0_105, %c0_106], %125 {strides = array<i32>} : memref<1x48x16xbf16, #tpu.memory_space<vmem>>, vector<1x48x16xbf16>,
    return
  }
  func.func @transform_0(%arg0: i32) -> (i32, i32, i32) {
    %c0_i32 = arith.constant 0 : i32
    %c0_i32_0 = arith.constant 0 : i32
    %c0_i32_1 = arith.constant 0 : i32
    return %arg0, %c0_i32, %c0_i32_0 : i32, i32, i32
  }
  func.func @transform_1(%arg0: i32) -> (i32, i32, i32) {
    %c0_i32 = arith.constant 0 : i32
    %c0_i32_0 = arith.constant 0 : i32
    %c0_i32_1 = arith.constant 0 : i32
    %c0_i32_2 = arith.constant 0 : i32
    return %c0_i32, %c0_i32_0, %c0_i32_1 : i32, i32, i32
  }
  func.func @transform_2(%arg0: i32) -> (i32, i32) {
    %c0_i32 = arith.constant 0 : i32
    %c0_i32_0 = arith.constant 0 : i32
    %c0_i32_1 = arith.constant 0 : i32
    return %c0_i32, %c0_i32_0 : i32, i32
  }
  func.func @transform_3(%arg0: i32) -> (i32, i32, i32) {
    %c0_i32 = arith.constant 0 : i32
    %c0_i32_0 = arith.constant 0 : i32
    %c0_i32_1 = arith.constant 0 : i32
    %c0_i32_2 = arith.constant 0 : i32
    return %c0_i32, %c0_i32_0, %c0_i32_1 : i32, i32, i32
  }
  func.func @transform_4(%arg0: i32) -> (i32, i32) {
    %c0_i32 = arith.constant 0 : i32
    %c0_i32_0 = arith.constant 0 : i32
    %c0_i32_1 = arith.constant 0 : i32
    return %c0_i32, %c0_i32_0 : i32, i32
  }
  func.func @transform_5(%arg0: i32) -> (i32, i32) {
    %c0_i32 = arith.constant 0 : i32
    %c0_i32_0 = arith.constant 0 : i32
    %c0_i32_1 = arith.constant 0 : i32
    return %c0_i32, %c0_i32_0 : i32, i32
  }
  func.func @transform_6(%arg0: i32) -> (i32, i32) {
    %c0_i32 = arith.constant 0 : i32
    %c0_i32_0 = arith.constant 0 : i32
    %c0_i32_1 = arith.constant 0 : i32
    return %c0_i32, %c0_i32_0 : i32, i32
  }
  func.func @transform_7(%arg0: i32) -> (i32, i32) {
    %c0_i32 = arith.constant 0 : i32
    %c0_i32_0 = arith.constant 0 : i32
    %c0_i32_1 = arith.constant 0 : i32
    return %c0_i32, %c0_i32_0 : i32, i32
  }
  func.func @transform_8(%arg0: i32) -> (i32, i32) {
    %c0_i32 = arith.constant 0 : i32
    %c0_i32_0 = arith.constant 0 : i32
    %c0_i32_1 = arith.constant 0 : i32
    return %c0_i32, %c0_i32_0 : i32, i32
  }
  func.func @transform_9(%arg0: i32) -> (i32, i32, i32) {
    %c0_i32 = arith.constant 0 : i32
    %c0_i32_0 = arith.constant 0 : i32
    %c0_i32_1 = arith.constant 0 : i32
    return %arg0, %c0_i32, %c0_i32_0 : i32, i32, i32
  }
}

module attributes {stable_mosaic.version = 11 : i64} {
  func.func @_basic_block_kernel(%arg0: i32, %arg1: memref<1x112x8xbf16, #tpu.memory_space<vmem>>, %arg2: memref<9x8x8xbf16, #tpu.memory_space<vmem>>, %arg3: memref<1x8xf32, #tpu.memory_space<vmem>>, %arg4: memref<9x8x8xbf16, #tpu.memory_space<vmem>>, %arg5: memref<1x8xf32, #tpu.memory_space<vmem>>, %arg6: memref<112x78xbf16, #tpu.memory_space<vmem>>, %arg7: memref<112x78xbf16, #tpu.memory_space<vmem>>, %arg8: memref<1x112x8xbf16, #tpu.memory_space<vmem>>) attributes {dimension_semantics = [#tpu.dimension_semantics<parallel>], iteration_bounds = array<i64: 2>, scalar_prefetch = 0 : i64, scratch_operands = 0 : i64, tpu.core_type = #tpu.core_type<tc>, window_params = [{transform_indices = @transform_0, window_bounds = array<i64: 1, 112, 8>}, {pipeline_mode = #tpu.pipeline_mode<synchronous>, transform_indices = @transform_1, window_bounds = array<i64: 9, 8, 8>}, {pipeline_mode = #tpu.pipeline_mode<synchronous>, transform_indices = @transform_2, window_bounds = array<i64: 1, 8>}, {pipeline_mode = #tpu.pipeline_mode<synchronous>, transform_indices = @transform_3, window_bounds = array<i64: 9, 8, 8>}, {pipeline_mode = #tpu.pipeline_mode<synchronous>, transform_indices = @transform_4, window_bounds = array<i64: 1, 8>}, {pipeline_mode = #tpu.pipeline_mode<synchronous>, transform_indices = @transform_5, window_bounds = array<i64: 112, 78>}, {pipeline_mode = #tpu.pipeline_mode<synchronous>, transform_indices = @transform_6, window_bounds = array<i64: 112, 78>}, {transform_indices = @transform_7, window_bounds = array<i64: 1, 112, 8>}]} {
    %c0 = arith.constant 0 : index
    %c0_0 = arith.constant 0 : index
    %c0_1 = arith.constant 0 : index
    %0 = vector.load %arg1[%c0, %c0_0, %c0_1] : memref<1x112x8xbf16, #tpu.memory_space<vmem>>, vector<1x78x8xbf16>
    %1 = vector.shape_cast %0 : vector<1x78x8xbf16> to vector<78x8xbf16>
    %c0_2 = arith.constant 0 : index
    %c0_3 = arith.constant 0 : index
    %c0_4 = arith.constant 0 : index
    %2 = vector.load %arg2[%c0_2, %c0_3, %c0_4] : memref<9x8x8xbf16, #tpu.memory_space<vmem>>, vector<1x8x8xbf16>
    %3 = vector.shape_cast %2 : vector<1x8x8xbf16> to vector<8x8xbf16>
    %cst = arith.constant dense<0.000000e+00> : vector<78x8xf32>
    %4 = tpu.matmul %1, %3, %cst {dimension_numbers = #tpu.dot_dimension_numbers<[1], [0], [0], [1], [0, 0, 1, 1], [], []>} : vector<78x8xbf16>, vector<8x8xbf16>, vector<78x8xf32> -> vector<78x8xf32>
    %c0_5 = arith.constant 0 : index
    %c1 = arith.constant 1 : index
    %c0_6 = arith.constant 0 : index
    %5 = vector.load %arg1[%c0_5, %c1, %c0_6] : memref<1x112x8xbf16, #tpu.memory_space<vmem>>, vector<1x78x8xbf16>
    %6 = vector.shape_cast %5 : vector<1x78x8xbf16> to vector<78x8xbf16>
    %c1_7 = arith.constant 1 : index
    %c0_8 = arith.constant 0 : index
    %c0_9 = arith.constant 0 : index
    %7 = vector.load %arg2[%c1_7, %c0_8, %c0_9] : memref<9x8x8xbf16, #tpu.memory_space<vmem>>, vector<1x8x8xbf16>
    %8 = vector.shape_cast %7 : vector<1x8x8xbf16> to vector<8x8xbf16>
    %cst_10 = arith.constant dense<0.000000e+00> : vector<78x8xf32>
    %9 = tpu.matmul %6, %8, %cst_10 {dimension_numbers = #tpu.dot_dimension_numbers<[1], [0], [0], [1], [0, 0, 1, 1], [], []>} : vector<78x8xbf16>, vector<8x8xbf16>, vector<78x8xf32> -> vector<78x8xf32>
    %10 = arith.addf %4, %9 : vector<78x8xf32>
    %c0_11 = arith.constant 0 : index
    %c2 = arith.constant 2 : index
    %c0_12 = arith.constant 0 : index
    %11 = vector.load %arg1[%c0_11, %c2, %c0_12] : memref<1x112x8xbf16, #tpu.memory_space<vmem>>, vector<1x78x8xbf16>
    %12 = vector.shape_cast %11 : vector<1x78x8xbf16> to vector<78x8xbf16>
    %c2_13 = arith.constant 2 : index
    %c0_14 = arith.constant 0 : index
    %c0_15 = arith.constant 0 : index
    %13 = vector.load %arg2[%c2_13, %c0_14, %c0_15] : memref<9x8x8xbf16, #tpu.memory_space<vmem>>, vector<1x8x8xbf16>
    %14 = vector.shape_cast %13 : vector<1x8x8xbf16> to vector<8x8xbf16>
    %cst_16 = arith.constant dense<0.000000e+00> : vector<78x8xf32>
    %15 = tpu.matmul %12, %14, %cst_16 {dimension_numbers = #tpu.dot_dimension_numbers<[1], [0], [0], [1], [0, 0, 1, 1], [], []>} : vector<78x8xbf16>, vector<8x8xbf16>, vector<78x8xf32> -> vector<78x8xf32>
    %16 = arith.addf %10, %15 : vector<78x8xf32>
    %c0_17 = arith.constant 0 : index
    %c10 = arith.constant 10 : index
    %c0_18 = arith.constant 0 : index
    %17 = vector.load %arg1[%c0_17, %c10, %c0_18] : memref<1x112x8xbf16, #tpu.memory_space<vmem>>, vector<1x78x8xbf16>
    %18 = vector.shape_cast %17 : vector<1x78x8xbf16> to vector<78x8xbf16>
    %c3 = arith.constant 3 : index
    %c0_19 = arith.constant 0 : index
    %c0_20 = arith.constant 0 : index
    %19 = vector.load %arg2[%c3, %c0_19, %c0_20] : memref<9x8x8xbf16, #tpu.memory_space<vmem>>, vector<1x8x8xbf16>
    %20 = vector.shape_cast %19 : vector<1x8x8xbf16> to vector<8x8xbf16>
    %cst_21 = arith.constant dense<0.000000e+00> : vector<78x8xf32>
    %21 = tpu.matmul %18, %20, %cst_21 {dimension_numbers = #tpu.dot_dimension_numbers<[1], [0], [0], [1], [0, 0, 1, 1], [], []>} : vector<78x8xbf16>, vector<8x8xbf16>, vector<78x8xf32> -> vector<78x8xf32>
    %22 = arith.addf %16, %21 : vector<78x8xf32>
    %c0_22 = arith.constant 0 : index
    %c11 = arith.constant 11 : index
    %c0_23 = arith.constant 0 : index
    %23 = vector.load %arg1[%c0_22, %c11, %c0_23] : memref<1x112x8xbf16, #tpu.memory_space<vmem>>, vector<1x78x8xbf16>
    %24 = vector.shape_cast %23 : vector<1x78x8xbf16> to vector<78x8xbf16>
    %c4 = arith.constant 4 : index
    %c0_24 = arith.constant 0 : index
    %c0_25 = arith.constant 0 : index
    %25 = vector.load %arg2[%c4, %c0_24, %c0_25] : memref<9x8x8xbf16, #tpu.memory_space<vmem>>, vector<1x8x8xbf16>
    %26 = vector.shape_cast %25 : vector<1x8x8xbf16> to vector<8x8xbf16>
    %cst_26 = arith.constant dense<0.000000e+00> : vector<78x8xf32>
    %27 = tpu.matmul %24, %26, %cst_26 {dimension_numbers = #tpu.dot_dimension_numbers<[1], [0], [0], [1], [0, 0, 1, 1], [], []>} : vector<78x8xbf16>, vector<8x8xbf16>, vector<78x8xf32> -> vector<78x8xf32>
    %28 = arith.addf %22, %27 : vector<78x8xf32>
    %c0_27 = arith.constant 0 : index
    %c12 = arith.constant 12 : index
    %c0_28 = arith.constant 0 : index
    %29 = vector.load %arg1[%c0_27, %c12, %c0_28] : memref<1x112x8xbf16, #tpu.memory_space<vmem>>, vector<1x78x8xbf16>
    %30 = vector.shape_cast %29 : vector<1x78x8xbf16> to vector<78x8xbf16>
    %c5 = arith.constant 5 : index
    %c0_29 = arith.constant 0 : index
    %c0_30 = arith.constant 0 : index
    %31 = vector.load %arg2[%c5, %c0_29, %c0_30] : memref<9x8x8xbf16, #tpu.memory_space<vmem>>, vector<1x8x8xbf16>
    %32 = vector.shape_cast %31 : vector<1x8x8xbf16> to vector<8x8xbf16>
    %cst_31 = arith.constant dense<0.000000e+00> : vector<78x8xf32>
    %33 = tpu.matmul %30, %32, %cst_31 {dimension_numbers = #tpu.dot_dimension_numbers<[1], [0], [0], [1], [0, 0, 1, 1], [], []>} : vector<78x8xbf16>, vector<8x8xbf16>, vector<78x8xf32> -> vector<78x8xf32>
    %34 = arith.addf %28, %33 : vector<78x8xf32>
    %c0_32 = arith.constant 0 : index
    %c20 = arith.constant 20 : index
    %c0_33 = arith.constant 0 : index
    %35 = vector.load %arg1[%c0_32, %c20, %c0_33] : memref<1x112x8xbf16, #tpu.memory_space<vmem>>, vector<1x78x8xbf16>
    %36 = vector.shape_cast %35 : vector<1x78x8xbf16> to vector<78x8xbf16>
    %c6 = arith.constant 6 : index
    %c0_34 = arith.constant 0 : index
    %c0_35 = arith.constant 0 : index
    %37 = vector.load %arg2[%c6, %c0_34, %c0_35] : memref<9x8x8xbf16, #tpu.memory_space<vmem>>, vector<1x8x8xbf16>
    %38 = vector.shape_cast %37 : vector<1x8x8xbf16> to vector<8x8xbf16>
    %cst_36 = arith.constant dense<0.000000e+00> : vector<78x8xf32>
    %39 = tpu.matmul %36, %38, %cst_36 {dimension_numbers = #tpu.dot_dimension_numbers<[1], [0], [0], [1], [0, 0, 1, 1], [], []>} : vector<78x8xbf16>, vector<8x8xbf16>, vector<78x8xf32> -> vector<78x8xf32>
    %40 = arith.addf %34, %39 : vector<78x8xf32>
    %c0_37 = arith.constant 0 : index
    %c21 = arith.constant 21 : index
    %c0_38 = arith.constant 0 : index
    %41 = vector.load %arg1[%c0_37, %c21, %c0_38] : memref<1x112x8xbf16, #tpu.memory_space<vmem>>, vector<1x78x8xbf16>
    %42 = vector.shape_cast %41 : vector<1x78x8xbf16> to vector<78x8xbf16>
    %c7 = arith.constant 7 : index
    %c0_39 = arith.constant 0 : index
    %c0_40 = arith.constant 0 : index
    %43 = vector.load %arg2[%c7, %c0_39, %c0_40] : memref<9x8x8xbf16, #tpu.memory_space<vmem>>, vector<1x8x8xbf16>
    %44 = vector.shape_cast %43 : vector<1x8x8xbf16> to vector<8x8xbf16>
    %cst_41 = arith.constant dense<0.000000e+00> : vector<78x8xf32>
    %45 = tpu.matmul %42, %44, %cst_41 {dimension_numbers = #tpu.dot_dimension_numbers<[1], [0], [0], [1], [0, 0, 1, 1], [], []>} : vector<78x8xbf16>, vector<8x8xbf16>, vector<78x8xf32> -> vector<78x8xf32>
    %46 = arith.addf %40, %45 : vector<78x8xf32>
    %c0_42 = arith.constant 0 : index
    %c22 = arith.constant 22 : index
    %c0_43 = arith.constant 0 : index
    %47 = vector.load %arg1[%c0_42, %c22, %c0_43] : memref<1x112x8xbf16, #tpu.memory_space<vmem>>, vector<1x78x8xbf16>
    %48 = vector.shape_cast %47 : vector<1x78x8xbf16> to vector<78x8xbf16>
    %c8 = arith.constant 8 : index
    %c0_44 = arith.constant 0 : index
    %c0_45 = arith.constant 0 : index
    %49 = vector.load %arg2[%c8, %c0_44, %c0_45] : memref<9x8x8xbf16, #tpu.memory_space<vmem>>, vector<1x8x8xbf16>
    %50 = vector.shape_cast %49 : vector<1x8x8xbf16> to vector<8x8xbf16>
    %cst_46 = arith.constant dense<0.000000e+00> : vector<78x8xf32>
    %51 = tpu.matmul %48, %50, %cst_46 {dimension_numbers = #tpu.dot_dimension_numbers<[1], [0], [0], [1], [0, 0, 1, 1], [], []>} : vector<78x8xbf16>, vector<8x8xbf16>, vector<78x8xf32> -> vector<78x8xf32>
    %52 = arith.addf %46, %51 : vector<78x8xf32>
    %c0_47 = arith.constant 0 : index
    %c0_48 = arith.constant 0 : index
    %53 = vector.load %arg3[%c0_47, %c0_48] : memref<1x8xf32, #tpu.memory_space<vmem>>, vector<1x8xf32>
    %54 = vector.broadcast %53 : vector<1x8xf32> to vector<78x8xf32>
    %55 = arith.addf %52, %54 : vector<78x8xf32>
    %cst_49 = arith.constant 0.000000e+00 : f32
    %56 = vector.broadcast %cst_49 : f32 to vector<78x8xf32>
    %57 = arith.maximumf %55, %56 : vector<78x8xf32>
    %58 = arith.truncf %57 : vector<78x8xf32> to vector<78x8xbf16>
    %c0_50 = arith.constant 0 : index
    %c0_51 = arith.constant 0 : index
    %59 = vector.load %arg6[%c0_50, %c0_51] : memref<112x78xbf16, #tpu.memory_space<vmem>>, vector<112x78xbf16>
    %cst_52 = arith.constant dense<0.000000e+00> : vector<112x8xf32>
    %60 = tpu.matmul %59, %58, %cst_52 {dimension_numbers = #tpu.dot_dimension_numbers<[1], [0], [0], [1], [0, 0, 1, 1], [], []>} : vector<112x78xbf16>, vector<78x8xbf16>, vector<112x8xf32> -> vector<112x8xf32>
    %61 = arith.truncf %60 : vector<112x8xf32> to vector<112x8xbf16>
    %62 = vector.extract_strided_slice %61 {offsets = [0, 0], sizes = [78, 8], strides = [1, 1]} : vector<112x8xbf16> to vector<78x8xbf16>
    %c0_53 = arith.constant 0 : index
    %c0_54 = arith.constant 0 : index
    %c0_55 = arith.constant 0 : index
    %63 = vector.load %arg4[%c0_53, %c0_54, %c0_55] : memref<9x8x8xbf16, #tpu.memory_space<vmem>>, vector<1x8x8xbf16>
    %64 = vector.shape_cast %63 : vector<1x8x8xbf16> to vector<8x8xbf16>
    %cst_56 = arith.constant dense<0.000000e+00> : vector<78x8xf32>
    %65 = tpu.matmul %62, %64, %cst_56 {dimension_numbers = #tpu.dot_dimension_numbers<[1], [0], [0], [1], [0, 0, 1, 1], [], []>} : vector<78x8xbf16>, vector<8x8xbf16>, vector<78x8xf32> -> vector<78x8xf32>
    %66 = vector.extract_strided_slice %61 {offsets = [1, 0], sizes = [78, 8], strides = [1, 1]} : vector<112x8xbf16> to vector<78x8xbf16>
    %c1_57 = arith.constant 1 : index
    %c0_58 = arith.constant 0 : index
    %c0_59 = arith.constant 0 : index
    %67 = vector.load %arg4[%c1_57, %c0_58, %c0_59] : memref<9x8x8xbf16, #tpu.memory_space<vmem>>, vector<1x8x8xbf16>
    %68 = vector.shape_cast %67 : vector<1x8x8xbf16> to vector<8x8xbf16>
    %cst_60 = arith.constant dense<0.000000e+00> : vector<78x8xf32>
    %69 = tpu.matmul %66, %68, %cst_60 {dimension_numbers = #tpu.dot_dimension_numbers<[1], [0], [0], [1], [0, 0, 1, 1], [], []>} : vector<78x8xbf16>, vector<8x8xbf16>, vector<78x8xf32> -> vector<78x8xf32>
    %70 = arith.addf %65, %69 : vector<78x8xf32>
    %71 = vector.extract_strided_slice %61 {offsets = [2, 0], sizes = [78, 8], strides = [1, 1]} : vector<112x8xbf16> to vector<78x8xbf16>
    %c2_61 = arith.constant 2 : index
    %c0_62 = arith.constant 0 : index
    %c0_63 = arith.constant 0 : index
    %72 = vector.load %arg4[%c2_61, %c0_62, %c0_63] : memref<9x8x8xbf16, #tpu.memory_space<vmem>>, vector<1x8x8xbf16>
    %73 = vector.shape_cast %72 : vector<1x8x8xbf16> to vector<8x8xbf16>
    %cst_64 = arith.constant dense<0.000000e+00> : vector<78x8xf32>
    %74 = tpu.matmul %71, %73, %cst_64 {dimension_numbers = #tpu.dot_dimension_numbers<[1], [0], [0], [1], [0, 0, 1, 1], [], []>} : vector<78x8xbf16>, vector<8x8xbf16>, vector<78x8xf32> -> vector<78x8xf32>
    %75 = arith.addf %70, %74 : vector<78x8xf32>
    %76 = vector.extract_strided_slice %61 {offsets = [10, 0], sizes = [78, 8], strides = [1, 1]} : vector<112x8xbf16> to vector<78x8xbf16>
    %c3_65 = arith.constant 3 : index
    %c0_66 = arith.constant 0 : index
    %c0_67 = arith.constant 0 : index
    %77 = vector.load %arg4[%c3_65, %c0_66, %c0_67] : memref<9x8x8xbf16, #tpu.memory_space<vmem>>, vector<1x8x8xbf16>
    %78 = vector.shape_cast %77 : vector<1x8x8xbf16> to vector<8x8xbf16>
    %cst_68 = arith.constant dense<0.000000e+00> : vector<78x8xf32>
    %79 = tpu.matmul %76, %78, %cst_68 {dimension_numbers = #tpu.dot_dimension_numbers<[1], [0], [0], [1], [0, 0, 1, 1], [], []>} : vector<78x8xbf16>, vector<8x8xbf16>, vector<78x8xf32> -> vector<78x8xf32>
    %80 = arith.addf %75, %79 : vector<78x8xf32>
    %81 = vector.extract_strided_slice %61 {offsets = [11, 0], sizes = [78, 8], strides = [1, 1]} : vector<112x8xbf16> to vector<78x8xbf16>
    %c4_69 = arith.constant 4 : index
    %c0_70 = arith.constant 0 : index
    %c0_71 = arith.constant 0 : index
    %82 = vector.load %arg4[%c4_69, %c0_70, %c0_71] : memref<9x8x8xbf16, #tpu.memory_space<vmem>>, vector<1x8x8xbf16>
    %83 = vector.shape_cast %82 : vector<1x8x8xbf16> to vector<8x8xbf16>
    %cst_72 = arith.constant dense<0.000000e+00> : vector<78x8xf32>
    %84 = tpu.matmul %81, %83, %cst_72 {dimension_numbers = #tpu.dot_dimension_numbers<[1], [0], [0], [1], [0, 0, 1, 1], [], []>} : vector<78x8xbf16>, vector<8x8xbf16>, vector<78x8xf32> -> vector<78x8xf32>
    %85 = arith.addf %80, %84 : vector<78x8xf32>
    %86 = vector.extract_strided_slice %61 {offsets = [12, 0], sizes = [78, 8], strides = [1, 1]} : vector<112x8xbf16> to vector<78x8xbf16>
    %c5_73 = arith.constant 5 : index
    %c0_74 = arith.constant 0 : index
    %c0_75 = arith.constant 0 : index
    %87 = vector.load %arg4[%c5_73, %c0_74, %c0_75] : memref<9x8x8xbf16, #tpu.memory_space<vmem>>, vector<1x8x8xbf16>
    %88 = vector.shape_cast %87 : vector<1x8x8xbf16> to vector<8x8xbf16>
    %cst_76 = arith.constant dense<0.000000e+00> : vector<78x8xf32>
    %89 = tpu.matmul %86, %88, %cst_76 {dimension_numbers = #tpu.dot_dimension_numbers<[1], [0], [0], [1], [0, 0, 1, 1], [], []>} : vector<78x8xbf16>, vector<8x8xbf16>, vector<78x8xf32> -> vector<78x8xf32>
    %90 = arith.addf %85, %89 : vector<78x8xf32>
    %91 = vector.extract_strided_slice %61 {offsets = [20, 0], sizes = [78, 8], strides = [1, 1]} : vector<112x8xbf16> to vector<78x8xbf16>
    %c6_77 = arith.constant 6 : index
    %c0_78 = arith.constant 0 : index
    %c0_79 = arith.constant 0 : index
    %92 = vector.load %arg4[%c6_77, %c0_78, %c0_79] : memref<9x8x8xbf16, #tpu.memory_space<vmem>>, vector<1x8x8xbf16>
    %93 = vector.shape_cast %92 : vector<1x8x8xbf16> to vector<8x8xbf16>
    %cst_80 = arith.constant dense<0.000000e+00> : vector<78x8xf32>
    %94 = tpu.matmul %91, %93, %cst_80 {dimension_numbers = #tpu.dot_dimension_numbers<[1], [0], [0], [1], [0, 0, 1, 1], [], []>} : vector<78x8xbf16>, vector<8x8xbf16>, vector<78x8xf32> -> vector<78x8xf32>
    %95 = arith.addf %90, %94 : vector<78x8xf32>
    %96 = vector.extract_strided_slice %61 {offsets = [21, 0], sizes = [78, 8], strides = [1, 1]} : vector<112x8xbf16> to vector<78x8xbf16>
    %c7_81 = arith.constant 7 : index
    %c0_82 = arith.constant 0 : index
    %c0_83 = arith.constant 0 : index
    %97 = vector.load %arg4[%c7_81, %c0_82, %c0_83] : memref<9x8x8xbf16, #tpu.memory_space<vmem>>, vector<1x8x8xbf16>
    %98 = vector.shape_cast %97 : vector<1x8x8xbf16> to vector<8x8xbf16>
    %cst_84 = arith.constant dense<0.000000e+00> : vector<78x8xf32>
    %99 = tpu.matmul %96, %98, %cst_84 {dimension_numbers = #tpu.dot_dimension_numbers<[1], [0], [0], [1], [0, 0, 1, 1], [], []>} : vector<78x8xbf16>, vector<8x8xbf16>, vector<78x8xf32> -> vector<78x8xf32>
    %100 = arith.addf %95, %99 : vector<78x8xf32>
    %101 = vector.extract_strided_slice %61 {offsets = [22, 0], sizes = [78, 8], strides = [1, 1]} : vector<112x8xbf16> to vector<78x8xbf16>
    %c8_85 = arith.constant 8 : index
    %c0_86 = arith.constant 0 : index
    %c0_87 = arith.constant 0 : index
    %102 = vector.load %arg4[%c8_85, %c0_86, %c0_87] : memref<9x8x8xbf16, #tpu.memory_space<vmem>>, vector<1x8x8xbf16>
    %103 = vector.shape_cast %102 : vector<1x8x8xbf16> to vector<8x8xbf16>
    %cst_88 = arith.constant dense<0.000000e+00> : vector<78x8xf32>
    %104 = tpu.matmul %101, %103, %cst_88 {dimension_numbers = #tpu.dot_dimension_numbers<[1], [0], [0], [1], [0, 0, 1, 1], [], []>} : vector<78x8xbf16>, vector<8x8xbf16>, vector<78x8xf32> -> vector<78x8xf32>
    %105 = arith.addf %100, %104 : vector<78x8xf32>
    %c0_89 = arith.constant 0 : index
    %c0_90 = arith.constant 0 : index
    %106 = vector.load %arg5[%c0_89, %c0_90] : memref<1x8xf32, #tpu.memory_space<vmem>>, vector<1x8xf32>
    %107 = vector.broadcast %106 : vector<1x8xf32> to vector<78x8xf32>
    %108 = arith.addf %105, %107 : vector<78x8xf32>
    %109 = arith.truncf %108 : vector<78x8xf32> to vector<78x8xbf16>
    %c0_91 = arith.constant 0 : index
    %c0_92 = arith.constant 0 : index
    %110 = vector.load %arg7[%c0_91, %c0_92] : memref<112x78xbf16, #tpu.memory_space<vmem>>, vector<112x78xbf16>
    %cst_93 = arith.constant dense<0.000000e+00> : vector<112x8xf32>
    %111 = tpu.matmul %110, %109, %cst_93 {dimension_numbers = #tpu.dot_dimension_numbers<[1], [0], [0], [1], [0, 0, 1, 1], [], []>} : vector<112x78xbf16>, vector<78x8xbf16>, vector<112x8xf32> -> vector<112x8xf32>
    %c0_94 = arith.constant 0 : index
    %c0_95 = arith.constant 0 : index
    %c0_96 = arith.constant 0 : index
    %112 = vector.load %arg1[%c0_94, %c0_95, %c0_96] : memref<1x112x8xbf16, #tpu.memory_space<vmem>>, vector<1x112x8xbf16>
    %113 = vector.shape_cast %112 : vector<1x112x8xbf16> to vector<112x8xbf16>
    %114 = arith.extf %113 : vector<112x8xbf16> to vector<112x8xf32>
    %115 = arith.addf %111, %114 : vector<112x8xf32>
    %cst_97 = arith.constant 0.000000e+00 : f32
    %116 = vector.broadcast %cst_97 : f32 to vector<112x8xf32>
    %117 = arith.maximumf %115, %116 : vector<112x8xf32>
    %118 = arith.truncf %117 : vector<112x8xf32> to vector<112x8xbf16>
    %c0_98 = arith.constant 0 : index
    %c0_99 = arith.constant 0 : index
    %c0_100 = arith.constant 0 : index
    %119 = vector.load %arg8[%c0_98, %c0_99, %c0_100] : memref<1x112x8xbf16, #tpu.memory_space<vmem>>, vector<1x112x8xbf16>
    %120 = vector.shape_cast %119 : vector<1x112x8xbf16> to vector<112x8xbf16>
    %121 = vector.shape_cast %118 : vector<112x8xbf16> to vector<1x112x8xbf16>
    tpu.vector_store %arg8[%c0_98, %c0_99, %c0_100], %121 {strides = array<i32>} : memref<1x112x8xbf16, #tpu.memory_space<vmem>>, vector<1x112x8xbf16>,
    return
  }
  func.func @transform_0(%arg0: i32) -> (i32, i32, i32) {
    %c0_i32 = arith.constant 0 : i32
    %c0_i32_0 = arith.constant 0 : i32
    %c0_i32_1 = arith.constant 0 : i32
    return %arg0, %c0_i32, %c0_i32_0 : i32, i32, i32
  }
  func.func @transform_1(%arg0: i32) -> (i32, i32, i32) {
    %c0_i32 = arith.constant 0 : i32
    %c0_i32_0 = arith.constant 0 : i32
    %c0_i32_1 = arith.constant 0 : i32
    %c0_i32_2 = arith.constant 0 : i32
    return %c0_i32, %c0_i32_0, %c0_i32_1 : i32, i32, i32
  }
  func.func @transform_2(%arg0: i32) -> (i32, i32) {
    %c0_i32 = arith.constant 0 : i32
    %c0_i32_0 = arith.constant 0 : i32
    %c0_i32_1 = arith.constant 0 : i32
    return %c0_i32, %c0_i32_0 : i32, i32
  }
  func.func @transform_3(%arg0: i32) -> (i32, i32, i32) {
    %c0_i32 = arith.constant 0 : i32
    %c0_i32_0 = arith.constant 0 : i32
    %c0_i32_1 = arith.constant 0 : i32
    %c0_i32_2 = arith.constant 0 : i32
    return %c0_i32, %c0_i32_0, %c0_i32_1 : i32, i32, i32
  }
  func.func @transform_4(%arg0: i32) -> (i32, i32) {
    %c0_i32 = arith.constant 0 : i32
    %c0_i32_0 = arith.constant 0 : i32
    %c0_i32_1 = arith.constant 0 : i32
    return %c0_i32, %c0_i32_0 : i32, i32
  }
  func.func @transform_5(%arg0: i32) -> (i32, i32) {
    %c0_i32 = arith.constant 0 : i32
    %c0_i32_0 = arith.constant 0 : i32
    %c0_i32_1 = arith.constant 0 : i32
    return %c0_i32, %c0_i32_0 : i32, i32
  }
  func.func @transform_6(%arg0: i32) -> (i32, i32) {
    %c0_i32 = arith.constant 0 : i32
    %c0_i32_0 = arith.constant 0 : i32
    %c0_i32_1 = arith.constant 0 : i32
    return %c0_i32, %c0_i32_0 : i32, i32
  }
  func.func @transform_7(%arg0: i32) -> (i32, i32, i32) {
    %c0_i32 = arith.constant 0 : i32
    %c0_i32_0 = arith.constant 0 : i32
    %c0_i32_1 = arith.constant 0 : i32
    return %arg0, %c0_i32, %c0_i32_0 : i32, i32, i32
  }
}

module attributes {stable_mosaic.version = 11 : i64} {
  func.func @_basic_block_kernel(%arg0: i32, %arg1: memref<1x48x16xbf16, #tpu.memory_space<vmem>>, %arg2: memref<9x16x16xbf16, #tpu.memory_space<vmem>>, %arg3: memref<1x16xf32, #tpu.memory_space<vmem>>, %arg4: memref<9x16x16xbf16, #tpu.memory_space<vmem>>, %arg5: memref<1x16xf32, #tpu.memory_space<vmem>>, %arg6: memref<48x22xbf16, #tpu.memory_space<vmem>>, %arg7: memref<48x22xbf16, #tpu.memory_space<vmem>>, %arg8: memref<1x48x16xbf16, #tpu.memory_space<vmem>>) attributes {dimension_semantics = [#tpu.dimension_semantics<parallel>], iteration_bounds = array<i64: 2>, scalar_prefetch = 0 : i64, scratch_operands = 0 : i64, tpu.core_type = #tpu.core_type<tc>, window_params = [{transform_indices = @transform_0, window_bounds = array<i64: 1, 48, 16>}, {pipeline_mode = #tpu.pipeline_mode<synchronous>, transform_indices = @transform_1, window_bounds = array<i64: 9, 16, 16>}, {pipeline_mode = #tpu.pipeline_mode<synchronous>, transform_indices = @transform_2, window_bounds = array<i64: 1, 16>}, {pipeline_mode = #tpu.pipeline_mode<synchronous>, transform_indices = @transform_3, window_bounds = array<i64: 9, 16, 16>}, {pipeline_mode = #tpu.pipeline_mode<synchronous>, transform_indices = @transform_4, window_bounds = array<i64: 1, 16>}, {pipeline_mode = #tpu.pipeline_mode<synchronous>, transform_indices = @transform_5, window_bounds = array<i64: 48, 22>}, {pipeline_mode = #tpu.pipeline_mode<synchronous>, transform_indices = @transform_6, window_bounds = array<i64: 48, 22>}, {transform_indices = @transform_7, window_bounds = array<i64: 1, 48, 16>}]} {
    %c0 = arith.constant 0 : index
    %c0_0 = arith.constant 0 : index
    %c0_1 = arith.constant 0 : index
    %0 = vector.load %arg1[%c0, %c0_0, %c0_1] : memref<1x48x16xbf16, #tpu.memory_space<vmem>>, vector<1x22x16xbf16>
    %1 = vector.shape_cast %0 : vector<1x22x16xbf16> to vector<22x16xbf16>
    %c0_2 = arith.constant 0 : index
    %c0_3 = arith.constant 0 : index
    %c0_4 = arith.constant 0 : index
    %2 = vector.load %arg2[%c0_2, %c0_3, %c0_4] : memref<9x16x16xbf16, #tpu.memory_space<vmem>>, vector<1x16x16xbf16>
    %3 = vector.shape_cast %2 : vector<1x16x16xbf16> to vector<16x16xbf16>
    %cst = arith.constant dense<0.000000e+00> : vector<22x16xf32>
    %4 = tpu.matmul %1, %3, %cst {dimension_numbers = #tpu.dot_dimension_numbers<[1], [0], [0], [1], [0, 0, 1, 1], [], []>} : vector<22x16xbf16>, vector<16x16xbf16>, vector<22x16xf32> -> vector<22x16xf32>
    %c0_5 = arith.constant 0 : index
    %c1 = arith.constant 1 : index
    %c0_6 = arith.constant 0 : index
    %5 = vector.load %arg1[%c0_5, %c1, %c0_6] : memref<1x48x16xbf16, #tpu.memory_space<vmem>>, vector<1x22x16xbf16>
    %6 = vector.shape_cast %5 : vector<1x22x16xbf16> to vector<22x16xbf16>
    %c1_7 = arith.constant 1 : index
    %c0_8 = arith.constant 0 : index
    %c0_9 = arith.constant 0 : index
    %7 = vector.load %arg2[%c1_7, %c0_8, %c0_9] : memref<9x16x16xbf16, #tpu.memory_space<vmem>>, vector<1x16x16xbf16>
    %8 = vector.shape_cast %7 : vector<1x16x16xbf16> to vector<16x16xbf16>
    %cst_10 = arith.constant dense<0.000000e+00> : vector<22x16xf32>
    %9 = tpu.matmul %6, %8, %cst_10 {dimension_numbers = #tpu.dot_dimension_numbers<[1], [0], [0], [1], [0, 0, 1, 1], [], []>} : vector<22x16xbf16>, vector<16x16xbf16>, vector<22x16xf32> -> vector<22x16xf32>
    %10 = arith.addf %4, %9 : vector<22x16xf32>
    %c0_11 = arith.constant 0 : index
    %c2 = arith.constant 2 : index
    %c0_12 = arith.constant 0 : index
    %11 = vector.load %arg1[%c0_11, %c2, %c0_12] : memref<1x48x16xbf16, #tpu.memory_space<vmem>>, vector<1x22x16xbf16>
    %12 = vector.shape_cast %11 : vector<1x22x16xbf16> to vector<22x16xbf16>
    %c2_13 = arith.constant 2 : index
    %c0_14 = arith.constant 0 : index
    %c0_15 = arith.constant 0 : index
    %13 = vector.load %arg2[%c2_13, %c0_14, %c0_15] : memref<9x16x16xbf16, #tpu.memory_space<vmem>>, vector<1x16x16xbf16>
    %14 = vector.shape_cast %13 : vector<1x16x16xbf16> to vector<16x16xbf16>
    %cst_16 = arith.constant dense<0.000000e+00> : vector<22x16xf32>
    %15 = tpu.matmul %12, %14, %cst_16 {dimension_numbers = #tpu.dot_dimension_numbers<[1], [0], [0], [1], [0, 0, 1, 1], [], []>} : vector<22x16xbf16>, vector<16x16xbf16>, vector<22x16xf32> -> vector<22x16xf32>
    %16 = arith.addf %10, %15 : vector<22x16xf32>
    %c0_17 = arith.constant 0 : index
    %c6 = arith.constant 6 : index
    %c0_18 = arith.constant 0 : index
    %17 = vector.load %arg1[%c0_17, %c6, %c0_18] : memref<1x48x16xbf16, #tpu.memory_space<vmem>>, vector<1x22x16xbf16>
    %18 = vector.shape_cast %17 : vector<1x22x16xbf16> to vector<22x16xbf16>
    %c3 = arith.constant 3 : index
    %c0_19 = arith.constant 0 : index
    %c0_20 = arith.constant 0 : index
    %19 = vector.load %arg2[%c3, %c0_19, %c0_20] : memref<9x16x16xbf16, #tpu.memory_space<vmem>>, vector<1x16x16xbf16>
    %20 = vector.shape_cast %19 : vector<1x16x16xbf16> to vector<16x16xbf16>
    %cst_21 = arith.constant dense<0.000000e+00> : vector<22x16xf32>
    %21 = tpu.matmul %18, %20, %cst_21 {dimension_numbers = #tpu.dot_dimension_numbers<[1], [0], [0], [1], [0, 0, 1, 1], [], []>} : vector<22x16xbf16>, vector<16x16xbf16>, vector<22x16xf32> -> vector<22x16xf32>
    %22 = arith.addf %16, %21 : vector<22x16xf32>
    %c0_22 = arith.constant 0 : index
    %c7 = arith.constant 7 : index
    %c0_23 = arith.constant 0 : index
    %23 = vector.load %arg1[%c0_22, %c7, %c0_23] : memref<1x48x16xbf16, #tpu.memory_space<vmem>>, vector<1x22x16xbf16>
    %24 = vector.shape_cast %23 : vector<1x22x16xbf16> to vector<22x16xbf16>
    %c4 = arith.constant 4 : index
    %c0_24 = arith.constant 0 : index
    %c0_25 = arith.constant 0 : index
    %25 = vector.load %arg2[%c4, %c0_24, %c0_25] : memref<9x16x16xbf16, #tpu.memory_space<vmem>>, vector<1x16x16xbf16>
    %26 = vector.shape_cast %25 : vector<1x16x16xbf16> to vector<16x16xbf16>
    %cst_26 = arith.constant dense<0.000000e+00> : vector<22x16xf32>
    %27 = tpu.matmul %24, %26, %cst_26 {dimension_numbers = #tpu.dot_dimension_numbers<[1], [0], [0], [1], [0, 0, 1, 1], [], []>} : vector<22x16xbf16>, vector<16x16xbf16>, vector<22x16xf32> -> vector<22x16xf32>
    %28 = arith.addf %22, %27 : vector<22x16xf32>
    %c0_27 = arith.constant 0 : index
    %c8 = arith.constant 8 : index
    %c0_28 = arith.constant 0 : index
    %29 = vector.load %arg1[%c0_27, %c8, %c0_28] : memref<1x48x16xbf16, #tpu.memory_space<vmem>>, vector<1x22x16xbf16>
    %30 = vector.shape_cast %29 : vector<1x22x16xbf16> to vector<22x16xbf16>
    %c5 = arith.constant 5 : index
    %c0_29 = arith.constant 0 : index
    %c0_30 = arith.constant 0 : index
    %31 = vector.load %arg2[%c5, %c0_29, %c0_30] : memref<9x16x16xbf16, #tpu.memory_space<vmem>>, vector<1x16x16xbf16>
    %32 = vector.shape_cast %31 : vector<1x16x16xbf16> to vector<16x16xbf16>
    %cst_31 = arith.constant dense<0.000000e+00> : vector<22x16xf32>
    %33 = tpu.matmul %30, %32, %cst_31 {dimension_numbers = #tpu.dot_dimension_numbers<[1], [0], [0], [1], [0, 0, 1, 1], [], []>} : vector<22x16xbf16>, vector<16x16xbf16>, vector<22x16xf32> -> vector<22x16xf32>
    %34 = arith.addf %28, %33 : vector<22x16xf32>
    %c0_32 = arith.constant 0 : index
    %c12 = arith.constant 12 : index
    %c0_33 = arith.constant 0 : index
    %35 = vector.load %arg1[%c0_32, %c12, %c0_33] : memref<1x48x16xbf16, #tpu.memory_space<vmem>>, vector<1x22x16xbf16>
    %36 = vector.shape_cast %35 : vector<1x22x16xbf16> to vector<22x16xbf16>
    %c6_34 = arith.constant 6 : index
    %c0_35 = arith.constant 0 : index
    %c0_36 = arith.constant 0 : index
    %37 = vector.load %arg2[%c6_34, %c0_35, %c0_36] : memref<9x16x16xbf16, #tpu.memory_space<vmem>>, vector<1x16x16xbf16>
    %38 = vector.shape_cast %37 : vector<1x16x16xbf16> to vector<16x16xbf16>
    %cst_37 = arith.constant dense<0.000000e+00> : vector<22x16xf32>
    %39 = tpu.matmul %36, %38, %cst_37 {dimension_numbers = #tpu.dot_dimension_numbers<[1], [0], [0], [1], [0, 0, 1, 1], [], []>} : vector<22x16xbf16>, vector<16x16xbf16>, vector<22x16xf32> -> vector<22x16xf32>
    %40 = arith.addf %34, %39 : vector<22x16xf32>
    %c0_38 = arith.constant 0 : index
    %c13 = arith.constant 13 : index
    %c0_39 = arith.constant 0 : index
    %41 = vector.load %arg1[%c0_38, %c13, %c0_39] : memref<1x48x16xbf16, #tpu.memory_space<vmem>>, vector<1x22x16xbf16>
    %42 = vector.shape_cast %41 : vector<1x22x16xbf16> to vector<22x16xbf16>
    %c7_40 = arith.constant 7 : index
    %c0_41 = arith.constant 0 : index
    %c0_42 = arith.constant 0 : index
    %43 = vector.load %arg2[%c7_40, %c0_41, %c0_42] : memref<9x16x16xbf16, #tpu.memory_space<vmem>>, vector<1x16x16xbf16>
    %44 = vector.shape_cast %43 : vector<1x16x16xbf16> to vector<16x16xbf16>
    %cst_43 = arith.constant dense<0.000000e+00> : vector<22x16xf32>
    %45 = tpu.matmul %42, %44, %cst_43 {dimension_numbers = #tpu.dot_dimension_numbers<[1], [0], [0], [1], [0, 0, 1, 1], [], []>} : vector<22x16xbf16>, vector<16x16xbf16>, vector<22x16xf32> -> vector<22x16xf32>
    %46 = arith.addf %40, %45 : vector<22x16xf32>
    %c0_44 = arith.constant 0 : index
    %c14 = arith.constant 14 : index
    %c0_45 = arith.constant 0 : index
    %47 = vector.load %arg1[%c0_44, %c14, %c0_45] : memref<1x48x16xbf16, #tpu.memory_space<vmem>>, vector<1x22x16xbf16>
    %48 = vector.shape_cast %47 : vector<1x22x16xbf16> to vector<22x16xbf16>
    %c8_46 = arith.constant 8 : index
    %c0_47 = arith.constant 0 : index
    %c0_48 = arith.constant 0 : index
    %49 = vector.load %arg2[%c8_46, %c0_47, %c0_48] : memref<9x16x16xbf16, #tpu.memory_space<vmem>>, vector<1x16x16xbf16>
    %50 = vector.shape_cast %49 : vector<1x16x16xbf16> to vector<16x16xbf16>
    %cst_49 = arith.constant dense<0.000000e+00> : vector<22x16xf32>
    %51 = tpu.matmul %48, %50, %cst_49 {dimension_numbers = #tpu.dot_dimension_numbers<[1], [0], [0], [1], [0, 0, 1, 1], [], []>} : vector<22x16xbf16>, vector<16x16xbf16>, vector<22x16xf32> -> vector<22x16xf32>
    %52 = arith.addf %46, %51 : vector<22x16xf32>
    %c0_50 = arith.constant 0 : index
    %c0_51 = arith.constant 0 : index
    %53 = vector.load %arg3[%c0_50, %c0_51] : memref<1x16xf32, #tpu.memory_space<vmem>>, vector<1x16xf32>
    %54 = vector.broadcast %53 : vector<1x16xf32> to vector<22x16xf32>
    %55 = arith.addf %52, %54 : vector<22x16xf32>
    %cst_52 = arith.constant 0.000000e+00 : f32
    %56 = vector.broadcast %cst_52 : f32 to vector<22x16xf32>
    %57 = arith.maximumf %55, %56 : vector<22x16xf32>
    %58 = arith.truncf %57 : vector<22x16xf32> to vector<22x16xbf16>
    %c0_53 = arith.constant 0 : index
    %c0_54 = arith.constant 0 : index
    %59 = vector.load %arg6[%c0_53, %c0_54] : memref<48x22xbf16, #tpu.memory_space<vmem>>, vector<48x22xbf16>
    %cst_55 = arith.constant dense<0.000000e+00> : vector<48x16xf32>
    %60 = tpu.matmul %59, %58, %cst_55 {dimension_numbers = #tpu.dot_dimension_numbers<[1], [0], [0], [1], [0, 0, 1, 1], [], []>} : vector<48x22xbf16>, vector<22x16xbf16>, vector<48x16xf32> -> vector<48x16xf32>
    %61 = arith.truncf %60 : vector<48x16xf32> to vector<48x16xbf16>
    %62 = vector.extract_strided_slice %61 {offsets = [0, 0], sizes = [22, 16], strides = [1, 1]} : vector<48x16xbf16> to vector<22x16xbf16>
    %c0_56 = arith.constant 0 : index
    %c0_57 = arith.constant 0 : index
    %c0_58 = arith.constant 0 : index
    %63 = vector.load %arg4[%c0_56, %c0_57, %c0_58] : memref<9x16x16xbf16, #tpu.memory_space<vmem>>, vector<1x16x16xbf16>
    %64 = vector.shape_cast %63 : vector<1x16x16xbf16> to vector<16x16xbf16>
    %cst_59 = arith.constant dense<0.000000e+00> : vector<22x16xf32>
    %65 = tpu.matmul %62, %64, %cst_59 {dimension_numbers = #tpu.dot_dimension_numbers<[1], [0], [0], [1], [0, 0, 1, 1], [], []>} : vector<22x16xbf16>, vector<16x16xbf16>, vector<22x16xf32> -> vector<22x16xf32>
    %66 = vector.extract_strided_slice %61 {offsets = [1, 0], sizes = [22, 16], strides = [1, 1]} : vector<48x16xbf16> to vector<22x16xbf16>
    %c1_60 = arith.constant 1 : index
    %c0_61 = arith.constant 0 : index
    %c0_62 = arith.constant 0 : index
    %67 = vector.load %arg4[%c1_60, %c0_61, %c0_62] : memref<9x16x16xbf16, #tpu.memory_space<vmem>>, vector<1x16x16xbf16>
    %68 = vector.shape_cast %67 : vector<1x16x16xbf16> to vector<16x16xbf16>
    %cst_63 = arith.constant dense<0.000000e+00> : vector<22x16xf32>
    %69 = tpu.matmul %66, %68, %cst_63 {dimension_numbers = #tpu.dot_dimension_numbers<[1], [0], [0], [1], [0, 0, 1, 1], [], []>} : vector<22x16xbf16>, vector<16x16xbf16>, vector<22x16xf32> -> vector<22x16xf32>
    %70 = arith.addf %65, %69 : vector<22x16xf32>
    %71 = vector.extract_strided_slice %61 {offsets = [2, 0], sizes = [22, 16], strides = [1, 1]} : vector<48x16xbf16> to vector<22x16xbf16>
    %c2_64 = arith.constant 2 : index
    %c0_65 = arith.constant 0 : index
    %c0_66 = arith.constant 0 : index
    %72 = vector.load %arg4[%c2_64, %c0_65, %c0_66] : memref<9x16x16xbf16, #tpu.memory_space<vmem>>, vector<1x16x16xbf16>
    %73 = vector.shape_cast %72 : vector<1x16x16xbf16> to vector<16x16xbf16>
    %cst_67 = arith.constant dense<0.000000e+00> : vector<22x16xf32>
    %74 = tpu.matmul %71, %73, %cst_67 {dimension_numbers = #tpu.dot_dimension_numbers<[1], [0], [0], [1], [0, 0, 1, 1], [], []>} : vector<22x16xbf16>, vector<16x16xbf16>, vector<22x16xf32> -> vector<22x16xf32>
    %75 = arith.addf %70, %74 : vector<22x16xf32>
    %76 = vector.extract_strided_slice %61 {offsets = [6, 0], sizes = [22, 16], strides = [1, 1]} : vector<48x16xbf16> to vector<22x16xbf16>
    %c3_68 = arith.constant 3 : index
    %c0_69 = arith.constant 0 : index
    %c0_70 = arith.constant 0 : index
    %77 = vector.load %arg4[%c3_68, %c0_69, %c0_70] : memref<9x16x16xbf16, #tpu.memory_space<vmem>>, vector<1x16x16xbf16>
    %78 = vector.shape_cast %77 : vector<1x16x16xbf16> to vector<16x16xbf16>
    %cst_71 = arith.constant dense<0.000000e+00> : vector<22x16xf32>
    %79 = tpu.matmul %76, %78, %cst_71 {dimension_numbers = #tpu.dot_dimension_numbers<[1], [0], [0], [1], [0, 0, 1, 1], [], []>} : vector<22x16xbf16>, vector<16x16xbf16>, vector<22x16xf32> -> vector<22x16xf32>
    %80 = arith.addf %75, %79 : vector<22x16xf32>
    %81 = vector.extract_strided_slice %61 {offsets = [7, 0], sizes = [22, 16], strides = [1, 1]} : vector<48x16xbf16> to vector<22x16xbf16>
    %c4_72 = arith.constant 4 : index
    %c0_73 = arith.constant 0 : index
    %c0_74 = arith.constant 0 : index
    %82 = vector.load %arg4[%c4_72, %c0_73, %c0_74] : memref<9x16x16xbf16, #tpu.memory_space<vmem>>, vector<1x16x16xbf16>
    %83 = vector.shape_cast %82 : vector<1x16x16xbf16> to vector<16x16xbf16>
    %cst_75 = arith.constant dense<0.000000e+00> : vector<22x16xf32>
    %84 = tpu.matmul %81, %83, %cst_75 {dimension_numbers = #tpu.dot_dimension_numbers<[1], [0], [0], [1], [0, 0, 1, 1], [], []>} : vector<22x16xbf16>, vector<16x16xbf16>, vector<22x16xf32> -> vector<22x16xf32>
    %85 = arith.addf %80, %84 : vector<22x16xf32>
    %86 = vector.extract_strided_slice %61 {offsets = [8, 0], sizes = [22, 16], strides = [1, 1]} : vector<48x16xbf16> to vector<22x16xbf16>
    %c5_76 = arith.constant 5 : index
    %c0_77 = arith.constant 0 : index
    %c0_78 = arith.constant 0 : index
    %87 = vector.load %arg4[%c5_76, %c0_77, %c0_78] : memref<9x16x16xbf16, #tpu.memory_space<vmem>>, vector<1x16x16xbf16>
    %88 = vector.shape_cast %87 : vector<1x16x16xbf16> to vector<16x16xbf16>
    %cst_79 = arith.constant dense<0.000000e+00> : vector<22x16xf32>
    %89 = tpu.matmul %86, %88, %cst_79 {dimension_numbers = #tpu.dot_dimension_numbers<[1], [0], [0], [1], [0, 0, 1, 1], [], []>} : vector<22x16xbf16>, vector<16x16xbf16>, vector<22x16xf32> -> vector<22x16xf32>
    %90 = arith.addf %85, %89 : vector<22x16xf32>
    %91 = vector.extract_strided_slice %61 {offsets = [12, 0], sizes = [22, 16], strides = [1, 1]} : vector<48x16xbf16> to vector<22x16xbf16>
    %c6_80 = arith.constant 6 : index
    %c0_81 = arith.constant 0 : index
    %c0_82 = arith.constant 0 : index
    %92 = vector.load %arg4[%c6_80, %c0_81, %c0_82] : memref<9x16x16xbf16, #tpu.memory_space<vmem>>, vector<1x16x16xbf16>
    %93 = vector.shape_cast %92 : vector<1x16x16xbf16> to vector<16x16xbf16>
    %cst_83 = arith.constant dense<0.000000e+00> : vector<22x16xf32>
    %94 = tpu.matmul %91, %93, %cst_83 {dimension_numbers = #tpu.dot_dimension_numbers<[1], [0], [0], [1], [0, 0, 1, 1], [], []>} : vector<22x16xbf16>, vector<16x16xbf16>, vector<22x16xf32> -> vector<22x16xf32>
    %95 = arith.addf %90, %94 : vector<22x16xf32>
    %96 = vector.extract_strided_slice %61 {offsets = [13, 0], sizes = [22, 16], strides = [1, 1]} : vector<48x16xbf16> to vector<22x16xbf16>
    %c7_84 = arith.constant 7 : index
    %c0_85 = arith.constant 0 : index
    %c0_86 = arith.constant 0 : index
    %97 = vector.load %arg4[%c7_84, %c0_85, %c0_86] : memref<9x16x16xbf16, #tpu.memory_space<vmem>>, vector<1x16x16xbf16>
    %98 = vector.shape_cast %97 : vector<1x16x16xbf16> to vector<16x16xbf16>
    %cst_87 = arith.constant dense<0.000000e+00> : vector<22x16xf32>
    %99 = tpu.matmul %96, %98, %cst_87 {dimension_numbers = #tpu.dot_dimension_numbers<[1], [0], [0], [1], [0, 0, 1, 1], [], []>} : vector<22x16xbf16>, vector<16x16xbf16>, vector<22x16xf32> -> vector<22x16xf32>
    %100 = arith.addf %95, %99 : vector<22x16xf32>
    %101 = vector.extract_strided_slice %61 {offsets = [14, 0], sizes = [22, 16], strides = [1, 1]} : vector<48x16xbf16> to vector<22x16xbf16>
    %c8_88 = arith.constant 8 : index
    %c0_89 = arith.constant 0 : index
    %c0_90 = arith.constant 0 : index
    %102 = vector.load %arg4[%c8_88, %c0_89, %c0_90] : memref<9x16x16xbf16, #tpu.memory_space<vmem>>, vector<1x16x16xbf16>
    %103 = vector.shape_cast %102 : vector<1x16x16xbf16> to vector<16x16xbf16>
    %cst_91 = arith.constant dense<0.000000e+00> : vector<22x16xf32>
    %104 = tpu.matmul %101, %103, %cst_91 {dimension_numbers = #tpu.dot_dimension_numbers<[1], [0], [0], [1], [0, 0, 1, 1], [], []>} : vector<22x16xbf16>, vector<16x16xbf16>, vector<22x16xf32> -> vector<22x16xf32>
    %105 = arith.addf %100, %104 : vector<22x16xf32>
    %c0_92 = arith.constant 0 : index
    %c0_93 = arith.constant 0 : index
    %106 = vector.load %arg5[%c0_92, %c0_93] : memref<1x16xf32, #tpu.memory_space<vmem>>, vector<1x16xf32>
    %107 = vector.broadcast %106 : vector<1x16xf32> to vector<22x16xf32>
    %108 = arith.addf %105, %107 : vector<22x16xf32>
    %109 = arith.truncf %108 : vector<22x16xf32> to vector<22x16xbf16>
    %c0_94 = arith.constant 0 : index
    %c0_95 = arith.constant 0 : index
    %110 = vector.load %arg7[%c0_94, %c0_95] : memref<48x22xbf16, #tpu.memory_space<vmem>>, vector<48x22xbf16>
    %cst_96 = arith.constant dense<0.000000e+00> : vector<48x16xf32>
    %111 = tpu.matmul %110, %109, %cst_96 {dimension_numbers = #tpu.dot_dimension_numbers<[1], [0], [0], [1], [0, 0, 1, 1], [], []>} : vector<48x22xbf16>, vector<22x16xbf16>, vector<48x16xf32> -> vector<48x16xf32>
    %c0_97 = arith.constant 0 : index
    %c0_98 = arith.constant 0 : index
    %c0_99 = arith.constant 0 : index
    %112 = vector.load %arg1[%c0_97, %c0_98, %c0_99] : memref<1x48x16xbf16, #tpu.memory_space<vmem>>, vector<1x48x16xbf16>
    %113 = vector.shape_cast %112 : vector<1x48x16xbf16> to vector<48x16xbf16>
    %114 = arith.extf %113 : vector<48x16xbf16> to vector<48x16xf32>
    %115 = arith.addf %111, %114 : vector<48x16xf32>
    %cst_100 = arith.constant 0.000000e+00 : f32
    %116 = vector.broadcast %cst_100 : f32 to vector<48x16xf32>
    %117 = arith.maximumf %115, %116 : vector<48x16xf32>
    %118 = arith.truncf %117 : vector<48x16xf32> to vector<48x16xbf16>
    %c0_101 = arith.constant 0 : index
    %c0_102 = arith.constant 0 : index
    %c0_103 = arith.constant 0 : index
    %119 = vector.load %arg8[%c0_101, %c0_102, %c0_103] : memref<1x48x16xbf16, #tpu.memory_space<vmem>>, vector<1x48x16xbf16>
    %120 = vector.shape_cast %119 : vector<1x48x16xbf16> to vector<48x16xbf16>
    %121 = vector.shape_cast %118 : vector<48x16xbf16> to vector<1x48x16xbf16>
    tpu.vector_store %arg8[%c0_101, %c0_102, %c0_103], %121 {strides = array<i32>} : memref<1x48x16xbf16, #tpu.memory_space<vmem>>, vector<1x48x16xbf16>,
    return
  }
  func.func @transform_0(%arg0: i32) -> (i32, i32, i32) {
    %c0_i32 = arith.constant 0 : i32
    %c0_i32_0 = arith.constant 0 : i32
    %c0_i32_1 = arith.constant 0 : i32
    return %arg0, %c0_i32, %c0_i32_0 : i32, i32, i32
  }
  func.func @transform_1(%arg0: i32) -> (i32, i32, i32) {
    %c0_i32 = arith.constant 0 : i32
    %c0_i32_0 = arith.constant 0 : i32
    %c0_i32_1 = arith.constant 0 : i32
    %c0_i32_2 = arith.constant 0 : i32
    return %c0_i32, %c0_i32_0, %c0_i32_1 : i32, i32, i32
  }
  func.func @transform_2(%arg0: i32) -> (i32, i32) {
    %c0_i32 = arith.constant 0 : i32
    %c0_i32_0 = arith.constant 0 : i32
    %c0_i32_1 = arith.constant 0 : i32
    return %c0_i32, %c0_i32_0 : i32, i32
  }
  func.func @transform_3(%arg0: i32) -> (i32, i32, i32) {
    %c0_i32 = arith.constant 0 : i32
    %c0_i32_0 = arith.constant 0 : i32
    %c0_i32_1 = arith.constant 0 : i32
    %c0_i32_2 = arith.constant 0 : i32
    return %c0_i32, %c0_i32_0, %c0_i32_1 : i32, i32, i32
  }
  func.func @transform_4(%arg0: i32) -> (i32, i32) {
    %c0_i32 = arith.constant 0 : i32
    %c0_i32_0 = arith.constant 0 : i32
    %c0_i32_1 = arith.constant 0 : i32
    return %c0_i32, %c0_i32_0 : i32, i32
  }
  func.func @transform_5(%arg0: i32) -> (i32, i32) {
    %c0_i32 = arith.constant 0 : i32
    %c0_i32_0 = arith.constant 0 : i32
    %c0_i32_1 = arith.constant 0 : i32
    return %c0_i32, %c0_i32_0 : i32, i32
  }
  func.func @transform_6(%arg0: i32) -> (i32, i32) {
    %c0_i32 = arith.constant 0 : i32
    %c0_i32_0 = arith.constant 0 : i32
    %c0_i32_1 = arith.constant 0 : i32
    return %c0_i32, %c0_i32_0 : i32, i32
  }
  func.func @transform_7(%arg0: i32) -> (i32, i32, i32) {
    %c0_i32 = arith.constant 0 : i32
    %c0_i32_0 = arith.constant 0 : i32
    %c0_i32_1 = arith.constant 0 : i32
    return %arg0, %c0_i32, %c0_i32_0 : i32, i32, i32
  }
}

</mosaic_0001>

<llo_original>
// kernel: _lambda_.5
$region0: #{_lambda_.5}
  #allocation0 [shape = 'u32[]', space=smem, size = 0x4, offset = 0x4, fixed_abs, tag = 'smem constant byte address 0x4 - core index']
  #allocation1 [shape = 'u32[144,128]{1,0:T(1,128)}', space=vmem, size = 0x12000, scoped, tag = 'internal scratch']
  %s0 = inlined_call_operand.vmem [shape: bf16[2,336,64], index: 0, kind: input, shape index: {}]
  %s1 = inlined_call_operand.vmem [shape: bf16[64,8], index: 1, kind: input, shape index: {}]
  %s2 = inlined_call_operand.vmem [shape: f32[1,8], index: 2, kind: input, shape index: {}]
  %s3 = inlined_call_operand.vmem [shape: f32[336,1], index: 3, kind: input, shape index: {}]
  %s4 = inlined_call_operand.vmem [shape: bf16[112,267], index: 4, kind: input, shape index: {}]
  %s5 = inlined_call_operand.vmem [shape: bf16[2,112,8], index: 5, kind: output, shape index: {}]
  %s6 = sld [smem:[#allocation0]]
  $region53: #{_lambda_.5} parent=0
    _
  %s8 = ssub.s32 1, %s6
  %s9 = scalar_select 0, %s8, %s6
  loop: start=0, step=1, limit=4
  $region2: #{_lambda_.5} parent=0 // loop_pre_header
    _
  $region3: #{_lambda_.5} parent=0 // loop_header
    %s11 = sphi 0, %s15
    %p12 = scmp.ge.s32.totalorder %s11, 4
    %s21 = sphi 0, %s23
    %s24 = sphi 0, %s21
    %s25 = sphi 0, %s24
    %s41 = sphi 0, %s25
    %s45 = sphi 0, %s45
    %s47 = sphi 0, %s45
    %s48 = sphi 0, %s47
    %s62 = sphi 0, %s48
    %s66 = sphi 0, %s66
    %s68 = sphi 0, %s66
    %s69 = sphi 0, %s68
    %s83 = sphi 0, %s69
    %s87 = sphi 0, %s87
    %s89 = sphi 0, %s87
    %s90 = sphi 0, %s89
    %s104 = sphi 0, %s90
    %s108 = sphi 0, %s108
    %s110 = sphi 0, %s108
    %s111 = sphi 0, %s110
    %s125 = sphi 0, %s111
    %s131 = sphi 0, %s133
    %s134 = sphi 0, %s131
    %s135 = sphi 0, %s134
    %s151 = sphi 0, %s135
  $region4: #{_lambda_.5} parent=0 // loop_header_branch
    %14 = sbr.rel (%p12) target = $region8
  $region5: #{_lambda_.5} parent=0 // loop_body
    %s16 = ssub.s32 %s11, 1
    %s17 = ssub.s32 %s11, 2
    %s18 = sadd.s32 %s11, 1
    %s19 = ssub.s32 %s11, %s18
    %p20 = scmp.eq.s32.totalorder %s19, 0
    %s22 = sadd.s32 %s21, 1
    %s23 = scalar_select %p20, %s21, %s22
    %p26 = pneg %p20
    %p27 = scmp.eq.s32.totalorder %s11, 1
    %p28 = por %p26, %p27
    %p29 = scmp.ne.s32.totalorder %s21, %s24
    %p30 = scmp.eq.s32.totalorder %s11, 0
    %p31 = por %p29, %p30
    %p32 = scmp.ne.s32.totalorder %s21, %s24
    %p33 = scmp.eq.s32.totalorder %s16, 1
    %p34 = por %p32, %p33
    %p35 = scmp.ne.s32.totalorder %s24, %s25
    %p36 = scmp.eq.s32.totalorder %s16, 0
    %p37 = por %p35, %p36
    %p38 = scmp.ne.s32.totalorder %s24, %s25
    %p39 = scmp.eq.s32.totalorder %s17, 1
    %p40 = por %p38, %p39
    %p42 = scmp.ne.s32.totalorder %s25, %s41
    %p43 = scmp.eq.s32.totalorder %s17, 0
    %p44 = por %p42, %p43
    %s46 = sadd.s32 %s45, 1
    %p49 = scmp.eq.s32.totalorder %s11, 1
    %p50 = scmp.ne.s32.totalorder %s45, %s47
    %p51 = scmp.eq.s32.totalorder %s11, 0
    %p52 = por %p50, %p51
    %p53 = scmp.ne.s32.totalorder %s45, %s47
    %p54 = scmp.eq.s32.totalorder %s16, 1
    %p55 = por %p53, %p54
    %p56 = scmp.ne.s32.totalorder %s47, %s48
    %p57 = scmp.eq.s32.totalorder %s16, 0
    %p58 = por %p56, %p57
    %p59 = scmp.ne.s32.totalorder %s47, %s48
    %p60 = scmp.eq.s32.totalorder %s17, 1
    %p61 = por %p59, %p60
    %p63 = scmp.ne.s32.totalorder %s48, %s62
    %p64 = scmp.eq.s32.totalorder %s17, 0
    %p65 = por %p63, %p64
    %s67 = sadd.s32 %s66, 1
    %p70 = scmp.eq.s32.totalorder %s11, 1
    %p71 = scmp.ne.s32.totalorder %s66, %s68
    %p72 = scmp.eq.s32.totalorder %s11, 0
    %p73 = por %p71, %p72
    %p74 = scmp.ne.s32.totalorder %s66, %s68
    %p75 = scmp.eq.s32.totalorder %s16, 1
    %p76 = por %p74, %p75
    %p77 = scmp.ne.s32.totalorder %s68, %s69
    %p78 = scmp.eq.s32.totalorder %s16, 0
    %p79 = por %p77, %p78
    %p80 = scmp.ne.s32.totalorder %s68, %s69
    %p81 = scmp.eq.s32.totalorder %s17, 1
    %p82 = por %p80, %p81
    %p84 = scmp.ne.s32.totalorder %s69, %s83
    %p85 = scmp.eq.s32.totalorder %s17, 0
    %p86 = por %p84, %p85
    %s88 = sadd.s32 %s87, 1
    %p91 = scmp.eq.s32.totalorder %s11, 1
    %p92 = scmp.ne.s32.totalorder %s87, %s89
    %p93 = scmp.eq.s32.totalorder %s11, 0
    %p94 = por %p92, %p93
    %p95 = scmp.ne.s32.totalorder %s87, %s89
    %p96 = scmp.eq.s32.totalorder %s16, 1
    %p97 = por %p95, %p96
    %p98 = scmp.ne.s32.totalorder %s89, %s90
    %p99 = scmp.eq.s32.totalorder %s16, 0
    %p100 = por %p98, %p99
    %p101 = scmp.ne.s32.totalorder %s89, %s90
    %p102 = scmp.eq.s32.totalorder %s17, 1
    %p103 = por %p101, %p102
    %p105 = scmp.ne.s32.totalorder %s90, %s104
    %p106 = scmp.eq.s32.totalorder %s17, 0
    %p107 = por %p105, %p106
    %s109 = sadd.s32 %s108, 1
    %p112 = scmp.eq.s32.totalorder %s11, 1
    %p113 = scmp.ne.s32.totalorder %s108, %s110
    %p114 = scmp.eq.s32.totalorder %s11, 0
    %p115 = por %p113, %p114
    %p116 = scmp.ne.s32.totalorder %s108, %s110
    %p117 = scmp.eq.s32.totalorder %s16, 1
    %p118 = por %p116, %p117
    %p119 = scmp.ne.s32.totalorder %s110, %s111
    %p120 = scmp.eq.s32.totalorder %s16, 0
    %p121 = por %p119, %p120
    %p122 = scmp.ne.s32.totalorder %s110, %s111
    %p123 = scmp.eq.s32.totalorder %s17, 1
    %p124 = por %p122, %p123
    %p126 = scmp.ne.s32.totalorder %s111, %s125
    %p127 = scmp.eq.s32.totalorder %s17, 0
    %p128 = por %p126, %p127
    %s129 = ssub.s32 %s11, %s18
    %p130 = scmp.eq.s32.totalorder %s129, 0
    %s132 = sadd.s32 %s131, 1
    %s133 = scalar_select %p130, %s131, %s132
    %p136 = pneg %p130
    %p137 = scmp.eq.s32.totalorder %s11, 1
    %p138 = por %p136, %p137
    %p139 = scmp.ne.s32.totalorder %s131, %s134
    %p140 = scmp.eq.s32.totalorder %s11, 0
    %p141 = por %p139, %p140
    %p142 = scmp.ne.s32.totalorder %s131, %s134
    %p143 = scmp.eq.s32.totalorder %s16, 1
    %p144 = por %p142, %p143
    %p145 = scmp.ne.s32.totalorder %s134, %s135
    %p146 = scmp.eq.s32.totalorder %s16, 0
    %p147 = por %p145, %p146
    %p148 = scmp.ne.s32.totalorder %s134, %s135
    %p149 = scmp.eq.s32.totalorder %s17, 1
    %p150 = por %p148, %p149
    %p152 = scmp.ne.s32.totalorder %s135, %s151
    %p153 = scmp.eq.s32.totalorder %s17, 0
    %p154 = por %p152, %p153
    %p155 = scmp.le.s32.totalorder 1, %s11
    %p156 = scmp.lt.s32.totalorder %s11, 3
    %p157 = pnand %p155, %p156
    %p158 = pneg %p157
    // Predicated region
    $region9: #{_lambda_.5} parent=5 // pred_check
      _
    $region10: #{_lambda_.5} parent=5 // pred_check_branch
      %160 = sbr.rel (%p157) target = $region12
    $region11: #{_lambda_.5} parent=5 // pred_region
      %s161 = ssub.s32 %s11, 1
      // Predicated region
      $region13: #{_lambda_.5} parent=11 // pred_check
        %p162 = pneg %p58
      $region14: #{_lambda_.5} parent=11 // pred_check_branch
        %164 = sbr.rel (%p162) target = $region16
      $region15: #{_lambda_.5} parent=11 // pred_region
        _
      $region16: #{_lambda_.5} parent=11 // pred_fallthru
        _
      // Predicated region
      $region17: #{_lambda_.5} parent=11 // pred_check
        %p165 = pneg %p79
      $region18: #{_lambda_.5} parent=11 // pred_check_branch
        %167 = sbr.rel (%p165) target = $region20
      $region19: #{_lambda_.5} parent=11 // pred_region
        _
      $region20: #{_lambda_.5} parent=11 // pred_fallthru
        _
      // Predicated region
      $region21: #{_lambda_.5} parent=11 // pred_check
        %p168 = pneg %p100
      $region22: #{_lambda_.5} parent=11 // pred_check_branch
        %170 = sbr.rel (%p168) target = $region24
      $region23: #{_lambda_.5} parent=11 // pred_region
        _
      $region24: #{_lambda_.5} parent=11 // pred_fallthru
        _
      // Predicated region
      $region25: #{_lambda_.5} parent=11 // pred_check
        %p171 = pneg %p121
      $region26: #{_lambda_.5} parent=11 // pred_check_branch
        %173 = sbr.rel (%p171) target = $region28
      $region27: #{_lambda_.5} parent=11 // pred_region
        _
      $region28: #{_lambda_.5} parent=11 // pred_fallthru
        _
    $region12: #{_lambda_.5} parent=5 // pred_fallthru
      _
    %p174 = scmp.lt.s32.totalorder %s11, 2
    // Predicated region
    $region29: #{_lambda_.5} parent=5 // pred_check
      %p175 = pneg %p174
    $region30: #{_lambda_.5} parent=5 // pred_check_branch
      %177 = sbr.rel (%p175) target = $region32
    $region31: #{_lambda_.5} parent=5 // pred_region
      // Predicated region
      $region33: #{_lambda_.5} parent=31 // pred_check
        %p178 = pneg %p31
      $region34: #{_lambda_.5} parent=31 // pred_check_branch
        %180 = sbr.rel (%p178) target = $region36
      $region35: #{_lambda_.5} parent=31 // pred_region
        %p181 = scmp.lt.s32.totalorder %s11, 1
        %s182 = scalar_select %p181, %s11, 1
        %s183 = smul.addr %s182, 42
        %s184 = smul.addr %s183, 4
        %s185 = scalar_lea.vmem %s0, %s184
      $region36: #{_lambda_.5} parent=31 // pred_fallthru
        _
    $region32: #{_lambda_.5} parent=5 // pred_fallthru
      _
    %p186 = scmp.le.s32.totalorder 1, %s11
    %p187 = scmp.lt.s32.totalorder %s11, 3
    %p188 = pnand %p186, %p187
    %p189 = pneg %p188
    // Predicated region
    $region37: #{_lambda_.5} parent=5 // pred_check
      _
    $region38: #{_lambda_.5} parent=5 // pred_check_branch
      %191 = sbr.rel (%p188) target = $region40
    $region39: #{_lambda_.5} parent=5 // pred_region
      %s192 = ssub.s32 %s11, 1
      %p193 = scmp.lt.s32.totalorder %s16, 1
      %s194 = scalar_select %p193, %s16, 1
      %s195 = smul.addr %s194, 42
      %s196 = smul.addr %s195, 4
      %s197 = scalar_lea.vmem %s0, %s196
      %p198 = pneg %p37
      %p199 = pneg %p34
      %p200 = pneg %p58
      %p201 = pneg %p55
      %p202 = pneg %p79
      %p203 = pneg %p76
      %p204 = pneg %p100
      %p205 = pneg %p97
      %p206 = pneg %p121
      %p207 = pneg %p118
      %p208 = pneg %p147
      %p209 = pneg %p144
      %p210 = scmp.lt.s32.totalorder %s16, 1
      %s211 = scalar_select %p210, %s16, 1
      %s212 = smul.addr %s211, 14
      %s213 = smul.addr %s212, 4
      %s214 = scalar_lea.vmem %s5, %s213
      %p215 = scmp.lt.s32.totalorder %s16, 1
      %s216 = scalar_select %p215, %s16, 1
      %s217 = smul.addr %s216, 42
      %s218 = smul.addr %s217, 4
      %s219 = scalar_lea.vmem %s0, %s218
      %p220 = scmp.lt.s32.totalorder %s16, 1
      %s221 = scalar_select %p220, %s16, 1
      %s222 = smul.addr %s221, 14
      %s223 = smul.addr %s222, 4
      %s224 = scalar_lea.vmem %s5, %s223
      %v226 = vld [vmem:[%s219] sm:$0xf]
      %v227 = vld [vmem:[%s219 + $0x4] sm:$0xf]
      %v228 = vld [vmem:[%s219 + $0x8] sm:$0xf]
      %v229 = vld [vmem:[%s219 + $0xc] sm:$0xf]
      %v230 = vld [vmem:[%s219 + $0x10] sm:$0xf]
      %v231 = vld [vmem:[%s219 + $0x14] sm:$0xf]
      %v232 = vld [vmem:[%s219 + $0x18] sm:$0xf]
      %v233 = vld [vmem:[%s219 + $0x1c] sm:$0xf]
      %v234 = vld [vmem:[%s219 + $0x20] sm:$0xf]
      %v235 = vld [vmem:[%s219 + $0x24] sm:$0xf]
      %v236 = vld [vmem:[%s219 + $0x28] sm:$0xf]
      %v237 = vld [vmem:[%s219 + $0x2c] sm:$0xf]
      %v238 = vld [vmem:[%s219 + $0x30] sm:$0xf]
      %v239 = vld [vmem:[%s219 + $0x34] sm:$0xf]
      %v240 = vld [vmem:[%s219 + $0x38] sm:$0xf]
      %v241 = vld [vmem:[%s219 + $0x3c] sm:$0xf]
      %v242 = vld [vmem:[%s219 + $0x40] sm:$0xf]
      %v243 = vld [vmem:[%s219 + $0x44] sm:$0xf]
      %v244 = vld [vmem:[%s219 + $0x48] sm:$0xf]
      %v245 = vld [vmem:[%s219 + $0x4c] sm:$0xf]
      %v246 = vld [vmem:[%s219 + $0x50] sm:$0xf]
      %v247 = vld [vmem:[%s219 + $0x54] sm:$0xf]
      %v248 = vld [vmem:[%s219 + $0x58] sm:$0xf]
      %v249 = vld [vmem:[%s219 + $0x5c] sm:$0xf]
      %v250 = vld [vmem:[%s219 + $0x60] sm:$0xf]
      %v251 = vld [vmem:[%s219 + $0x64] sm:$0xf]
      %v252 = vld [vmem:[%s219 + $0x68] sm:$0xf]
      %v253 = vld [vmem:[%s219 + $0x6c] sm:$0xf]
      %v254 = vld [vmem:[%s219 + $0x70] sm:$0xf]
      %v255 = vld [vmem:[%s219 + $0x74] sm:$0xf]
      %v256 = vld [vmem:[%s219 + $0x78] sm:$0xf]
      %v257 = vld [vmem:[%s219 + $0x7c] sm:$0xf]
      %v258 = vld [vmem:[%s219 + $0x80] sm:$0xf]
      %v259 = vld [vmem:[%s219 + $0x84] sm:$0xf]
      %v260 = vld [vmem:[%s219 + $0x88] sm:$0xf]
      %v261 = vld [vmem:[%s219 + $0x8c] sm:$0xf]
      %v262 = vld [vmem:[%s219 + $0x90] sm:$0xf]
      %v263 = vld [vmem:[%s219 + $0x94] sm:$0xf]
      %v264 = vld [vmem:[%s219 + $0x98] sm:$0xf]
      %v265 = vld [vmem:[%s219 + $0x9c] sm:$0xf]
      %v266 = vld [vmem:[%s219 + $0xa0] sm:$0xf]
      %v267 = vld [vmem:[%s219 + $0xa4] sm:$0xf]
      %v268 = vld [vmem:[%s1] sm:$0xf]
      %v269 = vld [vmem:[%s1 + $0x4] sm:$0xf]
      %v270 = vld [vmem:[%s1 + $0x8] sm:$0xf]
      %v271 = vld [vmem:[%s1 + $0xc] sm:$0xf]
      %v272 = vld [vmem:[%s1 + $0x10] sm:$0xf]
      %v273 = vld [vmem:[%s1 + $0x14] sm:$0xf]
      %v274 = vld [vmem:[%s1 + $0x18] sm:$0xf]
      %v275 = vld [vmem:[%s1 + $0x1c] sm:$0xf]
      %v276 = vld [vmem:[%s2] sm:$0x1]
      %v278 = vlaneseq
      %v279 = vshrl.u32 %v278, 7
      %v280 = vsub.s32 0, %v279
      %v281 = vrot.slane %v276, %v280
      %v325 = vunpack.c.l.b16 %v226
      %v326 = vunpack.c.l.b16 %v227
      %v327 = vunpack.c.l.b16 %v228
      %v328 = vunpack.c.l.b16 %v229
      %v329 = vunpack.c.l.b16 %v230
      %v330 = vunpack.c.l.b16 %v231
      %v331 = vunpack.c.l.b16 %v232
      %v332 = vunpack.c.l.b16 %v233
      %v333 = vunpack.c.l.b16 %v234
      %v334 = vunpack.c.l.b16 %v235
      %v335 = vunpack.c.l.b16 %v236
      %v336 = vunpack.c.l.b16 %v237
      %v337 = vunpack.c.l.b16 %v238
      %v338 = vunpack.c.l.b16 %v239
      %v339 = vunpack.c.l.b16 %v240
      %v340 = vunpack.c.l.b16 %v241
      %v341 = vunpack.c.l.b16 %v242
      %v342 = vunpack.c.l.b16 %v243
      %v343 = vunpack.c.l.b16 %v244
      %v344 = vunpack.c.l.b16 %v245
      %v345 = vunpack.c.l.b16 %v246
      %v346 = vunpack.c.l.b16 %v247
      %v347 = vunpack.c.l.b16 %v248
      %v348 = vunpack.c.l.b16 %v249
      %v349 = vunpack.c.l.b16 %v250
      %v350 = vunpack.c.l.b16 %v251
      %v351 = vunpack.c.l.b16 %v252
      %v352 = vunpack.c.l.b16 %v253
      %v353 = vunpack.c.l.b16 %v254
      %v354 = vunpack.c.l.b16 %v255
      %v355 = vunpack.c.l.b16 %v256
      %v356 = vunpack.c.l.b16 %v257
      %v357 = vunpack.c.l.b16 %v258
      %v358 = vunpack.c.l.b16 %v259
      %v359 = vunpack.c.l.b16 %v260
      %v360 = vunpack.c.l.b16 %v261
      %v361 = vunpack.c.l.b16 %v262
      %v362 = vunpack.c.l.b16 %v263
      %v363 = vunpack.c.l.b16 %v264
      %v364 = vunpack.c.l.b16 %v265
      %v365 = vunpack.c.l.b16 %v266
      %v366 = vunpack.c.l.b16 %v267
      %v367 = vpack.c.b16 %v326, %v325
      %v368 = vpack.c.b16 %v328, %v327
      %v369 = vpack.c.b16 %v330, %v329
      %v370 = vpack.c.b16 %v332, %v331
      %v371 = vpack.c.b16 %v334, %v333
      %v372 = vpack.c.b16 %v336, %v335
      %v373 = vpack.c.b16 %v338, %v337
      %v374 = vpack.c.b16 %v340, %v339
      %v375 = vpack.c.b16 %v342, %v341
      %v376 = vpack.c.b16 %v344, %v343
      %v377 = vpack.c.b16 %v346, %v345
      %v378 = vpack.c.b16 %v348, %v347
      %v379 = vpack.c.b16 %v350, %v349
      %v380 = vpack.c.b16 %v352, %v351
      %v381 = vpack.c.b16 %v354, %v353
      %v382 = vpack.c.b16 %v356, %v355
      %v383 = vpack.c.b16 %v358, %v357
      %v384 = vpack.c.b16 %v360, %v359
      %v385 = vpack.c.b16 %v362, %v361
      %v386 = vpack.c.b16 %v364, %v363
      %v387 = vpack.c.b16 %v366, %v365
      %v396 = vunpack.c.l.b16 %v268
      %v397 = vunpack.c.l.b16 %v269
      %v398 = vunpack.c.l.b16 %v270
      %v399 = vunpack.c.l.b16 %v271
      %v400 = vunpack.c.l.b16 %v272
      %v401 = vunpack.c.l.b16 %v273
      %v402 = vunpack.c.l.b16 %v274
      %v403 = vunpack.c.l.b16 %v275
      %v404 = vpack.c.b16 %v397, %v396
      %v405 = vpack.c.b16 %v399, %v398
      %v406 = vpack.c.b16 %v401, %v400
      %v407 = vpack.c.b16 %v403, %v402
      %vm412 = vcmask 523264
      %v414 = vsel %vm412, %v367, 0
      %v417 = vsel %vm412, %v368, 0
      %v420 = vsel %vm412, %v369, 0
      %v423 = vsel %vm412, %v370, 0
      %v426 = vsel %vm412, %v371, 0
      %v429 = vsel %vm412, %v372, 0
      %v432 = vsel %vm412, %v373, 0
      %v435 = vsel %vm412, %v374, 0
      %v438 = vsel %vm412, %v375, 0
      %v441 = vsel %vm412, %v376, 0
      %v444 = vsel %vm412, %v377, 0
      %v447 = vsel %vm412, %v378, 0
      %v450 = vsel %vm412, %v379, 0
      %v453 = vsel %vm412, %v380, 0
      %v456 = vsel %vm412, %v381, 0
      %v459 = vsel %vm412, %v382, 0
      %v462 = vsel %vm412, %v383, 0
      %v465 = vsel %vm412, %v384, 0
      %v468 = vsel %vm412, %v385, 0
      %v471 = vsel %vm412, %v386, 0
      %v474 = vsel %vm412, %v387, 0
      %476 = vmatprep.subr.bf16.mxu0 0
      %477 = vmatpush1.bf16.msra.mxu0 %v404
      %478 = vmatprep.subr.bf16.mxu0 0
      %479 = vmatpush1.bf16.msra.mxu0 %v405
      %480 = vmatprep.subr.bf16.mxu0 0
      %481 = vmatpush1.bf16.msra.mxu0 %v406
      %482 = vmatprep.subr.bf16.mxu0 0
      %483 = vmatpush1.bf16.msra.mxu0 %v407
      %484 = vmatprep.subr.bf16.mxu0 0
      %485 = vmatpush1.bf16.msra.mxu0 0
      %486 = vmatprep.subr.bf16.mxu0 0
      %487 = vmatpush1.bf16.msra.mxu0 0
      %488 = vmatprep.subr.bf16.mxu0 0
      %489 = vmatpush1.bf16.msra.mxu0 0
      %490 = vmatprep.subr.bf16.mxu0 0
      %491 = vmatpush1.bf16.msra.mxu0 0
      %492 = vmatprep.subr.bf16.mxu0 0
      %493 = vmatpush1.bf16.msra.mxu0 0
      %494 = vmatprep.subr.bf16.mxu0 0
      %495 = vmatpush1.bf16.msra.mxu0 0
      %496 = vmatprep.subr.bf16.mxu0 0
      %497 = vmatpush1.bf16.msra.mxu0 0
      %498 = vmatprep.subr.bf16.mxu0 0
      %499 = vmatpush1.bf16.msra.mxu0 0
      %500 = vmatprep.subr.bf16.mxu0 0
      %501 = vmatpush1.bf16.msra.mxu0 0
      %502 = vmatprep.subr.bf16.mxu0 0
      %503 = vmatpush1.bf16.msra.mxu0 0
      %504 = vmatprep.subr.bf16.mxu0 0
      %505 = vmatpush1.bf16.msra.mxu0 0
      %506 = vmatprep.subr.bf16.mxu0 0
      %507 = vmatpush1.bf16.msra.mxu0 0
      %508 = vmatprep.mubr.bf16.mxu0 0
      %509 = vmatmul.mubr.bf16.gmra.mrb[0].mxu0 %v414
      %v510 = vpop.f32.mrb[0].mxu0
      %v511 = vadd.f32 %v281, %v510
      %v512 = vpop.f32.mrb[0].mxu0
      %v513 = vpop.f32.mrb[0].mxu0
      %v514 = vadd.f32 %v281, %v513
      %v515 = vpop.f32.mrb[0].mxu0
      %516 = vmatprep.mubr.bf16.mxu0 0
      %517 = vmatmul.mubr.bf16.gmra.mrb[0].mxu0 %v417
      %v518 = vpop.f32.mrb[0].mxu0
      %v519 = vadd.f32 %v281, %v518
      %v520 = vpop.f32.mrb[0].mxu0
      %v521 = vpop.f32.mrb[0].mxu0
      %v522 = vadd.f32 %v281, %v521
      %v523 = vpop.f32.mrb[0].mxu0
      %524 = vmatprep.mubr.bf16.mxu0 0
      %525 = vmatmul.mubr.bf16.gmra.mrb[0].mxu0 %v420
      %v526 = vpop.f32.mrb[0].mxu0
      %v527 = vadd.f32 %v281, %v526
      %v528 = vpop.f32.mrb[0].mxu0
      %v529 = vpop.f32.mrb[0].mxu0
      %v530 = vadd.f32 %v281, %v529
      %v531 = vpop.f32.mrb[0].mxu0
      %532 = vmatprep.mubr.bf16.mxu0 0
      %533 = vmatmul.mubr.bf16.gmra.mrb[0].mxu0 %v423
      %v534 = vpop.f32.mrb[0].mxu0
      %v535 = vadd.f32 %v281, %v534
      %v536 = vpop.f32.mrb[0].mxu0
      %v537 = vpop.f32.mrb[0].mxu0
      %v538 = vadd.f32 %v281, %v537
      %v539 = vpop.f32.mrb[0].mxu0
      %540 = vmatprep.mubr.bf16.mxu0 0
      %541 = vmatmul.mubr.bf16.gmra.mrb[0].mxu0 %v426
      %v542 = vpop.f32.mrb[0].mxu0
      %v543 = vadd.f32 %v281, %v542
      %v544 = vpop.f32.mrb[0].mxu0
      %v545 = vpop.f32.mrb[0].mxu0
      %v546 = vadd.f32 %v281, %v545
      %v547 = vpop.f32.mrb[0].mxu0
      %548 = vmatprep.mubr.bf16.mxu0 0
      %549 = vmatmul.mubr.bf16.gmra.mrb[0].mxu0 %v429
      %v550 = vpop.f32.mrb[0].mxu0
      %v551 = vadd.f32 %v281, %v550
      %v552 = vpop.f32.mrb[0].mxu0
      %v553 = vpop.f32.mrb[0].mxu0
      %v554 = vadd.f32 %v281, %v553
      %v555 = vpop.f32.mrb[0].mxu0
      %556 = vmatprep.mubr.bf16.mxu0 0
      %557 = vmatmul.mubr.bf16.gmra.mrb[0].mxu0 %v432
      %v558 = vpop.f32.mrb[0].mxu0
      %v559 = vadd.f32 %v281, %v558
      %v560 = vpop.f32.mrb[0].mxu0
      %v561 = vpop.f32.mrb[0].mxu0
      %v562 = vadd.f32 %v281, %v561
      %v563 = vpop.f32.mrb[0].mxu0
      %564 = vmatprep.mubr.bf16.mxu0 0
      %565 = vmatmul.mubr.bf16.gmra.mrb[0].mxu0 %v435
      %v566 = vpop.f32.mrb[0].mxu0
      %v567 = vadd.f32 %v281, %v566
      %v568 = vpop.f32.mrb[0].mxu0
      %v569 = vpop.f32.mrb[0].mxu0
      %v570 = vadd.f32 %v281, %v569
      %v571 = vpop.f32.mrb[0].mxu0
      %572 = vmatprep.mubr.bf16.mxu0 0
      %573 = vmatmul.mubr.bf16.gmra.mrb[0].mxu0 %v438
      %v574 = vpop.f32.mrb[0].mxu0
      %v575 = vadd.f32 %v281, %v574
      %v576 = vpop.f32.mrb[0].mxu0
      %v577 = vpop.f32.mrb[0].mxu0
      %v578 = vadd.f32 %v281, %v577
      %v579 = vpop.f32.mrb[0].mxu0
      %580 = vmatprep.mubr.bf16.mxu0 0
      %581 = vmatmul.mubr.bf16.gmra.mrb[0].mxu0 %v441
      %v582 = vpop.f32.mrb[0].mxu0
      %v583 = vadd.f32 %v281, %v582
      %v584 = vpop.f32.mrb[0].mxu0
      %v585 = vpop.f32.mrb[0].mxu0
      %v586 = vadd.f32 %v281, %v585
      %v587 = vpop.f32.mrb[0].mxu0
      %588 = vmatprep.mubr.bf16.mxu0 0
      %589 = vmatmul.mubr.bf16.gmra.mrb[0].mxu0 %v444
      %v590 = vpop.f32.mrb[0].mxu0
      %v591 = vadd.f32 %v281, %v590
      %v592 = vpop.f32.mrb[0].mxu0
      %v593 = vpop.f32.mrb[0].mxu0
      %v594 = vadd.f32 %v281, %v593
      %v595 = vpop.f32.mrb[0].mxu0
      %596 = vmatprep.mubr.bf16.mxu0 0
      %597 = vmatmul.mubr.bf16.gmra.mrb[0].mxu0 %v447
      %v598 = vpop.f32.mrb[0].mxu0
      %v599 = vadd.f32 %v281, %v598
      %v600 = vpop.f32.mrb[0].mxu0
      %v601 = vpop.f32.mrb[0].mxu0
      %v602 = vadd.f32 %v281, %v601
      %v603 = vpop.f32.mrb[0].mxu0
      %604 = vmatprep.mubr.bf16.mxu0 0
      %605 = vmatmul.mubr.bf16.gmra.mrb[0].mxu0 %v450
      %v606 = vpop.f32.mrb[0].mxu0
      %v607 = vadd.f32 %v281, %v606
      %v608 = vpop.f32.mrb[0].mxu0
      %v609 = vpop.f32.mrb[0].mxu0
      %v610 = vadd.f32 %v281, %v609
      %v611 = vpop.f32.mrb[0].mxu0
      %612 = vmatprep.mubr.bf16.mxu0 0
      %613 = vmatmul.mubr.bf16.gmra.mrb[0].mxu0 %v453
      %v614 = vpop.f32.mrb[0].mxu0
      %v615 = vadd.f32 %v281, %v614
      %v616 = vpop.f32.mrb[0].mxu0
      %v617 = vpop.f32.mrb[0].mxu0
      %v618 = vadd.f32 %v281, %v617
      %v619 = vpop.f32.mrb[0].mxu0
      %620 = vmatprep.mubr.bf16.mxu0 0
      %621 = vmatmul.mubr.bf16.gmra.mrb[0].mxu0 %v456
      %v622 = vpop.f32.mrb[0].mxu0
      %v623 = vadd.f32 %v281, %v622
      %v624 = vpop.f32.mrb[0].mxu0
      %v625 = vpop.f32.mrb[0].mxu0
      %v626 = vadd.f32 %v281, %v625
      %v627 = vpop.f32.mrb[0].mxu0
      %628 = vmatprep.mubr.bf16.mxu0 0
      %629 = vmatmul.mubr.bf16.gmra.mrb[0].mxu0 %v459
      %v630 = vpop.f32.mrb[0].mxu0
      %v631 = vadd.f32 %v281, %v630
      %v632 = vpop.f32.mrb[0].mxu0
      %v633 = vpop.f32.mrb[0].mxu0
      %v634 = vadd.f32 %v281, %v633
      %v635 = vpop.f32.mrb[0].mxu0
      %636 = vmatprep.mubr.bf16.mxu0 0
      %637 = vmatmul.mubr.bf16.gmra.mrb[0].mxu0 %v462
      %v638 = vpop.f32.mrb[0].mxu0
      %v639 = vadd.f32 %v281, %v638
      %v640 = vpop.f32.mrb[0].mxu0
      %v641 = vpop.f32.mrb[0].mxu0
      %v642 = vadd.f32 %v281, %v641
      %v643 = vpop.f32.mrb[0].mxu0
      %644 = vmatprep.mubr.bf16.mxu0 0
      %645 = vmatmul.mubr.bf16.gmra.mrb[0].mxu0 %v465
      %v646 = vpop.f32.mrb[0].mxu0
      %v647 = vadd.f32 %v281, %v646
      %v648 = vpop.f32.mrb[0].mxu0
      %v649 = vpop.f32.mrb[0].mxu0
      %v650 = vadd.f32 %v281, %v649
      %v651 = vpop.f32.mrb[0].mxu0
      %652 = vmatprep.mubr.bf16.mxu0 0
      %653 = vmatmul.mubr.bf16.gmra.mrb[0].mxu0 %v468
      %v654 = vpop.f32.mrb[0].mxu0
      %v655 = vadd.f32 %v281, %v654
      %v656 = vpop.f32.mrb[0].mxu0
      %v657 = vpop.f32.mrb[0].mxu0
      %v658 = vadd.f32 %v281, %v657
      %v659 = vpop.f32.mrb[0].mxu0
      %660 = vmatprep.mubr.bf16.mxu0 0
      %661 = vmatmul.mubr.bf16.gmra.mrb[0].mxu0 %v471
      %v662 = vpop.f32.mrb[0].mxu0
      %v663 = vadd.f32 %v281, %v662
      %v664 = vpop.f32.mrb[0].mxu0
      %v665 = vpop.f32.mrb[0].mxu0
      %v666 = vpop.f32.mrb[0].mxu0
      %667 = vmatprep.mubr.bf16.mxu0 0
      %668 = vmatmul.mubr.bf16.gmra.mrb[0].mxu0 %v474
      %v669 = vpop.f32.mrb[0].mxu0
      %v670 = vpop.f32.mrb[0].mxu0
      %v671 = vpop.f32.mrb[0].mxu0
      %v672 = vpop.f32.mrb[0].mxu0
      %673 = vdwg.mxu0
      %v674 = vmax.f32 %v511, 0.0
      %v675 = vmax.f32 %v514, 0.0
      %v676 = vmax.f32 %v519, 0.0
      %v677 = vmax.f32 %v522, 0.0
      %v678 = vmax.f32 %v527, 0.0
      %v679 = vmax.f32 %v530, 0.0
      %v680 = vmax.f32 %v535, 0.0
      %v681 = vmax.f32 %v538, 0.0
      %v682 = vmax.f32 %v543, 0.0
      %v683 = vmax.f32 %v546, 0.0
      %v684 = vmax.f32 %v551, 0.0
      %v685 = vmax.f32 %v554, 0.0
      %v686 = vmax.f32 %v559, 0.0
      %v687 = vmax.f32 %v562, 0.0
      %v688 = vmax.f32 %v567, 0.0
      %v689 = vmax.f32 %v570, 0.0
      %v690 = vmax.f32 %v575, 0.0
      %v691 = vmax.f32 %v578, 0.0
      %v692 = vmax.f32 %v583, 0.0
      %v693 = vmax.f32 %v586, 0.0
      %v694 = vmax.f32 %v591, 0.0
      %v695 = vmax.f32 %v594, 0.0
      %v696 = vmax.f32 %v599, 0.0
      %v697 = vmax.f32 %v602, 0.0
      %v698 = vmax.f32 %v607, 0.0
      %v699 = vmax.f32 %v610, 0.0
      %v700 = vmax.f32 %v615, 0.0
      %v701 = vmax.f32 %v618, 0.0
      %v702 = vmax.f32 %v623, 0.0
      %v703 = vmax.f32 %v626, 0.0
      %v704 = vmax.f32 %v631, 0.0
      %v705 = vmax.f32 %v634, 0.0
      %v706 = vmax.f32 %v639, 0.0
      %v707 = vmax.f32 %v642, 0.0
      %v708 = vmax.f32 %v647, 0.0
      %v709 = vmax.f32 %v650, 0.0
      %v710 = vmax.f32 %v655, 0.0
      %v711 = vmax.f32 %v658, 0.0
      %v712 = vmax.f32 %v663, 0.0
      %v713 = vld [vmem:[%s3] sm:$0xff]
      %v714 = vld [vmem:[%s3 + $0x8] sm:$0xff]
      %v715 = vld [vmem:[%s3 + $0x10] sm:$0xff]
      %v716 = vld [vmem:[%s3 + $0x18] sm:$0xff]
      %v717 = vld [vmem:[%s3 + $0x20] sm:$0xff]
      %v718 = vld [vmem:[%s3 + $0x28] sm:$0xff]
      %v719 = vld [vmem:[%s3 + $0x30] sm:$0xff]
      %v720 = vld [vmem:[%s3 + $0x38] sm:$0xff]
      %v721 = vld [vmem:[%s3 + $0x40] sm:$0xff]
      %v722 = vld [vmem:[%s3 + $0x48] sm:$0xff]
      %v723 = vld [vmem:[%s3 + $0x50] sm:$0xff]
      %v724 = vld [vmem:[%s3 + $0x58] sm:$0xff]
      %v725 = vld [vmem:[%s3 + $0x60] sm:$0xff]
      %v726 = vld [vmem:[%s3 + $0x68] sm:$0xff]
      %v727 = vld [vmem:[%s3 + $0x70] sm:$0xff]
      %v728 = vld [vmem:[%s3 + $0x78] sm:$0xff]
      %v729 = vld [vmem:[%s3 + $0x80] sm:$0xff]
      %v730 = vld [vmem:[%s3 + $0x88] sm:$0xff]
      %v731 = vld [vmem:[%s3 + $0x90] sm:$0xff]
      %v732 = vld [vmem:[%s3 + $0x98] sm:$0xff]
      %v733 = vld [vmem:[%s3 + $0xa0] sm:$0xff]
      %v734 = vld [vmem:[%s3 + $0xa8] sm:$0xff]
      %v735 = vld [vmem:[%s3 + $0xb0] sm:$0xff]
      %v736 = vld [vmem:[%s3 + $0xb8] sm:$0xff]
      %v737 = vld [vmem:[%s3 + $0xc0] sm:$0xff]
      %v738 = vld [vmem:[%s3 + $0xc8] sm:$0xff]
      %v739 = vld [vmem:[%s3 + $0xd0] sm:$0xff]
      %v740 = vld [vmem:[%s3 + $0xd8] sm:$0xff]
      %v741 = vld [vmem:[%s3 + $0xe0] sm:$0xff]
      %v742 = vld [vmem:[%s3 + $0xe8] sm:$0xff]
      %v743 = vld [vmem:[%s3 + $0xf0] sm:$0xff]
      %v744 = vld [vmem:[%s3 + $0xf8] sm:$0xff]
      %v745 = vld [vmem:[%s3 + $0x100] sm:$0xff]
      %v746 = vld [vmem:[%s3 + $0x108] sm:$0xff]
      %v747 = vld [vmem:[%s3 + $0x110] sm:$0xff]
      %v748 = vld [vmem:[%s3 + $0x118] sm:$0xff]
      %v749 = vld [vmem:[%s3 + $0x120] sm:$0xff]
      %v750 = vld [vmem:[%s3 + $0x128] sm:$0xff]
      %v751 = vld [vmem:[%s3 + $0x130] sm:$0xff]
      %753 = vset.pattern.permute.xlu0 0
      %754 = vperm.xlu0 %753, %v713
      %v755 = vpop.permute.xlu0 %754
      %758 = vset.pattern.permute.xlu0 0
      %759 = vperm.xlu0 %758, %v714
      %v760 = vpop.permute.xlu0 %759
      %763 = vset.pattern.permute.xlu0 0
      %764 = vperm.xlu0 %763, %v715
      %v765 = vpop.permute.xlu0 %764
      %768 = vset.pattern.permute.xlu0 0
      %769 = vperm.xlu0 %768, %v716
      %v770 = vpop.permute.xlu0 %769
      %773 = vset.pattern.permute.xlu0 0
      %774 = vperm.xlu0 %773, %v717
      %v775 = vpop.permute.xlu0 %774
      %778 = vset.pattern.permute.xlu0 0
      %779 = vperm.xlu0 %778, %v718
      %v780 = vpop.permute.xlu0 %779
      %783 = vset.pattern.permute.xlu0 0
      %784 = vperm.xlu0 %783, %v719
      %v785 = vpop.permute.xlu0 %784
      %788 = vset.pattern.permute.xlu0 0
      %789 = vperm.xlu0 %788, %v720
      %v790 = vpop.permute.xlu0 %789
      %793 = vset.pattern.permute.xlu0 0
      %794 = vperm.xlu0 %793, %v721
      %v795 = vpop.permute.xlu0 %794
      %798 = vset.pattern.permute.xlu0 0
      %799 = vperm.xlu0 %798, %v722
      %v800 = vpop.permute.xlu0 %799
      %803 = vset.pattern.permute.xlu0 0
      %804 = vperm.xlu0 %803, %v723
      %v805 = vpop.permute.xlu0 %804
      %808 = vset.pattern.permute.xlu0 0
      %809 = vperm.xlu0 %808, %v724
      %v810 = vpop.permute.xlu0 %809
      %813 = vset.pattern.permute.xlu0 0
      %814 = vperm.xlu0 %813, %v725
      %v815 = vpop.permute.xlu0 %814
      %818 = vset.pattern.permute.xlu0 0
      %819 = vperm.xlu0 %818, %v726
      %v820 = vpop.permute.xlu0 %819
      %823 = vset.pattern.permute.xlu0 0
      %824 = vperm.xlu0 %823, %v727
      %v825 = vpop.permute.xlu0 %824
      %828 = vset.pattern.permute.xlu0 0
      %829 = vperm.xlu0 %828, %v728
      %v830 = vpop.permute.xlu0 %829
      %833 = vset.pattern.permute.xlu0 0
      %834 = vperm.xlu0 %833, %v729
      %v835 = vpop.permute.xlu0 %834
      %838 = vset.pattern.permute.xlu0 0
      %839 = vperm.xlu0 %838, %v730
      %v840 = vpop.permute.xlu0 %839
      %843 = vset.pattern.permute.xlu0 0
      %844 = vperm.xlu0 %843, %v731
      %v845 = vpop.permute.xlu0 %844
      %848 = vset.pattern.permute.xlu0 0
      %849 = vperm.xlu0 %848, %v732
      %v850 = vpop.permute.xlu0 %849
      %853 = vset.pattern.permute.xlu0 0
      %854 = vperm.xlu0 %853, %v733
      %v855 = vpop.permute.xlu0 %854
      %858 = vset.pattern.permute.xlu0 0
      %859 = vperm.xlu0 %858, %v734
      %v860 = vpop.permute.xlu0 %859
      %863 = vset.pattern.permute.xlu0 0
      %864 = vperm.xlu0 %863, %v735
      %v865 = vpop.permute.xlu0 %864
      %868 = vset.pattern.permute.xlu0 0
      %869 = vperm.xlu0 %868, %v736
      %v870 = vpop.permute.xlu0 %869
      %873 = vset.pattern.permute.xlu0 0
      %874 = vperm.xlu0 %873, %v737
      %v875 = vpop.permute.xlu0 %874
      %878 = vset.pattern.permute.xlu0 0
      %879 = vperm.xlu0 %878, %v738
      %v880 = vpop.permute.xlu0 %879
      %883 = vset.pattern.permute.xlu0 0
      %884 = vperm.xlu0 %883, %v739
      %v885 = vpop.permute.xlu0 %884
      %888 = vset.pattern.permute.xlu0 0
      %889 = vperm.xlu0 %888, %v740
      %v890 = vpop.permute.xlu0 %889
      %893 = vset.pattern.permute.xlu0 0
      %894 = vperm.xlu0 %893, %v741
      %v895 = vpop.permute.xlu0 %894
      %898 = vset.pattern.permute.xlu0 0
      %899 = vperm.xlu0 %898, %v742
      %v900 = vpop.permute.xlu0 %899
      %903 = vset.pattern.permute.xlu0 0
      %904 = vperm.xlu0 %903, %v743
      %v905 = vpop.permute.xlu0 %904
      %908 = vset.pattern.permute.xlu0 0
      %909 = vperm.xlu0 %908, %v744
      %v910 = vpop.permute.xlu0 %909
      %913 = vset.pattern.permute.xlu0 0
      %914 = vperm.xlu0 %913, %v745
      %v915 = vpop.permute.xlu0 %914
      %918 = vset.pattern.permute.xlu0 0
      %919 = vperm.xlu0 %918, %v746
      %v920 = vpop.permute.xlu0 %919
      %923 = vset.pattern.permute.xlu0 0
      %924 = vperm.xlu0 %923, %v747
      %v925 = vpop.permute.xlu0 %924
      %928 = vset.pattern.permute.xlu0 0
      %929 = vperm.xlu0 %928, %v748
      %v930 = vpop.permute.xlu0 %929
      %933 = vset.pattern.permute.xlu0 0
      %934 = vperm.xlu0 %933, %v749
      %v935 = vpop.permute.xlu0 %934
      %938 = vset.pattern.permute.xlu0 0
      %939 = vperm.xlu0 %938, %v750
      %v940 = vpop.permute.xlu0 %939
      %943 = vset.pattern.permute.xlu0 0
      %944 = vperm.xlu0 %943, %v751
      %v945 = vpop.permute.xlu0 %944
      %v947 = vmul.f32 %v674, %v755
      %v948 = vmul.f32 %v675, %v760
      %v949 = vmul.f32 %v676, %v765
      %v950 = vmul.f32 %v677, %v770
      %v951 = vmul.f32 %v678, %v775
      %v952 = vmul.f32 %v679, %v780
      %v953 = vmul.f32 %v680, %v785
      %v954 = vmul.f32 %v681, %v790
      %v955 = vmul.f32 %v682, %v795
      %v956 = vmul.f32 %v683, %v800
      %v957 = vmul.f32 %v684, %v805
      %v958 = vmul.f32 %v685, %v810
      %v959 = vmul.f32 %v686, %v815
      %v960 = vmul.f32 %v687, %v820
      %v961 = vmul.f32 %v688, %v825
      %v962 = vmul.f32 %v689, %v830
      %v963 = vmul.f32 %v690, %v835
      %v964 = vmul.f32 %v691, %v840
      %v965 = vmul.f32 %v692, %v845
      %v966 = vmul.f32 %v693, %v850
      %v967 = vmul.f32 %v694, %v855
      %v968 = vmul.f32 %v695, %v860
      %v969 = vmul.f32 %v696, %v865
      %v970 = vmul.f32 %v697, %v870
      %v971 = vmul.f32 %v698, %v875
      %v972 = vmul.f32 %v699, %v880
      %v973 = vmul.f32 %v700, %v885
      %v974 = vmul.f32 %v701, %v890
      %v975 = vmul.f32 %v702, %v895
      %v976 = vmul.f32 %v703, %v900
      %v977 = vmul.f32 %v704, %v905
      %v978 = vmul.f32 %v705, %v910
      %v979 = vmul.f32 %v706, %v915
      %v980 = vmul.f32 %v707, %v920
      %v981 = vmul.f32 %v708, %v925
      %v982 = vmul.f32 %v709, %v930
      %v983 = vmul.f32 %v710, %v935
      %v984 = vmul.f32 %v711, %v940
      %v985 = vmul.f32 %v712, %v945
      %vm1020 = vcmask 1046528
      %v1021 = vrot.slane %v947, 1
      %v1022 = vrot.slane %v948, 1
      %v1023 = vsel %vm1020, %v1021, %v1022
      %v1024 = vrot.slane %v949, 1
      %v1025 = vsel %vm1020, %v1022, %v1024
      %v1026 = vrot.slane %v950, 1
      %v1027 = vsel %vm1020, %v1024, %v1026
      %v1028 = vrot.slane %v951, 1
      %v1029 = vsel %vm1020, %v1026, %v1028
      %v1030 = vrot.slane %v952, 1
      %v1031 = vsel %vm1020, %v1028, %v1030
      %v1032 = vrot.slane %v953, 1
      %v1033 = vsel %vm1020, %v1030, %v1032
      %v1034 = vrot.slane %v954, 1
      %v1035 = vsel %vm1020, %v1032, %v1034
      %v1036 = vrot.slane %v955, 1
      %v1037 = vsel %vm1020, %v1034, %v1036
      %v1038 = vrot.slane %v956, 1
      %v1039 = vsel %vm1020, %v1036, %v1038
      %v1040 = vrot.slane %v957, 1
      %v1041 = vsel %vm1020, %v1038, %v1040
      %v1042 = vrot.slane %v958, 1
      %v1043 = vsel %vm1020, %v1040, %v1042
      %v1044 = vrot.slane %v959, 1
      %v1045 = vsel %vm1020, %v1042, %v1044
      %v1046 = vrot.slane %v960, 1
      %v1047 = vsel %vm1020, %v1044, %v1046
      %v1048 = vrot.slane %v961, 1
      %v1049 = vsel %vm1020, %v1046, %v1048
      %v1050 = vrot.slane %v962, 1
      %v1051 = vsel %vm1020, %v1048, %v1050
      %v1052 = vrot.slane %v963, 1
      %v1053 = vsel %vm1020, %v1050, %v1052
      %v1054 = vrot.slane %v964, 1
      %v1055 = vsel %vm1020, %v1052, %v1054
      %v1056 = vrot.slane %v965, 1
      %v1057 = vsel %vm1020, %v1054, %v1056
      %v1058 = vrot.slane %v966, 1
      %v1059 = vsel %vm1020, %v1056, %v1058
      %v1060 = vrot.slane %v967, 1
      %v1061 = vsel %vm1020, %v1058, %v1060
      %v1062 = vrot.slane %v968, 1
      %v1063 = vsel %vm1020, %v1060, %v1062
      %v1064 = vrot.slane %v969, 1
      %v1065 = vsel %vm1020, %v1062, %v1064
      %v1066 = vrot.slane %v970, 1
      %v1067 = vsel %vm1020, %v1064, %v1066
      %v1068 = vrot.slane %v971, 1
      %v1069 = vsel %vm1020, %v1066, %v1068
      %v1070 = vrot.slane %v972, 1
      %v1071 = vsel %vm1020, %v1068, %v1070
      %v1072 = vrot.slane %v973, 1
      %v1073 = vsel %vm1020, %v1070, %v1072
      %v1074 = vrot.slane %v974, 1
      %v1075 = vsel %vm1020, %v1072, %v1074
      %v1076 = vrot.slane %v975, 1
      %v1077 = vsel %vm1020, %v1074, %v1076
      %v1078 = vrot.slane %v976, 1
      %v1079 = vsel %vm1020, %v1076, %v1078
      %v1080 = vrot.slane %v977, 1
      %v1081 = vsel %vm1020, %v1078, %v1080
      %v1082 = vrot.slane %v978, 1
      %v1083 = vsel %vm1020, %v1080, %v1082
      %v1084 = vrot.slane %v979, 1
      %v1085 = vsel %vm1020, %v1082, %v1084
      %v1086 = vrot.slane %v980, 1
      %v1087 = vsel %vm1020, %v1084, %v1086
      %v1122 = vmax.f32 %v947, %v1023
      %v1123 = vmax.f32 %v948, %v1025
      %v1124 = vmax.f32 %v949, %v1027
      %v1125 = vmax.f32 %v950, %v1029
      %v1126 = vmax.f32 %v951, %v1031
      %v1127 = vmax.f32 %v952, %v1033
      %v1128 = vmax.f32 %v953, %v1035
      %v1129 = vmax.f32 %v954, %v1037
      %v1130 = vmax.f32 %v955, %v1039
      %v1131 = vmax.f32 %v956, %v1041
      %v1132 = vmax.f32 %v957, %v1043
      %v1133 = vmax.f32 %v958, %v1045
      %v1134 = vmax.f32 %v959, %v1047
      %v1135 = vmax.f32 %v960, %v1049
      %v1136 = vmax.f32 %v961, %v1051
      %v1137 = vmax.f32 %v962, %v1053
      %v1138 = vmax.f32 %v963, %v1055
      %v1139 = vmax.f32 %v964, %v1057
      %v1140 = vmax.f32 %v965, %v1059
      %v1141 = vmax.f32 %v966, %v1061
      %v1142 = vmax.f32 %v967, %v1063
      %v1143 = vmax.f32 %v968, %v1065
      %v1144 = vmax.f32 %v969, %v1067
      %v1145 = vmax.f32 %v970, %v1069
      %v1146 = vmax.f32 %v971, %v1071
      %v1147 = vmax.f32 %v972, %v1073
      %v1148 = vmax.f32 %v973, %v1075
      %v1149 = vmax.f32 %v974, %v1077
      %v1150 = vmax.f32 %v975, %v1079
      %v1151 = vmax.f32 %v976, %v1081
      %v1152 = vmax.f32 %v977, %v1083
      %v1153 = vmax.f32 %v978, %v1085
      %v1154 = vmax.f32 %v979, %v1087
      %v1155 = vmax.f32 %v980, %v1086
      %vm1156 = vcmask 1045504
      %v1157 = vrot.slane %v947, 2
      %v1158 = vrot.slane %v948, 2
      %v1159 = vsel %vm1156, %v1157, %v1158
      %v1160 = vrot.slane %v949, 2
      %v1161 = vsel %vm1156, %v1158, %v1160
      %v1162 = vrot.slane %v950, 2
      %v1163 = vsel %vm1156, %v1160, %v1162
      %v1164 = vrot.slane %v951, 2
      %v1165 = vsel %vm1156, %v1162, %v1164
      %v1166 = vrot.slane %v952, 2
      %v1167 = vsel %vm1156, %v1164, %v1166
      %v1168 = vrot.slane %v953, 2
      %v1169 = vsel %vm1156, %v1166, %v1168
      %v1170 = vrot.slane %v954, 2
      %v1171 = vsel %vm1156, %v1168, %v1170
      %v1172 = vrot.slane %v955, 2
      %v1173 = vsel %vm1156, %v1170, %v1172
      %v1174 = vrot.slane %v956, 2
      %v1175 = vsel %vm1156, %v1172, %v1174
      %v1176 = vrot.slane %v957, 2
      %v1177 = vsel %vm1156, %v1174, %v1176
      %v1178 = vrot.slane %v958, 2
      %v1179 = vsel %vm1156, %v1176, %v1178
      %v1180 = vrot.slane %v959, 2
      %v1181 = vsel %vm1156, %v1178, %v1180
      %v1182 = vrot.slane %v960, 2
      %v1183 = vsel %vm1156, %v1180, %v1182
      %v1184 = vrot.slane %v961, 2
      %v1185 = vsel %vm1156, %v1182, %v1184
      %v1186 = vrot.slane %v962, 2
      %v1187 = vsel %vm1156, %v1184, %v1186
      %v1188 = vrot.slane %v963, 2
      %v1189 = vsel %vm1156, %v1186, %v1188
      %v1190 = vrot.slane %v964, 2
      %v1191 = vsel %vm1156, %v1188, %v1190
      %v1192 = vrot.slane %v965, 2
      %v1193 = vsel %vm1156, %v1190, %v1192
      %v1194 = vrot.slane %v966, 2
      %v1195 = vsel %vm1156, %v1192, %v1194
      %v1196 = vrot.slane %v967, 2
      %v1197 = vsel %vm1156, %v1194, %v1196
      %v1198 = vrot.slane %v968, 2
      %v1199 = vsel %vm1156, %v1196, %v1198
      %v1200 = vrot.slane %v969, 2
      %v1201 = vsel %vm1156, %v1198, %v1200
      %v1202 = vrot.slane %v970, 2
      %v1203 = vsel %vm1156, %v1200, %v1202
      %v1204 = vrot.slane %v971, 2
      %v1205 = vsel %vm1156, %v1202, %v1204
      %v1206 = vrot.slane %v972, 2
      %v1207 = vsel %vm1156, %v1204, %v1206
      %v1208 = vrot.slane %v973, 2
      %v1209 = vsel %vm1156, %v1206, %v1208
      %v1210 = vrot.slane %v974, 2
      %v1211 = vsel %vm1156, %v1208, %v1210
      %v1212 = vrot.slane %v975, 2
      %v1213 = vsel %vm1156, %v1210, %v1212
      %v1214 = vrot.slane %v976, 2
      %v1215 = vsel %vm1156, %v1212, %v1214
      %v1216 = vrot.slane %v977, 2
      %v1217 = vsel %vm1156, %v1214, %v1216
      %v1218 = vrot.slane %v978, 2
      %v1219 = vsel %vm1156, %v1216, %v1218
      %v1220 = vrot.slane %v979, 2
      %v1221 = vsel %vm1156, %v1218, %v1220
      %v1222 = vrot.slane %v980, 2
      %v1223 = vsel %vm1156, %v1220, %v1222
      %v1258 = vmax.f32 %v1122, %v1159
      %v1259 = vmax.f32 %v1123, %v1161
      %v1260 = vmax.f32 %v1124, %v1163
      %v1261 = vmax.f32 %v1125, %v1165
      %v1262 = vmax.f32 %v1126, %v1167
      %v1263 = vmax.f32 %v1127, %v1169
      %v1264 = vmax.f32 %v1128, %v1171
      %v1265 = vmax.f32 %v1129, %v1173
      %v1266 = vmax.f32 %v1130, %v1175
      %v1267 = vmax.f32 %v1131, %v1177
      %v1268 = vmax.f32 %v1132, %v1179
      %v1269 = vmax.f32 %v1133, %v1181
      %v1270 = vmax.f32 %v1134, %v1183
      %v1271 = vmax.f32 %v1135, %v1185
      %v1272 = vmax.f32 %v1136, %v1187
      %v1273 = vmax.f32 %v1137, %v1189
      %v1274 = vmax.f32 %v1138, %v1191
      %v1275 = vmax.f32 %v1139, %v1193
      %v1276 = vmax.f32 %v1140, %v1195
      %v1277 = vmax.f32 %v1141, %v1197
      %v1278 = vmax.f32 %v1142, %v1199
      %v1279 = vmax.f32 %v1143, %v1201
      %v1280 = vmax.f32 %v1144, %v1203
      %v1281 = vmax.f32 %v1145, %v1205
      %v1282 = vmax.f32 %v1146, %v1207
      %v1283 = vmax.f32 %v1147, %v1209
      %v1284 = vmax.f32 %v1148, %v1211
      %v1285 = vmax.f32 %v1149, %v1213
      %v1286 = vmax.f32 %v1150, %v1215
      %v1287 = vmax.f32 %v1151, %v1217
      %v1288 = vmax.f32 %v1152, %v1219
      %v1289 = vmax.f32 %v1153, %v1221
      %v1290 = vmax.f32 %v1154, %v1223
      %v1291 = vmax.f32 %v1155, %v1222
      %v1294 = vrot.slane %v981, 2
      %v1295 = vsel %vm1156, %v1222, %v1294
      %v1296 = vrot.slane %v982, 2
      %v1297 = vsel %vm1156, %v1294, %v1296
      %v1301 = vmax.f32 %v1258, %v1163
      %v1302 = vmax.f32 %v1259, %v1165
      %v1303 = vmax.f32 %v1260, %v1167
      %v1304 = vmax.f32 %v1261, %v1169
      %v1305 = vmax.f32 %v1262, %v1171
      %v1306 = vmax.f32 %v1263, %v1173
      %v1307 = vmax.f32 %v1264, %v1175
      %v1308 = vmax.f32 %v1265, %v1177
      %v1309 = vmax.f32 %v1266, %v1179
      %v1310 = vmax.f32 %v1267, %v1181
      %v1311 = vmax.f32 %v1268, %v1183
      %v1312 = vmax.f32 %v1269, %v1185
      %v1313 = vmax.f32 %v1270, %v1187
      %v1314 = vmax.f32 %v1271, %v1189
      %v1315 = vmax.f32 %v1272, %v1191
      %v1316 = vmax.f32 %v1273, %v1193
      %v1317 = vmax.f32 %v1274, %v1195
      %v1318 = vmax.f32 %v1275, %v1197
      %v1319 = vmax.f32 %v1276, %v1199
      %v1320 = vmax.f32 %v1277, %v1201
      %v1321 = vmax.f32 %v1278, %v1203
      %v1322 = vmax.f32 %v1279, %v1205
      %v1323 = vmax.f32 %v1280, %v1207
      %v1324 = vmax.f32 %v1281, %v1209
      %v1325 = vmax.f32 %v1282, %v1211
      %v1326 = vmax.f32 %v1283, %v1213
      %v1327 = vmax.f32 %v1284, %v1215
      %v1328 = vmax.f32 %v1285, %v1217
      %v1329 = vmax.f32 %v1286, %v1219
      %v1330 = vmax.f32 %v1287, %v1221
      %v1331 = vmax.f32 %v1288, %v1223
      %v1332 = vmax.f32 %v1289, %v1295
      %v1333 = vmax.f32 %v1290, %v1297
      %v1334 = vmax.f32 %v1291, %v1296
      %vm1335 = vcmask 1044480
      %v1336 = vrot.slane %v949, 3
      %v1337 = vrot.slane %v950, 3
      %v1338 = vsel %vm1335, %v1336, %v1337
      %v1339 = vrot.slane %v951, 3
      %v1340 = vsel %vm1335, %v1337, %v1339
      %v1341 = vrot.slane %v952, 3
      %v1342 = vsel %vm1335, %v1339, %v1341
      %v1343 = vrot.slane %v953, 3
      %v1344 = vsel %vm1335, %v1341, %v1343
      %v1345 = vrot.slane %v954, 3
      %v1346 = vsel %vm1335, %v1343, %v1345
      %v1347 = vrot.slane %v955, 3
      %v1348 = vsel %vm1335, %v1345, %v1347
      %v1349 = vrot.slane %v956, 3
      %v1350 = vsel %vm1335, %v1347, %v1349
      %v1351 = vrot.slane %v957, 3
      %v1352 = vsel %vm1335, %v1349, %v1351
      %v1353 = vrot.slane %v958, 3
      %v1354 = vsel %vm1335, %v1351, %v1353
      %v1355 = vrot.slane %v959, 3
      %v1356 = vsel %vm1335, %v1353, %v1355
      %v1357 = vrot.slane %v960, 3
      %v1358 = vsel %vm1335, %v1355, %v1357
      %v1359 = vrot.slane %v961, 3
      %v1360 = vsel %vm1335, %v1357, %v1359
      %v1361 = vrot.slane %v962, 3
      %v1362 = vsel %vm1335, %v1359, %v1361
      %v1363 = vrot.slane %v963, 3
      %v1364 = vsel %vm1335, %v1361, %v1363
      %v1365 = vrot.slane %v964, 3
      %v1366 = vsel %vm1335, %v1363, %v1365
      %v1367 = vrot.slane %v965, 3
      %v1368 = vsel %vm1335, %v1365, %v1367
      %v1369 = vrot.slane %v966, 3
      %v1370 = vsel %vm1335, %v1367, %v1369
      %v1371 = vrot.slane %v967, 3
      %v1372 = vsel %vm1335, %v1369, %v1371
      %v1373 = vrot.slane %v968, 3
      %v1374 = vsel %vm1335, %v1371, %v1373
      %v1375 = vrot.slane %v969, 3
      %v1376 = vsel %vm1335, %v1373, %v1375
      %v1377 = vrot.slane %v970, 3
      %v1378 = vsel %vm1335, %v1375, %v1377
      %v1379 = vrot.slane %v971, 3
      %v1380 = vsel %vm1335, %v1377, %v1379
      %v1381 = vrot.slane %v972, 3
      %v1382 = vsel %vm1335, %v1379, %v1381
      %v1383 = vrot.slane %v973, 3
      %v1384 = vsel %vm1335, %v1381, %v1383
      %v1385 = vrot.slane %v974, 3
      %v1386 = vsel %vm1335, %v1383, %v1385
      %v1387 = vrot.slane %v975, 3
      %v1388 = vsel %vm1335, %v1385, %v1387
      %v1389 = vrot.slane %v976, 3
      %v1390 = vsel %vm1335, %v1387, %v1389
      %v1391 = vrot.slane %v977, 3
      %v1392 = vsel %vm1335, %v1389, %v1391
      %v1393 = vrot.slane %v978, 3
      %v1394 = vsel %vm1335, %v1391, %v1393
      %v1395 = vrot.slane %v979, 3
      %v1396 = vsel %vm1335, %v1393, %v1395
      %v1397 = vrot.slane %v980, 3
      %v1398 = vsel %vm1335, %v1395, %v1397
      %v1399 = vrot.slane %v981, 3
      %v1400 = vsel %vm1335, %v1397, %v1399
      %v1401 = vrot.slane %v982, 3
      %v1402 = vsel %vm1335, %v1399, %v1401
      %v1437 = vmax.f32 %v1301, %v1338
      %v1438 = vmax.f32 %v1302, %v1340
      %v1439 = vmax.f32 %v1303, %v1342
      %v1440 = vmax.f32 %v1304, %v1344
      %v1441 = vmax.f32 %v1305, %v1346
      %v1442 = vmax.f32 %v1306, %v1348
      %v1443 = vmax.f32 %v1307, %v1350
      %v1444 = vmax.f32 %v1308, %v1352
      %v1445 = vmax.f32 %v1309, %v1354
      %v1446 = vmax.f32 %v1310, %v1356
      %v1447 = vmax.f32 %v1311, %v1358
      %v1448 = vmax.f32 %v1312, %v1360
      %v1449 = vmax.f32 %v1313, %v1362
      %v1450 = vmax.f32 %v1314, %v1364
      %v1451 = vmax.f32 %v1315, %v1366
      %v1452 = vmax.f32 %v1316, %v1368
      %v1453 = vmax.f32 %v1317, %v1370
      %v1454 = vmax.f32 %v1318, %v1372
      %v1455 = vmax.f32 %v1319, %v1374
      %v1456 = vmax.f32 %v1320, %v1376
      %v1457 = vmax.f32 %v1321, %v1378
      %v1458 = vmax.f32 %v1322, %v1380
      %v1459 = vmax.f32 %v1323, %v1382
      %v1460 = vmax.f32 %v1324, %v1384
      %v1461 = vmax.f32 %v1325, %v1386
      %v1462 = vmax.f32 %v1326, %v1388
      %v1463 = vmax.f32 %v1327, %v1390
      %v1464 = vmax.f32 %v1328, %v1392
      %v1465 = vmax.f32 %v1329, %v1394
      %v1466 = vmax.f32 %v1330, %v1396
      %v1467 = vmax.f32 %v1331, %v1398
      %v1468 = vmax.f32 %v1332, %v1400
      %v1469 = vmax.f32 %v1333, %v1402
      %v1470 = vmax.f32 %v1334, %v1401
      %vm1471 = vcmask 1043456
      %v1472 = vrot.slane %v949, 4
      %v1473 = vrot.slane %v950, 4
      %v1474 = vsel %vm1471, %v1472, %v1473
      %v1475 = vrot.slane %v951, 4
      %v1476 = vsel %vm1471, %v1473, %v1475
      %v1477 = vrot.slane %v952, 4
      %v1478 = vsel %vm1471, %v1475, %v1477
      %v1479 = vrot.slane %v953, 4
      %v1480 = vsel %vm1471, %v1477, %v1479
      %v1481 = vrot.slane %v954, 4
      %v1482 = vsel %vm1471, %v1479, %v1481
      %v1483 = vrot.slane %v955, 4
      %v1484 = vsel %vm1471, %v1481, %v1483
      %v1485 = vrot.slane %v956, 4
      %v1486 = vsel %vm1471, %v1483, %v1485
      %v1487 = vrot.slane %v957, 4
      %v1488 = vsel %vm1471, %v1485, %v1487
      %v1489 = vrot.slane %v958, 4
      %v1490 = vsel %vm1471, %v1487, %v1489
      %v1491 = vrot.slane %v959, 4
      %v1492 = vsel %vm1471, %v1489, %v1491
      %v1493 = vrot.slane %v960, 4
      %v1494 = vsel %vm1471, %v1491, %v1493
      %v1495 = vrot.slane %v961, 4
      %v1496 = vsel %vm1471, %v1493, %v1495
      %v1497 = vrot.slane %v962, 4
      %v1498 = vsel %vm1471, %v1495, %v1497
      %v1499 = vrot.slane %v963, 4
      %v1500 = vsel %vm1471, %v1497, %v1499
      %v1501 = vrot.slane %v964, 4
      %v1502 = vsel %vm1471, %v1499, %v1501
      %v1503 = vrot.slane %v965, 4
      %v1504 = vsel %vm1471, %v1501, %v1503
      %v1505 = vrot.slane %v966, 4
      %v1506 = vsel %vm1471, %v1503, %v1505
      %v1507 = vrot.slane %v967, 4
      %v1508 = vsel %vm1471, %v1505, %v1507
      %v1509 = vrot.slane %v968, 4
      %v1510 = vsel %vm1471, %v1507, %v1509
      %v1511 = vrot.slane %v969, 4
      %v1512 = vsel %vm1471, %v1509, %v1511
      %v1513 = vrot.slane %v970, 4
      %v1514 = vsel %vm1471, %v1511, %v1513
      %v1515 = vrot.slane %v971, 4
      %v1516 = vsel %vm1471, %v1513, %v1515
      %v1517 = vrot.slane %v972, 4
      %v1518 = vsel %vm1471, %v1515, %v1517
      %v1519 = vrot.slane %v973, 4
      %v1520 = vsel %vm1471, %v1517, %v1519
      %v1521 = vrot.slane %v974, 4
      %v1522 = vsel %vm1471, %v1519, %v1521
      %v1523 = vrot.slane %v975, 4
      %v1524 = vsel %vm1471, %v1521, %v1523
      %v1525 = vrot.slane %v976, 4
      %v1526 = vsel %vm1471, %v1523, %v1525
      %v1527 = vrot.slane %v977, 4
      %v1528 = vsel %vm1471, %v1525, %v1527
      %v1529 = vrot.slane %v978, 4
      %v1530 = vsel %vm1471, %v1527, %v1529
      %v1531 = vrot.slane %v979, 4
      %v1532 = vsel %vm1471, %v1529, %v1531
      %v1533 = vrot.slane %v980, 4
      %v1534 = vsel %vm1471, %v1531, %v1533
      %v1535 = vrot.slane %v981, 4
      %v1536 = vsel %vm1471, %v1533, %v1535
      %v1537 = vrot.slane %v982, 4
      %v1538 = vsel %vm1471, %v1535, %v1537
      %v1573 = vmax.f32 %v1437, %v1474
      %v1574 = vmax.f32 %v1438, %v1476
      %v1575 = vmax.f32 %v1439, %v1478
      %v1576 = vmax.f32 %v1440, %v1480
      %v1577 = vmax.f32 %v1441, %v1482
      %v1578 = vmax.f32 %v1442, %v1484
      %v1579 = vmax.f32 %v1443, %v1486
      %v1580 = vmax.f32 %v1444, %v1488
      %v1581 = vmax.f32 %v1445, %v1490
      %v1582 = vmax.f32 %v1446, %v1492
      %v1583 = vmax.f32 %v1447, %v1494
      %v1584 = vmax.f32 %v1448, %v1496
      %v1585 = vmax.f32 %v1449, %v1498
      %v1586 = vmax.f32 %v1450, %v1500
      %v1587 = vmax.f32 %v1451, %v1502
      %v1588 = vmax.f32 %v1452, %v1504
      %v1589 = vmax.f32 %v1453, %v1506
      %v1590 = vmax.f32 %v1454, %v1508
      %v1591 = vmax.f32 %v1455, %v1510
      %v1592 = vmax.f32 %v1456, %v1512
      %v1593 = vmax.f32 %v1457, %v1514
      %v1594 = vmax.f32 %v1458, %v1516
      %v1595 = vmax.f32 %v1459, %v1518
      %v1596 = vmax.f32 %v1460, %v1520
      %v1597 = vmax.f32 %v1461, %v1522
      %v1598 = vmax.f32 %v1462, %v1524
      %v1599 = vmax.f32 %v1463, %v1526
      %v1600 = vmax.f32 %v1464, %v1528
      %v1601 = vmax.f32 %v1465, %v1530
      %v1602 = vmax.f32 %v1466, %v1532
      %v1603 = vmax.f32 %v1467, %v1534
      %v1604 = vmax.f32 %v1468, %v1536
      %v1605 = vmax.f32 %v1469, %v1538
      %v1606 = vmax.f32 %v1470, %v1537
      %v1609 = vrot.slane %v983, 4
      %v1610 = vsel %vm1471, %v1537, %v1609
      %v1611 = vrot.slane %v984, 4
      %v1612 = vsel %vm1471, %v1609, %v1611
      %v1616 = vmax.f32 %v1573, %v1478
      %v1617 = vmax.f32 %v1574, %v1480
      %v1618 = vmax.f32 %v1575, %v1482
      %v1619 = vmax.f32 %v1576, %v1484
      %v1620 = vmax.f32 %v1577, %v1486
      %v1621 = vmax.f32 %v1578, %v1488
      %v1622 = vmax.f32 %v1579, %v1490
      %v1623 = vmax.f32 %v1580, %v1492
      %v1624 = vmax.f32 %v1581, %v1494
      %v1625 = vmax.f32 %v1582, %v1496
      %v1626 = vmax.f32 %v1583, %v1498
      %v1627 = vmax.f32 %v1584, %v1500
      %v1628 = vmax.f32 %v1585, %v1502
      %v1629 = vmax.f32 %v1586, %v1504
      %v1630 = vmax.f32 %v1587, %v1506
      %v1631 = vmax.f32 %v1588, %v1508
      %v1632 = vmax.f32 %v1589, %v1510
      %v1633 = vmax.f32 %v1590, %v1512
      %v1634 = vmax.f32 %v1591, %v1514
      %v1635 = vmax.f32 %v1592, %v1516
      %v1636 = vmax.f32 %v1593, %v1518
      %v1637 = vmax.f32 %v1594, %v1520
      %v1638 = vmax.f32 %v1595, %v1522
      %v1639 = vmax.f32 %v1596, %v1524
      %v1640 = vmax.f32 %v1597, %v1526
      %v1641 = vmax.f32 %v1598, %v1528
      %v1642 = vmax.f32 %v1599, %v1530
      %v1643 = vmax.f32 %v1600, %v1532
      %v1644 = vmax.f32 %v1601, %v1534
      %v1645 = vmax.f32 %v1602, %v1536
      %v1646 = vmax.f32 %v1603, %v1538
      %v1647 = vmax.f32 %v1604, %v1610
      %v1648 = vmax.f32 %v1605, %v1612
      %v1649 = vmax.f32 %v1606, %v1611
      %vm1650 = vcmask 1042432
      %v1651 = vrot.slane %v951, 5
      %v1652 = vrot.slane %v952, 5
      %v1653 = vsel %vm1650, %v1651, %v1652
      %v1654 = vrot.slane %v953, 5
      %v1655 = vsel %vm1650, %v1652, %v1654
      %v1656 = vrot.slane %v954, 5
      %v1657 = vsel %vm1650, %v1654, %v1656
      %v1658 = vrot.slane %v955, 5
      %v1659 = vsel %vm1650, %v1656, %v1658
      %v1660 = vrot.slane %v956, 5
      %v1661 = vsel %vm1650, %v1658, %v1660
      %v1662 = vrot.slane %v957, 5
      %v1663 = vsel %vm1650, %v1660, %v1662
      %v1664 = vrot.slane %v958, 5
      %v1665 = vsel %vm1650, %v1662, %v1664
      %v1666 = vrot.slane %v959, 5
      %v1667 = vsel %vm1650, %v1664, %v1666
      %v1668 = vrot.slane %v960, 5
      %v1669 = vsel %vm1650, %v1666, %v1668
      %v1670 = vrot.slane %v961, 5
      %v1671 = vsel %vm1650, %v1668, %v1670
      %v1672 = vrot.slane %v962, 5
      %v1673 = vsel %vm1650, %v1670, %v1672
      %v1674 = vrot.slane %v963, 5
      %v1675 = vsel %vm1650, %v1672, %v1674
      %v1676 = vrot.slane %v964, 5
      %v1677 = vsel %vm1650, %v1674, %v1676
      %v1678 = vrot.slane %v965, 5
      %v1679 = vsel %vm1650, %v1676, %v1678
      %v1680 = vrot.slane %v966, 5
      %v1681 = vsel %vm1650, %v1678, %v1680
      %v1682 = vrot.slane %v967, 5
      %v1683 = vsel %vm1650, %v1680, %v1682
      %v1684 = vrot.slane %v968, 5
      %v1685 = vsel %vm1650, %v1682, %v1684
      %v1686 = vrot.slane %v969, 5
      %v1687 = vsel %vm1650, %v1684, %v1686
      %v1688 = vrot.slane %v970, 5
      %v1689 = vsel %vm1650, %v1686, %v1688
      %v1690 = vrot.slane %v971, 5
      %v1691 = vsel %vm1650, %v1688, %v1690
      %v1692 = vrot.slane %v972, 5
      %v1693 = vsel %vm1650, %v1690, %v1692
      %v1694 = vrot.slane %v973, 5
      %v1695 = vsel %vm1650, %v1692, %v1694
      %v1696 = vrot.slane %v974, 5
      %v1697 = vsel %vm1650, %v1694, %v1696
      %v1698 = vrot.slane %v975, 5
      %v1699 = vsel %vm1650, %v1696, %v1698
      %v1700 = vrot.slane %v976, 5
      %v1701 = vsel %vm1650, %v1698, %v1700
      %v1702 = vrot.slane %v977, 5
      %v1703 = vsel %vm1650, %v1700, %v1702
      %v1704 = vrot.slane %v978, 5
      %v1705 = vsel %vm1650, %v1702, %v1704
      %v1706 = vrot.slane %v979, 5
      %v1707 = vsel %vm1650, %v1704, %v1706
      %v1708 = vrot.slane %v980, 5
      %v1709 = vsel %vm1650, %v1706, %v1708
      %v1710 = vrot.slane %v981, 5
      %v1711 = vsel %vm1650, %v1708, %v1710
      %v1712 = vrot.slane %v982, 5
      %v1713 = vsel %vm1650, %v1710, %v1712
      %v1714 = vrot.slane %v983, 5
      %v1715 = vsel %vm1650, %v1712, %v1714
      %v1716 = vrot.slane %v984, 5
      %v1717 = vsel %vm1650, %v1714, %v1716
      %v1752 = vmax.f32 %v1616, %v1653
      %v1753 = vmax.f32 %v1617, %v1655
      %v1754 = vmax.f32 %v1618, %v1657
      %v1755 = vmax.f32 %v1619, %v1659
      %v1756 = vmax.f32 %v1620, %v1661
      %v1757 = vmax.f32 %v1621, %v1663
      %v1758 = vmax.f32 %v1622, %v1665
      %v1759 = vmax.f32 %v1623, %v1667
      %v1760 = vmax.f32 %v1624, %v1669
      %v1761 = vmax.f32 %v1625, %v1671
      %v1762 = vmax.f32 %v1626, %v1673
      %v1763 = vmax.f32 %v1627, %v1675
      %v1764 = vmax.f32 %v1628, %v1677
      %v1765 = vmax.f32 %v1629, %v1679
      %v1766 = vmax.f32 %v1630, %v1681
      %v1767 = vmax.f32 %v1631, %v1683
      %v1768 = vmax.f32 %v1632, %v1685
      %v1769 = vmax.f32 %v1633, %v1687
      %v1770 = vmax.f32 %v1634, %v1689
      %v1771 = vmax.f32 %v1635, %v1691
      %v1772 = vmax.f32 %v1636, %v1693
      %v1773 = vmax.f32 %v1637, %v1695
      %v1774 = vmax.f32 %v1638, %v1697
      %v1775 = vmax.f32 %v1639, %v1699
      %v1776 = vmax.f32 %v1640, %v1701
      %v1777 = vmax.f32 %v1641, %v1703
      %v1778 = vmax.f32 %v1642, %v1705
      %v1779 = vmax.f32 %v1643, %v1707
      %v1780 = vmax.f32 %v1644, %v1709
      %v1781 = vmax.f32 %v1645, %v1711
      %v1782 = vmax.f32 %v1646, %v1713
      %v1783 = vmax.f32 %v1647, %v1715
      %v1784 = vmax.f32 %v1648, %v1717
      %v1785 = vmax.f32 %v1649, %v1716
      %vm1787 = vcmask 1041408
      %v1788 = vrot.slane %v951, 6
      %v1789 = vrot.slane %v952, 6
      %v1790 = vsel %vm1787, %v1788, %v1789
      %v1791 = vrot.slane %v953, 6
      %v1792 = vsel %vm1787, %v1789, %v1791
      %v1793 = vrot.slane %v954, 6
      %v1794 = vsel %vm1787, %v1791, %v1793
      %v1795 = vrot.slane %v955, 6
      %v1796 = vsel %vm1787, %v1793, %v1795
      %v1797 = vrot.slane %v956, 6
      %v1798 = vsel %vm1787, %v1795, %v1797
      %v1799 = vrot.slane %v957, 6
      %v1800 = vsel %vm1787, %v1797, %v1799
      %v1801 = vrot.slane %v958, 6
      %v1802 = vsel %vm1787, %v1799, %v1801
      %v1803 = vrot.slane %v959, 6
      %v1804 = vsel %vm1787, %v1801, %v1803
      %v1805 = vrot.slane %v960, 6
      %v1806 = vsel %vm1787, %v1803, %v1805
      %v1807 = vrot.slane %v961, 6
      %v1808 = vsel %vm1787, %v1805, %v1807
      %v1809 = vrot.slane %v962, 6
      %v1810 = vsel %vm1787, %v1807, %v1809
      %v1811 = vrot.slane %v963, 6
      %v1812 = vsel %vm1787, %v1809, %v1811
      %v1813 = vrot.slane %v964, 6
      %v1814 = vsel %vm1787, %v1811, %v1813
      %v1815 = vrot.slane %v965, 6
      %v1816 = vsel %vm1787, %v1813, %v1815
      %v1817 = vrot.slane %v966, 6
      %v1818 = vsel %vm1787, %v1815, %v1817
      %v1819 = vrot.slane %v967, 6
      %v1820 = vsel %vm1787, %v1817, %v1819
      %v1821 = vrot.slane %v968, 6
      %v1822 = vsel %vm1787, %v1819, %v1821
      %v1823 = vrot.slane %v969, 6
      %v1824 = vsel %vm1787, %v1821, %v1823
      %v1825 = vrot.slane %v970, 6
      %v1826 = vsel %vm1787, %v1823, %v1825
      %v1827 = vrot.slane %v971, 6
      %v1828 = vsel %vm1787, %v1825, %v1827
      %v1829 = vrot.slane %v972, 6
      %v1830 = vsel %vm1787, %v1827, %v1829
      %v1831 = vrot.slane %v973, 6
      %v1832 = vsel %vm1787, %v1829, %v1831
      %v1833 = vrot.slane %v974, 6
      %v1834 = vsel %vm1787, %v1831, %v1833
      %v1835 = vrot.slane %v975, 6
      %v1836 = vsel %vm1787, %v1833, %v1835
      %v1837 = vrot.slane %v976, 6
      %v1838 = vsel %vm1787, %v1835, %v1837
      %v1839 = vrot.slane %v977, 6
      %v1840 = vsel %vm1787, %v1837, %v1839
      %v1841 = vrot.slane %v978, 6
      %v1842 = vsel %vm1787, %v1839, %v1841
      %v1843 = vrot.slane %v979, 6
      %v1844 = vsel %vm1787, %v1841, %v1843
      %v1845 = vrot.slane %v980, 6
      %v1846 = vsel %vm1787, %v1843, %v1845
      %v1847 = vrot.slane %v981, 6
      %v1848 = vsel %vm1787, %v1845, %v1847
      %v1849 = vrot.slane %v982, 6
      %v1850 = vsel %vm1787, %v1847, %v1849
      %v1851 = vrot.slane %v983, 6
      %v1852 = vsel %vm1787, %v1849, %v1851
      %v1853 = vrot.slane %v984, 6
      %v1854 = vsel %vm1787, %v1851, %v1853
      %v1855 = vrot.slane %v985, 6
      %v1856 = vsel %vm1787, %v1853, %v1855
      %v1891 = vmax.f32 %v1752, %v1790
      %v1892 = vmax.f32 %v1753, %v1792
      %v1893 = vmax.f32 %v1754, %v1794
      %v1894 = vmax.f32 %v1755, %v1796
      %v1895 = vmax.f32 %v1756, %v1798
      %v1896 = vmax.f32 %v1757, %v1800
      %v1897 = vmax.f32 %v1758, %v1802
      %v1898 = vmax.f32 %v1759, %v1804
      %v1899 = vmax.f32 %v1760, %v1806
      %v1900 = vmax.f32 %v1761, %v1808
      %v1901 = vmax.f32 %v1762, %v1810
      %v1902 = vmax.f32 %v1763, %v1812
      %v1903 = vmax.f32 %v1764, %v1814
      %v1904 = vmax.f32 %v1765, %v1816
      %v1905 = vmax.f32 %v1766, %v1818
      %v1906 = vmax.f32 %v1767, %v1820
      %v1907 = vmax.f32 %v1768, %v1822
      %v1908 = vmax.f32 %v1769, %v1824
      %v1909 = vmax.f32 %v1770, %v1826
      %v1910 = vmax.f32 %v1771, %v1828
      %v1911 = vmax.f32 %v1772, %v1830
      %v1912 = vmax.f32 %v1773, %v1832
      %v1913 = vmax.f32 %v1774, %v1834
      %v1914 = vmax.f32 %v1775, %v1836
      %v1915 = vmax.f32 %v1776, %v1838
      %v1916 = vmax.f32 %v1777, %v1840
      %v1917 = vmax.f32 %v1778, %v1842
      %v1918 = vmax.f32 %v1779, %v1844
      %v1919 = vmax.f32 %v1780, %v1846
      %v1920 = vmax.f32 %v1781, %v1848
      %v1921 = vmax.f32 %v1782, %v1850
      %v1922 = vmax.f32 %v1783, %v1852
      %v1923 = vmax.f32 %v1784, %v1854
      %v1924 = vmax.f32 %v1785, %v1856
      %v1925 = vld [vmem:[%s4] sm:$0xff]
      %v1926 = vld [vmem:[%s4 + $0x8] sm:$0xf]
      %v1927 = vld [vmem:[%s4 + $0xc] sm:$0xff]
      %v1928 = vld [vmem:[%s4 + $0x14] sm:$0xf]
      %v1929 = vld [vmem:[%s4 + $0x18] sm:$0xff]
      %v1930 = vld [vmem:[%s4 + $0x20] sm:$0xf]
      %v1931 = vld [vmem:[%s4 + $0x24] sm:$0xff]
      %v1932 = vld [vmem:[%s4 + $0x2c] sm:$0xf]
      %v1933 = vld [vmem:[%s4 + $0x30] sm:$0xff]
      %v1934 = vld [vmem:[%s4 + $0x38] sm:$0xf]
      %v1935 = vld [vmem:[%s4 + $0x3c] sm:$0xff]
      %v1936 = vld [vmem:[%s4 + $0x44] sm:$0xf]
      %v1937 = vld [vmem:[%s4 + $0x48] sm:$0xff]
      %v1938 = vld [vmem:[%s4 + $0x50] sm:$0xf]
      %v1939 = vld [vmem:[%s4 + $0x54] sm:$0xff]
      %v1940 = vld [vmem:[%s4 + $0x5c] sm:$0xf]
      %v1941 = vld [vmem:[%s4 + $0x60] sm:$0xff]
      %v1942 = vld [vmem:[%s4 + $0x68] sm:$0xf]
      %v1943 = vld [vmem:[%s4 + $0x6c] sm:$0xff]
      %v1944 = vld [vmem:[%s4 + $0x74] sm:$0xf]
      %v1945 = vld [vmem:[%s4 + $0x78] sm:$0xff]
      %v1946 = vld [vmem:[%s4 + $0x80] sm:$0xf]
      %v1947 = vld [vmem:[%s4 + $0x84] sm:$0xff]
      %v1948 = vld [vmem:[%s4 + $0x8c] sm:$0xf]
      %v1949 = vld [vmem:[%s4 + $0x90] sm:$0xff]
      %v1950 = vld [vmem:[%s4 + $0x98] sm:$0xf]
      %v1951 = vld [vmem:[%s4 + $0x9c] sm:$0xff]
      %v1952 = vld [vmem:[%s4 + $0xa4] sm:$0xf]
      %v1953 = vpack.c.bf16 %v1892, %v1891
      %v1954 = vpack.c.bf16 %v1894, %v1893
      %v1955 = vpack.c.bf16 %v1896, %v1895
      %v1956 = vpack.c.bf16 %v1898, %v1897
      %v1957 = vpack.c.bf16 %v1900, %v1899
      %v1958 = vpack.c.bf16 %v1902, %v1901
      %v1959 = vpack.c.bf16 %v1904, %v1903
      %v1960 = vpack.c.bf16 %v1906, %v1905
      %v1961 = vpack.c.bf16 %v1908, %v1907
      %v1962 = vpack.c.bf16 %v1910, %v1909
      %v1963 = vpack.c.bf16 %v1912, %v1911
      %v1964 = vpack.c.bf16 %v1914, %v1913
      %v1965 = vpack.c.bf16 %v1916, %v1915
      %v1966 = vpack.c.bf16 %v1918, %v1917
      %v1967 = vpack.c.bf16 %v1920, %v1919
      %v1968 = vpack.c.bf16 %v1922, %v1921
      %v1969 = vpack.c.bf16 %v1924, %v1923
      %v1998 = vunpack.c.l.b16 %v1925
      %v1999 = vunpack.c.h.b16 %v1925
      %v2000 = vunpack.c.l.b16 %v1926
      %v2001 = vunpack.c.l.b16 %v1927
      %v2002 = vunpack.c.h.b16 %v1927
      %v2003 = vunpack.c.l.b16 %v1928
      %v2004 = vunpack.c.l.b16 %v1929
      %v2005 = vunpack.c.h.b16 %v1929
      %v2006 = vunpack.c.l.b16 %v1930
      %v2007 = vunpack.c.l.b16 %v1931
      %v2008 = vunpack.c.h.b16 %v1931
      %v2009 = vunpack.c.l.b16 %v1932
      %v2010 = vunpack.c.l.b16 %v1933
      %v2011 = vunpack.c.h.b16 %v1933
      %v2012 = vunpack.c.l.b16 %v1934
      %v2013 = vunpack.c.l.b16 %v1935
      %v2014 = vunpack.c.h.b16 %v1935
      %v2015 = vunpack.c.l.b16 %v1936
      %v2016 = vunpack.c.l.b16 %v1937
      %v2017 = vunpack.c.h.b16 %v1937
      %v2018 = vunpack.c.l.b16 %v1938
      %v2019 = vunpack.c.l.b16 %v1939
      %v2020 = vunpack.c.h.b16 %v1939
      %v2021 = vunpack.c.l.b16 %v1940
      %v2022 = vunpack.c.l.b16 %v1941
      %v2023 = vunpack.c.h.b16 %v1941
      %v2024 = vunpack.c.l.b16 %v1942
      %v2025 = vunpack.c.l.b16 %v1943
      %v2026 = vunpack.c.h.b16 %v1943
      %v2027 = vunpack.c.l.b16 %v1944
      %v2028 = vunpack.c.l.b16 %v1945
      %v2029 = vunpack.c.h.b16 %v1945
      %v2030 = vunpack.c.l.b16 %v1946
      %v2031 = vunpack.c.l.b16 %v1947
      %v2032 = vunpack.c.h.b16 %v1947
      %v2033 = vunpack.c.l.b16 %v1948
      %v2034 = vunpack.c.l.b16 %v1949
      %v2035 = vunpack.c.h.b16 %v1949
      %v2036 = vunpack.c.l.b16 %v1950
      %v2037 = vunpack.c.l.b16 %v1951
      %v2038 = vunpack.c.h.b16 %v1951
      %v2039 = vunpack.c.l.b16 %v1952
      %v2040 = vpack.c.b16 %v2001, %v1998
      %v2041 = vpack.c.b16 %v2002, %v1999
      %v2042 = vpack.c.b16 %v2003, %v2000
      %v2043 = vpack.c.b16 %v2007, %v2004
      %v2044 = vpack.c.b16 %v2008, %v2005
      %v2045 = vpack.c.b16 %v2009, %v2006
      %v2046 = vpack.c.b16 %v2013, %v2010
      %v2047 = vpack.c.b16 %v2014, %v2011
      %v2048 = vpack.c.b16 %v2015, %v2012
      %v2049 = vpack.c.b16 %v2019, %v2016
      %v2050 = vpack.c.b16 %v2020, %v2017
      %v2051 = vpack.c.b16 %v2021, %v2018
      %v2052 = vpack.c.b16 %v2025, %v2022
      %v2053 = vpack.c.b16 %v2026, %v2023
      %v2054 = vpack.c.b16 %v2027, %v2024
      %v2055 = vpack.c.b16 %v2031, %v2028
      %v2056 = vpack.c.b16 %v2032, %v2029
      %v2057 = vpack.c.b16 %v2033, %v2030
      %v2058 = vpack.c.b16 %v2037, %v2034
      %v2059 = vpack.c.b16 %v2038, %v2035
      %v2060 = vpack.c.b16 %v2039, %v2036
      %vm2075 = vcmask 89088
      %v2077 = vsel %vm2075, %v2042, 0
      %v2080 = vsel %vm2075, %v2045, 0
      %v2083 = vsel %vm2075, %v2048, 0
      %v2086 = vsel %vm2075, %v2051, 0
      %v2089 = vsel %vm2075, %v2054, 0
      %v2092 = vsel %vm2075, %v2057, 0
      %v2095 = vsel %vm2075, %v2060, 0
      %v2097 = vsel %vm1335, 4294967295, 65535
      %v2098 = vsel %vm1156, %v2097, 0
      %v2100 = vand.u32 %v1969, %v2098
      %2102 = vmatprep.subr.bf16.mxu0 0
      %2103 = vmatpush1.bf16.msra.mxu0 %v1953
      %2104 = vmatprep.subr.bf16.mxu0 0
      %2105 = vmatpush1.bf16.msra.mxu0 %v1954
      %2106 = vmatprep.subr.bf16.mxu0 0
      %2107 = vmatpush1.bf16.msra.mxu0 %v1955
      %2108 = vmatprep.subr.bf16.mxu0 0
      %2109 = vmatpush1.bf16.msra.mxu0 %v1956
      %2110 = vmatprep.subr.bf16.mxu0 0
      %2111 = vmatpush1.bf16.msra.mxu0 %v1957
      %2112 = vmatprep.subr.bf16.mxu0 0
      %2113 = vmatpush1.bf16.msra.mxu0 %v1958
      %2114 = vmatprep.subr.bf16.mxu0 0
      %2115 = vmatpush1.bf16.msra.mxu0 %v1959
      %2116 = vmatprep.subr.bf16.mxu0 0
      %2117 = vmatpush1.bf16.msra.mxu0 %v1960
      %2118 = vmatprep.subr.bf16.mxu0 0
      %2119 = vmatpush1.bf16.msra.mxu0 %v1961
      %2120 = vmatprep.subr.bf16.mxu0 0
      %2121 = vmatpush1.bf16.msra.mxu0 %v1962
      %2122 = vmatprep.subr.bf16.mxu0 0
      %2123 = vmatpush1.bf16.msra.mxu0 %v1963
      %2124 = vmatprep.subr.bf16.mxu0 0
      %2125 = vmatpush1.bf16.msra.mxu0 %v1964
      %2126 = vmatprep.subr.bf16.mxu0 0
      %2127 = vmatpush1.bf16.msra.mxu0 %v1965
      %2128 = vmatprep.subr.bf16.mxu0 0
      %2129 = vmatpush1.bf16.msra.mxu0 %v1966
      %2130 = vmatprep.subr.bf16.mxu0 0
      %2131 = vmatpush1.bf16.msra.mxu0 %v1967
      %2132 = vmatprep.subr.bf16.mxu0 0
      %2133 = vmatpush1.bf16.msra.mxu0 %v1968
      %2134 = vmatprep.mubr.bf16.mxu0 %v2041
      %2135 = vmatmul.mubr.bf16.gmra.mrb[0].mxu0 %v2040
      %v2136 = vpop.f32.mrb[0].mxu0
      %v2137 = vadd.f32 0.0, %v2136
      %v2138 = vpop.f32.mrb[0].mxu0
      %v2139 = vpop.f32.mrb[0].mxu0
      %v2140 = vadd.f32 0.0, %v2139
      %v2141 = vpop.f32.mrb[0].mxu0
      %2142 = vmatprep.mubr.bf16.mxu0 %v2044
      %2143 = vmatmul.mubr.bf16.gmra.mrb[0].mxu0 %v2043
      %v2144 = vpop.f32.mrb[0].mxu0
      %v2145 = vadd.f32 0.0, %v2144
      %v2146 = vpop.f32.mrb[0].mxu0
      %v2147 = vpop.f32.mrb[0].mxu0
      %v2148 = vadd.f32 0.0, %v2147
      %v2149 = vpop.f32.mrb[0].mxu0
      %2150 = vmatprep.mubr.bf16.mxu0 %v2047
      %2151 = vmatmul.mubr.bf16.gmra.mrb[0].mxu0 %v2046
      %v2152 = vpop.f32.mrb[0].mxu0
      %v2153 = vadd.f32 0.0, %v2152
      %v2154 = vpop.f32.mrb[0].mxu0
      %v2155 = vpop.f32.mrb[0].mxu0
      %v2156 = vadd.f32 0.0, %v2155
      %v2157 = vpop.f32.mrb[0].mxu0
      %2158 = vmatprep.mubr.bf16.mxu0 %v2050
      %2159 = vmatmul.mubr.bf16.gmra.mrb[0].mxu0 %v2049
      %v2160 = vpop.f32.mrb[0].mxu0
      %v2161 = vadd.f32 0.0, %v2160
      %v2162 = vpop.f32.mrb[0].mxu0
      %v2163 = vpop.f32.mrb[0].mxu0
      %v2164 = vadd.f32 0.0, %v2163
      %v2165 = vpop.f32.mrb[0].mxu0
      %2166 = vmatprep.mubr.bf16.mxu0 %v2053
      %2167 = vmatmul.mubr.bf16.gmra.mrb[0].mxu0 %v2052
      %v2168 = vpop.f32.mrb[0].mxu0
      %v2169 = vadd.f32 0.0, %v2168
      %v2170 = vpop.f32.mrb[0].mxu0
      %v2171 = vpop.f32.mrb[0].mxu0
      %v2172 = vadd.f32 0.0, %v2171
      %v2173 = vpop.f32.mrb[0].mxu0
      %2174 = vmatprep.mubr.bf16.mxu0 %v2056
      %2175 = vmatmul.mubr.bf16.gmra.mrb[0].mxu0 %v2055
      %v2176 = vpop.f32.mrb[0].mxu0
      %v2177 = vadd.f32 0.0, %v2176
      %v2178 = vpop.f32.mrb[0].mxu0
      %v2179 = vpop.f32.mrb[0].mxu0
      %v2180 = vadd.f32 0.0, %v2179
      %v2181 = vpop.f32.mrb[0].mxu0
      %2182 = vmatprep.mubr.bf16.mxu0 %v2059
      %2183 = vmatmul.mubr.bf16.gmra.mrb[0].mxu0 %v2058
      %v2184 = vpop.f32.mrb[0].mxu0
      %v2185 = vadd.f32 0.0, %v2184
      %v2186 = vpop.f32.mrb[0].mxu0
      %v2187 = vpop.f32.mrb[0].mxu0
      %v2188 = vadd.f32 0.0, %v2187
      %v2189 = vpop.f32.mrb[0].mxu0
      %2190 = vdwg.mxu0
      %2191 = vmatprep.subr.bf16.mxu0 0
      %2192 = vmatpush1.bf16.msra.mxu0 %v2100
      %2193 = vmatprep.subr.bf16.mxu0 0
      %2194 = vmatpush1.bf16.msra.mxu0 0
      %2195 = vmatprep.subr.bf16.mxu0 0
      %2196 = vmatpush1.bf16.msra.mxu0 0
      %2197 = vmatprep.subr.bf16.mxu0 0
      %2198 = vmatpush1.bf16.msra.mxu0 0
      %2199 = vmatprep.subr.bf16.mxu0 0
      %2200 = vmatpush1.bf16.msra.mxu0 0
      %2201 = vmatprep.subr.bf16.mxu0 0
      %2202 = vmatpush1.bf16.msra.mxu0 0
      %2203 = vmatprep.subr.bf16.mxu0 0
      %2204 = vmatpush1.bf16.msra.mxu0 0
      %2205 = vmatprep.subr.bf16.mxu0 0
      %2206 = vmatpush1.bf16.msra.mxu0 0
      %2207 = vmatprep.subr.bf16.mxu0 0
      %2208 = vmatpush1.bf16.msra.mxu0 0
      %2209 = vmatprep.subr.bf16.mxu0 0
      %2210 = vmatpush1.bf16.msra.mxu0 0
      %2211 = vmatprep.subr.bf16.mxu0 0
      %2212 = vmatpush1.bf16.msra.mxu0 0
      %2213 = vmatprep.subr.bf16.mxu0 0
      %2214 = vmatpush1.bf16.msra.mxu0 0
      %2215 = vmatprep.subr.bf16.mxu0 0
      %2216 = vmatpush1.bf16.msra.mxu0 0
      %2217 = vmatprep.subr.bf16.mxu0 0
      %2218 = vmatpush1.bf16.msra.mxu0 0
      %2219 = vmatprep.subr.bf16.mxu0 0
      %2220 = vmatpush1.bf16.msra.mxu0 0
      %2221 = vmatprep.subr.bf16.mxu0 0
      %2222 = vmatpush1.bf16.msra.mxu0 0
      %2223 = vmatprep.mubr.bf16.mxu0 0
      %2224 = vmatmul.mubr.bf16.gmra.mrb[0].mxu0 %v2077
      %v2225 = vpop.f32.mrb[0].mxu0
      %v2226 = vadd.f32 %v2137, %v2225
      %v2227 = vpop.f32.mrb[0].mxu0
      %v2228 = vpop.f32.mrb[0].mxu0
      %v2229 = vadd.f32 %v2140, %v2228
      %v2230 = vpop.f32.mrb[0].mxu0
      %2231 = vmatprep.mubr.bf16.mxu0 0
      %2232 = vmatmul.mubr.bf16.gmra.mrb[0].mxu0 %v2080
      %v2233 = vpop.f32.mrb[0].mxu0
      %v2234 = vadd.f32 %v2145, %v2233
      %v2235 = vpop.f32.mrb[0].mxu0
      %v2236 = vpop.f32.mrb[0].mxu0
      %v2237 = vadd.f32 %v2148, %v2236
      %v2238 = vpop.f32.mrb[0].mxu0
      %2239 = vmatprep.mubr.bf16.mxu0 0
      %2240 = vmatmul.mubr.bf16.gmra.mrb[0].mxu0 %v2083
      %v2241 = vpop.f32.mrb[0].mxu0
      %v2242 = vadd.f32 %v2153, %v2241
      %v2243 = vpop.f32.mrb[0].mxu0
      %v2244 = vpop.f32.mrb[0].mxu0
      %v2245 = vadd.f32 %v2156, %v2244
      %v2246 = vpop.f32.mrb[0].mxu0
      %2247 = vmatprep.mubr.bf16.mxu0 0
      %2248 = vmatmul.mubr.bf16.gmra.mrb[0].mxu0 %v2086
      %v2249 = vpop.f32.mrb[0].mxu0
      %v2250 = vadd.f32 %v2161, %v2249
      %v2251 = vpop.f32.mrb[0].mxu0
      %v2252 = vpop.f32.mrb[0].mxu0
      %v2253 = vadd.f32 %v2164, %v2252
      %v2254 = vpop.f32.mrb[0].mxu0
      %2255 = vmatprep.mubr.bf16.mxu0 0
      %2256 = vmatmul.mubr.bf16.gmra.mrb[0].mxu0 %v2089
      %v2257 = vpop.f32.mrb[0].mxu0
      %v2258 = vadd.f32 %v2169, %v2257
      %v2259 = vpop.f32.mrb[0].mxu0
      %v2260 = vpop.f32.mrb[0].mxu0
      %v2261 = vadd.f32 %v2172, %v2260
      %v2262 = vpop.f32.mrb[0].mxu0
      %2263 = vmatprep.mubr.bf16.mxu0 0
      %2264 = vmatmul.mubr.bf16.gmra.mrb[0].mxu0 %v2092
      %v2265 = vpop.f32.mrb[0].mxu0
      %v2266 = vadd.f32 %v2177, %v2265
      %v2267 = vpop.f32.mrb[0].mxu0
      %v2268 = vpop.f32.mrb[0].mxu0
      %v2269 = vadd.f32 %v2180, %v2268
      %v2270 = vpop.f32.mrb[0].mxu0
      %2271 = vmatprep.mubr.bf16.mxu0 0
      %2272 = vmatmul.mubr.bf16.gmra.mrb[0].mxu0 %v2095
      %v2273 = vpop.f32.mrb[0].mxu0
      %v2274 = vadd.f32 %v2185, %v2273
      %v2275 = vpop.f32.mrb[0].mxu0
      %v2276 = vpop.f32.mrb[0].mxu0
      %v2277 = vadd.f32 %v2188, %v2276
      %v2278 = vpop.f32.mrb[0].mxu0
      %2279 = vdwg.mxu0
      %v2280 = vpack.c.bf16 %v2229, %v2226
      %v2281 = vpack.c.bf16 %v2237, %v2234
      %v2282 = vpack.c.bf16 %v2245, %v2242
      %v2283 = vpack.c.bf16 %v2253, %v2250
      %v2284 = vpack.c.bf16 %v2261, %v2258
      %v2285 = vpack.c.bf16 %v2269, %v2266
      %v2286 = vpack.c.bf16 %v2277, %v2274
      %v2294 = vunpack.c.l.b16 %v2280
      %v2295 = vunpack.c.h.b16 %v2280
      %v2296 = vunpack.c.l.b16 %v2281
      %v2297 = vunpack.c.h.b16 %v2281
      %v2298 = vunpack.c.l.b16 %v2282
      %v2299 = vunpack.c.h.b16 %v2282
      %v2300 = vunpack.c.l.b16 %v2283
      %v2301 = vunpack.c.h.b16 %v2283
      %v2302 = vunpack.c.l.b16 %v2284
      %v2303 = vunpack.c.h.b16 %v2284
      %v2304 = vunpack.c.l.b16 %v2285
      %v2305 = vunpack.c.h.b16 %v2285
      %v2306 = vunpack.c.l.b16 %v2286
      %v2307 = vunpack.c.h.b16 %v2286
      %v2308 = vpack.c.b16 %v2294, %v2294
      %v2309 = vpack.c.b16 %v2295, %v2295
      %v2310 = vpack.c.b16 %v2296, %v2296
      %v2311 = vpack.c.b16 %v2297, %v2297
      %v2312 = vpack.c.b16 %v2298, %v2298
      %v2313 = vpack.c.b16 %v2299, %v2299
      %v2314 = vpack.c.b16 %v2300, %v2300
      %v2315 = vpack.c.b16 %v2301, %v2301
      %v2316 = vpack.c.b16 %v2302, %v2302
      %v2317 = vpack.c.b16 %v2303, %v2303
      %v2318 = vpack.c.b16 %v2304, %v2304
      %v2319 = vpack.c.b16 %v2305, %v2305
      %v2320 = vpack.c.b16 %v2306, %v2306
      %v2321 = vpack.c.b16 %v2307, %v2307
      %vm2336 = vcmask 60416
      %2337 = vst.msk [vmem:[%s224] sm:$0xf] %vm2336, %v2308
      %2338 = vst.msk [vmem:[%s224 + $0x4] sm:$0xf] %vm2336, %v2309
      %2339 = vst.msk [vmem:[%s224 + $0x8] sm:$0xf] %vm2336, %v2310
      %2340 = vst.msk [vmem:[%s224 + $0xc] sm:$0xf] %vm2336, %v2311
      %2341 = vst.msk [vmem:[%s224 + $0x10] sm:$0xf] %vm2336, %v2312
      %2342 = vst.msk [vmem:[%s224 + $0x14] sm:$0xf] %vm2336, %v2313
      %2343 = vst.msk [vmem:[%s224 + $0x18] sm:$0xf] %vm2336, %v2314
      %2344 = vst.msk [vmem:[%s224 + $0x1c] sm:$0xf] %vm2336, %v2315
      %2345 = vst.msk [vmem:[%s224 + $0x20] sm:$0xf] %vm2336, %v2316
      %2346 = vst.msk [vmem:[%s224 + $0x24] sm:$0xf] %vm2336, %v2317
      %2347 = vst.msk [vmem:[%s224 + $0x28] sm:$0xf] %vm2336, %v2318
      %2348 = vst.msk [vmem:[%s224 + $0x2c] sm:$0xf] %vm2336, %v2319
      %2349 = vst.msk [vmem:[%s224 + $0x30] sm:$0xf] %vm2336, %v2320
      %2350 = vst.msk [vmem:[%s224 + $0x34] sm:$0xf] %vm2336, %v2321
      %p2351 = scmp.lt.s32.totalorder %s16, 1
      %s2352 = scalar_select %p2351, %s16, 1
      %s2353 = smul.addr %s2352, 14
      %s2354 = smul.addr %s2353, 4
      %s2355 = scalar_lea.vmem %s5, %s2354
      // Predicated region
      $region41: #{_lambda_.5} parent=39 // pred_check
        %p2356 = pneg %p144
      $region42: #{_lambda_.5} parent=39 // pred_check_branch
        %2358 = sbr.rel (%p2356) target = $region44
      $region43: #{_lambda_.5} parent=39 // pred_region
        _
      $region44: #{_lambda_.5} parent=39 // pred_fallthru
        _
    $region40: #{_lambda_.5} parent=5 // pred_fallthru
      _
    %p2359 = scmp.le.s32.totalorder 2, %s11
    // Predicated region
    $region45: #{_lambda_.5} parent=5 // pred_check
      %p2360 = pneg %p2359
    $region46: #{_lambda_.5} parent=5 // pred_check_branch
      %2362 = sbr.rel (%p2360) target = $region48
    $region47: #{_lambda_.5} parent=5 // pred_region
      %s2363 = ssub.s32 %s11, 2
      // Predicated region
      $region49: #{_lambda_.5} parent=47 // pred_check
        %p2364 = pneg %p150
      $region50: #{_lambda_.5} parent=47 // pred_check_branch
        %2366 = sbr.rel (%p2364) target = $region52
      $region51: #{_lambda_.5} parent=47 // pred_region
        %p2367 = scmp.lt.s32.totalorder %s17, 1
        %s2368 = scalar_select %p2367, %s17, 1
        %s2369 = smul.addr %s2368, 14
        %s2370 = smul.addr %s2369, 4
        %s2371 = scalar_lea.vmem %s5, %s2370
      $region52: #{_lambda_.5} parent=47 // pred_fallthru
        _
    $region48: #{_lambda_.5} parent=5 // pred_fallthru
      _
  $region6: #{_lambda_.5} parent=0 // loop_footer
    %s15 = sadd.s32 1, %s11
  $region7: #{_lambda_.5} parent=0 // loop_footer_branch
    %10 = sbr.rel target = $region3
  $region8: #{_lambda_.5} parent=0 // loop_exit
    _

// kernel: _lambda_.8
$region0: #{_lambda_.8}
  #allocation0 [shape = 'u32[]', space=smem, size = 0x4, offset = 0x4, fixed_abs, tag = 'smem constant byte address 0x4 - core index']
  #allocation1 [shape = 'u32[144,128]{1,0:T(1,128)}', space=vmem, size = 0x12000, scoped, tag = 'internal scratch']
  %s0 = inlined_call_operand.vmem [shape: bf16[2,112,8], index: 0, kind: input, shape index: {}]
  %s1 = inlined_call_operand.vmem [shape: bf16[9,8,16], index: 1, kind: input, shape index: {}]
  %s2 = inlined_call_operand.vmem [shape: f32[1,16], index: 2, kind: input, shape index: {}, may-alias: {2,4}]
  %s3 = inlined_call_operand.vmem [shape: bf16[9,16,16], index: 3, kind: input, shape index: {}]
  %s4 = inlined_call_operand.vmem [shape: f32[1,16], index: 4, kind: input, shape index: {}, may-alias: {2,4}]
  %s5 = inlined_call_operand.vmem [shape: bf16[48,67], index: 5, kind: input, shape index: {}]
  %s6 = inlined_call_operand.vmem [shape: bf16[48,22], index: 6, kind: input, shape index: {}]
  %s7 = inlined_call_operand.vmem [shape: bf16[48,112], index: 7, kind: input, shape index: {}]
  %s8 = inlined_call_operand.vmem [shape: bf16[8,16], index: 8, kind: input, shape index: {}]
  %s9 = inlined_call_operand.vmem [shape: bf16[2,48,16], index: 9, kind: output, shape index: {}]
  %s10 = sld [smem:[#allocation0]]
  $region69: #{_lambda_.8} parent=0
    _
  %s12 = ssub.s32 1, %s10
  %s13 = scalar_select 0, %s12, %s10
  loop: start=0, step=1, limit=4
  $region2: #{_lambda_.8} parent=0 // loop_pre_header
    _
  $region3: #{_lambda_.8} parent=0 // loop_header
    %s15 = sphi 0, %s19
    %p16 = scmp.ge.s32.totalorder %s15, 4
    %s25 = sphi 0, %s27
    %s28 = sphi 0, %s25
    %s29 = sphi 0, %s28
    %s45 = sphi 0, %s29
    %s49 = sphi 0, %s49
    %s51 = sphi 0, %s49
    %s52 = sphi 0, %s51
    %s66 = sphi 0, %s52
    %s70 = sphi 0, %s70
    %s72 = sphi 0, %s70
    %s73 = sphi 0, %s72
    %s87 = sphi 0, %s73
    %s91 = sphi 0, %s91
    %s93 = sphi 0, %s91
    %s94 = sphi 0, %s93
    %s108 = sphi 0, %s94
    %s112 = sphi 0, %s112
    %s114 = sphi 0, %s112
    %s115 = sphi 0, %s114
    %s129 = sphi 0, %s115
    %s133 = sphi 0, %s133
    %s135 = sphi 0, %s133
    %s136 = sphi 0, %s135
    %s150 = sphi 0, %s136
    %s154 = sphi 0, %s154
    %s156 = sphi 0, %s154
    %s157 = sphi 0, %s156
    %s171 = sphi 0, %s157
    %s175 = sphi 0, %s175
    %s177 = sphi 0, %s175
    %s178 = sphi 0, %s177
    %s192 = sphi 0, %s178
    %s196 = sphi 0, %s196
    %s198 = sphi 0, %s196
    %s199 = sphi 0, %s198
    %s213 = sphi 0, %s199
    %s219 = sphi 0, %s221
    %s222 = sphi 0, %s219
    %s223 = sphi 0, %s222
    %s239 = sphi 0, %s223
  $region4: #{_lambda_.8} parent=0 // loop_header_branch
    %18 = sbr.rel (%p16) target = $region8
  $region5: #{_lambda_.8} parent=0 // loop_body
    %s20 = ssub.s32 %s15, 1
    %s21 = ssub.s32 %s15, 2
    %s22 = sadd.s32 %s15, 1
    %s23 = ssub.s32 %s15, %s22
    %p24 = scmp.eq.s32.totalorder %s23, 0
    %s26 = sadd.s32 %s25, 1
    %s27 = scalar_select %p24, %s25, %s26
    %p30 = pneg %p24
    %p31 = scmp.eq.s32.totalorder %s15, 1
    %p32 = por %p30, %p31
    %p33 = scmp.ne.s32.totalorder %s25, %s28
    %p34 = scmp.eq.s32.totalorder %s15, 0
    %p35 = por %p33, %p34
    %p36 = scmp.ne.s32.totalorder %s25, %s28
    %p37 = scmp.eq.s32.totalorder %s20, 1
    %p38 = por %p36, %p37
    %p39 = scmp.ne.s32.totalorder %s28, %s29
    %p40 = scmp.eq.s32.totalorder %s20, 0
    %p41 = por %p39, %p40
    %p42 = scmp.ne.s32.totalorder %s28, %s29
    %p43 = scmp.eq.s32.totalorder %s21, 1
    %p44 = por %p42, %p43
    %p46 = scmp.ne.s32.totalorder %s29, %s45
    %p47 = scmp.eq.s32.totalorder %s21, 0
    %p48 = por %p46, %p47
    %s50 = sadd.s32 %s49, 1
    %p53 = scmp.eq.s32.totalorder %s15, 1
    %p54 = scmp.ne.s32.totalorder %s49, %s51
    %p55 = scmp.eq.s32.totalorder %s15, 0
    %p56 = por %p54, %p55
    %p57 = scmp.ne.s32.totalorder %s49, %s51
    %p58 = scmp.eq.s32.totalorder %s20, 1
    %p59 = por %p57, %p58
    %p60 = scmp.ne.s32.totalorder %s51, %s52
    %p61 = scmp.eq.s32.totalorder %s20, 0
    %p62 = por %p60, %p61
    %p63 = scmp.ne.s32.totalorder %s51, %s52
    %p64 = scmp.eq.s32.totalorder %s21, 1
    %p65 = por %p63, %p64
    %p67 = scmp.ne.s32.totalorder %s52, %s66
    %p68 = scmp.eq.s32.totalorder %s21, 0
    %p69 = por %p67, %p68
    %s71 = sadd.s32 %s70, 1
    %p74 = scmp.eq.s32.totalorder %s15, 1
    %p75 = scmp.ne.s32.totalorder %s70, %s72
    %p76 = scmp.eq.s32.totalorder %s15, 0
    %p77 = por %p75, %p76
    %p78 = scmp.ne.s32.totalorder %s70, %s72
    %p79 = scmp.eq.s32.totalorder %s20, 1
    %p80 = por %p78, %p79
    %p81 = scmp.ne.s32.totalorder %s72, %s73
    %p82 = scmp.eq.s32.totalorder %s20, 0
    %p83 = por %p81, %p82
    %p84 = scmp.ne.s32.totalorder %s72, %s73
    %p85 = scmp.eq.s32.totalorder %s21, 1
    %p86 = por %p84, %p85
    %p88 = scmp.ne.s32.totalorder %s73, %s87
    %p89 = scmp.eq.s32.totalorder %s21, 0
    %p90 = por %p88, %p89
    %s92 = sadd.s32 %s91, 1
    %p95 = scmp.eq.s32.totalorder %s15, 1
    %p96 = scmp.ne.s32.totalorder %s91, %s93
    %p97 = scmp.eq.s32.totalorder %s15, 0
    %p98 = por %p96, %p97
    %p99 = scmp.ne.s32.totalorder %s91, %s93
    %p100 = scmp.eq.s32.totalorder %s20, 1
    %p101 = por %p99, %p100
    %p102 = scmp.ne.s32.totalorder %s93, %s94
    %p103 = scmp.eq.s32.totalorder %s20, 0
    %p104 = por %p102, %p103
    %p105 = scmp.ne.s32.totalorder %s93, %s94
    %p106 = scmp.eq.s32.totalorder %s21, 1
    %p107 = por %p105, %p106
    %p109 = scmp.ne.s32.totalorder %s94, %s108
    %p110 = scmp.eq.s32.totalorder %s21, 0
    %p111 = por %p109, %p110
    %s113 = sadd.s32 %s112, 1
    %p116 = scmp.eq.s32.totalorder %s15, 1
    %p117 = scmp.ne.s32.totalorder %s112, %s114
    %p118 = scmp.eq.s32.totalorder %s15, 0
    %p119 = por %p117, %p118
    %p120 = scmp.ne.s32.totalorder %s112, %s114
    %p121 = scmp.eq.s32.totalorder %s20, 1
    %p122 = por %p120, %p121
    %p123 = scmp.ne.s32.totalorder %s114, %s115
    %p124 = scmp.eq.s32.totalorder %s20, 0
    %p125 = por %p123, %p124
    %p126 = scmp.ne.s32.totalorder %s114, %s115
    %p127 = scmp.eq.s32.totalorder %s21, 1
    %p128 = por %p126, %p127
    %p130 = scmp.ne.s32.totalorder %s115, %s129
    %p131 = scmp.eq.s32.totalorder %s21, 0
    %p132 = por %p130, %p131
    %s134 = sadd.s32 %s133, 1
    %p137 = scmp.eq.s32.totalorder %s15, 1
    %p138 = scmp.ne.s32.totalorder %s133, %s135
    %p139 = scmp.eq.s32.totalorder %s15, 0
    %p140 = por %p138, %p139
    %p141 = scmp.ne.s32.totalorder %s133, %s135
    %p142 = scmp.eq.s32.totalorder %s20, 1
    %p143 = por %p141, %p142
    %p144 = scmp.ne.s32.totalorder %s135, %s136
    %p145 = scmp.eq.s32.totalorder %s20, 0
    %p146 = por %p144, %p145
    %p147 = scmp.ne.s32.totalorder %s135, %s136
    %p148 = scmp.eq.s32.totalorder %s21, 1
    %p149 = por %p147, %p148
    %p151 = scmp.ne.s32.totalorder %s136, %s150
    %p152 = scmp.eq.s32.totalorder %s21, 0
    %p153 = por %p151, %p152
    %s155 = sadd.s32 %s154, 1
    %p158 = scmp.eq.s32.totalorder %s15, 1
    %p159 = scmp.ne.s32.totalorder %s154, %s156
    %p160 = scmp.eq.s32.totalorder %s15, 0
    %p161 = por %p159, %p160
    %p162 = scmp.ne.s32.totalorder %s154, %s156
    %p163 = scmp.eq.s32.totalorder %s20, 1
    %p164 = por %p162, %p163
    %p165 = scmp.ne.s32.totalorder %s156, %s157
    %p166 = scmp.eq.s32.totalorder %s20, 0
    %p167 = por %p165, %p166
    %p168 = scmp.ne.s32.totalorder %s156, %s157
    %p169 = scmp.eq.s32.totalorder %s21, 1
    %p170 = por %p168, %p169
    %p172 = scmp.ne.s32.totalorder %s157, %s171
    %p173 = scmp.eq.s32.totalorder %s21, 0
    %p174 = por %p172, %p173
    %s176 = sadd.s32 %s175, 1
    %p179 = scmp.eq.s32.totalorder %s15, 1
    %p180 = scmp.ne.s32.totalorder %s175, %s177
    %p181 = scmp.eq.s32.totalorder %s15, 0
    %p182 = por %p180, %p181
    %p183 = scmp.ne.s32.totalorder %s175, %s177
    %p184 = scmp.eq.s32.totalorder %s20, 1
    %p185 = por %p183, %p184
    %p186 = scmp.ne.s32.totalorder %s177, %s178
    %p187 = scmp.eq.s32.totalorder %s20, 0
    %p188 = por %p186, %p187
    %p189 = scmp.ne.s32.totalorder %s177, %s178
    %p190 = scmp.eq.s32.totalorder %s21, 1
    %p191 = por %p189, %p190
    %p193 = scmp.ne.s32.totalorder %s178, %s192
    %p194 = scmp.eq.s32.totalorder %s21, 0
    %p195 = por %p193, %p194
    %s197 = sadd.s32 %s196, 1
    %p200 = scmp.eq.s32.totalorder %s15, 1
    %p201 = scmp.ne.s32.totalorder %s196, %s198
    %p202 = scmp.eq.s32.totalorder %s15, 0
    %p203 = por %p201, %p202
    %p204 = scmp.ne.s32.totalorder %s196, %s198
    %p205 = scmp.eq.s32.totalorder %s20, 1
    %p206 = por %p204, %p205
    %p207 = scmp.ne.s32.totalorder %s198, %s199
    %p208 = scmp.eq.s32.totalorder %s20, 0
    %p209 = por %p207, %p208
    %p210 = scmp.ne.s32.totalorder %s198, %s199
    %p211 = scmp.eq.s32.totalorder %s21, 1
    %p212 = por %p210, %p211
    %p214 = scmp.ne.s32.totalorder %s199, %s213
    %p215 = scmp.eq.s32.totalorder %s21, 0
    %p216 = por %p214, %p215
    %s217 = ssub.s32 %s15, %s22
    %p218 = scmp.eq.s32.totalorder %s217, 0
    %s220 = sadd.s32 %s219, 1
    %s221 = scalar_select %p218, %s219, %s220
    %p224 = pneg %p218
    %p225 = scmp.eq.s32.totalorder %s15, 1
    %p226 = por %p224, %p225
    %p227 = scmp.ne.s32.totalorder %s219, %s222
    %p228 = scmp.eq.s32.totalorder %s15, 0
    %p229 = por %p227, %p228
    %p230 = scmp.ne.s32.totalorder %s219, %s222
    %p231 = scmp.eq.s32.totalorder %s20, 1
    %p232 = por %p230, %p231
    %p233 = scmp.ne.s32.totalorder %s222, %s223
    %p234 = scmp.eq.s32.totalorder %s20, 0
    %p235 = por %p233, %p234
    %p236 = scmp.ne.s32.totalorder %s222, %s223
    %p237 = scmp.eq.s32.totalorder %s21, 1
    %p238 = por %p236, %p237
    %p240 = scmp.ne.s32.totalorder %s223, %s239
    %p241 = scmp.eq.s32.totalorder %s21, 0
    %p242 = por %p240, %p241
    %p243 = scmp.le.s32.totalorder 1, %s15
    %p244 = scmp.lt.s32.totalorder %s15, 3
    %p245 = pnand %p243, %p244
    %p246 = pneg %p245
    // Predicated region
    $region9: #{_lambda_.8} parent=5 // pred_check
      _
    $region10: #{_lambda_.8} parent=5 // pred_check_branch
      %248 = sbr.rel (%p245) target = $region12
    $region11: #{_lambda_.8} parent=5 // pred_region
      %s249 = ssub.s32 %s15, 1
      // Predicated region
      $region13: #{_lambda_.8} parent=11 // pred_check
        %p250 = pneg %p62
      $region14: #{_lambda_.8} parent=11 // pred_check_branch
        %252 = sbr.rel (%p250) target = $region16
      $region15: #{_lambda_.8} parent=11 // pred_region
        _
      $region16: #{_lambda_.8} parent=11 // pred_fallthru
        _
      // Predicated region
      $region17: #{_lambda_.8} parent=11 // pred_check
        %p253 = pneg %p83
      $region18: #{_lambda_.8} parent=11 // pred_check_branch
        %255 = sbr.rel (%p253) target = $region20
      $region19: #{_lambda_.8} parent=11 // pred_region
        _
      $region20: #{_lambda_.8} parent=11 // pred_fallthru
        _
      // Predicated region
      $region21: #{_lambda_.8} parent=11 // pred_check
        %p256 = pneg %p104
      $region22: #{_lambda_.8} parent=11 // pred_check_branch
        %258 = sbr.rel (%p256) target = $region24
      $region23: #{_lambda_.8} parent=11 // pred_region
        _
      $region24: #{_lambda_.8} parent=11 // pred_fallthru
        _
      // Predicated region
      $region25: #{_lambda_.8} parent=11 // pred_check
        %p259 = pneg %p125
      $region26: #{_lambda_.8} parent=11 // pred_check_branch
        %261 = sbr.rel (%p259) target = $region28
      $region27: #{_lambda_.8} parent=11 // pred_region
        _
      $region28: #{_lambda_.8} parent=11 // pred_fallthru
        _
      // Predicated region
      $region29: #{_lambda_.8} parent=11 // pred_check
        %p262 = pneg %p146
      $region30: #{_lambda_.8} parent=11 // pred_check_branch
        %264 = sbr.rel (%p262) target = $region32
      $region31: #{_lambda_.8} parent=11 // pred_region
        _
      $region32: #{_lambda_.8} parent=11 // pred_fallthru
        _
      // Predicated region
      $region33: #{_lambda_.8} parent=11 // pred_check
        %p265 = pneg %p167
      $region34: #{_lambda_.8} parent=11 // pred_check_branch
        %267 = sbr.rel (%p265) target = $region36
      $region35: #{_lambda_.8} parent=11 // pred_region
        _
      $region36: #{_lambda_.8} parent=11 // pred_fallthru
        _
      // Predicated region
      $region37: #{_lambda_.8} parent=11 // pred_check
        %p268 = pneg %p188
      $region38: #{_lambda_.8} parent=11 // pred_check_branch
        %270 = sbr.rel (%p268) target = $region40
      $region39: #{_lambda_.8} parent=11 // pred_region
        _
      $region40: #{_lambda_.8} parent=11 // pred_fallthru
        _
      // Predicated region
      $region41: #{_lambda_.8} parent=11 // pred_check
        %p271 = pneg %p209
      $region42: #{_lambda_.8} parent=11 // pred_check_branch
        %273 = sbr.rel (%p271) target = $region44
      $region43: #{_lambda_.8} parent=11 // pred_region
        _
      $region44: #{_lambda_.8} parent=11 // pred_fallthru
        _
    $region12: #{_lambda_.8} parent=5 // pred_fallthru
      _
    %p274 = scmp.lt.s32.totalorder %s15, 2
    // Predicated region
    $region45: #{_lambda_.8} parent=5 // pred_check
      %p275 = pneg %p274
    $region46: #{_lambda_.8} parent=5 // pred_check_branch
      %277 = sbr.rel (%p275) target = $region48
    $region47: #{_lambda_.8} parent=5 // pred_region
      // Predicated region
      $region49: #{_lambda_.8} parent=47 // pred_check
        %p278 = pneg %p35
      $region50: #{_lambda_.8} parent=47 // pred_check_branch
        %280 = sbr.rel (%p278) target = $region52
      $region51: #{_lambda_.8} parent=47 // pred_region
        %p281 = scmp.lt.s32.totalorder %s15, 1
        %s282 = scalar_select %p281, %s15, 1
        %s283 = smul.addr %s282, 14
        %s284 = smul.addr %s283, 4
        %s285 = scalar_lea.vmem %s0, %s284
      $region52: #{_lambda_.8} parent=47 // pred_fallthru
        _
    $region48: #{_lambda_.8} parent=5 // pred_fallthru
      _
    %p286 = scmp.le.s32.totalorder 1, %s15
    %p287 = scmp.lt.s32.totalorder %s15, 3
    %p288 = pnand %p286, %p287
    %p289 = pneg %p288
    // Predicated region
    $region53: #{_lambda_.8} parent=5 // pred_check
      _
    $region54: #{_lambda_.8} parent=5 // pred_check_branch
      %291 = sbr.rel (%p288) target = $region56
    $region55: #{_lambda_.8} parent=5 // pred_region
      %s292 = ssub.s32 %s15, 1
      %p293 = scmp.lt.s32.totalorder %s20, 1
      %s294 = scalar_select %p293, %s20, 1
      %s295 = smul.addr %s294, 14
      %s296 = smul.addr %s295, 4
      %s297 = scalar_lea.vmem %s0, %s296
      %p298 = pneg %p41
      %p299 = pneg %p38
      %p300 = pneg %p62
      %p301 = pneg %p59
      %p302 = pneg %p83
      %p303 = pneg %p80
      %p304 = pneg %p104
      %p305 = pneg %p101
      %p306 = pneg %p125
      %p307 = pneg %p122
      %p308 = pneg %p146
      %p309 = pneg %p143
      %p310 = pneg %p167
      %p311 = pneg %p164
      %p312 = pneg %p188
      %p313 = pneg %p185
      %p314 = pneg %p209
      %p315 = pneg %p206
      %p316 = pneg %p235
      %p317 = pneg %p232
      %p318 = scmp.lt.s32.totalorder %s20, 1
      %s319 = scalar_select %p318, %s20, 1
      %s320 = smul.addr %s319, 6
      %s321 = smul.addr %s320, 4
      %s322 = scalar_lea.vmem %s9, %s321
      %p323 = scmp.lt.s32.totalorder %s20, 1
      %s324 = scalar_select %p323, %s20, 1
      %s325 = smul.addr %s324, 14
      %s326 = smul.addr %s325, 4
      %s327 = scalar_lea.vmem %s0, %s326
      %p328 = scmp.lt.s32.totalorder %s20, 1
      %s329 = scalar_select %p328, %s20, 1
      %s330 = smul.addr %s329, 6
      %s331 = smul.addr %s330, 4
      %s332 = scalar_lea.vmem %s9, %s331
      %v334 = vld [vmem:[%s327] sm:$0xf]
      %v335 = vld [vmem:[%s327 + $0x4] sm:$0xf]
      %v336 = vld [vmem:[%s327 + $0x8] sm:$0xf]
      %v337 = vld [vmem:[%s327 + $0xc] sm:$0xf]
      %v338 = vld [vmem:[%s327 + $0x10] sm:$0xf]
      %v339 = vld [vmem:[%s327 + $0x14] sm:$0xf]
      %v340 = vld [vmem:[%s327 + $0x18] sm:$0xf]
      %v341 = vld [vmem:[%s327 + $0x1c] sm:$0xf]
      %v342 = vld [vmem:[%s327 + $0x20] sm:$0x3]
      %v343 = vld [vmem:[%s1] sm:$0xf]
      %s344 = scalar_lea.vmem %s1, 4
      %v345 = vld [vmem:[%s344] sm:$0xf]
      %v355 = vunpack.c.l.b16 %v334
      %v356 = vunpack.c.l.b16 %v335
      %v357 = vunpack.c.l.b16 %v336
      %v358 = vunpack.c.l.b16 %v337
      %v359 = vunpack.c.l.b16 %v338
      %v360 = vunpack.c.l.b16 %v339
      %v361 = vunpack.c.l.b16 %v340
      %v362 = vunpack.c.l.b16 %v341
      %v363 = vunpack.c.l.b16 %v342
      %v364 = vpack.c.b16 %v356, %v355
      %v365 = vpack.c.b16 %v358, %v357
      %v366 = vpack.c.b16 %v360, %v359
      %v367 = vpack.c.b16 %v362, %v361
      %v368 = vpack.c.b16 %v363, %v363
      %vm369 = vsmask.f32 7424
      %v371 = vshrl.u32 %v364, 16
      %v373 = vshll.u32 %v364, 16
      %v375 = vrot.slane %v373, 1
      %v376 = vor.u32 %v371, %v375
      %v378 = vshll.u32 %v365, 16
      %v380 = vrot.slane %v378, 1
      %v381 = vsel %vm369, %v376, %v380
      %v382 = vshrl.u32 %v365, 16
      %v384 = vor.u32 %v382, %v380
      %v386 = vshll.u32 %v366, 16
      %v388 = vrot.slane %v386, 1
      %v389 = vsel %vm369, %v384, %v388
      %v390 = vshrl.u32 %v366, 16
      %v392 = vor.u32 %v390, %v388
      %v394 = vshll.u32 %v367, 16
      %v396 = vrot.slane %v394, 1
      %v397 = vsel %vm369, %v392, %v396
      %v398 = vshrl.u32 %v367, 16
      %v400 = vor.u32 %v398, %v396
      %v402 = vshll.u32 %v368, 16
      %v404 = vrot.slane %v402, 1
      %v405 = vsel %vm369, %v400, %v404
      %v406 = vshrl.u32 %v368, 16
      %v408 = vor.u32 %v406, %v404
      %vm409 = vcmask 64512
      %v411 = vsel %vm409, %v381, 0
      %v414 = vsel %vm409, %v389, 0
      %v417 = vsel %vm409, %v397, 0
      %v420 = vsel %vm409, %v405, 0
      %v423 = vsel %vm409, %v408, 0
      %vm425 = vcmask 1043456
      %v427 = vsel %vm425, %v345, 0
      %429 = vmatprep.subr.bf16.mxu0 0
      %430 = vmatpush1.bf16.msra.mxu0 %v427
      %431 = vmatprep.subr.bf16.mxu0 0
      %432 = vmatpush1.bf16.msra.mxu0 0
      %433 = vmatprep.subr.bf16.mxu0 0
      %434 = vmatpush1.bf16.msra.mxu0 0
      %435 = vmatprep.subr.bf16.mxu0 0
      %436 = vmatpush1.bf16.msra.mxu0 0
      %437 = vmatprep.subr.bf16.mxu0 0
      %438 = vmatpush1.bf16.msra.mxu0 0
      %439 = vmatprep.subr.bf16.mxu0 0
      %440 = vmatpush1.bf16.msra.mxu0 0
      %441 = vmatprep.subr.bf16.mxu0 0
      %442 = vmatpush1.bf16.msra.mxu0 0
      %443 = vmatprep.subr.bf16.mxu0 0
      %444 = vmatpush1.bf16.msra.mxu0 0
      %445 = vmatprep.subr.bf16.mxu0 0
      %446 = vmatpush1.bf16.msra.mxu0 0
      %447 = vmatprep.subr.bf16.mxu0 0
      %448 = vmatpush1.bf16.msra.mxu0 0
      %449 = vmatprep.subr.bf16.mxu0 0
      %450 = vmatpush1.bf16.msra.mxu0 0
      %451 = vmatprep.subr.bf16.mxu0 0
      %452 = vmatpush1.bf16.msra.mxu0 0
      %453 = vmatprep.subr.bf16.mxu0 0
      %454 = vmatpush1.bf16.msra.mxu0 0
      %455 = vmatprep.subr.bf16.mxu0 0
      %456 = vmatpush1.bf16.msra.mxu0 0
      %457 = vmatprep.subr.bf16.mxu0 0
      %458 = vmatpush1.bf16.msra.mxu0 0
      %459 = vmatprep.subr.bf16.mxu0 0
      %460 = vmatpush1.bf16.msra.mxu0 0
      %461 = vmatprep.mubr.bf16.mxu0 0
      %462 = vmatmul.mubr.bf16.gmra.mrb[0].mxu0 %v411
      %v463 = vpop.f32.mrb[0].mxu0
      %v464 = vadd.f32 0.0, %v463
      %v465 = vpop.f32.mrb[0].mxu0
      %v466 = vpop.f32.mrb[0].mxu0
      %v467 = vadd.f32 0.0, %v466
      %v468 = vpop.f32.mrb[0].mxu0
      %469 = vmatprep.mubr.bf16.mxu0 0
      %470 = vmatmul.mubr.bf16.gmra.mrb[0].mxu0 %v414
      %v471 = vpop.f32.mrb[0].mxu0
      %v472 = vadd.f32 0.0, %v471
      %v473 = vpop.f32.mrb[0].mxu0
      %v474 = vpop.f32.mrb[0].mxu0
      %v475 = vadd.f32 0.0, %v474
      %v476 = vpop.f32.mrb[0].mxu0
      %477 = vmatprep.mubr.bf16.mxu0 0
      %478 = vmatmul.mubr.bf16.gmra.mrb[0].mxu0 %v417
      %v479 = vpop.f32.mrb[0].mxu0
      %v480 = vadd.f32 0.0, %v479
      %v481 = vpop.f32.mrb[0].mxu0
      %v482 = vpop.f32.mrb[0].mxu0
      %v483 = vadd.f32 0.0, %v482
      %v484 = vpop.f32.mrb[0].mxu0
      %485 = vmatprep.mubr.bf16.mxu0 0
      %486 = vmatmul.mubr.bf16.gmra.mrb[0].mxu0 %v420
      %v487 = vpop.f32.mrb[0].mxu0
      %v488 = vadd.f32 0.0, %v487
      %v489 = vpop.f32.mrb[0].mxu0
      %v490 = vpop.f32.mrb[0].mxu0
      %v491 = vadd.f32 0.0, %v490
      %v492 = vpop.f32.mrb[0].mxu0
      %493 = vmatprep.mubr.bf16.mxu0 0
      %494 = vmatmul.mubr.bf16.gmra.mrb[0].mxu0 %v423
      %v495 = vpop.f32.mrb[0].mxu0
      %v496 = vadd.f32 0.0, %v495
      %v497 = vpop.f32.mrb[0].mxu0
      %v498 = vpop.f32.mrb[0].mxu0
      %v499 = vpop.f32.mrb[0].mxu0
      %500 = vdwg.mxu0
      %v501 = vsel %vm409, %v364, 0
      %v503 = vsel %vm409, %v365, 0
      %v505 = vsel %vm409, %v366, 0
      %v507 = vsel %vm409, %v367, 0
      %v509 = vsel %vm409, %v368, 0
      %v512 = vsel %vm425, %v343, 0
      %514 = vmatprep.subr.bf16.mxu0 0
      %515 = vmatpush1.bf16.msra.mxu0 %v512
      %516 = vmatprep.subr.bf16.mxu0 0
      %517 = vmatpush1.bf16.msra.mxu0 0
      %518 = vmatprep.subr.bf16.mxu0 0
      %519 = vmatpush1.bf16.msra.mxu0 0
      %520 = vmatprep.subr.bf16.mxu0 0
      %521 = vmatpush1.bf16.msra.mxu0 0
      %522 = vmatprep.subr.bf16.mxu0 0
      %523 = vmatpush1.bf16.msra.mxu0 0
      %524 = vmatprep.subr.bf16.mxu0 0
      %525 = vmatpush1.bf16.msra.mxu0 0
      %526 = vmatprep.subr.bf16.mxu0 0
      %527 = vmatpush1.bf16.msra.mxu0 0
      %528 = vmatprep.subr.bf16.mxu0 0
      %529 = vmatpush1.bf16.msra.mxu0 0
      %530 = vmatprep.subr.bf16.mxu0 0
      %531 = vmatpush1.bf16.msra.mxu0 0
      %532 = vmatprep.subr.bf16.mxu0 0
      %533 = vmatpush1.bf16.msra.mxu0 0
      %534 = vmatprep.subr.bf16.mxu0 0
      %535 = vmatpush1.bf16.msra.mxu0 0
      %536 = vmatprep.subr.bf16.mxu0 0
      %537 = vmatpush1.bf16.msra.mxu0 0
      %538 = vmatprep.subr.bf16.mxu0 0
      %539 = vmatpush1.bf16.msra.mxu0 0
      %540 = vmatprep.subr.bf16.mxu0 0
      %541 = vmatpush1.bf16.msra.mxu0 0
      %542 = vmatprep.subr.bf16.mxu0 0
      %543 = vmatpush1.bf16.msra.mxu0 0
      %544 = vmatprep.subr.bf16.mxu0 0
      %545 = vmatpush1.bf16.msra.mxu0 0
      %546 = vmatprep.mubr.bf16.mxu0 0
      %547 = vmatmul.mubr.bf16.gmra.mrb[0].mxu0 %v501
      %v548 = vpop.f32.mrb[0].mxu0
      %v549 = vadd.f32 %v464, %v548
      %v550 = vpop.f32.mrb[0].mxu0
      %v551 = vpop.f32.mrb[0].mxu0
      %v552 = vadd.f32 %v467, %v551
      %v553 = vpop.f32.mrb[0].mxu0
      %554 = vmatprep.mubr.bf16.mxu0 0
      %555 = vmatmul.mubr.bf16.gmra.mrb[0].mxu0 %v503
      %v556 = vpop.f32.mrb[0].mxu0
      %v557 = vadd.f32 %v472, %v556
      %v558 = vpop.f32.mrb[0].mxu0
      %v559 = vpop.f32.mrb[0].mxu0
      %v560 = vadd.f32 %v475, %v559
      %v561 = vpop.f32.mrb[0].mxu0
      %562 = vmatprep.mubr.bf16.mxu0 0
      %563 = vmatmul.mubr.bf16.gmra.mrb[0].mxu0 %v505
      %v564 = vpop.f32.mrb[0].mxu0
      %v565 = vadd.f32 %v480, %v564
      %v566 = vpop.f32.mrb[0].mxu0
      %v567 = vpop.f32.mrb[0].mxu0
      %v568 = vadd.f32 %v483, %v567
      %v569 = vpop.f32.mrb[0].mxu0
      %570 = vmatprep.mubr.bf16.mxu0 0
      %571 = vmatmul.mubr.bf16.gmra.mrb[0].mxu0 %v507
      %v572 = vpop.f32.mrb[0].mxu0
      %v573 = vadd.f32 %v488, %v572
      %v574 = vpop.f32.mrb[0].mxu0
      %v575 = vpop.f32.mrb[0].mxu0
      %v576 = vadd.f32 %v491, %v575
      %v577 = vpop.f32.mrb[0].mxu0
      %578 = vmatprep.mubr.bf16.mxu0 0
      %579 = vmatmul.mubr.bf16.gmra.mrb[0].mxu0 %v509
      %v580 = vpop.f32.mrb[0].mxu0
      %v581 = vadd.f32 %v496, %v580
      %v582 = vpop.f32.mrb[0].mxu0
      %v583 = vpop.f32.mrb[0].mxu0
      %v584 = vpop.f32.mrb[0].mxu0
      %585 = vdwg.mxu0
      %v586 = vld [vmem:[%s327] sm:$0xe]
      %v587 = vld [vmem:[%s327 + $0x20] sm:$0x7]
      %s588 = scalar_lea.vmem %s1, 8
      %v589 = vld [vmem:[%s588] sm:$0xf]
      %v592 = vunpack.c.l.b16 %v586
      %v593 = vunpack.c.l.b16 %v587
      %v594 = vpack.c.b16 %v356, %v592
      %v595 = vpack.c.b16 %v593, %v593
      %vm596 = vcmask 1046528
      %v597 = vrot.slane %v594, 1
      %v598 = vrot.slane %v365, 1
      %v599 = vsel %vm596, %v597, %v598
      %v600 = vrot.slane %v366, 1
      %v601 = vsel %vm596, %v598, %v600
      %v602 = vrot.slane %v367, 1
      %v603 = vsel %vm596, %v600, %v602
      %v604 = vrot.slane %v595, 1
      %v605 = vsel %vm596, %v602, %v604
      %v607 = vsel %vm409, %v599, 0
      %v610 = vsel %vm409, %v601, 0
      %v613 = vsel %vm409, %v603, 0
      %v616 = vsel %vm409, %v605, 0
      %v619 = vsel %vm409, %v604, 0
      %v622 = vsel %vm425, %v589, 0
      %624 = vmatprep.subr.bf16.mxu0 0
      %625 = vmatpush1.bf16.msra.mxu0 %v622
      %626 = vmatprep.subr.bf16.mxu0 0
      %627 = vmatpush1.bf16.msra.mxu0 0
      %628 = vmatprep.subr.bf16.mxu0 0
      %629 = vmatpush1.bf16.msra.mxu0 0
      %630 = vmatprep.subr.bf16.mxu0 0
      %631 = vmatpush1.bf16.msra.mxu0 0
      %632 = vmatprep.subr.bf16.mxu0 0
      %633 = vmatpush1.bf16.msra.mxu0 0
      %634 = vmatprep.subr.bf16.mxu0 0
      %635 = vmatpush1.bf16.msra.mxu0 0
      %636 = vmatprep.subr.bf16.mxu0 0
      %637 = vmatpush1.bf16.msra.mxu0 0
      %638 = vmatprep.subr.bf16.mxu0 0
      %639 = vmatpush1.bf16.msra.mxu0 0
      %640 = vmatprep.subr.bf16.mxu0 0
      %641 = vmatpush1.bf16.msra.mxu0 0
      %642 = vmatprep.subr.bf16.mxu0 0
      %643 = vmatpush1.bf16.msra.mxu0 0
      %644 = vmatprep.subr.bf16.mxu0 0
      %645 = vmatpush1.bf16.msra.mxu0 0
      %646 = vmatprep.subr.bf16.mxu0 0
      %647 = vmatpush1.bf16.msra.mxu0 0
      %648 = vmatprep.subr.bf16.mxu0 0
      %649 = vmatpush1.bf16.msra.mxu0 0
      %650 = vmatprep.subr.bf16.mxu0 0
      %651 = vmatpush1.bf16.msra.mxu0 0
      %652 = vmatprep.subr.bf16.mxu0 0
      %653 = vmatpush1.bf16.msra.mxu0 0
      %654 = vmatprep.subr.bf16.mxu0 0
      %655 = vmatpush1.bf16.msra.mxu0 0
      %656 = vmatprep.mubr.bf16.mxu0 0
      %657 = vmatmul.mubr.bf16.gmra.mrb[0].mxu0 %v607
      %v658 = vpop.f32.mrb[0].mxu0
      %v659 = vadd.f32 0.0, %v658
      %v660 = vpop.f32.mrb[0].mxu0
      %v661 = vpop.f32.mrb[0].mxu0
      %v662 = vadd.f32 0.0, %v661
      %v663 = vpop.f32.mrb[0].mxu0
      %664 = vmatprep.mubr.bf16.mxu0 0
      %665 = vmatmul.mubr.bf16.gmra.mrb[0].mxu0 %v610
      %v666 = vpop.f32.mrb[0].mxu0
      %v667 = vadd.f32 0.0, %v666
      %v668 = vpop.f32.mrb[0].mxu0
      %v669 = vpop.f32.mrb[0].mxu0
      %v670 = vadd.f32 0.0, %v669
      %v671 = vpop.f32.mrb[0].mxu0
      %672 = vmatprep.mubr.bf16.mxu0 0
      %673 = vmatmul.mubr.bf16.gmra.mrb[0].mxu0 %v613
      %v674 = vpop.f32.mrb[0].mxu0
      %v675 = vadd.f32 0.0, %v674
      %v676 = vpop.f32.mrb[0].mxu0
      %v677 = vpop.f32.mrb[0].mxu0
      %v678 = vadd.f32 0.0, %v677
      %v679 = vpop.f32.mrb[0].mxu0
      %680 = vmatprep.mubr.bf16.mxu0 0
      %681 = vmatmul.mubr.bf16.gmra.mrb[0].mxu0 %v616
      %v682 = vpop.f32.mrb[0].mxu0
      %v683 = vadd.f32 0.0, %v682
      %v684 = vpop.f32.mrb[0].mxu0
      %v685 = vpop.f32.mrb[0].mxu0
      %v686 = vadd.f32 0.0, %v685
      %v687 = vpop.f32.mrb[0].mxu0
      %688 = vmatprep.mubr.bf16.mxu0 0
      %689 = vmatmul.mubr.bf16.gmra.mrb[0].mxu0 %v619
      %v690 = vpop.f32.mrb[0].mxu0
      %v691 = vadd.f32 0.0, %v690
      %v692 = vpop.f32.mrb[0].mxu0
      %v693 = vpop.f32.mrb[0].mxu0
      %v694 = vpop.f32.mrb[0].mxu0
      %695 = vdwg.mxu0
      %v696 = vadd.f32 %v549, %v659
      %v697 = vadd.f32 %v552, %v662
      %v698 = vadd.f32 %v557, %v667
      %v699 = vadd.f32 %v560, %v670
      %v700 = vadd.f32 %v565, %v675
      %v701 = vadd.f32 %v568, %v678
      %v702 = vadd.f32 %v573, %v683
      %v703 = vadd.f32 %v576, %v686
      %v704 = vadd.f32 %v581, %v691
      %v705 = vld [vmem:[%s327 + $0x4] sm:$0xe]
      %v706 = vld [vmem:[%s327 + $0x8] sm:$0xf]
      %v707 = vld [vmem:[%s327 + $0xc] sm:$0xf]
      %v708 = vld [vmem:[%s327 + $0x10] sm:$0xf]
      %v709 = vld [vmem:[%s327 + $0x14] sm:$0xf]
      %v710 = vld [vmem:[%s327 + $0x18] sm:$0xf]
      %v711 = vld [vmem:[%s327 + $0x1c] sm:$0xf]
      %v712 = vld [vmem:[%s327 + $0x20] sm:$0xf]
      %v713 = vld [vmem:[%s327 + $0x24] sm:$0x7]
      %s714 = scalar_lea.vmem %s1, 12
      %v715 = vld [vmem:[%s714] sm:$0xf]
      %v725 = vunpack.c.l.b16 %v705
      %v726 = vunpack.c.l.b16 %v706
      %v727 = vunpack.c.l.b16 %v707
      %v728 = vunpack.c.l.b16 %v708
      %v729 = vunpack.c.l.b16 %v709
      %v730 = vunpack.c.l.b16 %v710
      %v731 = vunpack.c.l.b16 %v711
      %v732 = vunpack.c.l.b16 %v712
      %v733 = vunpack.c.l.b16 %v713
      %v734 = vpack.c.b16 %v726, %v725
      %v735 = vpack.c.b16 %v728, %v727
      %v736 = vpack.c.b16 %v730, %v729
      %v737 = vpack.c.b16 %v732, %v731
      %v738 = vpack.c.b16 %v733, %v733
      %v739 = vrot.slane %v734, 1
      %v740 = vrot.slane %v735, 1
      %v741 = vsel %vm596, %v739, %v740
      %v742 = vrot.slane %v736, 1
      %v743 = vsel %vm596, %v740, %v742
      %v744 = vrot.slane %v737, 1
      %v745 = vsel %vm596, %v742, %v744
      %v746 = vrot.slane %v738, 1
      %v747 = vsel %vm596, %v744, %v746
      %v749 = vsel %vm409, %v741, 0
      %v752 = vsel %vm409, %v743, 0
      %v755 = vsel %vm409, %v745, 0
      %v758 = vsel %vm409, %v747, 0
      %v761 = vsel %vm409, %v746, 0
      %v764 = vsel %vm425, %v715, 0
      %766 = vmatprep.subr.bf16.mxu0 0
      %767 = vmatpush1.bf16.msra.mxu0 %v764
      %768 = vmatprep.subr.bf16.mxu0 0
      %769 = vmatpush1.bf16.msra.mxu0 0
      %770 = vmatprep.subr.bf16.mxu0 0
      %771 = vmatpush1.bf16.msra.mxu0 0
      %772 = vmatprep.subr.bf16.mxu0 0
      %773 = vmatpush1.bf16.msra.mxu0 0
      %774 = vmatprep.subr.bf16.mxu0 0
      %775 = vmatpush1.bf16.msra.mxu0 0
      %776 = vmatprep.subr.bf16.mxu0 0
      %777 = vmatpush1.bf16.msra.mxu0 0
      %778 = vmatprep.subr.bf16.mxu0 0
      %779 = vmatpush1.bf16.msra.mxu0 0
      %780 = vmatprep.subr.bf16.mxu0 0
      %781 = vmatpush1.bf16.msra.mxu0 0
      %782 = vmatprep.subr.bf16.mxu0 0
      %783 = vmatpush1.bf16.msra.mxu0 0
      %784 = vmatprep.subr.bf16.mxu0 0
      %785 = vmatpush1.bf16.msra.mxu0 0
      %786 = vmatprep.subr.bf16.mxu0 0
      %787 = vmatpush1.bf16.msra.mxu0 0
      %788 = vmatprep.subr.bf16.mxu0 0
      %789 = vmatpush1.bf16.msra.mxu0 0
      %790 = vmatprep.subr.bf16.mxu0 0
      %791 = vmatpush1.bf16.msra.mxu0 0
      %792 = vmatprep.subr.bf16.mxu0 0
      %793 = vmatpush1.bf16.msra.mxu0 0
      %794 = vmatprep.subr.bf16.mxu0 0
      %795 = vmatpush1.bf16.msra.mxu0 0
      %796 = vmatprep.subr.bf16.mxu0 0
      %797 = vmatpush1.bf16.msra.mxu0 0
      %798 = vmatprep.mubr.bf16.mxu0 0
      %799 = vmatmul.mubr.bf16.gmra.mrb[0].mxu0 %v749
      %v800 = vpop.f32.mrb[0].mxu0
      %v801 = vadd.f32 0.0, %v800
      %v802 = vpop.f32.mrb[0].mxu0
      %v803 = vpop.f32.mrb[0].mxu0
      %v804 = vadd.f32 0.0, %v803
      %v805 = vpop.f32.mrb[0].mxu0
      %806 = vmatprep.mubr.bf16.mxu0 0
      %807 = vmatmul.mubr.bf16.gmra.mrb[0].mxu0 %v752
      %v808 = vpop.f32.mrb[0].mxu0
      %v809 = vadd.f32 0.0, %v808
      %v810 = vpop.f32.mrb[0].mxu0
      %v811 = vpop.f32.mrb[0].mxu0
      %v812 = vadd.f32 0.0, %v811
      %v813 = vpop.f32.mrb[0].mxu0
      %814 = vmatprep.mubr.bf16.mxu0 0
      %815 = vmatmul.mubr.bf16.gmra.mrb[0].mxu0 %v755
      %v816 = vpop.f32.mrb[0].mxu0
      %v817 = vadd.f32 0.0, %v816
      %v818 = vpop.f32.mrb[0].mxu0
      %v819 = vpop.f32.mrb[0].mxu0
      %v820 = vadd.f32 0.0, %v819
      %v821 = vpop.f32.mrb[0].mxu0
      %822 = vmatprep.mubr.bf16.mxu0 0
      %823 = vmatmul.mubr.bf16.gmra.mrb[0].mxu0 %v758
      %v824 = vpop.f32.mrb[0].mxu0
      %v825 = vadd.f32 0.0, %v824
      %v826 = vpop.f32.mrb[0].mxu0
      %v827 = vpop.f32.mrb[0].mxu0
      %v828 = vadd.f32 0.0, %v827
      %v829 = vpop.f32.mrb[0].mxu0
      %830 = vmatprep.mubr.bf16.mxu0 0
      %831 = vmatmul.mubr.bf16.gmra.mrb[0].mxu0 %v761
      %v832 = vpop.f32.mrb[0].mxu0
      %v833 = vadd.f32 0.0, %v832
      %v834 = vpop.f32.mrb[0].mxu0
      %v835 = vpop.f32.mrb[0].mxu0
      %v836 = vpop.f32.mrb[0].mxu0
      %837 = vdwg.mxu0
      %v838 = vadd.f32 %v696, %v801
      %v839 = vadd.f32 %v697, %v804
      %v840 = vadd.f32 %v698, %v809
      %v841 = vadd.f32 %v699, %v812
      %v842 = vadd.f32 %v700, %v817
      %v843 = vadd.f32 %v701, %v820
      %v844 = vadd.f32 %v702, %v825
      %v845 = vadd.f32 %v703, %v828
      %v846 = vadd.f32 %v704, %v833
      %s847 = scalar_lea.vmem %s1, 16
      %v848 = vld [vmem:[%s847] sm:$0xf]
      %vm849 = vsmask.f32 6400
      %v851 = vshrl.u32 %v734, 16
      %v853 = vrot.slane %v851, 1
      %v854 = vshll.u32 %v734, 16
      %v856 = vrot.slane %v854, 2
      %v857 = vor.u32 %v853, %v856
      %v859 = vshrl.u32 %v735, 16
      %v861 = vrot.slane %v859, 1
      %v862 = vshll.u32 %v735, 16
      %v864 = vrot.slane %v862, 2
      %v865 = vor.u32 %v861, %v864
      %v866 = vsel %vm849, %v857, %v865
      %v868 = vshrl.u32 %v736, 16
      %v870 = vrot.slane %v868, 1
      %v871 = vshll.u32 %v736, 16
      %v873 = vrot.slane %v871, 2
      %v874 = vor.u32 %v870, %v873
      %v875 = vsel %vm849, %v865, %v874
      %v877 = vshrl.u32 %v737, 16
      %v879 = vrot.slane %v877, 1
      %v880 = vshll.u32 %v737, 16
      %v882 = vrot.slane %v880, 2
      %v883 = vor.u32 %v879, %v882
      %v884 = vsel %vm849, %v874, %v883
      %v886 = vshrl.u32 %v738, 16
      %v888 = vrot.slane %v886, 1
      %v889 = vshll.u32 %v738, 16
      %v891 = vrot.slane %v889, 2
      %v892 = vor.u32 %v888, %v891
      %v893 = vsel %vm849, %v883, %v892
      %v895 = vsel %vm409, %v866, 0
      %v898 = vsel %vm409, %v875, 0
      %v901 = vsel %vm409, %v884, 0
      %v904 = vsel %vm409, %v893, 0
      %v907 = vsel %vm409, %v892, 0
      %v910 = vsel %vm425, %v848, 0
      %912 = vmatprep.subr.bf16.mxu0 0
      %913 = vmatpush1.bf16.msra.mxu0 %v910
      %914 = vmatprep.subr.bf16.mxu0 0
      %915 = vmatpush1.bf16.msra.mxu0 0
      %916 = vmatprep.subr.bf16.mxu0 0
      %917 = vmatpush1.bf16.msra.mxu0 0
      %918 = vmatprep.subr.bf16.mxu0 0
      %919 = vmatpush1.bf16.msra.mxu0 0
      %920 = vmatprep.subr.bf16.mxu0 0
      %921 = vmatpush1.bf16.msra.mxu0 0
      %922 = vmatprep.subr.bf16.mxu0 0
      %923 = vmatpush1.bf16.msra.mxu0 0
      %924 = vmatprep.subr.bf16.mxu0 0
      %925 = vmatpush1.bf16.msra.mxu0 0
      %926 = vmatprep.subr.bf16.mxu0 0
      %927 = vmatpush1.bf16.msra.mxu0 0
      %928 = vmatprep.subr.bf16.mxu0 0
      %929 = vmatpush1.bf16.msra.mxu0 0
      %930 = vmatprep.subr.bf16.mxu0 0
      %931 = vmatpush1.bf16.msra.mxu0 0
      %932 = vmatprep.subr.bf16.mxu0 0
      %933 = vmatpush1.bf16.msra.mxu0 0
      %934 = vmatprep.subr.bf16.mxu0 0
      %935 = vmatpush1.bf16.msra.mxu0 0
      %936 = vmatprep.subr.bf16.mxu0 0
      %937 = vmatpush1.bf16.msra.mxu0 0
      %938 = vmatprep.subr.bf16.mxu0 0
      %939 = vmatpush1.bf16.msra.mxu0 0
      %940 = vmatprep.subr.bf16.mxu0 0
      %941 = vmatpush1.bf16.msra.mxu0 0
      %942 = vmatprep.subr.bf16.mxu0 0
      %943 = vmatpush1.bf16.msra.mxu0 0
      %944 = vmatprep.mubr.bf16.mxu0 0
      %945 = vmatmul.mubr.bf16.gmra.mrb[0].mxu0 %v895
      %v946 = vpop.f32.mrb[0].mxu0
      %v947 = vadd.f32 0.0, %v946
      %v948 = vpop.f32.mrb[0].mxu0
      %v949 = vpop.f32.mrb[0].mxu0
      %v950 = vadd.f32 0.0, %v949
      %v951 = vpop.f32.mrb[0].mxu0
      %952 = vmatprep.mubr.bf16.mxu0 0
      %953 = vmatmul.mubr.bf16.gmra.mrb[0].mxu0 %v898
      %v954 = vpop.f32.mrb[0].mxu0
      %v955 = vadd.f32 0.0, %v954
      %v956 = vpop.f32.mrb[0].mxu0
      %v957 = vpop.f32.mrb[0].mxu0
      %v958 = vadd.f32 0.0, %v957
      %v959 = vpop.f32.mrb[0].mxu0
      %960 = vmatprep.mubr.bf16.mxu0 0
      %961 = vmatmul.mubr.bf16.gmra.mrb[0].mxu0 %v901
      %v962 = vpop.f32.mrb[0].mxu0
      %v963 = vadd.f32 0.0, %v962
      %v964 = vpop.f32.mrb[0].mxu0
      %v965 = vpop.f32.mrb[0].mxu0
      %v966 = vadd.f32 0.0, %v965
      %v967 = vpop.f32.mrb[0].mxu0
      %968 = vmatprep.mubr.bf16.mxu0 0
      %969 = vmatmul.mubr.bf16.gmra.mrb[0].mxu0 %v904
      %v970 = vpop.f32.mrb[0].mxu0
      %v971 = vadd.f32 0.0, %v970
      %v972 = vpop.f32.mrb[0].mxu0
      %v973 = vpop.f32.mrb[0].mxu0
      %v974 = vadd.f32 0.0, %v973
      %v975 = vpop.f32.mrb[0].mxu0
      %976 = vmatprep.mubr.bf16.mxu0 0
      %977 = vmatmul.mubr.bf16.gmra.mrb[0].mxu0 %v907
      %v978 = vpop.f32.mrb[0].mxu0
      %v979 = vadd.f32 0.0, %v978
      %v980 = vpop.f32.mrb[0].mxu0
      %v981 = vpop.f32.mrb[0].mxu0
      %v982 = vpop.f32.mrb[0].mxu0
      %983 = vdwg.mxu0
      %v984 = vadd.f32 %v838, %v947
      %v985 = vadd.f32 %v839, %v950
      %v986 = vadd.f32 %v840, %v955
      %v987 = vadd.f32 %v841, %v958
      %v988 = vadd.f32 %v842, %v963
      %v989 = vadd.f32 %v843, %v966
      %v990 = vadd.f32 %v844, %v971
      %v991 = vadd.f32 %v845, %v974
      %v992 = vadd.f32 %v846, %v979
      %v993 = vld [vmem:[%s327 + $0x4] sm:$0xc]
      %v994 = vld [vmem:[%s327 + $0x24] sm:$0xf]
      %s995 = scalar_lea.vmem %s1, 20
      %v996 = vld [vmem:[%s995] sm:$0xf]
      %v999 = vunpack.c.l.b16 %v993
      %v1000 = vunpack.c.l.b16 %v994
      %v1001 = vpack.c.b16 %v726, %v999
      %v1002 = vpack.c.b16 %v1000, %v1000
      %vm1003 = vcmask 1045504
      %v1004 = vrot.slane %v1001, 2
      %v1005 = vrot.slane %v735, 2
      %v1006 = vsel %vm1003, %v1004, %v1005
      %v1007 = vrot.slane %v736, 2
      %v1008 = vsel %vm1003, %v1005, %v1007
      %v1009 = vrot.slane %v737, 2
      %v1010 = vsel %vm1003, %v1007, %v1009
      %v1011 = vrot.slane %v1002, 2
      %v1012 = vsel %vm1003, %v1009, %v1011
      %v1014 = vsel %vm409, %v1006, 0
      %v1017 = vsel %vm409, %v1008, 0
      %v1020 = vsel %vm409, %v1010, 0
      %v1023 = vsel %vm409, %v1012, 0
      %v1026 = vsel %vm409, %v1011, 0
      %v1029 = vsel %vm425, %v996, 0
      %1031 = vmatprep.subr.bf16.mxu0 0
      %1032 = vmatpush1.bf16.msra.mxu0 %v1029
      %1033 = vmatprep.subr.bf16.mxu0 0
      %1034 = vmatpush1.bf16.msra.mxu0 0
      %1035 = vmatprep.subr.bf16.mxu0 0
      %1036 = vmatpush1.bf16.msra.mxu0 0
      %1037 = vmatprep.subr.bf16.mxu0 0
      %1038 = vmatpush1.bf16.msra.mxu0 0
      %1039 = vmatprep.subr.bf16.mxu0 0
      %1040 = vmatpush1.bf16.msra.mxu0 0
      %1041 = vmatprep.subr.bf16.mxu0 0
      %1042 = vmatpush1.bf16.msra.mxu0 0
      %1043 = vmatprep.subr.bf16.mxu0 0
      %1044 = vmatpush1.bf16.msra.mxu0 0
      %1045 = vmatprep.subr.bf16.mxu0 0
      %1046 = vmatpush1.bf16.msra.mxu0 0
      %1047 = vmatprep.subr.bf16.mxu0 0
      %1048 = vmatpush1.bf16.msra.mxu0 0
      %1049 = vmatprep.subr.bf16.mxu0 0
      %1050 = vmatpush1.bf16.msra.mxu0 0
      %1051 = vmatprep.subr.bf16.mxu0 0
      %1052 = vmatpush1.bf16.msra.mxu0 0
      %1053 = vmatprep.subr.bf16.mxu0 0
      %1054 = vmatpush1.bf16.msra.mxu0 0
      %1055 = vmatprep.subr.bf16.mxu0 0
      %1056 = vmatpush1.bf16.msra.mxu0 0
      %1057 = vmatprep.subr.bf16.mxu0 0
      %1058 = vmatpush1.bf16.msra.mxu0 0
      %1059 = vmatprep.subr.bf16.mxu0 0
      %1060 = vmatpush1.bf16.msra.mxu0 0
      %1061 = vmatprep.subr.bf16.mxu0 0
      %1062 = vmatpush1.bf16.msra.mxu0 0
      %1063 = vmatprep.mubr.bf16.mxu0 0
      %1064 = vmatmul.mubr.bf16.gmra.mrb[0].mxu0 %v1014
      %v1065 = vpop.f32.mrb[0].mxu0
      %v1066 = vadd.f32 0.0, %v1065
      %v1067 = vpop.f32.mrb[0].mxu0
      %v1068 = vpop.f32.mrb[0].mxu0
      %v1069 = vadd.f32 0.0, %v1068
      %v1070 = vpop.f32.mrb[0].mxu0
      %1071 = vmatprep.mubr.bf16.mxu0 0
      %1072 = vmatmul.mubr.bf16.gmra.mrb[0].mxu0 %v1017
      %v1073 = vpop.f32.mrb[0].mxu0
      %v1074 = vadd.f32 0.0, %v1073
      %v1075 = vpop.f32.mrb[0].mxu0
      %v1076 = vpop.f32.mrb[0].mxu0
      %v1077 = vadd.f32 0.0, %v1076
      %v1078 = vpop.f32.mrb[0].mxu0
      %1079 = vmatprep.mubr.bf16.mxu0 0
      %1080 = vmatmul.mubr.bf16.gmra.mrb[0].mxu0 %v1020
      %v1081 = vpop.f32.mrb[0].mxu0
      %v1082 = vadd.f32 0.0, %v1081
      %v1083 = vpop.f32.mrb[0].mxu0
      %v1084 = vpop.f32.mrb[0].mxu0
      %v1085 = vadd.f32 0.0, %v1084
      %v1086 = vpop.f32.mrb[0].mxu0
      %1087 = vmatprep.mubr.bf16.mxu0 0
      %1088 = vmatmul.mubr.bf16.gmra.mrb[0].mxu0 %v1023
      %v1089 = vpop.f32.mrb[0].mxu0
      %v1090 = vadd.f32 0.0, %v1089
      %v1091 = vpop.f32.mrb[0].mxu0
      %v1092 = vpop.f32.mrb[0].mxu0
      %v1093 = vadd.f32 0.0, %v1092
      %v1094 = vpop.f32.mrb[0].mxu0
      %1095 = vmatprep.mubr.bf16.mxu0 0
      %1096 = vmatmul.mubr.bf16.gmra.mrb[0].mxu0 %v1026
      %v1097 = vpop.f32.mrb[0].mxu0
      %v1098 = vadd.f32 0.0, %v1097
      %v1099 = vpop.f32.mrb[0].mxu0
      %v1100 = vpop.f32.mrb[0].mxu0
      %v1101 = vpop.f32.mrb[0].mxu0
      %1102 = vdwg.mxu0
      %v1103 = vadd.f32 %v984, %v1066
      %v1104 = vadd.f32 %v985, %v1069
      %v1105 = vadd.f32 %v986, %v1074
      %v1106 = vadd.f32 %v987, %v1077
      %v1107 = vadd.f32 %v988, %v1082
      %v1108 = vadd.f32 %v989, %v1085
      %v1109 = vadd.f32 %v990, %v1090
      %v1110 = vadd.f32 %v991, %v1093
      %v1111 = vadd.f32 %v992, %v1098
      %v1112 = vld [vmem:[%s327 + $0x8] sm:$0xc]
      %v1113 = vld [vmem:[%s327 + $0xc] sm:$0xf]
      %v1114 = vld [vmem:[%s327 + $0x10] sm:$0xf]
      %v1115 = vld [vmem:[%s327 + $0x14] sm:$0xf]
      %v1116 = vld [vmem:[%s327 + $0x18] sm:$0xf]
      %v1117 = vld [vmem:[%s327 + $0x1c] sm:$0xf]
      %v1118 = vld [vmem:[%s327 + $0x20] sm:$0xf]
      %v1119 = vld [vmem:[%s327 + $0x24] sm:$0xf]
      %v1120 = vld [vmem:[%s327 + $0x28] sm:$0xf]
      %s1121 = scalar_lea.vmem %s1, 24
      %v1122 = vld [vmem:[%s1121] sm:$0xf]
      %v1132 = vunpack.c.l.b16 %v1112
      %v1133 = vunpack.c.l.b16 %v1113
      %v1134 = vunpack.c.l.b16 %v1114
      %v1135 = vunpack.c.l.b16 %v1115
      %v1136 = vunpack.c.l.b16 %v1116
      %v1137 = vunpack.c.l.b16 %v1117
      %v1138 = vunpack.c.l.b16 %v1118
      %v1139 = vunpack.c.l.b16 %v1119
      %v1140 = vunpack.c.l.b16 %v1120
      %v1141 = vpack.c.b16 %v1133, %v1132
      %v1142 = vpack.c.b16 %v1135, %v1134
      %v1143 = vpack.c.b16 %v1137, %v1136
      %v1144 = vpack.c.b16 %v1139, %v1138
      %v1145 = vpack.c.b16 %v1140, %v1140
      %v1146 = vrot.slane %v1141, 2
      %v1147 = vrot.slane %v1142, 2
      %v1148 = vsel %vm1003, %v1146, %v1147
      %v1149 = vrot.slane %v1143, 2
      %v1150 = vsel %vm1003, %v1147, %v1149
      %v1151 = vrot.slane %v1144, 2
      %v1152 = vsel %vm1003, %v1149, %v1151
      %v1153 = vrot.slane %v1145, 2
      %v1154 = vsel %vm1003, %v1151, %v1153
      %v1156 = vsel %vm409, %v1148, 0
      %v1159 = vsel %vm409, %v1150, 0
      %v1162 = vsel %vm409, %v1152, 0
      %v1165 = vsel %vm409, %v1154, 0
      %v1168 = vsel %vm409, %v1153, 0
      %v1171 = vsel %vm425, %v1122, 0
      %1173 = vmatprep.subr.bf16.mxu0 0
      %1174 = vmatpush1.bf16.msra.mxu0 %v1171
      %1175 = vmatprep.subr.bf16.mxu0 0
      %1176 = vmatpush1.bf16.msra.mxu0 0
      %1177 = vmatprep.subr.bf16.mxu0 0
      %1178 = vmatpush1.bf16.msra.mxu0 0
      %1179 = vmatprep.subr.bf16.mxu0 0
      %1180 = vmatpush1.bf16.msra.mxu0 0
      %1181 = vmatprep.subr.bf16.mxu0 0
      %1182 = vmatpush1.bf16.msra.mxu0 0
      %1183 = vmatprep.subr.bf16.mxu0 0
      %1184 = vmatpush1.bf16.msra.mxu0 0
      %1185 = vmatprep.subr.bf16.mxu0 0
      %1186 = vmatpush1.bf16.msra.mxu0 0
      %1187 = vmatprep.subr.bf16.mxu0 0
      %1188 = vmatpush1.bf16.msra.mxu0 0
      %1189 = vmatprep.subr.bf16.mxu0 0
      %1190 = vmatpush1.bf16.msra.mxu0 0
      %1191 = vmatprep.subr.bf16.mxu0 0
      %1192 = vmatpush1.bf16.msra.mxu0 0
      %1193 = vmatprep.subr.bf16.mxu0 0
      %1194 = vmatpush1.bf16.msra.mxu0 0
      %1195 = vmatprep.subr.bf16.mxu0 0
      %1196 = vmatpush1.bf16.msra.mxu0 0
      %1197 = vmatprep.subr.bf16.mxu0 0
      %1198 = vmatpush1.bf16.msra.mxu0 0
      %1199 = vmatprep.subr.bf16.mxu0 0
      %1200 = vmatpush1.bf16.msra.mxu0 0
      %1201 = vmatprep.subr.bf16.mxu0 0
      %1202 = vmatpush1.bf16.msra.mxu0 0
      %1203 = vmatprep.subr.bf16.mxu0 0
      %1204 = vmatpush1.bf16.msra.mxu0 0
      %1205 = vmatprep.mubr.bf16.mxu0 0
      %1206 = vmatmul.mubr.bf16.gmra.mrb[0].mxu0 %v1156
      %v1207 = vpop.f32.mrb[0].mxu0
      %v1208 = vadd.f32 0.0, %v1207
      %v1209 = vpop.f32.mrb[0].mxu0
      %v1210 = vpop.f32.mrb[0].mxu0
      %v1211 = vadd.f32 0.0, %v1210
      %v1212 = vpop.f32.mrb[0].mxu0
      %1213 = vmatprep.mubr.bf16.mxu0 0
      %1214 = vmatmul.mubr.bf16.gmra.mrb[0].mxu0 %v1159
      %v1215 = vpop.f32.mrb[0].mxu0
      %v1216 = vadd.f32 0.0, %v1215
      %v1217 = vpop.f32.mrb[0].mxu0
      %v1218 = vpop.f32.mrb[0].mxu0
      %v1219 = vadd.f32 0.0, %v1218
      %v1220 = vpop.f32.mrb[0].mxu0
      %1221 = vmatprep.mubr.bf16.mxu0 0
      %1222 = vmatmul.mubr.bf16.gmra.mrb[0].mxu0 %v1162
      %v1223 = vpop.f32.mrb[0].mxu0
      %v1224 = vadd.f32 0.0, %v1223
      %v1225 = vpop.f32.mrb[0].mxu0
      %v1226 = vpop.f32.mrb[0].mxu0
      %v1227 = vadd.f32 0.0, %v1226
      %v1228 = vpop.f32.mrb[0].mxu0
      %1229 = vmatprep.mubr.bf16.mxu0 0
      %1230 = vmatmul.mubr.bf16.gmra.mrb[0].mxu0 %v1165
      %v1231 = vpop.f32.mrb[0].mxu0
      %v1232 = vadd.f32 0.0, %v1231
      %v1233 = vpop.f32.mrb[0].mxu0
      %v1234 = vpop.f32.mrb[0].mxu0
      %v1235 = vadd.f32 0.0, %v1234
      %v1236 = vpop.f32.mrb[0].mxu0
      %1237 = vmatprep.mubr.bf16.mxu0 0
      %1238 = vmatmul.mubr.bf16.gmra.mrb[0].mxu0 %v1168
      %v1239 = vpop.f32.mrb[0].mxu0
      %v1240 = vadd.f32 0.0, %v1239
      %v1241 = vpop.f32.mrb[0].mxu0
      %v1242 = vpop.f32.mrb[0].mxu0
      %v1243 = vpop.f32.mrb[0].mxu0
      %1244 = vdwg.mxu0
      %v1245 = vadd.f32 %v1103, %v1208
      %v1246 = vadd.f32 %v1104, %v1211
      %v1247 = vadd.f32 %v1105, %v1216
      %v1248 = vadd.f32 %v1106, %v1219
      %v1249 = vadd.f32 %v1107, %v1224
      %v1250 = vadd.f32 %v1108, %v1227
      %v1251 = vadd.f32 %v1109, %v1232
      %v1252 = vadd.f32 %v1110, %v1235
      %v1253 = vadd.f32 %v1111, %v1240
      %s1254 = scalar_lea.vmem %s1, 28
      %v1255 = vld [vmem:[%s1254] sm:$0xf]
      %vm1256 = vsmask.f32 5376
      %v1258 = vshrl.u32 %v1141, 16
      %v1260 = vrot.slane %v1258, 2
      %v1261 = vshll.u32 %v1141, 16
      %v1263 = vrot.slane %v1261, 3
      %v1264 = vor.u32 %v1260, %v1263
      %v1266 = vshrl.u32 %v1142, 16
      %v1268 = vrot.slane %v1266, 2
      %v1269 = vshll.u32 %v1142, 16
      %v1271 = vrot.slane %v1269, 3
      %v1272 = vor.u32 %v1268, %v1271
      %v1273 = vsel %vm1256, %v1264, %v1272
      %v1275 = vshrl.u32 %v1143, 16
      %v1277 = vrot.slane %v1275, 2
      %v1278 = vshll.u32 %v1143, 16
      %v1280 = vrot.slane %v1278, 3
      %v1281 = vor.u32 %v1277, %v1280
      %v1282 = vsel %vm1256, %v1272, %v1281
      %v1284 = vshrl.u32 %v1144, 16
      %v1286 = vrot.slane %v1284, 2
      %v1287 = vshll.u32 %v1144, 16
      %v1289 = vrot.slane %v1287, 3
      %v1290 = vor.u32 %v1286, %v1289
      %v1291 = vsel %vm1256, %v1281, %v1290
      %v1293 = vshrl.u32 %v1145, 16
      %v1295 = vrot.slane %v1293, 2
      %v1296 = vshll.u32 %v1145, 16
      %v1298 = vrot.slane %v1296, 3
      %v1299 = vor.u32 %v1295, %v1298
      %v1300 = vsel %vm1256, %v1290, %v1299
      %v1302 = vsel %vm409, %v1273, 0
      %v1305 = vsel %vm409, %v1282, 0
      %v1308 = vsel %vm409, %v1291, 0
      %v1311 = vsel %vm409, %v1300, 0
      %v1314 = vsel %vm409, %v1299, 0
      %v1317 = vsel %vm425, %v1255, 0
      %1319 = vmatprep.subr.bf16.mxu0 0
      %1320 = vmatpush1.bf16.msra.mxu0 %v1317
      %1321 = vmatprep.subr.bf16.mxu0 0
      %1322 = vmatpush1.bf16.msra.mxu0 0
      %1323 = vmatprep.subr.bf16.mxu0 0
      %1324 = vmatpush1.bf16.msra.mxu0 0
      %1325 = vmatprep.subr.bf16.mxu0 0
      %1326 = vmatpush1.bf16.msra.mxu0 0
      %1327 = vmatprep.subr.bf16.mxu0 0
      %1328 = vmatpush1.bf16.msra.mxu0 0
      %1329 = vmatprep.subr.bf16.mxu0 0
      %1330 = vmatpush1.bf16.msra.mxu0 0
      %1331 = vmatprep.subr.bf16.mxu0 0
      %1332 = vmatpush1.bf16.msra.mxu0 0
      %1333 = vmatprep.subr.bf16.mxu0 0
      %1334 = vmatpush1.bf16.msra.mxu0 0
      %1335 = vmatprep.subr.bf16.mxu0 0
      %1336 = vmatpush1.bf16.msra.mxu0 0
      %1337 = vmatprep.subr.bf16.mxu0 0
      %1338 = vmatpush1.bf16.msra.mxu0 0
      %1339 = vmatprep.subr.bf16.mxu0 0
      %1340 = vmatpush1.bf16.msra.mxu0 0
      %1341 = vmatprep.subr.bf16.mxu0 0
      %1342 = vmatpush1.bf16.msra.mxu0 0
      %1343 = vmatprep.subr.bf16.mxu0 0
      %1344 = vmatpush1.bf16.msra.mxu0 0
      %1345 = vmatprep.subr.bf16.mxu0 0
      %1346 = vmatpush1.bf16.msra.mxu0 0
      %1347 = vmatprep.subr.bf16.mxu0 0
      %1348 = vmatpush1.bf16.msra.mxu0 0
      %1349 = vmatprep.subr.bf16.mxu0 0
      %1350 = vmatpush1.bf16.msra.mxu0 0
      %1351 = vmatprep.mubr.bf16.mxu0 0
      %1352 = vmatmul.mubr.bf16.gmra.mrb[0].mxu0 %v1302
      %v1353 = vpop.f32.mrb[0].mxu0
      %v1354 = vadd.f32 0.0, %v1353
      %v1355 = vpop.f32.mrb[0].mxu0
      %v1356 = vpop.f32.mrb[0].mxu0
      %v1357 = vadd.f32 0.0, %v1356
      %v1358 = vpop.f32.mrb[0].mxu0
      %1359 = vmatprep.mubr.bf16.mxu0 0
      %1360 = vmatmul.mubr.bf16.gmra.mrb[0].mxu0 %v1305
      %v1361 = vpop.f32.mrb[0].mxu0
      %v1362 = vadd.f32 0.0, %v1361
      %v1363 = vpop.f32.mrb[0].mxu0
      %v1364 = vpop.f32.mrb[0].mxu0
      %v1365 = vadd.f32 0.0, %v1364
      %v1366 = vpop.f32.mrb[0].mxu0
      %1367 = vmatprep.mubr.bf16.mxu0 0
      %1368 = vmatmul.mubr.bf16.gmra.mrb[0].mxu0 %v1308
      %v1369 = vpop.f32.mrb[0].mxu0
      %v1370 = vadd.f32 0.0, %v1369
      %v1371 = vpop.f32.mrb[0].mxu0
      %v1372 = vpop.f32.mrb[0].mxu0
      %v1373 = vadd.f32 0.0, %v1372
      %v1374 = vpop.f32.mrb[0].mxu0
      %1375 = vmatprep.mubr.bf16.mxu0 0
      %1376 = vmatmul.mubr.bf16.gmra.mrb[0].mxu0 %v1311
      %v1377 = vpop.f32.mrb[0].mxu0
      %v1378 = vadd.f32 0.0, %v1377
      %v1379 = vpop.f32.mrb[0].mxu0
      %v1380 = vpop.f32.mrb[0].mxu0
      %v1381 = vadd.f32 0.0, %v1380
      %v1382 = vpop.f32.mrb[0].mxu0
      %1383 = vmatprep.mubr.bf16.mxu0 0
      %1384 = vmatmul.mubr.bf16.gmra.mrb[0].mxu0 %v1314
      %v1385 = vpop.f32.mrb[0].mxu0
      %v1386 = vadd.f32 0.0, %v1385
      %v1387 = vpop.f32.mrb[0].mxu0
      %v1388 = vpop.f32.mrb[0].mxu0
      %v1389 = vpop.f32.mrb[0].mxu0
      %1390 = vdwg.mxu0
      %v1391 = vadd.f32 %v1245, %v1354
      %v1392 = vadd.f32 %v1246, %v1357
      %v1393 = vadd.f32 %v1247, %v1362
      %v1394 = vadd.f32 %v1248, %v1365
      %v1395 = vadd.f32 %v1249, %v1370
      %v1396 = vadd.f32 %v1250, %v1373
      %v1397 = vadd.f32 %v1251, %v1378
      %v1398 = vadd.f32 %v1252, %v1381
      %v1399 = vadd.f32 %v1253, %v1386
      %v1400 = vld [vmem:[%s327 + $0x8] sm:$0x8]
      %v1401 = vld [vmem:[%s327 + $0xc] sm:$0xf]
      %v1402 = vld [vmem:[%s327 + $0x10] sm:$0xf]
      %v1403 = vld [vmem:[%s327 + $0x14] sm:$0xf]
      %v1404 = vld [vmem:[%s327 + $0x18] sm:$0xf]
      %v1405 = vld [vmem:[%s327 + $0x1c] sm:$0xf]
      %v1406 = vld [vmem:[%s327 + $0x20] sm:$0xf]
      %v1407 = vld [vmem:[%s327 + $0x24] sm:$0xf]
      %v1408 = vld [vmem:[%s327 + $0x28] sm:$0xf]
      %v1409 = vld [vmem:[%s327 + $0x2c] sm:$0x1]
      %s1410 = scalar_lea.vmem %s1, 32
      %v1411 = vld [vmem:[%s1410] sm:$0xf]
      %v1422 = vunpack.c.l.b16 %v1400
      %v1423 = vunpack.c.l.b16 %v1401
      %v1424 = vunpack.c.l.b16 %v1402
      %v1425 = vunpack.c.l.b16 %v1403
      %v1426 = vunpack.c.l.b16 %v1404
      %v1427 = vunpack.c.l.b16 %v1405
      %v1428 = vunpack.c.l.b16 %v1406
      %v1429 = vunpack.c.l.b16 %v1407
      %v1430 = vunpack.c.l.b16 %v1408
      %v1431 = vunpack.c.l.b16 %v1409
      %v1432 = vpack.c.b16 %v1423, %v1422
      %v1433 = vpack.c.b16 %v1425, %v1424
      %v1434 = vpack.c.b16 %v1427, %v1426
      %v1435 = vpack.c.b16 %v1429, %v1428
      %v1436 = vpack.c.b16 %v1431, %v1430
      %vm1437 = vcmask 1044480
      %v1438 = vrot.slane %v1432, 3
      %v1439 = vrot.slane %v1433, 3
      %v1440 = vsel %vm1437, %v1438, %v1439
      %v1441 = vrot.slane %v1434, 3
      %v1442 = vsel %vm1437, %v1439, %v1441
      %v1443 = vrot.slane %v1435, 3
      %v1444 = vsel %vm1437, %v1441, %v1443
      %v1445 = vrot.slane %v1436, 3
      %v1446 = vsel %vm1437, %v1443, %v1445
      %v1448 = vsel %vm409, %v1440, 0
      %v1451 = vsel %vm409, %v1442, 0
      %v1454 = vsel %vm409, %v1444, 0
      %v1457 = vsel %vm409, %v1446, 0
      %v1460 = vsel %vm409, %v1445, 0
      %v1463 = vsel %vm425, %v1411, 0
      %1465 = vmatprep.subr.bf16.mxu0 0
      %1466 = vmatpush1.bf16.msra.mxu0 %v1463
      %1467 = vmatprep.subr.bf16.mxu0 0
      %1468 = vmatpush1.bf16.msra.mxu0 0
      %1469 = vmatprep.subr.bf16.mxu0 0
      %1470 = vmatpush1.bf16.msra.mxu0 0
      %1471 = vmatprep.subr.bf16.mxu0 0
      %1472 = vmatpush1.bf16.msra.mxu0 0
      %1473 = vmatprep.subr.bf16.mxu0 0
      %1474 = vmatpush1.bf16.msra.mxu0 0
      %1475 = vmatprep.subr.bf16.mxu0 0
      %1476 = vmatpush1.bf16.msra.mxu0 0
      %1477 = vmatprep.subr.bf16.mxu0 0
      %1478 = vmatpush1.bf16.msra.mxu0 0
      %1479 = vmatprep.subr.bf16.mxu0 0
      %1480 = vmatpush1.bf16.msra.mxu0 0
      %1481 = vmatprep.subr.bf16.mxu0 0
      %1482 = vmatpush1.bf16.msra.mxu0 0
      %1483 = vmatprep.subr.bf16.mxu0 0
      %1484 = vmatpush1.bf16.msra.mxu0 0
      %1485 = vmatprep.subr.bf16.mxu0 0
      %1486 = vmatpush1.bf16.msra.mxu0 0
      %1487 = vmatprep.subr.bf16.mxu0 0
      %1488 = vmatpush1.bf16.msra.mxu0 0
      %1489 = vmatprep.subr.bf16.mxu0 0
      %1490 = vmatpush1.bf16.msra.mxu0 0
      %1491 = vmatprep.subr.bf16.mxu0 0
      %1492 = vmatpush1.bf16.msra.mxu0 0
      %1493 = vmatprep.subr.bf16.mxu0 0
      %1494 = vmatpush1.bf16.msra.mxu0 0
      %1495 = vmatprep.subr.bf16.mxu0 0
      %1496 = vmatpush1.bf16.msra.mxu0 0
      %1497 = vmatprep.mubr.bf16.mxu0 0
      %1498 = vmatmul.mubr.bf16.gmra.mrb[0].mxu0 %v1448
      %v1499 = vpop.f32.mrb[0].mxu0
      %v1500 = vadd.f32 0.0, %v1499
      %v1501 = vpop.f32.mrb[0].mxu0
      %v1502 = vpop.f32.mrb[0].mxu0
      %v1503 = vadd.f32 0.0, %v1502
      %v1504 = vpop.f32.mrb[0].mxu0
      %1505 = vmatprep.mubr.bf16.mxu0 0
      %1506 = vmatmul.mubr.bf16.gmra.mrb[0].mxu0 %v1451
      %v1507 = vpop.f32.mrb[0].mxu0
      %v1508 = vadd.f32 0.0, %v1507
      %v1509 = vpop.f32.mrb[0].mxu0
      %v1510 = vpop.f32.mrb[0].mxu0
      %v1511 = vadd.f32 0.0, %v1510
      %v1512 = vpop.f32.mrb[0].mxu0
      %1513 = vmatprep.mubr.bf16.mxu0 0
      %1514 = vmatmul.mubr.bf16.gmra.mrb[0].mxu0 %v1454
      %v1515 = vpop.f32.mrb[0].mxu0
      %v1516 = vadd.f32 0.0, %v1515
      %v1517 = vpop.f32.mrb[0].mxu0
      %v1518 = vpop.f32.mrb[0].mxu0
      %v1519 = vadd.f32 0.0, %v1518
      %v1520 = vpop.f32.mrb[0].mxu0
      %1521 = vmatprep.mubr.bf16.mxu0 0
      %1522 = vmatmul.mubr.bf16.gmra.mrb[0].mxu0 %v1457
      %v1523 = vpop.f32.mrb[0].mxu0
      %v1524 = vadd.f32 0.0, %v1523
      %v1525 = vpop.f32.mrb[0].mxu0
      %v1526 = vpop.f32.mrb[0].mxu0
      %v1527 = vadd.f32 0.0, %v1526
      %v1528 = vpop.f32.mrb[0].mxu0
      %1529 = vmatprep.mubr.bf16.mxu0 0
      %1530 = vmatmul.mubr.bf16.gmra.mrb[0].mxu0 %v1460
      %v1531 = vpop.f32.mrb[0].mxu0
      %v1532 = vadd.f32 0.0, %v1531
      %v1533 = vpop.f32.mrb[0].mxu0
      %v1534 = vpop.f32.mrb[0].mxu0
      %v1535 = vpop.f32.mrb[0].mxu0
      %1536 = vdwg.mxu0
      %v1537 = vadd.f32 %v1391, %v1500
      %v1538 = vadd.f32 %v1392, %v1503
      %v1539 = vadd.f32 %v1393, %v1508
      %v1540 = vadd.f32 %v1394, %v1511
      %v1541 = vadd.f32 %v1395, %v1516
      %v1542 = vadd.f32 %v1396, %v1519
      %v1543 = vadd.f32 %v1397, %v1524
      %v1544 = vadd.f32 %v1398, %v1527
      %v1545 = vadd.f32 %v1399, %v1532
      %v1546 = vld [vmem:[%s2] sm:$0x1]
      %v1548 = vlaneseq
      %v1549 = vshrl.u32 %v1548, 7
      %v1550 = vsub.s32 0, %v1549
      %v1551 = vrot.slane %v1546, %v1550
      %v1553 = vadd.f32 %v1537, %v1551
      %v1554 = vadd.f32 %v1538, %v1551
      %v1555 = vadd.f32 %v1539, %v1551
      %v1556 = vadd.f32 %v1540, %v1551
      %v1557 = vadd.f32 %v1541, %v1551
      %v1558 = vadd.f32 %v1542, %v1551
      %v1559 = vadd.f32 %v1543, %v1551
      %v1560 = vadd.f32 %v1544, %v1551
      %v1561 = vadd.f32 %v1545, %v1551
      %v1562 = vmax.f32 %v1553, 0.0
      %v1563 = vmax.f32 %v1554, 0.0
      %v1564 = vmax.f32 %v1555, 0.0
      %v1565 = vmax.f32 %v1556, 0.0
      %v1566 = vmax.f32 %v1557, 0.0
      %v1567 = vmax.f32 %v1558, 0.0
      %v1568 = vmax.f32 %v1559, 0.0
      %v1569 = vmax.f32 %v1560, 0.0
      %v1570 = vmax.f32 %v1561, 0.0
      %v1571 = vpack.c.bf16 %v1563, %v1562
      %v1572 = vpack.c.bf16 %v1565, %v1564
      %v1573 = vpack.c.bf16 %v1567, %v1566
      %v1574 = vpack.c.bf16 %v1569, %v1568
      %v1575 = vpack.c.bf16 %v1570, %v1570
      %v1576 = vld [vmem:[%s5] sm:$0xf]
      %v1577 = vld [vmem:[%s5 + $0x4] sm:$0xf]
      %v1578 = vld [vmem:[%s5 + $0x8] sm:$0xf]
      %v1579 = vld [vmem:[%s5 + $0xc] sm:$0xf]
      %v1580 = vld [vmem:[%s5 + $0x10] sm:$0xf]
      %v1581 = vld [vmem:[%s5 + $0x14] sm:$0xf]
      %v1588 = vunpack.c.l.b16 %v1576
      %v1589 = vunpack.c.l.b16 %v1577
      %v1590 = vunpack.c.l.b16 %v1578
      %v1591 = vunpack.c.l.b16 %v1579
      %v1592 = vunpack.c.l.b16 %v1580
      %v1593 = vunpack.c.l.b16 %v1581
      %v1594 = vpack.c.b16 %v1589, %v1588
      %v1595 = vpack.c.b16 %v1591, %v1590
      %v1596 = vpack.c.b16 %v1593, %v1592
      %vm1597 = vcmask 547840
      %v1599 = vsel %vm1597, %v1594, 0
      %v1602 = vsel %vm1597, %v1595, 0
      %v1605 = vsel %vm1597, %v1596, 0
      %vm1607 = vcmask 1040384
      %vm1608 = vcmask 1041408
      %v1609 = vsel %vm1607, 4294967295, 65535
      %v1610 = vsel %vm1608, %v1609, 0
      %v1612 = vand.u32 %v1575, %v1610
      %1614 = vmatprep.subr.bf16.mxu0 0
      %1615 = vmatpush1.bf16.msra.mxu0 %v1571
      %1616 = vmatprep.subr.bf16.mxu0 0
      %1617 = vmatpush1.bf16.msra.mxu0 %v1572
      %1618 = vmatprep.subr.bf16.mxu0 0
      %1619 = vmatpush1.bf16.msra.mxu0 %v1573
      %1620 = vmatprep.subr.bf16.mxu0 0
      %1621 = vmatpush1.bf16.msra.mxu0 %v1574
      %1622 = vmatprep.subr.bf16.mxu0 0
      %1623 = vmatpush1.bf16.msra.mxu0 %v1612
      %1624 = vmatprep.subr.bf16.mxu0 0
      %1625 = vmatpush1.bf16.msra.mxu0 0
      %1626 = vmatprep.subr.bf16.mxu0 0
      %1627 = vmatpush1.bf16.msra.mxu0 0
      %1628 = vmatprep.subr.bf16.mxu0 0
      %1629 = vmatpush1.bf16.msra.mxu0 0
      %1630 = vmatprep.subr.bf16.mxu0 0
      %1631 = vmatpush1.bf16.msra.mxu0 0
      %1632 = vmatprep.subr.bf16.mxu0 0
      %1633 = vmatpush1.bf16.msra.mxu0 0
      %1634 = vmatprep.subr.bf16.mxu0 0
      %1635 = vmatpush1.bf16.msra.mxu0 0
      %1636 = vmatprep.subr.bf16.mxu0 0
      %1637 = vmatpush1.bf16.msra.mxu0 0
      %1638 = vmatprep.subr.bf16.mxu0 0
      %1639 = vmatpush1.bf16.msra.mxu0 0
      %1640 = vmatprep.subr.bf16.mxu0 0
      %1641 = vmatpush1.bf16.msra.mxu0 0
      %1642 = vmatprep.subr.bf16.mxu0 0
      %1643 = vmatpush1.bf16.msra.mxu0 0
      %1644 = vmatprep.subr.bf16.mxu0 0
      %1645 = vmatpush1.bf16.msra.mxu0 0
      %1646 = vmatprep.mubr.bf16.mxu0 0
      %1647 = vmatmul.mubr.bf16.gmra.mrb[0].mxu0 %v1599
      %v1648 = vpop.f32.mrb[0].mxu0
      %v1649 = vadd.f32 0.0, %v1648
      %v1650 = vpop.f32.mrb[0].mxu0
      %v1651 = vpop.f32.mrb[0].mxu0
      %v1652 = vadd.f32 0.0, %v1651
      %v1653 = vpop.f32.mrb[0].mxu0
      %1654 = vmatprep.mubr.bf16.mxu0 0
      %1655 = vmatmul.mubr.bf16.gmra.mrb[0].mxu0 %v1602
      %v1656 = vpop.f32.mrb[0].mxu0
      %v1657 = vadd.f32 0.0, %v1656
      %v1658 = vpop.f32.mrb[0].mxu0
      %v1659 = vpop.f32.mrb[0].mxu0
      %v1660 = vadd.f32 0.0, %v1659
      %v1661 = vpop.f32.mrb[0].mxu0
      %1662 = vmatprep.mubr.bf16.mxu0 0
      %1663 = vmatmul.mubr.bf16.gmra.mrb[0].mxu0 %v1605
      %v1664 = vpop.f32.mrb[0].mxu0
      %v1665 = vadd.f32 0.0, %v1664
      %v1666 = vpop.f32.mrb[0].mxu0
      %v1667 = vpop.f32.mrb[0].mxu0
      %v1668 = vadd.f32 0.0, %v1667
      %v1669 = vpop.f32.mrb[0].mxu0
      %1670 = vdwg.mxu0
      %v1671 = vpack.c.bf16 %v1652, %v1649
      %v1672 = vpack.c.bf16 %v1660, %v1657
      %v1673 = vpack.c.bf16 %v1668, %v1665
      %v1674 = vld [vmem:[%s3] sm:$0xf]
      %v1675 = vld [vmem:[%s3 + $0x4] sm:$0xf]
      %s1676 = scalar_lea.vmem %s3, 8
      %v1677 = vld [vmem:[%s1676] sm:$0xf]
      %v1678 = vld [vmem:[%s1676 + $0x4] sm:$0xf]
      %v1680 = vshrl.u32 %v1671, 16
      %v1682 = vshll.u32 %v1671, 16
      %v1684 = vrot.slane %v1682, 1
      %v1685 = vor.u32 %v1680, %v1684
      %v1687 = vshll.u32 %v1672, 16
      %v1689 = vrot.slane %v1687, 1
      %v1690 = vsel %vm369, %v1685, %v1689
      %v1691 = vshrl.u32 %v1672, 16
      %v1693 = vor.u32 %v1691, %v1689
      %v1696 = vunpack.c.l.b16 %v1677
      %v1697 = vunpack.c.l.b16 %v1678
      %v1698 = vpack.c.b16 %v1697, %v1696
      %vm1700 = vcmask 130048
      %v1702 = vsel %vm1700, %v1690, 0
      %v1705 = vsel %vm1700, %v1693, 0
      %1707 = vmatprep.subr.bf16.mxu0 0
      %1708 = vmatpush1.bf16.msra.mxu0 %v1698
      %1709 = vmatprep.subr.bf16.mxu0 0
      %1710 = vmatpush1.bf16.msra.mxu0 0
      %1711 = vmatprep.subr.bf16.mxu0 0
      %1712 = vmatpush1.bf16.msra.mxu0 0
      %1713 = vmatprep.subr.bf16.mxu0 0
      %1714 = vmatpush1.bf16.msra.mxu0 0
      %1715 = vmatprep.subr.bf16.mxu0 0
      %1716 = vmatpush1.bf16.msra.mxu0 0
      %1717 = vmatprep.subr.bf16.mxu0 0
      %1718 = vmatpush1.bf16.msra.mxu0 0
      %1719 = vmatprep.subr.bf16.mxu0 0
      %1720 = vmatpush1.bf16.msra.mxu0 0
      %1721 = vmatprep.subr.bf16.mxu0 0
      %1722 = vmatpush1.bf16.msra.mxu0 0
      %1723 = vmatprep.subr.bf16.mxu0 0
      %1724 = vmatpush1.bf16.msra.mxu0 0
      %1725 = vmatprep.subr.bf16.mxu0 0
      %1726 = vmatpush1.bf16.msra.mxu0 0
      %1727 = vmatprep.subr.bf16.mxu0 0
      %1728 = vmatpush1.bf16.msra.mxu0 0
      %1729 = vmatprep.subr.bf16.mxu0 0
      %1730 = vmatpush1.bf16.msra.mxu0 0
      %1731 = vmatprep.subr.bf16.mxu0 0
      %1732 = vmatpush1.bf16.msra.mxu0 0
      %1733 = vmatprep.subr.bf16.mxu0 0
      %1734 = vmatpush1.bf16.msra.mxu0 0
      %1735 = vmatprep.subr.bf16.mxu0 0
      %1736 = vmatpush1.bf16.msra.mxu0 0
      %1737 = vmatprep.subr.bf16.mxu0 0
      %1738 = vmatpush1.bf16.msra.mxu0 0
      %1739 = vmatprep.mubr.bf16.mxu0 0
      %1740 = vmatmul.mubr.bf16.gmra.mrb[0].mxu0 %v1702
      %v1741 = vpop.f32.mrb[0].mxu0
      %v1742 = vadd.f32 0.0, %v1741
      %v1743 = vpop.f32.mrb[0].mxu0
      %v1744 = vpop.f32.mrb[0].mxu0
      %v1745 = vadd.f32 0.0, %v1744
      %v1746 = vpop.f32.mrb[0].mxu0
      %1747 = vmatprep.mubr.bf16.mxu0 0
      %1748 = vmatmul.mubr.bf16.gmra.mrb[0].mxu0 %v1705
      %v1749 = vpop.f32.mrb[0].mxu0
      %v1750 = vadd.f32 0.0, %v1749
      %v1751 = vpop.f32.mrb[0].mxu0
      %v1752 = vpop.f32.mrb[0].mxu0
      %v1753 = vpop.f32.mrb[0].mxu0
      %1754 = vdwg.mxu0
      %v1757 = vunpack.c.l.b16 %v1674
      %v1758 = vunpack.c.l.b16 %v1675
      %v1759 = vpack.c.b16 %v1758, %v1757
      %v1761 = vsel %vm1700, %v1671, 0
      %v1763 = vsel %vm1700, %v1672, 0
      %1765 = vmatprep.subr.bf16.mxu0 0
      %1766 = vmatpush1.bf16.msra.mxu0 %v1759
      %1767 = vmatprep.subr.bf16.mxu0 0
      %1768 = vmatpush1.bf16.msra.mxu0 0
      %1769 = vmatprep.subr.bf16.mxu0 0
      %1770 = vmatpush1.bf16.msra.mxu0 0
      %1771 = vmatprep.subr.bf16.mxu0 0
      %1772 = vmatpush1.bf16.msra.mxu0 0
      %1773 = vmatprep.subr.bf16.mxu0 0
      %1774 = vmatpush1.bf16.msra.mxu0 0
      %1775 = vmatprep.subr.bf16.mxu0 0
      %1776 = vmatpush1.bf16.msra.mxu0 0
      %1777 = vmatprep.subr.bf16.mxu0 0
      %1778 = vmatpush1.bf16.msra.mxu0 0
      %1779 = vmatprep.subr.bf16.mxu0 0
      %1780 = vmatpush1.bf16.msra.mxu0 0
      %1781 = vmatprep.subr.bf16.mxu0 0
      %1782 = vmatpush1.bf16.msra.mxu0 0
      %1783 = vmatprep.subr.bf16.mxu0 0
      %1784 = vmatpush1.bf16.msra.mxu0 0
      %1785 = vmatprep.subr.bf16.mxu0 0
      %1786 = vmatpush1.bf16.msra.mxu0 0
      %1787 = vmatprep.subr.bf16.mxu0 0
      %1788 = vmatpush1.bf16.msra.mxu0 0
      %1789 = vmatprep.subr.bf16.mxu0 0
      %1790 = vmatpush1.bf16.msra.mxu0 0
      %1791 = vmatprep.subr.bf16.mxu0 0
      %1792 = vmatpush1.bf16.msra.mxu0 0
      %1793 = vmatprep.subr.bf16.mxu0 0
      %1794 = vmatpush1.bf16.msra.mxu0 0
      %1795 = vmatprep.subr.bf16.mxu0 0
      %1796 = vmatpush1.bf16.msra.mxu0 0
      %1797 = vmatprep.mubr.bf16.mxu0 0
      %1798 = vmatmul.mubr.bf16.gmra.mrb[0].mxu0 %v1761
      %v1799 = vpop.f32.mrb[0].mxu0
      %v1800 = vadd.f32 %v1742, %v1799
      %v1801 = vpop.f32.mrb[0].mxu0
      %v1802 = vpop.f32.mrb[0].mxu0
      %v1803 = vadd.f32 %v1745, %v1802
      %v1804 = vpop.f32.mrb[0].mxu0
      %1805 = vmatprep.mubr.bf16.mxu0 0
      %1806 = vmatmul.mubr.bf16.gmra.mrb[0].mxu0 %v1763
      %v1807 = vpop.f32.mrb[0].mxu0
      %v1808 = vadd.f32 %v1750, %v1807
      %v1809 = vpop.f32.mrb[0].mxu0
      %v1810 = vpop.f32.mrb[0].mxu0
      %v1811 = vpop.f32.mrb[0].mxu0
      %1812 = vdwg.mxu0
      %s1813 = scalar_lea.vmem %s3, 16
      %v1814 = vld [vmem:[%s1813] sm:$0xf]
      %v1815 = vld [vmem:[%s1813 + $0x4] sm:$0xf]
      %v1818 = vrot.slane %v1671, 1
      %v1819 = vrot.slane %v1672, 1
      %v1820 = vsel %vm596, %v1818, %v1819
      %v1823 = vunpack.c.l.b16 %v1814
      %v1824 = vunpack.c.l.b16 %v1815
      %v1825 = vpack.c.b16 %v1824, %v1823
      %v1828 = vsel %vm1700, %v1820, 0
      %v1831 = vsel %vm1700, %v1819, 0
      %1833 = vmatprep.subr.bf16.mxu0 0
      %1834 = vmatpush1.bf16.msra.mxu0 %v1825
      %1835 = vmatprep.subr.bf16.mxu0 0
      %1836 = vmatpush1.bf16.msra.mxu0 0
      %1837 = vmatprep.subr.bf16.mxu0 0
      %1838 = vmatpush1.bf16.msra.mxu0 0
      %1839 = vmatprep.subr.bf16.mxu0 0
      %1840 = vmatpush1.bf16.msra.mxu0 0
      %1841 = vmatprep.subr.bf16.mxu0 0
      %1842 = vmatpush1.bf16.msra.mxu0 0
      %1843 = vmatprep.subr.bf16.mxu0 0
      %1844 = vmatpush1.bf16.msra.mxu0 0
      %1845 = vmatprep.subr.bf16.mxu0 0
      %1846 = vmatpush1.bf16.msra.mxu0 0
      %1847 = vmatprep.subr.bf16.mxu0 0
      %1848 = vmatpush1.bf16.msra.mxu0 0
      %1849 = vmatprep.subr.bf16.mxu0 0
      %1850 = vmatpush1.bf16.msra.mxu0 0
      %1851 = vmatprep.subr.bf16.mxu0 0
      %1852 = vmatpush1.bf16.msra.mxu0 0
      %1853 = vmatprep.subr.bf16.mxu0 0
      %1854 = vmatpush1.bf16.msra.mxu0 0
      %1855 = vmatprep.subr.bf16.mxu0 0
      %1856 = vmatpush1.bf16.msra.mxu0 0
      %1857 = vmatprep.subr.bf16.mxu0 0
      %1858 = vmatpush1.bf16.msra.mxu0 0
      %1859 = vmatprep.subr.bf16.mxu0 0
      %1860 = vmatpush1.bf16.msra.mxu0 0
      %1861 = vmatprep.subr.bf16.mxu0 0
      %1862 = vmatpush1.bf16.msra.mxu0 0
      %1863 = vmatprep.subr.bf16.mxu0 0
      %1864 = vmatpush1.bf16.msra.mxu0 0
      %1865 = vmatprep.mubr.bf16.mxu0 0
      %1866 = vmatmul.mubr.bf16.gmra.mrb[0].mxu0 %v1828
      %v1867 = vpop.f32.mrb[0].mxu0
      %v1868 = vadd.f32 0.0, %v1867
      %v1869 = vpop.f32.mrb[0].mxu0
      %v1870 = vpop.f32.mrb[0].mxu0
      %v1871 = vadd.f32 0.0, %v1870
      %v1872 = vpop.f32.mrb[0].mxu0
      %1873 = vmatprep.mubr.bf16.mxu0 0
      %1874 = vmatmul.mubr.bf16.gmra.mrb[0].mxu0 %v1831
      %v1875 = vpop.f32.mrb[0].mxu0
      %v1876 = vadd.f32 0.0, %v1875
      %v1877 = vpop.f32.mrb[0].mxu0
      %v1878 = vpop.f32.mrb[0].mxu0
      %v1879 = vpop.f32.mrb[0].mxu0
      %1880 = vdwg.mxu0
      %v1881 = vadd.f32 %v1800, %v1868
      %v1882 = vadd.f32 %v1803, %v1871
      %v1883 = vadd.f32 %v1808, %v1876
      %s1884 = scalar_lea.vmem %s3, 24
      %v1885 = vld [vmem:[%s1884] sm:$0xf]
      %v1886 = vld [vmem:[%s1884 + $0x4] sm:$0xf]
      %v1887 = vrot.slane %v1671, 3
      %v1888 = vrot.slane %v1672, 3
      %v1889 = vsel %vm1437, %v1887, %v1888
      %v1892 = vunpack.c.l.b16 %v1885
      %v1893 = vunpack.c.l.b16 %v1886
      %v1894 = vpack.c.b16 %v1893, %v1892
      %v1897 = vsel %vm1700, %v1889, 0
      %v1900 = vsel %vm1700, %v1888, 0
      %1902 = vmatprep.subr.bf16.mxu0 0
      %1903 = vmatpush1.bf16.msra.mxu0 %v1894
      %1904 = vmatprep.subr.bf16.mxu0 0
      %1905 = vmatpush1.bf16.msra.mxu0 0
      %1906 = vmatprep.subr.bf16.mxu0 0
      %1907 = vmatpush1.bf16.msra.mxu0 0
      %1908 = vmatprep.subr.bf16.mxu0 0
      %1909 = vmatpush1.bf16.msra.mxu0 0
      %1910 = vmatprep.subr.bf16.mxu0 0
      %1911 = vmatpush1.bf16.msra.mxu0 0
      %1912 = vmatprep.subr.bf16.mxu0 0
      %1913 = vmatpush1.bf16.msra.mxu0 0
      %1914 = vmatprep.subr.bf16.mxu0 0
      %1915 = vmatpush1.bf16.msra.mxu0 0
      %1916 = vmatprep.subr.bf16.mxu0 0
      %1917 = vmatpush1.bf16.msra.mxu0 0
      %1918 = vmatprep.subr.bf16.mxu0 0
      %1919 = vmatpush1.bf16.msra.mxu0 0
      %1920 = vmatprep.subr.bf16.mxu0 0
      %1921 = vmatpush1.bf16.msra.mxu0 0
      %1922 = vmatprep.subr.bf16.mxu0 0
      %1923 = vmatpush1.bf16.msra.mxu0 0
      %1924 = vmatprep.subr.bf16.mxu0 0
      %1925 = vmatpush1.bf16.msra.mxu0 0
      %1926 = vmatprep.subr.bf16.mxu0 0
      %1927 = vmatpush1.bf16.msra.mxu0 0
      %1928 = vmatprep.subr.bf16.mxu0 0
      %1929 = vmatpush1.bf16.msra.mxu0 0
      %1930 = vmatprep.subr.bf16.mxu0 0
      %1931 = vmatpush1.bf16.msra.mxu0 0
      %1932 = vmatprep.subr.bf16.mxu0 0
      %1933 = vmatpush1.bf16.msra.mxu0 0
      %1934 = vmatprep.mubr.bf16.mxu0 0
      %1935 = vmatmul.mubr.bf16.gmra.mrb[0].mxu0 %v1897
      %v1936 = vpop.f32.mrb[0].mxu0
      %v1937 = vadd.f32 0.0, %v1936
      %v1938 = vpop.f32.mrb[0].mxu0
      %v1939 = vpop.f32.mrb[0].mxu0
      %v1940 = vadd.f32 0.0, %v1939
      %v1941 = vpop.f32.mrb[0].mxu0
      %1942 = vmatprep.mubr.bf16.mxu0 0
      %1943 = vmatmul.mubr.bf16.gmra.mrb[0].mxu0 %v1900
      %v1944 = vpop.f32.mrb[0].mxu0
      %v1945 = vadd.f32 0.0, %v1944
      %v1946 = vpop.f32.mrb[0].mxu0
      %v1947 = vpop.f32.mrb[0].mxu0
      %v1948 = vpop.f32.mrb[0].mxu0
      %1949 = vdwg.mxu0
      %v1950 = vadd.f32 %v1881, %v1937
      %v1951 = vadd.f32 %v1882, %v1940
      %v1952 = vadd.f32 %v1883, %v1945
      %s1953 = scalar_lea.vmem %s3, 32
      %v1954 = vld [vmem:[%s1953] sm:$0xf]
      %v1955 = vld [vmem:[%s1953 + $0x4] sm:$0xf]
      %vm1956 = vsmask.f32 4352
      %v1957 = vrot.slane %v1680, 3
      %v1958 = vrot.slane %v1682, 4
      %v1959 = vor.u32 %v1957, %v1958
      %v1960 = vrot.slane %v1691, 3
      %v1961 = vrot.slane %v1687, 4
      %v1962 = vor.u32 %v1960, %v1961
      %v1963 = vsel %vm1956, %v1959, %v1962
      %v1966 = vunpack.c.l.b16 %v1954
      %v1967 = vunpack.c.l.b16 %v1955
      %v1968 = vpack.c.b16 %v1967, %v1966
      %v1971 = vsel %vm1700, %v1963, 0
      %v1974 = vsel %vm1700, %v1962, 0
      %1976 = vmatprep.subr.bf16.mxu0 0
      %1977 = vmatpush1.bf16.msra.mxu0 %v1968
      %1978 = vmatprep.subr.bf16.mxu0 0
      %1979 = vmatpush1.bf16.msra.mxu0 0
      %1980 = vmatprep.subr.bf16.mxu0 0
      %1981 = vmatpush1.bf16.msra.mxu0 0
      %1982 = vmatprep.subr.bf16.mxu0 0
      %1983 = vmatpush1.bf16.msra.mxu0 0
      %1984 = vmatprep.subr.bf16.mxu0 0
      %1985 = vmatpush1.bf16.msra.mxu0 0
      %1986 = vmatprep.subr.bf16.mxu0 0
      %1987 = vmatpush1.bf16.msra.mxu0 0
      %1988 = vmatprep.subr.bf16.mxu0 0
      %1989 = vmatpush1.bf16.msra.mxu0 0
      %1990 = vmatprep.subr.bf16.mxu0 0
      %1991 = vmatpush1.bf16.msra.mxu0 0
      %1992 = vmatprep.subr.bf16.mxu0 0
      %1993 = vmatpush1.bf16.msra.mxu0 0
      %1994 = vmatprep.subr.bf16.mxu0 0
      %1995 = vmatpush1.bf16.msra.mxu0 0
      %1996 = vmatprep.subr.bf16.mxu0 0
      %1997 = vmatpush1.bf16.msra.mxu0 0
      %1998 = vmatprep.subr.bf16.mxu0 0
      %1999 = vmatpush1.bf16.msra.mxu0 0
      %2000 = vmatprep.subr.bf16.mxu0 0
      %2001 = vmatpush1.bf16.msra.mxu0 0
      %2002 = vmatprep.subr.bf16.mxu0 0
      %2003 = vmatpush1.bf16.msra.mxu0 0
      %2004 = vmatprep.subr.bf16.mxu0 0
      %2005 = vmatpush1.bf16.msra.mxu0 0
      %2006 = vmatprep.subr.bf16.mxu0 0
      %2007 = vmatpush1.bf16.msra.mxu0 0
      %2008 = vmatprep.mubr.bf16.mxu0 0
      %2009 = vmatmul.mubr.bf16.gmra.mrb[0].mxu0 %v1971
      %v2010 = vpop.f32.mrb[0].mxu0
      %v2011 = vadd.f32 0.0, %v2010
      %v2012 = vpop.f32.mrb[0].mxu0
      %v2013 = vpop.f32.mrb[0].mxu0
      %v2014 = vadd.f32 0.0, %v2013
      %v2015 = vpop.f32.mrb[0].mxu0
      %2016 = vmatprep.mubr.bf16.mxu0 0
      %2017 = vmatmul.mubr.bf16.gmra.mrb[0].mxu0 %v1974
      %v2018 = vpop.f32.mrb[0].mxu0
      %v2019 = vadd.f32 0.0, %v2018
      %v2020 = vpop.f32.mrb[0].mxu0
      %v2021 = vpop.f32.mrb[0].mxu0
      %v2022 = vpop.f32.mrb[0].mxu0
      %2023 = vdwg.mxu0
      %v2024 = vadd.f32 %v1950, %v2011
      %v2025 = vadd.f32 %v1951, %v2014
      %v2026 = vadd.f32 %v1952, %v2019
      %s2027 = scalar_lea.vmem %s3, 40
      %v2028 = vld [vmem:[%s2027] sm:$0xf]
      %v2029 = vld [vmem:[%s2027 + $0x4] sm:$0xf]
      %vm2030 = vcmask 1043456
      %v2031 = vrot.slane %v1671, 4
      %v2032 = vrot.slane %v1672, 4
      %v2033 = vsel %vm2030, %v2031, %v2032
      %v2036 = vunpack.c.l.b16 %v2028
      %v2037 = vunpack.c.l.b16 %v2029
      %v2038 = vpack.c.b16 %v2037, %v2036
      %v2041 = vsel %vm1700, %v2033, 0
      %v2044 = vsel %vm1700, %v2032, 0
      %2046 = vmatprep.subr.bf16.mxu0 0
      %2047 = vmatpush1.bf16.msra.mxu0 %v2038
      %2048 = vmatprep.subr.bf16.mxu0 0
      %2049 = vmatpush1.bf16.msra.mxu0 0
      %2050 = vmatprep.subr.bf16.mxu0 0
      %2051 = vmatpush1.bf16.msra.mxu0 0
      %2052 = vmatprep.subr.bf16.mxu0 0
      %2053 = vmatpush1.bf16.msra.mxu0 0
      %2054 = vmatprep.subr.bf16.mxu0 0
      %2055 = vmatpush1.bf16.msra.mxu0 0
      %2056 = vmatprep.subr.bf16.mxu0 0
      %2057 = vmatpush1.bf16.msra.mxu0 0
      %2058 = vmatprep.subr.bf16.mxu0 0
      %2059 = vmatpush1.bf16.msra.mxu0 0
      %2060 = vmatprep.subr.bf16.mxu0 0
      %2061 = vmatpush1.bf16.msra.mxu0 0
      %2062 = vmatprep.subr.bf16.mxu0 0
      %2063 = vmatpush1.bf16.msra.mxu0 0
      %2064 = vmatprep.subr.bf16.mxu0 0
      %2065 = vmatpush1.bf16.msra.mxu0 0
      %2066 = vmatprep.subr.bf16.mxu0 0
      %2067 = vmatpush1.bf16.msra.mxu0 0
      %2068 = vmatprep.subr.bf16.mxu0 0
      %2069 = vmatpush1.bf16.msra.mxu0 0
      %2070 = vmatprep.subr.bf16.mxu0 0
      %2071 = vmatpush1.bf16.msra.mxu0 0
      %2072 = vmatprep.subr.bf16.mxu0 0
      %2073 = vmatpush1.bf16.msra.mxu0 0
      %2074 = vmatprep.subr.bf16.mxu0 0
      %2075 = vmatpush1.bf16.msra.mxu0 0
      %2076 = vmatprep.subr.bf16.mxu0 0
      %2077 = vmatpush1.bf16.msra.mxu0 0
      %2078 = vmatprep.mubr.bf16.mxu0 0
      %2079 = vmatmul.mubr.bf16.gmra.mrb[0].mxu0 %v2041
      %v2080 = vpop.f32.mrb[0].mxu0
      %v2081 = vadd.f32 0.0, %v2080
      %v2082 = vpop.f32.mrb[0].mxu0
      %v2083 = vpop.f32.mrb[0].mxu0
      %v2084 = vadd.f32 0.0, %v2083
      %v2085 = vpop.f32.mrb[0].mxu0
      %2086 = vmatprep.mubr.bf16.mxu0 0
      %2087 = vmatmul.mubr.bf16.gmra.mrb[0].mxu0 %v2044
      %v2088 = vpop.f32.mrb[0].mxu0
      %v2089 = vadd.f32 0.0, %v2088
      %v2090 = vpop.f32.mrb[0].mxu0
      %v2091 = vpop.f32.mrb[0].mxu0
      %v2092 = vpop.f32.mrb[0].mxu0
      %2093 = vdwg.mxu0
      %v2094 = vadd.f32 %v2024, %v2081
      %v2095 = vadd.f32 %v2025, %v2084
      %v2096 = vadd.f32 %v2026, %v2089
      %s2097 = scalar_lea.vmem %s3, 48
      %v2098 = vld [vmem:[%s2097] sm:$0xf]
      %v2099 = vld [vmem:[%s2097 + $0x4] sm:$0xf]
      %vm2101 = vcmask 1041408
      %v2102 = vrot.slane %v1671, 6
      %v2103 = vrot.slane %v1672, 6
      %v2104 = vsel %vm2101, %v2102, %v2103
      %v2105 = vrot.slane %v1673, 6
      %v2106 = vsel %vm2101, %v2103, %v2105
      %v2109 = vunpack.c.l.b16 %v2098
      %v2110 = vunpack.c.l.b16 %v2099
      %v2111 = vpack.c.b16 %v2110, %v2109
      %v2114 = vsel %vm1700, %v2104, 0
      %v2117 = vsel %vm1700, %v2106, 0
      %2119 = vmatprep.subr.bf16.mxu0 0
      %2120 = vmatpush1.bf16.msra.mxu0 %v2111
      %2121 = vmatprep.subr.bf16.mxu0 0
      %2122 = vmatpush1.bf16.msra.mxu0 0
      %2123 = vmatprep.subr.bf16.mxu0 0
      %2124 = vmatpush1.bf16.msra.mxu0 0
      %2125 = vmatprep.subr.bf16.mxu0 0
      %2126 = vmatpush1.bf16.msra.mxu0 0
      %2127 = vmatprep.subr.bf16.mxu0 0
      %2128 = vmatpush1.bf16.msra.mxu0 0
      %2129 = vmatprep.subr.bf16.mxu0 0
      %2130 = vmatpush1.bf16.msra.mxu0 0
      %2131 = vmatprep.subr.bf16.mxu0 0
      %2132 = vmatpush1.bf16.msra.mxu0 0
      %2133 = vmatprep.subr.bf16.mxu0 0
      %2134 = vmatpush1.bf16.msra.mxu0 0
      %2135 = vmatprep.subr.bf16.mxu0 0
      %2136 = vmatpush1.bf16.msra.mxu0 0
      %2137 = vmatprep.subr.bf16.mxu0 0
      %2138 = vmatpush1.bf16.msra.mxu0 0
      %2139 = vmatprep.subr.bf16.mxu0 0
      %2140 = vmatpush1.bf16.msra.mxu0 0
      %2141 = vmatprep.subr.bf16.mxu0 0
      %2142 = vmatpush1.bf16.msra.mxu0 0
      %2143 = vmatprep.subr.bf16.mxu0 0
      %2144 = vmatpush1.bf16.msra.mxu0 0
      %2145 = vmatprep.subr.bf16.mxu0 0
      %2146 = vmatpush1.bf16.msra.mxu0 0
      %2147 = vmatprep.subr.bf16.mxu0 0
      %2148 = vmatpush1.bf16.msra.mxu0 0
      %2149 = vmatprep.subr.bf16.mxu0 0
      %2150 = vmatpush1.bf16.msra.mxu0 0
      %2151 = vmatprep.mubr.bf16.mxu0 0
      %2152 = vmatmul.mubr.bf16.gmra.mrb[0].mxu0 %v2114
      %v2153 = vpop.f32.mrb[0].mxu0
      %v2154 = vadd.f32 0.0, %v2153
      %v2155 = vpop.f32.mrb[0].mxu0
      %v2156 = vpop.f32.mrb[0].mxu0
      %v2157 = vadd.f32 0.0, %v2156
      %v2158 = vpop.f32.mrb[0].mxu0
      %2159 = vmatprep.mubr.bf16.mxu0 0
      %2160 = vmatmul.mubr.bf16.gmra.mrb[0].mxu0 %v2117
      %v2161 = vpop.f32.mrb[0].mxu0
      %v2162 = vadd.f32 0.0, %v2161
      %v2163 = vpop.f32.mrb[0].mxu0
      %v2164 = vpop.f32.mrb[0].mxu0
      %v2165 = vpop.f32.mrb[0].mxu0
      %2166 = vdwg.mxu0
      %v2167 = vadd.f32 %v2094, %v2154
      %v2168 = vadd.f32 %v2095, %v2157
      %v2169 = vadd.f32 %v2096, %v2162
      %s2170 = scalar_lea.vmem %s3, 56
      %v2171 = vld [vmem:[%s2170] sm:$0xf]
      %v2172 = vld [vmem:[%s2170 + $0x4] sm:$0xf]
      %vm2173 = vsmask.f32 1280
      %v2174 = vrot.slane %v1680, 6
      %v2175 = vrot.slane %v1682, 7
      %v2176 = vor.u32 %v2174, %v2175
      %v2177 = vrot.slane %v1691, 6
      %v2178 = vrot.slane %v1687, 7
      %v2179 = vor.u32 %v2177, %v2178
      %v2180 = vsel %vm2173, %v2176, %v2179
      %v2182 = vshrl.u32 %v1673, 16
      %v2184 = vrot.slane %v2182, 6
      %v2185 = vshll.u32 %v1673, 16
      %v2187 = vrot.slane %v2185, 7
      %v2188 = vor.u32 %v2184, %v2187
      %v2189 = vsel %vm2173, %v2179, %v2188
      %v2192 = vunpack.c.l.b16 %v2171
      %v2193 = vunpack.c.l.b16 %v2172
      %v2194 = vpack.c.b16 %v2193, %v2192
      %v2197 = vsel %vm1700, %v2180, 0
      %v2200 = vsel %vm1700, %v2189, 0
      %2202 = vmatprep.subr.bf16.mxu0 0
      %2203 = vmatpush1.bf16.msra.mxu0 %v2194
      %2204 = vmatprep.subr.bf16.mxu0 0
      %2205 = vmatpush1.bf16.msra.mxu0 0
      %2206 = vmatprep.subr.bf16.mxu0 0
      %2207 = vmatpush1.bf16.msra.mxu0 0
      %2208 = vmatprep.subr.bf16.mxu0 0
      %2209 = vmatpush1.bf16.msra.mxu0 0
      %2210 = vmatprep.subr.bf16.mxu0 0
      %2211 = vmatpush1.bf16.msra.mxu0 0
      %2212 = vmatprep.subr.bf16.mxu0 0
      %2213 = vmatpush1.bf16.msra.mxu0 0
      %2214 = vmatprep.subr.bf16.mxu0 0
      %2215 = vmatpush1.bf16.msra.mxu0 0
      %2216 = vmatprep.subr.bf16.mxu0 0
      %2217 = vmatpush1.bf16.msra.mxu0 0
      %2218 = vmatprep.subr.bf16.mxu0 0
      %2219 = vmatpush1.bf16.msra.mxu0 0
      %2220 = vmatprep.subr.bf16.mxu0 0
      %2221 = vmatpush1.bf16.msra.mxu0 0
      %2222 = vmatprep.subr.bf16.mxu0 0
      %2223 = vmatpush1.bf16.msra.mxu0 0
      %2224 = vmatprep.subr.bf16.mxu0 0
      %2225 = vmatpush1.bf16.msra.mxu0 0
      %2226 = vmatprep.subr.bf16.mxu0 0
      %2227 = vmatpush1.bf16.msra.mxu0 0
      %2228 = vmatprep.subr.bf16.mxu0 0
      %2229 = vmatpush1.bf16.msra.mxu0 0
      %2230 = vmatprep.subr.bf16.mxu0 0
      %2231 = vmatpush1.bf16.msra.mxu0 0
      %2232 = vmatprep.subr.bf16.mxu0 0
      %2233 = vmatpush1.bf16.msra.mxu0 0
      %2234 = vmatprep.mubr.bf16.mxu0 0
      %2235 = vmatmul.mubr.bf16.gmra.mrb[0].mxu0 %v2197
      %v2236 = vpop.f32.mrb[0].mxu0
      %v2237 = vadd.f32 0.0, %v2236
      %v2238 = vpop.f32.mrb[0].mxu0
      %v2239 = vpop.f32.mrb[0].mxu0
      %v2240 = vadd.f32 0.0, %v2239
      %v2241 = vpop.f32.mrb[0].mxu0
      %2242 = vmatprep.mubr.bf16.mxu0 0
      %2243 = vmatmul.mubr.bf16.gmra.mrb[0].mxu0 %v2200
      %v2244 = vpop.f32.mrb[0].mxu0
      %v2245 = vadd.f32 0.0, %v2244
      %v2246 = vpop.f32.mrb[0].mxu0
      %v2247 = vpop.f32.mrb[0].mxu0
      %v2248 = vpop.f32.mrb[0].mxu0
      %2249 = vdwg.mxu0
      %v2250 = vadd.f32 %v2167, %v2237
      %v2251 = vadd.f32 %v2168, %v2240
      %v2252 = vadd.f32 %v2169, %v2245
      %s2253 = scalar_lea.vmem %s3, 64
      %v2254 = vld [vmem:[%s2253] sm:$0xf]
      %v2255 = vld [vmem:[%s2253 + $0x4] sm:$0xf]
      %vm2256 = vcmask 1040384
      %v2257 = vrot.slane %v1671, 7
      %v2258 = vrot.slane %v1672, 7
      %v2259 = vsel %vm2256, %v2257, %v2258
      %v2260 = vrot.slane %v1673, 7
      %v2261 = vsel %vm2256, %v2258, %v2260
      %v2264 = vunpack.c.l.b16 %v2254
      %v2265 = vunpack.c.l.b16 %v2255
      %v2266 = vpack.c.b16 %v2265, %v2264
      %v2269 = vsel %vm1700, %v2259, 0
      %v2272 = vsel %vm1700, %v2261, 0
      %2274 = vmatprep.subr.bf16.mxu0 0
      %2275 = vmatpush1.bf16.msra.mxu0 %v2266
      %2276 = vmatprep.subr.bf16.mxu0 0
      %2277 = vmatpush1.bf16.msra.mxu0 0
      %2278 = vmatprep.subr.bf16.mxu0 0
      %2279 = vmatpush1.bf16.msra.mxu0 0
      %2280 = vmatprep.subr.bf16.mxu0 0
      %2281 = vmatpush1.bf16.msra.mxu0 0
      %2282 = vmatprep.subr.bf16.mxu0 0
      %2283 = vmatpush1.bf16.msra.mxu0 0
      %2284 = vmatprep.subr.bf16.mxu0 0
      %2285 = vmatpush1.bf16.msra.mxu0 0
      %2286 = vmatprep.subr.bf16.mxu0 0
      %2287 = vmatpush1.bf16.msra.mxu0 0
      %2288 = vmatprep.subr.bf16.mxu0 0
      %2289 = vmatpush1.bf16.msra.mxu0 0
      %2290 = vmatprep.subr.bf16.mxu0 0
      %2291 = vmatpush1.bf16.msra.mxu0 0
      %2292 = vmatprep.subr.bf16.mxu0 0
      %2293 = vmatpush1.bf16.msra.mxu0 0
      %2294 = vmatprep.subr.bf16.mxu0 0
      %2295 = vmatpush1.bf16.msra.mxu0 0
      %2296 = vmatprep.subr.bf16.mxu0 0
      %2297 = vmatpush1.bf16.msra.mxu0 0
      %2298 = vmatprep.subr.bf16.mxu0 0
      %2299 = vmatpush1.bf16.msra.mxu0 0
      %2300 = vmatprep.subr.bf16.mxu0 0
      %2301 = vmatpush1.bf16.msra.mxu0 0
      %2302 = vmatprep.subr.bf16.mxu0 0
      %2303 = vmatpush1.bf16.msra.mxu0 0
      %2304 = vmatprep.subr.bf16.mxu0 0
      %2305 = vmatpush1.bf16.msra.mxu0 0
      %2306 = vmatprep.mubr.bf16.mxu0 0
      %2307 = vmatmul.mubr.bf16.gmra.mrb[0].mxu0 %v2269
      %v2308 = vpop.f32.mrb[0].mxu0
      %v2309 = vadd.f32 0.0, %v2308
      %v2310 = vpop.f32.mrb[0].mxu0
      %v2311 = vpop.f32.mrb[0].mxu0
      %v2312 = vadd.f32 0.0, %v2311
      %v2313 = vpop.f32.mrb[0].mxu0
      %2314 = vmatprep.mubr.bf16.mxu0 0
      %2315 = vmatmul.mubr.bf16.gmra.mrb[0].mxu0 %v2272
      %v2316 = vpop.f32.mrb[0].mxu0
      %v2317 = vadd.f32 0.0, %v2316
      %v2318 = vpop.f32.mrb[0].mxu0
      %v2319 = vpop.f32.mrb[0].mxu0
      %v2320 = vpop.f32.mrb[0].mxu0
      %2321 = vdwg.mxu0
      %v2322 = vadd.f32 %v2250, %v2309
      %v2323 = vadd.f32 %v2251, %v2312
      %v2324 = vadd.f32 %v2252, %v2317
      %v2325 = vld [vmem:[%s4] sm:$0x1]
      %v2327 = vlaneseq
      %v2328 = vshrl.u32 %v2327, 7
      %v2329 = vsub.s32 0, %v2328
      %v2330 = vrot.slane %v2325, %v2329
      %v2332 = vadd.f32 %v2322, %v2330
      %v2333 = vadd.f32 %v2323, %v2330
      %v2334 = vadd.f32 %v2324, %v2330
      %v2335 = vpack.c.bf16 %v2333, %v2332
      %v2336 = vpack.c.bf16 %v2334, %v2334
      %v2337 = vld [vmem:[%s6] sm:$0xf]
      %v2338 = vld [vmem:[%s6 + $0x4] sm:$0xf]
      %v2339 = vld [vmem:[%s6 + $0x8] sm:$0xf]
      %v2340 = vld [vmem:[%s6 + $0xc] sm:$0xf]
      %v2341 = vld [vmem:[%s6 + $0x10] sm:$0xf]
      %v2342 = vld [vmem:[%s6 + $0x14] sm:$0xf]
      %v2343 = vld [vmem:[%s7] sm:$0xf]
      %v2344 = vld [vmem:[%s7 + $0x4] sm:$0xf]
      %v2345 = vld [vmem:[%s7 + $0x8] sm:$0xf]
      %v2346 = vld [vmem:[%s7 + $0xc] sm:$0xf]
      %v2347 = vld [vmem:[%s7 + $0x10] sm:$0xf]
      %v2348 = vld [vmem:[%s7 + $0x14] sm:$0xf]
      %v2349 = vld [vmem:[%s327] sm:$0xf]
      %v2350 = vld [vmem:[%s327 + $0x4] sm:$0xf]
      %v2351 = vld [vmem:[%s327 + $0x8] sm:$0xf]
      %v2352 = vld [vmem:[%s327 + $0xc] sm:$0xf]
      %v2353 = vld [vmem:[%s327 + $0x10] sm:$0xf]
      %v2354 = vld [vmem:[%s327 + $0x14] sm:$0xf]
      %v2355 = vld [vmem:[%s327 + $0x18] sm:$0xf]
      %v2356 = vld [vmem:[%s327 + $0x1c] sm:$0xf]
      %v2357 = vld [vmem:[%s327 + $0x20] sm:$0xf]
      %v2358 = vld [vmem:[%s327 + $0x24] sm:$0xf]
      %v2359 = vld [vmem:[%s327 + $0x28] sm:$0xf]
      %v2360 = vld [vmem:[%s327 + $0x2c] sm:$0xf]
      %v2361 = vld [vmem:[%s327 + $0x30] sm:$0xf]
      %v2362 = vld [vmem:[%s327 + $0x34] sm:$0xf]
      %v2369 = vunpack.c.l.b16 %v2343
      %v2370 = vunpack.c.l.b16 %v2344
      %v2371 = vunpack.c.l.b16 %v2345
      %v2372 = vunpack.c.l.b16 %v2346
      %v2373 = vunpack.c.l.b16 %v2347
      %v2374 = vunpack.c.l.b16 %v2348
      %v2375 = vpack.c.b16 %v2370, %v2369
      %v2376 = vpack.c.b16 %v2372, %v2371
      %v2377 = vpack.c.b16 %v2374, %v2373
      %v2392 = vunpack.c.l.b16 %v2349
      %v2393 = vunpack.c.l.b16 %v2350
      %v2394 = vunpack.c.l.b16 %v2351
      %v2395 = vunpack.c.l.b16 %v2352
      %v2396 = vunpack.c.l.b16 %v2353
      %v2397 = vunpack.c.l.b16 %v2354
      %v2398 = vunpack.c.l.b16 %v2355
      %v2399 = vunpack.c.l.b16 %v2356
      %v2400 = vunpack.c.l.b16 %v2357
      %v2401 = vunpack.c.l.b16 %v2358
      %v2402 = vunpack.c.l.b16 %v2359
      %v2403 = vunpack.c.l.b16 %v2360
      %v2404 = vunpack.c.l.b16 %v2361
      %v2405 = vunpack.c.l.b16 %v2362
      %v2406 = vpack.c.b16 %v2393, %v2392
      %v2407 = vpack.c.b16 %v2395, %v2394
      %v2408 = vpack.c.b16 %v2397, %v2396
      %v2409 = vpack.c.b16 %v2399, %v2398
      %v2410 = vpack.c.b16 %v2401, %v2400
      %v2411 = vpack.c.b16 %v2403, %v2402
      %v2412 = vpack.c.b16 %v2405, %v2404
      %vm2420 = vcmask 916480
      %v2422 = vsel %vm2420, %v2375, 0
      %v2425 = vsel %vm2420, %v2376, 0
      %v2428 = vsel %vm2420, %v2377, 0
      %2430 = vmatprep.subr.bf16.mxu0 0
      %2431 = vmatpush1.bf16.msra.mxu0 %v2406
      %2432 = vmatprep.subr.bf16.mxu0 0
      %2433 = vmatpush1.bf16.msra.mxu0 %v2407
      %2434 = vmatprep.subr.bf16.mxu0 0
      %2435 = vmatpush1.bf16.msra.mxu0 %v2408
      %2436 = vmatprep.subr.bf16.mxu0 0
      %2437 = vmatpush1.bf16.msra.mxu0 %v2409
      %2438 = vmatprep.subr.bf16.mxu0 0
      %2439 = vmatpush1.bf16.msra.mxu0 %v2410
      %2440 = vmatprep.subr.bf16.mxu0 0
      %2441 = vmatpush1.bf16.msra.mxu0 %v2411
      %2442 = vmatprep.subr.bf16.mxu0 0
      %2443 = vmatpush1.bf16.msra.mxu0 %v2412
      %2444 = vmatprep.subr.bf16.mxu0 0
      %2445 = vmatpush1.bf16.msra.mxu0 0
      %2446 = vmatprep.subr.bf16.mxu0 0
      %2447 = vmatpush1.bf16.msra.mxu0 0
      %2448 = vmatprep.subr.bf16.mxu0 0
      %2449 = vmatpush1.bf16.msra.mxu0 0
      %2450 = vmatprep.subr.bf16.mxu0 0
      %2451 = vmatpush1.bf16.msra.mxu0 0
      %2452 = vmatprep.subr.bf16.mxu0 0
      %2453 = vmatpush1.bf16.msra.mxu0 0
      %2454 = vmatprep.subr.bf16.mxu0 0
      %2455 = vmatpush1.bf16.msra.mxu0 0
      %2456 = vmatprep.subr.bf16.mxu0 0
      %2457 = vmatpush1.bf16.msra.mxu0 0
      %2458 = vmatprep.subr.bf16.mxu0 0
      %2459 = vmatpush1.bf16.msra.mxu0 0
      %2460 = vmatprep.subr.bf16.mxu0 0
      %2461 = vmatpush1.bf16.msra.mxu0 0
      %2462 = vmatprep.mubr.bf16.mxu0 0
      %2463 = vmatmul.mubr.bf16.gmra.mrb[0].mxu0 %v2422
      %v2464 = vpop.f32.mrb[0].mxu0
      %v2465 = vadd.f32 0.0, %v2464
      %v2466 = vpop.f32.mrb[0].mxu0
      %v2467 = vpop.f32.mrb[0].mxu0
      %v2468 = vadd.f32 0.0, %v2467
      %v2469 = vpop.f32.mrb[0].mxu0
      %2470 = vmatprep.mubr.bf16.mxu0 0
      %2471 = vmatmul.mubr.bf16.gmra.mrb[0].mxu0 %v2425
      %v2472 = vpop.f32.mrb[0].mxu0
      %v2473 = vadd.f32 0.0, %v2472
      %v2474 = vpop.f32.mrb[0].mxu0
      %v2475 = vpop.f32.mrb[0].mxu0
      %v2476 = vadd.f32 0.0, %v2475
      %v2477 = vpop.f32.mrb[0].mxu0
      %2478 = vmatprep.mubr.bf16.mxu0 0
      %2479 = vmatmul.mubr.bf16.gmra.mrb[0].mxu0 %v2428
      %v2480 = vpop.f32.mrb[0].mxu0
      %v2481 = vadd.f32 0.0, %v2480
      %v2482 = vpop.f32.mrb[0].mxu0
      %v2483 = vpop.f32.mrb[0].mxu0
      %v2484 = vadd.f32 0.0, %v2483
      %v2485 = vpop.f32.mrb[0].mxu0
      %2486 = vdwg.mxu0
      %v2487 = vpack.c.bf16 %v2468, %v2465
      %v2488 = vpack.c.bf16 %v2476, %v2473
      %v2489 = vpack.c.bf16 %v2484, %v2481
      %v2490 = vld [vmem:[%s8] sm:$0xf]
      %v2492 = vsel %vm409, %v2487, 0
      %v2495 = vsel %vm409, %v2488, 0
      %v2498 = vsel %vm409, %v2489, 0
      %v2501 = vsel %vm425, %v2490, 0
      %2503 = vmatprep.subr.bf16.mxu0 0
      %2504 = vmatpush1.bf16.msra.mxu0 %v2501
      %2505 = vmatprep.subr.bf16.mxu0 0
      %2506 = vmatpush1.bf16.msra.mxu0 0
      %2507 = vmatprep.subr.bf16.mxu0 0
      %2508 = vmatpush1.bf16.msra.mxu0 0
      %2509 = vmatprep.subr.bf16.mxu0 0
      %2510 = vmatpush1.bf16.msra.mxu0 0
      %2511 = vmatprep.subr.bf16.mxu0 0
      %2512 = vmatpush1.bf16.msra.mxu0 0
      %2513 = vmatprep.subr.bf16.mxu0 0
      %2514 = vmatpush1.bf16.msra.mxu0 0
      %2515 = vmatprep.subr.bf16.mxu0 0
      %2516 = vmatpush1.bf16.msra.mxu0 0
      %2517 = vmatprep.subr.bf16.mxu0 0
      %2518 = vmatpush1.bf16.msra.mxu0 0
      %2519 = vmatprep.subr.bf16.mxu0 0
      %2520 = vmatpush1.bf16.msra.mxu0 0
      %2521 = vmatprep.subr.bf16.mxu0 0
      %2522 = vmatpush1.bf16.msra.mxu0 0
      %2523 = vmatprep.subr.bf16.mxu0 0
      %2524 = vmatpush1.bf16.msra.mxu0 0
      %2525 = vmatprep.subr.bf16.mxu0 0
      %2526 = vmatpush1.bf16.msra.mxu0 0
      %2527 = vmatprep.subr.bf16.mxu0 0
      %2528 = vmatpush1.bf16.msra.mxu0 0
      %2529 = vmatprep.subr.bf16.mxu0 0
      %2530 = vmatpush1.bf16.msra.mxu0 0
      %2531 = vmatprep.subr.bf16.mxu0 0
      %2532 = vmatpush1.bf16.msra.mxu0 0
      %2533 = vmatprep.subr.bf16.mxu0 0
      %2534 = vmatpush1.bf16.msra.mxu0 0
      %2535 = vmatprep.mubr.bf16.mxu0 0
      %2536 = vmatmul.mubr.bf16.gmra.mrb[0].mxu0 %v2492
      %v2537 = vpop.f32.mrb[0].mxu0
      %v2538 = vadd.f32 0.0, %v2537
      %v2539 = vpop.f32.mrb[0].mxu0
      %v2540 = vpop.f32.mrb[0].mxu0
      %v2541 = vadd.f32 0.0, %v2540
      %v2542 = vpop.f32.mrb[0].mxu0
      %2543 = vmatprep.mubr.bf16.mxu0 0
      %2544 = vmatmul.mubr.bf16.gmra.mrb[0].mxu0 %v2495
      %v2545 = vpop.f32.mrb[0].mxu0
      %v2546 = vadd.f32 0.0, %v2545
      %v2547 = vpop.f32.mrb[0].mxu0
      %v2548 = vpop.f32.mrb[0].mxu0
      %v2549 = vadd.f32 0.0, %v2548
      %v2550 = vpop.f32.mrb[0].mxu0
      %2551 = vmatprep.mubr.bf16.mxu0 0
      %2552 = vmatmul.mubr.bf16.gmra.mrb[0].mxu0 %v2498
      %v2553 = vpop.f32.mrb[0].mxu0
      %v2554 = vadd.f32 0.0, %v2553
      %v2555 = vpop.f32.mrb[0].mxu0
      %v2556 = vpop.f32.mrb[0].mxu0
      %v2557 = vadd.f32 0.0, %v2556
      %v2558 = vpop.f32.mrb[0].mxu0
      %2559 = vdwg.mxu0
      %v2566 = vunpack.c.l.b16 %v2337
      %v2567 = vunpack.c.l.b16 %v2338
      %v2568 = vunpack.c.l.b16 %v2339
      %v2569 = vunpack.c.l.b16 %v2340
      %v2570 = vunpack.c.l.b16 %v2341
      %v2571 = vunpack.c.l.b16 %v2342
      %v2572 = vpack.c.b16 %v2567, %v2566
      %v2573 = vpack.c.b16 %v2569, %v2568
      %v2574 = vpack.c.b16 %v2571, %v2570
      %vm2575 = vcmask 179200
      %v2577 = vsel %vm2575, %v2572, 0
      %v2580 = vsel %vm2575, %v2573, 0
      %v2583 = vsel %vm2575, %v2574, 0
      %vm2585 = vcmask 1042432
      %v2587 = vsel %vm2585, %v2336, 0
      %2589 = vmatprep.subr.bf16.mxu0 0
      %2590 = vmatpush1.bf16.msra.mxu0 %v2335
      %2591 = vmatprep.subr.bf16.mxu0 0
      %2592 = vmatpush1.bf16.msra.mxu0 %v2587
      %2593 = vmatprep.subr.bf16.mxu0 0
      %2594 = vmatpush1.bf16.msra.mxu0 0
      %2595 = vmatprep.subr.bf16.mxu0 0
      %2596 = vmatpush1.bf16.msra.mxu0 0
      %2597 = vmatprep.subr.bf16.mxu0 0
      %2598 = vmatpush1.bf16.msra.mxu0 0
      %2599 = vmatprep.subr.bf16.mxu0 0
      %2600 = vmatpush1.bf16.msra.mxu0 0
      %2601 = vmatprep.subr.bf16.mxu0 0
      %2602 = vmatpush1.bf16.msra.mxu0 0
      %2603 = vmatprep.subr.bf16.mxu0 0
      %2604 = vmatpush1.bf16.msra.mxu0 0
      %2605 = vmatprep.subr.bf16.mxu0 0
      %2606 = vmatpush1.bf16.msra.mxu0 0
      %2607 = vmatprep.subr.bf16.mxu0 0
      %2608 = vmatpush1.bf16.msra.mxu0 0
      %2609 = vmatprep.subr.bf16.mxu0 0
      %2610 = vmatpush1.bf16.msra.mxu0 0
      %2611 = vmatprep.subr.bf16.mxu0 0
      %2612 = vmatpush1.bf16.msra.mxu0 0
      %2613 = vmatprep.subr.bf16.mxu0 0
      %2614 = vmatpush1.bf16.msra.mxu0 0
      %2615 = vmatprep.subr.bf16.mxu0 0
      %2616 = vmatpush1.bf16.msra.mxu0 0
      %2617 = vmatprep.subr.bf16.mxu0 0
      %2618 = vmatpush1.bf16.msra.mxu0 0
      %2619 = vmatprep.subr.bf16.mxu0 0
      %2620 = vmatpush1.bf16.msra.mxu0 0
      %2621 = vmatprep.mubr.bf16.mxu0 0
      %2622 = vmatmul.mubr.bf16.gmra.mrb[0].mxu0 %v2577
      %v2623 = vpop.f32.mrb[0].mxu0
      %v2624 = vadd.f32 %v2538, %v2623
      %v2625 = vpop.f32.mrb[0].mxu0
      %v2626 = vpop.f32.mrb[0].mxu0
      %v2627 = vadd.f32 %v2541, %v2626
      %v2628 = vpop.f32.mrb[0].mxu0
      %2629 = vmatprep.mubr.bf16.mxu0 0
      %2630 = vmatmul.mubr.bf16.gmra.mrb[0].mxu0 %v2580
      %v2631 = vpop.f32.mrb[0].mxu0
      %v2632 = vadd.f32 %v2546, %v2631
      %v2633 = vpop.f32.mrb[0].mxu0
      %v2634 = vpop.f32.mrb[0].mxu0
      %v2635 = vadd.f32 %v2549, %v2634
      %v2636 = vpop.f32.mrb[0].mxu0
      %2637 = vmatprep.mubr.bf16.mxu0 0
      %2638 = vmatmul.mubr.bf16.gmra.mrb[0].mxu0 %v2583
      %v2639 = vpop.f32.mrb[0].mxu0
      %v2640 = vadd.f32 %v2554, %v2639
      %v2641 = vpop.f32.mrb[0].mxu0
      %v2642 = vpop.f32.mrb[0].mxu0
      %v2643 = vadd.f32 %v2557, %v2642
      %v2644 = vpop.f32.mrb[0].mxu0
      %2645 = vdwg.mxu0
      %v2646 = vmax.f32 %v2624, 0.0
      %v2647 = vmax.f32 %v2627, 0.0
      %v2648 = vmax.f32 %v2632, 0.0
      %v2649 = vmax.f32 %v2635, 0.0
      %v2650 = vmax.f32 %v2640, 0.0
      %v2651 = vmax.f32 %v2643, 0.0
      %v2652 = vpack.c.bf16 %v2647, %v2646
      %v2653 = vpack.c.bf16 %v2649, %v2648
      %v2654 = vpack.c.bf16 %v2651, %v2650
      %v2658 = vunpack.c.l.b16 %v2652
      %v2659 = vunpack.c.h.b16 %v2652
      %v2660 = vunpack.c.l.b16 %v2653
      %v2661 = vunpack.c.h.b16 %v2653
      %v2662 = vunpack.c.l.b16 %v2654
      %v2663 = vunpack.c.h.b16 %v2654
      %v2664 = vpack.c.b16 %v2658, %v2658
      %v2665 = vpack.c.b16 %v2659, %v2659
      %v2666 = vpack.c.b16 %v2660, %v2660
      %v2667 = vpack.c.b16 %v2661, %v2661
      %v2668 = vpack.c.b16 %v2662, %v2662
      %v2669 = vpack.c.b16 %v2663, %v2663
      %vm2676 = vcmask 125952
      %2677 = vst.msk [vmem:[%s332] sm:$0xf] %vm2676, %v2664
      %2678 = vst.msk [vmem:[%s332 + $0x4] sm:$0xf] %vm2676, %v2665
      %2679 = vst.msk [vmem:[%s332 + $0x8] sm:$0xf] %vm2676, %v2666
      %2680 = vst.msk [vmem:[%s332 + $0xc] sm:$0xf] %vm2676, %v2667
      %2681 = vst.msk [vmem:[%s332 + $0x10] sm:$0xf] %vm2676, %v2668
      %2682 = vst.msk [vmem:[%s332 + $0x14] sm:$0xf] %vm2676, %v2669
      %p2683 = scmp.lt.s32.totalorder %s20, 1
      %s2684 = scalar_select %p2683, %s20, 1
      %s2685 = smul.addr %s2684, 6
      %s2686 = smul.addr %s2685, 4
      %s2687 = scalar_lea.vmem %s9, %s2686
      // Predicated region
      $region57: #{_lambda_.8} parent=55 // pred_check
        %p2688 = pneg %p232
      $region58: #{_lambda_.8} parent=55 // pred_check_branch
        %2690 = sbr.rel (%p2688) target = $region60
      $region59: #{_lambda_.8} parent=55 // pred_region
        _
      $region60: #{_lambda_.8} parent=55 // pred_fallthru
        _
    $region56: #{_lambda_.8} parent=5 // pred_fallthru
      _
    %p2691 = scmp.le.s32.totalorder 2, %s15
    // Predicated region
    $region61: #{_lambda_.8} parent=5 // pred_check
      %p2692 = pneg %p2691
    $region62: #{_lambda_.8} parent=5 // pred_check_branch
      %2694 = sbr.rel (%p2692) target = $region64
    $region63: #{_lambda_.8} parent=5 // pred_region
      %s2695 = ssub.s32 %s15, 2
      // Predicated region
      $region65: #{_lambda_.8} parent=63 // pred_check
        %p2696 = pneg %p238
      $region66: #{_lambda_.8} parent=63 // pred_check_branch
        %2698 = sbr.rel (%p2696) target = $region68
      $region67: #{_lambda_.8} parent=63 // pred_region
        %p2699 = scmp.lt.s32.totalorder %s21, 1
        %s2700 = scalar_select %p2699, %s21, 1
        %s2701 = smul.addr %s2700, 6
        %s2702 = smul.addr %s2701, 4
        %s2703 = scalar_lea.vmem %s9, %s2702
      $region68: #{_lambda_.8} parent=63 // pred_fallthru
        _
    $region64: #{_lambda_.8} parent=5 // pred_fallthru
      _
  $region6: #{_lambda_.8} parent=0 // loop_footer
    %s19 = sadd.s32 1, %s15
  $region7: #{_lambda_.8} parent=0 // loop_footer_branch
    %14 = sbr.rel target = $region3
  $region8: #{_lambda_.8} parent=0 // loop_exit
    _

// kernel: _lambda_.6
$region0: #{_lambda_.6}
  #allocation0 [shape = 'u32[]', space=smem, size = 0x4, offset = 0x4, fixed_abs, tag = 'smem constant byte address 0x4 - core index']
  #allocation1 [shape = 'u32[144,128]{1,0:T(1,128)}', space=vmem, size = 0x12000, scoped, tag = 'internal scratch']
  %s0 = inlined_call_operand.vmem [shape: bf16[2,112,8], index: 0, kind: input, shape index: {}]
  %s1 = inlined_call_operand.vmem [shape: bf16[9,8,8], index: 1, kind: input, shape index: {}]
  %s2 = inlined_call_operand.vmem [shape: f32[1,8], index: 2, kind: input, shape index: {}, may-alias: {2,4}]
  %s3 = inlined_call_operand.vmem [shape: bf16[9,8,8], index: 3, kind: input, shape index: {}]
  %s4 = inlined_call_operand.vmem [shape: f32[1,8], index: 4, kind: input, shape index: {}, may-alias: {2,4}]
  %s5 = inlined_call_operand.vmem [shape: bf16[112,78], index: 5, kind: input, shape index: {}, may-alias: {5,6}]
  %s6 = inlined_call_operand.vmem [shape: bf16[112,78], index: 6, kind: input, shape index: {}, may-alias: {5,6}]
  %s7 = inlined_call_operand.vmem [shape: bf16[2,112,8], index: 7, kind: output, shape index: {}]
  %s8 = sld [smem:[#allocation0]]
  $region61: #{_lambda_.6} parent=0
    _
  %s10 = ssub.s32 1, %s8
  %s11 = scalar_select 0, %s10, %s8
  loop: start=0, step=1, limit=4
  $region2: #{_lambda_.6} parent=0 // loop_pre_header
    _
  $region3: #{_lambda_.6} parent=0 // loop_header
    %s13 = sphi 0, %s17
    %p14 = scmp.ge.s32.totalorder %s13, 4
    %s23 = sphi 0, %s25
    %s26 = sphi 0, %s23
    %s27 = sphi 0, %s26
    %s43 = sphi 0, %s27
    %s47 = sphi 0, %s47
    %s49 = sphi 0, %s47
    %s50 = sphi 0, %s49
    %s64 = sphi 0, %s50
    %s68 = sphi 0, %s68
    %s70 = sphi 0, %s68
    %s71 = sphi 0, %s70
    %s85 = sphi 0, %s71
    %s89 = sphi 0, %s89
    %s91 = sphi 0, %s89
    %s92 = sphi 0, %s91
    %s106 = sphi 0, %s92
    %s110 = sphi 0, %s110
    %s112 = sphi 0, %s110
    %s113 = sphi 0, %s112
    %s127 = sphi 0, %s113
    %s131 = sphi 0, %s131
    %s133 = sphi 0, %s131
    %s134 = sphi 0, %s133
    %s148 = sphi 0, %s134
    %s152 = sphi 0, %s152
    %s154 = sphi 0, %s152
    %s155 = sphi 0, %s154
    %s169 = sphi 0, %s155
    %s175 = sphi 0, %s177
    %s178 = sphi 0, %s175
    %s179 = sphi 0, %s178
    %s195 = sphi 0, %s179
  $region4: #{_lambda_.6} parent=0 // loop_header_branch
    %16 = sbr.rel (%p14) target = $region8
  $region5: #{_lambda_.6} parent=0 // loop_body
    %s18 = ssub.s32 %s13, 1
    %s19 = ssub.s32 %s13, 2
    %s20 = sadd.s32 %s13, 1
    %s21 = ssub.s32 %s13, %s20
    %p22 = scmp.eq.s32.totalorder %s21, 0
    %s24 = sadd.s32 %s23, 1
    %s25 = scalar_select %p22, %s23, %s24
    %p28 = pneg %p22
    %p29 = scmp.eq.s32.totalorder %s13, 1
    %p30 = por %p28, %p29
    %p31 = scmp.ne.s32.totalorder %s23, %s26
    %p32 = scmp.eq.s32.totalorder %s13, 0
    %p33 = por %p31, %p32
    %p34 = scmp.ne.s32.totalorder %s23, %s26
    %p35 = scmp.eq.s32.totalorder %s18, 1
    %p36 = por %p34, %p35
    %p37 = scmp.ne.s32.totalorder %s26, %s27
    %p38 = scmp.eq.s32.totalorder %s18, 0
    %p39 = por %p37, %p38
    %p40 = scmp.ne.s32.totalorder %s26, %s27
    %p41 = scmp.eq.s32.totalorder %s19, 1
    %p42 = por %p40, %p41
    %p44 = scmp.ne.s32.totalorder %s27, %s43
    %p45 = scmp.eq.s32.totalorder %s19, 0
    %p46 = por %p44, %p45
    %s48 = sadd.s32 %s47, 1
    %p51 = scmp.eq.s32.totalorder %s13, 1
    %p52 = scmp.ne.s32.totalorder %s47, %s49
    %p53 = scmp.eq.s32.totalorder %s13, 0
    %p54 = por %p52, %p53
    %p55 = scmp.ne.s32.totalorder %s47, %s49
    %p56 = scmp.eq.s32.totalorder %s18, 1
    %p57 = por %p55, %p56
    %p58 = scmp.ne.s32.totalorder %s49, %s50
    %p59 = scmp.eq.s32.totalorder %s18, 0
    %p60 = por %p58, %p59
    %p61 = scmp.ne.s32.totalorder %s49, %s50
    %p62 = scmp.eq.s32.totalorder %s19, 1
    %p63 = por %p61, %p62
    %p65 = scmp.ne.s32.totalorder %s50, %s64
    %p66 = scmp.eq.s32.totalorder %s19, 0
    %p67 = por %p65, %p66
    %s69 = sadd.s32 %s68, 1
    %p72 = scmp.eq.s32.totalorder %s13, 1
    %p73 = scmp.ne.s32.totalorder %s68, %s70
    %p74 = scmp.eq.s32.totalorder %s13, 0
    %p75 = por %p73, %p74
    %p76 = scmp.ne.s32.totalorder %s68, %s70
    %p77 = scmp.eq.s32.totalorder %s18, 1
    %p78 = por %p76, %p77
    %p79 = scmp.ne.s32.totalorder %s70, %s71
    %p80 = scmp.eq.s32.totalorder %s18, 0
    %p81 = por %p79, %p80
    %p82 = scmp.ne.s32.totalorder %s70, %s71
    %p83 = scmp.eq.s32.totalorder %s19, 1
    %p84 = por %p82, %p83
    %p86 = scmp.ne.s32.totalorder %s71, %s85
    %p87 = scmp.eq.s32.totalorder %s19, 0
    %p88 = por %p86, %p87
    %s90 = sadd.s32 %s89, 1
    %p93 = scmp.eq.s32.totalorder %s13, 1
    %p94 = scmp.ne.s32.totalorder %s89, %s91
    %p95 = scmp.eq.s32.totalorder %s13, 0
    %p96 = por %p94, %p95
    %p97 = scmp.ne.s32.totalorder %s89, %s91
    %p98 = scmp.eq.s32.totalorder %s18, 1
    %p99 = por %p97, %p98
    %p100 = scmp.ne.s32.totalorder %s91, %s92
    %p101 = scmp.eq.s32.totalorder %s18, 0
    %p102 = por %p100, %p101
    %p103 = scmp.ne.s32.totalorder %s91, %s92
    %p104 = scmp.eq.s32.totalorder %s19, 1
    %p105 = por %p103, %p104
    %p107 = scmp.ne.s32.totalorder %s92, %s106
    %p108 = scmp.eq.s32.totalorder %s19, 0
    %p109 = por %p107, %p108
    %s111 = sadd.s32 %s110, 1
    %p114 = scmp.eq.s32.totalorder %s13, 1
    %p115 = scmp.ne.s32.totalorder %s110, %s112
    %p116 = scmp.eq.s32.totalorder %s13, 0
    %p117 = por %p115, %p116
    %p118 = scmp.ne.s32.totalorder %s110, %s112
    %p119 = scmp.eq.s32.totalorder %s18, 1
    %p120 = por %p118, %p119
    %p121 = scmp.ne.s32.totalorder %s112, %s113
    %p122 = scmp.eq.s32.totalorder %s18, 0
    %p123 = por %p121, %p122
    %p124 = scmp.ne.s32.totalorder %s112, %s113
    %p125 = scmp.eq.s32.totalorder %s19, 1
    %p126 = por %p124, %p125
    %p128 = scmp.ne.s32.totalorder %s113, %s127
    %p129 = scmp.eq.s32.totalorder %s19, 0
    %p130 = por %p128, %p129
    %s132 = sadd.s32 %s131, 1
    %p135 = scmp.eq.s32.totalorder %s13, 1
    %p136 = scmp.ne.s32.totalorder %s131, %s133
    %p137 = scmp.eq.s32.totalorder %s13, 0
    %p138 = por %p136, %p137
    %p139 = scmp.ne.s32.totalorder %s131, %s133
    %p140 = scmp.eq.s32.totalorder %s18, 1
    %p141 = por %p139, %p140
    %p142 = scmp.ne.s32.totalorder %s133, %s134
    %p143 = scmp.eq.s32.totalorder %s18, 0
    %p144 = por %p142, %p143
    %p145 = scmp.ne.s32.totalorder %s133, %s134
    %p146 = scmp.eq.s32.totalorder %s19, 1
    %p147 = por %p145, %p146
    %p149 = scmp.ne.s32.totalorder %s134, %s148
    %p150 = scmp.eq.s32.totalorder %s19, 0
    %p151 = por %p149, %p150
    %s153 = sadd.s32 %s152, 1
    %p156 = scmp.eq.s32.totalorder %s13, 1
    %p157 = scmp.ne.s32.totalorder %s152, %s154
    %p158 = scmp.eq.s32.totalorder %s13, 0
    %p159 = por %p157, %p158
    %p160 = scmp.ne.s32.totalorder %s152, %s154
    %p161 = scmp.eq.s32.totalorder %s18, 1
    %p162 = por %p160, %p161
    %p163 = scmp.ne.s32.totalorder %s154, %s155
    %p164 = scmp.eq.s32.totalorder %s18, 0
    %p165 = por %p163, %p164
    %p166 = scmp.ne.s32.totalorder %s154, %s155
    %p167 = scmp.eq.s32.totalorder %s19, 1
    %p168 = por %p166, %p167
    %p170 = scmp.ne.s32.totalorder %s155, %s169
    %p171 = scmp.eq.s32.totalorder %s19, 0
    %p172 = por %p170, %p171
    %s173 = ssub.s32 %s13, %s20
    %p174 = scmp.eq.s32.totalorder %s173, 0
    %s176 = sadd.s32 %s175, 1
    %s177 = scalar_select %p174, %s175, %s176
    %p180 = pneg %p174
    %p181 = scmp.eq.s32.totalorder %s13, 1
    %p182 = por %p180, %p181
    %p183 = scmp.ne.s32.totalorder %s175, %s178
    %p184 = scmp.eq.s32.totalorder %s13, 0
    %p185 = por %p183, %p184
    %p186 = scmp.ne.s32.totalorder %s175, %s178
    %p187 = scmp.eq.s32.totalorder %s18, 1
    %p188 = por %p186, %p187
    %p189 = scmp.ne.s32.totalorder %s178, %s179
    %p190 = scmp.eq.s32.totalorder %s18, 0
    %p191 = por %p189, %p190
    %p192 = scmp.ne.s32.totalorder %s178, %s179
    %p193 = scmp.eq.s32.totalorder %s19, 1
    %p194 = por %p192, %p193
    %p196 = scmp.ne.s32.totalorder %s179, %s195
    %p197 = scmp.eq.s32.totalorder %s19, 0
    %p198 = por %p196, %p197
    %p199 = scmp.le.s32.totalorder 1, %s13
    %p200 = scmp.lt.s32.totalorder %s13, 3
    %p201 = pnand %p199, %p200
    %p202 = pneg %p201
    // Predicated region
    $region9: #{_lambda_.6} parent=5 // pred_check
      _
    $region10: #{_lambda_.6} parent=5 // pred_check_branch
      %204 = sbr.rel (%p201) target = $region12
    $region11: #{_lambda_.6} parent=5 // pred_region
      %s205 = ssub.s32 %s13, 1
      // Predicated region
      $region13: #{_lambda_.6} parent=11 // pred_check
        %p206 = pneg %p60
      $region14: #{_lambda_.6} parent=11 // pred_check_branch
        %208 = sbr.rel (%p206) target = $region16
      $region15: #{_lambda_.6} parent=11 // pred_region
        _
      $region16: #{_lambda_.6} parent=11 // pred_fallthru
        _
      // Predicated region
      $region17: #{_lambda_.6} parent=11 // pred_check
        %p209 = pneg %p81
      $region18: #{_lambda_.6} parent=11 // pred_check_branch
        %211 = sbr.rel (%p209) target = $region20
      $region19: #{_lambda_.6} parent=11 // pred_region
        _
      $region20: #{_lambda_.6} parent=11 // pred_fallthru
        _
      // Predicated region
      $region21: #{_lambda_.6} parent=11 // pred_check
        %p212 = pneg %p102
      $region22: #{_lambda_.6} parent=11 // pred_check_branch
        %214 = sbr.rel (%p212) target = $region24
      $region23: #{_lambda_.6} parent=11 // pred_region
        _
      $region24: #{_lambda_.6} parent=11 // pred_fallthru
        _
      // Predicated region
      $region25: #{_lambda_.6} parent=11 // pred_check
        %p215 = pneg %p123
      $region26: #{_lambda_.6} parent=11 // pred_check_branch
        %217 = sbr.rel (%p215) target = $region28
      $region27: #{_lambda_.6} parent=11 // pred_region
        _
      $region28: #{_lambda_.6} parent=11 // pred_fallthru
        _
      // Predicated region
      $region29: #{_lambda_.6} parent=11 // pred_check
        %p218 = pneg %p144
      $region30: #{_lambda_.6} parent=11 // pred_check_branch
        %220 = sbr.rel (%p218) target = $region32
      $region31: #{_lambda_.6} parent=11 // pred_region
        _
      $region32: #{_lambda_.6} parent=11 // pred_fallthru
        _
      // Predicated region
      $region33: #{_lambda_.6} parent=11 // pred_check
        %p221 = pneg %p165
      $region34: #{_lambda_.6} parent=11 // pred_check_branch
        %223 = sbr.rel (%p221) target = $region36
      $region35: #{_lambda_.6} parent=11 // pred_region
        _
      $region36: #{_lambda_.6} parent=11 // pred_fallthru
        _
    $region12: #{_lambda_.6} parent=5 // pred_fallthru
      _
    %p224 = scmp.lt.s32.totalorder %s13, 2
    // Predicated region
    $region37: #{_lambda_.6} parent=5 // pred_check
      %p225 = pneg %p224
    $region38: #{_lambda_.6} parent=5 // pred_check_branch
      %227 = sbr.rel (%p225) target = $region40
    $region39: #{_lambda_.6} parent=5 // pred_region
      // Predicated region
      $region41: #{_lambda_.6} parent=39 // pred_check
        %p228 = pneg %p33
      $region42: #{_lambda_.6} parent=39 // pred_check_branch
        %230 = sbr.rel (%p228) target = $region44
      $region43: #{_lambda_.6} parent=39 // pred_region
        %p231 = scmp.lt.s32.totalorder %s13, 1
        %s232 = scalar_select %p231, %s13, 1
        %s233 = smul.addr %s232, 14
        %s234 = smul.addr %s233, 4
        %s235 = scalar_lea.vmem %s0, %s234
      $region44: #{_lambda_.6} parent=39 // pred_fallthru
        _
    $region40: #{_lambda_.6} parent=5 // pred_fallthru
      _
    %p236 = scmp.le.s32.totalorder 1, %s13
    %p237 = scmp.lt.s32.totalorder %s13, 3
    %p238 = pnand %p236, %p237
    %p239 = pneg %p238
    // Predicated region
    $region45: #{_lambda_.6} parent=5 // pred_check
      _
    $region46: #{_lambda_.6} parent=5 // pred_check_branch
      %241 = sbr.rel (%p238) target = $region48
    $region47: #{_lambda_.6} parent=5 // pred_region
      %s242 = ssub.s32 %s13, 1
      %p243 = scmp.lt.s32.totalorder %s18, 1
      %s244 = scalar_select %p243, %s18, 1
      %s245 = smul.addr %s244, 14
      %s246 = smul.addr %s245, 4
      %s247 = scalar_lea.vmem %s0, %s246
      %p248 = pneg %p39
      %p249 = pneg %p36
      %p250 = pneg %p60
      %p251 = pneg %p57
      %p252 = pneg %p81
      %p253 = pneg %p78
      %p254 = pneg %p102
      %p255 = pneg %p99
      %p256 = pneg %p123
      %p257 = pneg %p120
      %p258 = pneg %p144
      %p259 = pneg %p141
      %p260 = pneg %p165
      %p261 = pneg %p162
      %p262 = pneg %p191
      %p263 = pneg %p188
      %p264 = scmp.lt.s32.totalorder %s18, 1
      %s265 = scalar_select %p264, %s18, 1
      %s266 = smul.addr %s265, 14
      %s267 = smul.addr %s266, 4
      %s268 = scalar_lea.vmem %s7, %s267
      %p269 = scmp.lt.s32.totalorder %s18, 1
      %s270 = scalar_select %p269, %s18, 1
      %s271 = smul.addr %s270, 14
      %s272 = smul.addr %s271, 4
      %s273 = scalar_lea.vmem %s0, %s272
      %p274 = scmp.lt.s32.totalorder %s18, 1
      %s275 = scalar_select %p274, %s18, 1
      %s276 = smul.addr %s275, 14
      %s277 = smul.addr %s276, 4
      %s278 = scalar_lea.vmem %s7, %s277
      %v280 = vld [vmem:[%s273] sm:$0xf]
      %v281 = vld [vmem:[%s273 + $0x4] sm:$0xf]
      %v282 = vld [vmem:[%s273 + $0x8] sm:$0xf]
      %v283 = vld [vmem:[%s273 + $0xc] sm:$0xf]
      %v284 = vld [vmem:[%s273 + $0x10] sm:$0xf]
      %v285 = vld [vmem:[%s273 + $0x14] sm:$0xf]
      %v286 = vld [vmem:[%s273 + $0x18] sm:$0xf]
      %v287 = vld [vmem:[%s273 + $0x1c] sm:$0xf]
      %v288 = vld [vmem:[%s273 + $0x20] sm:$0xf]
      %v289 = vld [vmem:[%s273 + $0x24] sm:$0x7]
      %v290 = vld [vmem:[%s1] sm:$0xf]
      %v291 = vld [vmem:[%s273 + $0x24] sm:$0xf]
      %s292 = scalar_lea.vmem %s1, 4
      %v293 = vld [vmem:[%s292] sm:$0xf]
      %v304 = vunpack.c.l.b16 %v280
      %v305 = vunpack.c.l.b16 %v281
      %v306 = vunpack.c.l.b16 %v282
      %v307 = vunpack.c.l.b16 %v283
      %v308 = vunpack.c.l.b16 %v284
      %v309 = vunpack.c.l.b16 %v285
      %v310 = vunpack.c.l.b16 %v286
      %v311 = vunpack.c.l.b16 %v287
      %v312 = vunpack.c.l.b16 %v288
      %v313 = vunpack.c.l.b16 %v291
      %v314 = vpack.c.b16 %v305, %v304
      %v315 = vpack.c.b16 %v307, %v306
      %v316 = vpack.c.b16 %v309, %v308
      %v317 = vpack.c.b16 %v311, %v310
      %v318 = vpack.c.b16 %v313, %v312
      %vm319 = vsmask.f32 7424
      %v321 = vshrl.u32 %v314, 16
      %v323 = vshll.u32 %v314, 16
      %v325 = vrot.slane %v323, 1
      %v326 = vor.u32 %v321, %v325
      %v328 = vshll.u32 %v315, 16
      %v330 = vrot.slane %v328, 1
      %v331 = vsel %vm319, %v326, %v330
      %v332 = vshrl.u32 %v315, 16
      %v334 = vor.u32 %v332, %v330
      %v336 = vshll.u32 %v316, 16
      %v338 = vrot.slane %v336, 1
      %v339 = vsel %vm319, %v334, %v338
      %v340 = vshrl.u32 %v316, 16
      %v342 = vor.u32 %v340, %v338
      %v344 = vshll.u32 %v317, 16
      %v346 = vrot.slane %v344, 1
      %v347 = vsel %vm319, %v342, %v346
      %v348 = vshrl.u32 %v317, 16
      %v350 = vor.u32 %v348, %v346
      %v352 = vshll.u32 %v318, 16
      %v354 = vrot.slane %v352, 1
      %v355 = vsel %vm319, %v350, %v354
      %v356 = vshrl.u32 %v318, 16
      %v358 = vor.u32 %v356, %v354
      %vm359 = vcmask 64512
      %v361 = vsel %vm359, %v331, 0
      %v364 = vsel %vm359, %v339, 0
      %v367 = vsel %vm359, %v347, 0
      %v370 = vsel %vm359, %v355, 0
      %v373 = vsel %vm359, %v358, 0
      %vm375 = vcmask 1043456
      %v377 = vsel %vm375, %v293, 0
      %379 = vmatprep.subr.bf16.mxu0 0
      %380 = vmatpush1.bf16.msra.mxu0 %v377
      %381 = vmatprep.subr.bf16.mxu0 0
      %382 = vmatpush1.bf16.msra.mxu0 0
      %383 = vmatprep.subr.bf16.mxu0 0
      %384 = vmatpush1.bf16.msra.mxu0 0
      %385 = vmatprep.subr.bf16.mxu0 0
      %386 = vmatpush1.bf16.msra.mxu0 0
      %387 = vmatprep.subr.bf16.mxu0 0
      %388 = vmatpush1.bf16.msra.mxu0 0
      %389 = vmatprep.subr.bf16.mxu0 0
      %390 = vmatpush1.bf16.msra.mxu0 0
      %391 = vmatprep.subr.bf16.mxu0 0
      %392 = vmatpush1.bf16.msra.mxu0 0
      %393 = vmatprep.subr.bf16.mxu0 0
      %394 = vmatpush1.bf16.msra.mxu0 0
      %395 = vmatprep.subr.bf16.mxu0 0
      %396 = vmatpush1.bf16.msra.mxu0 0
      %397 = vmatprep.subr.bf16.mxu0 0
      %398 = vmatpush1.bf16.msra.mxu0 0
      %399 = vmatprep.subr.bf16.mxu0 0
      %400 = vmatpush1.bf16.msra.mxu0 0
      %401 = vmatprep.subr.bf16.mxu0 0
      %402 = vmatpush1.bf16.msra.mxu0 0
      %403 = vmatprep.subr.bf16.mxu0 0
      %404 = vmatpush1.bf16.msra.mxu0 0
      %405 = vmatprep.subr.bf16.mxu0 0
      %406 = vmatpush1.bf16.msra.mxu0 0
      %407 = vmatprep.subr.bf16.mxu0 0
      %408 = vmatpush1.bf16.msra.mxu0 0
      %409 = vmatprep.subr.bf16.mxu0 0
      %410 = vmatpush1.bf16.msra.mxu0 0
      %411 = vmatprep.mubr.bf16.mxu0 0
      %412 = vmatmul.mubr.bf16.gmra.mrb[0].mxu0 %v361
      %v413 = vpop.f32.mrb[0].mxu0
      %v414 = vadd.f32 0.0, %v413
      %v415 = vpop.f32.mrb[0].mxu0
      %v416 = vpop.f32.mrb[0].mxu0
      %v417 = vadd.f32 0.0, %v416
      %v418 = vpop.f32.mrb[0].mxu0
      %419 = vmatprep.mubr.bf16.mxu0 0
      %420 = vmatmul.mubr.bf16.gmra.mrb[0].mxu0 %v364
      %v421 = vpop.f32.mrb[0].mxu0
      %v422 = vadd.f32 0.0, %v421
      %v423 = vpop.f32.mrb[0].mxu0
      %v424 = vpop.f32.mrb[0].mxu0
      %v425 = vadd.f32 0.0, %v424
      %v426 = vpop.f32.mrb[0].mxu0
      %427 = vmatprep.mubr.bf16.mxu0 0
      %428 = vmatmul.mubr.bf16.gmra.mrb[0].mxu0 %v367
      %v429 = vpop.f32.mrb[0].mxu0
      %v430 = vadd.f32 0.0, %v429
      %v431 = vpop.f32.mrb[0].mxu0
      %v432 = vpop.f32.mrb[0].mxu0
      %v433 = vadd.f32 0.0, %v432
      %v434 = vpop.f32.mrb[0].mxu0
      %435 = vmatprep.mubr.bf16.mxu0 0
      %436 = vmatmul.mubr.bf16.gmra.mrb[0].mxu0 %v370
      %v437 = vpop.f32.mrb[0].mxu0
      %v438 = vadd.f32 0.0, %v437
      %v439 = vpop.f32.mrb[0].mxu0
      %v440 = vpop.f32.mrb[0].mxu0
      %v441 = vadd.f32 0.0, %v440
      %v442 = vpop.f32.mrb[0].mxu0
      %443 = vmatprep.mubr.bf16.mxu0 0
      %444 = vmatmul.mubr.bf16.gmra.mrb[0].mxu0 %v373
      %v445 = vpop.f32.mrb[0].mxu0
      %v446 = vadd.f32 0.0, %v445
      %v447 = vpop.f32.mrb[0].mxu0
      %v448 = vpop.f32.mrb[0].mxu0
      %v449 = vadd.f32 0.0, %v448
      %v450 = vpop.f32.mrb[0].mxu0
      %451 = vdwg.mxu0
      %v453 = vunpack.c.l.b16 %v289
      %v454 = vpack.c.b16 %v453, %v312
      %v455 = vsel %vm359, %v314, 0
      %v457 = vsel %vm359, %v315, 0
      %v459 = vsel %vm359, %v316, 0
      %v461 = vsel %vm359, %v317, 0
      %v464 = vsel %vm359, %v454, 0
      %v467 = vsel %vm375, %v290, 0
      %469 = vmatprep.subr.bf16.mxu0 0
      %470 = vmatpush1.bf16.msra.mxu0 %v467
      %471 = vmatprep.subr.bf16.mxu0 0
      %472 = vmatpush1.bf16.msra.mxu0 0
      %473 = vmatprep.subr.bf16.mxu0 0
      %474 = vmatpush1.bf16.msra.mxu0 0
      %475 = vmatprep.subr.bf16.mxu0 0
      %476 = vmatpush1.bf16.msra.mxu0 0
      %477 = vmatprep.subr.bf16.mxu0 0
      %478 = vmatpush1.bf16.msra.mxu0 0
      %479 = vmatprep.subr.bf16.mxu0 0
      %480 = vmatpush1.bf16.msra.mxu0 0
      %481 = vmatprep.subr.bf16.mxu0 0
      %482 = vmatpush1.bf16.msra.mxu0 0
      %483 = vmatprep.subr.bf16.mxu0 0
      %484 = vmatpush1.bf16.msra.mxu0 0
      %485 = vmatprep.subr.bf16.mxu0 0
      %486 = vmatpush1.bf16.msra.mxu0 0
      %487 = vmatprep.subr.bf16.mxu0 0
      %488 = vmatpush1.bf16.msra.mxu0 0
      %489 = vmatprep.subr.bf16.mxu0 0
      %490 = vmatpush1.bf16.msra.mxu0 0
      %491 = vmatprep.subr.bf16.mxu0 0
      %492 = vmatpush1.bf16.msra.mxu0 0
      %493 = vmatprep.subr.bf16.mxu0 0
      %494 = vmatpush1.bf16.msra.mxu0 0
      %495 = vmatprep.subr.bf16.mxu0 0
      %496 = vmatpush1.bf16.msra.mxu0 0
      %497 = vmatprep.subr.bf16.mxu0 0
      %498 = vmatpush1.bf16.msra.mxu0 0
      %499 = vmatprep.subr.bf16.mxu0 0
      %500 = vmatpush1.bf16.msra.mxu0 0
      %501 = vmatprep.mubr.bf16.mxu0 0
      %502 = vmatmul.mubr.bf16.gmra.mrb[0].mxu0 %v455
      %v503 = vpop.f32.mrb[0].mxu0
      %v504 = vadd.f32 %v414, %v503
      %v505 = vpop.f32.mrb[0].mxu0
      %v506 = vpop.f32.mrb[0].mxu0
      %v507 = vadd.f32 %v417, %v506
      %v508 = vpop.f32.mrb[0].mxu0
      %509 = vmatprep.mubr.bf16.mxu0 0
      %510 = vmatmul.mubr.bf16.gmra.mrb[0].mxu0 %v457
      %v511 = vpop.f32.mrb[0].mxu0
      %v512 = vadd.f32 %v422, %v511
      %v513 = vpop.f32.mrb[0].mxu0
      %v514 = vpop.f32.mrb[0].mxu0
      %v515 = vadd.f32 %v425, %v514
      %v516 = vpop.f32.mrb[0].mxu0
      %517 = vmatprep.mubr.bf16.mxu0 0
      %518 = vmatmul.mubr.bf16.gmra.mrb[0].mxu0 %v459
      %v519 = vpop.f32.mrb[0].mxu0
      %v520 = vadd.f32 %v430, %v519
      %v521 = vpop.f32.mrb[0].mxu0
      %v522 = vpop.f32.mrb[0].mxu0
      %v523 = vadd.f32 %v433, %v522
      %v524 = vpop.f32.mrb[0].mxu0
      %525 = vmatprep.mubr.bf16.mxu0 0
      %526 = vmatmul.mubr.bf16.gmra.mrb[0].mxu0 %v461
      %v527 = vpop.f32.mrb[0].mxu0
      %v528 = vadd.f32 %v438, %v527
      %v529 = vpop.f32.mrb[0].mxu0
      %v530 = vpop.f32.mrb[0].mxu0
      %v531 = vadd.f32 %v441, %v530
      %v532 = vpop.f32.mrb[0].mxu0
      %533 = vmatprep.mubr.bf16.mxu0 0
      %534 = vmatmul.mubr.bf16.gmra.mrb[0].mxu0 %v464
      %v535 = vpop.f32.mrb[0].mxu0
      %v536 = vadd.f32 %v446, %v535
      %v537 = vpop.f32.mrb[0].mxu0
      %v538 = vpop.f32.mrb[0].mxu0
      %v539 = vadd.f32 %v449, %v538
      %v540 = vpop.f32.mrb[0].mxu0
      %541 = vdwg.mxu0
      %v542 = vld [vmem:[%s273] sm:$0xe]
      %s543 = scalar_lea.vmem %s1, 8
      %v544 = vld [vmem:[%s543] sm:$0xf]
      %v546 = vunpack.c.l.b16 %v542
      %v547 = vpack.c.b16 %v305, %v546
      %vm548 = vcmask 1046528
      %v549 = vrot.slane %v547, 1
      %v550 = vrot.slane %v315, 1
      %v551 = vsel %vm548, %v549, %v550
      %v552 = vrot.slane %v316, 1
      %v553 = vsel %vm548, %v550, %v552
      %v554 = vrot.slane %v317, 1
      %v555 = vsel %vm548, %v552, %v554
      %v556 = vrot.slane %v318, 1
      %v557 = vsel %vm548, %v554, %v556
      %v559 = vsel %vm359, %v551, 0
      %v562 = vsel %vm359, %v553, 0
      %v565 = vsel %vm359, %v555, 0
      %v568 = vsel %vm359, %v557, 0
      %v571 = vsel %vm359, %v556, 0
      %v574 = vsel %vm375, %v544, 0
      %576 = vmatprep.subr.bf16.mxu0 0
      %577 = vmatpush1.bf16.msra.mxu0 %v574
      %578 = vmatprep.subr.bf16.mxu0 0
      %579 = vmatpush1.bf16.msra.mxu0 0
      %580 = vmatprep.subr.bf16.mxu0 0
      %581 = vmatpush1.bf16.msra.mxu0 0
      %582 = vmatprep.subr.bf16.mxu0 0
      %583 = vmatpush1.bf16.msra.mxu0 0
      %584 = vmatprep.subr.bf16.mxu0 0
      %585 = vmatpush1.bf16.msra.mxu0 0
      %586 = vmatprep.subr.bf16.mxu0 0
      %587 = vmatpush1.bf16.msra.mxu0 0
      %588 = vmatprep.subr.bf16.mxu0 0
      %589 = vmatpush1.bf16.msra.mxu0 0
      %590 = vmatprep.subr.bf16.mxu0 0
      %591 = vmatpush1.bf16.msra.mxu0 0
      %592 = vmatprep.subr.bf16.mxu0 0
      %593 = vmatpush1.bf16.msra.mxu0 0
      %594 = vmatprep.subr.bf16.mxu0 0
      %595 = vmatpush1.bf16.msra.mxu0 0
      %596 = vmatprep.subr.bf16.mxu0 0
      %597 = vmatpush1.bf16.msra.mxu0 0
      %598 = vmatprep.subr.bf16.mxu0 0
      %599 = vmatpush1.bf16.msra.mxu0 0
      %600 = vmatprep.subr.bf16.mxu0 0
      %601 = vmatpush1.bf16.msra.mxu0 0
      %602 = vmatprep.subr.bf16.mxu0 0
      %603 = vmatpush1.bf16.msra.mxu0 0
      %604 = vmatprep.subr.bf16.mxu0 0
      %605 = vmatpush1.bf16.msra.mxu0 0
      %606 = vmatprep.subr.bf16.mxu0 0
      %607 = vmatpush1.bf16.msra.mxu0 0
      %608 = vmatprep.mubr.bf16.mxu0 0
      %609 = vmatmul.mubr.bf16.gmra.mrb[0].mxu0 %v559
      %v610 = vpop.f32.mrb[0].mxu0
      %v611 = vadd.f32 0.0, %v610
      %v612 = vpop.f32.mrb[0].mxu0
      %v613 = vpop.f32.mrb[0].mxu0
      %v614 = vadd.f32 0.0, %v613
      %v615 = vpop.f32.mrb[0].mxu0
      %616 = vmatprep.mubr.bf16.mxu0 0
      %617 = vmatmul.mubr.bf16.gmra.mrb[0].mxu0 %v562
      %v618 = vpop.f32.mrb[0].mxu0
      %v619 = vadd.f32 0.0, %v618
      %v620 = vpop.f32.mrb[0].mxu0
      %v621 = vpop.f32.mrb[0].mxu0
      %v622 = vadd.f32 0.0, %v621
      %v623 = vpop.f32.mrb[0].mxu0
      %624 = vmatprep.mubr.bf16.mxu0 0
      %625 = vmatmul.mubr.bf16.gmra.mrb[0].mxu0 %v565
      %v626 = vpop.f32.mrb[0].mxu0
      %v627 = vadd.f32 0.0, %v626
      %v628 = vpop.f32.mrb[0].mxu0
      %v629 = vpop.f32.mrb[0].mxu0
      %v630 = vadd.f32 0.0, %v629
      %v631 = vpop.f32.mrb[0].mxu0
      %632 = vmatprep.mubr.bf16.mxu0 0
      %633 = vmatmul.mubr.bf16.gmra.mrb[0].mxu0 %v568
      %v634 = vpop.f32.mrb[0].mxu0
      %v635 = vadd.f32 0.0, %v634
      %v636 = vpop.f32.mrb[0].mxu0
      %v637 = vpop.f32.mrb[0].mxu0
      %v638 = vadd.f32 0.0, %v637
      %v639 = vpop.f32.mrb[0].mxu0
      %640 = vmatprep.mubr.bf16.mxu0 0
      %641 = vmatmul.mubr.bf16.gmra.mrb[0].mxu0 %v571
      %v642 = vpop.f32.mrb[0].mxu0
      %v643 = vadd.f32 0.0, %v642
      %v644 = vpop.f32.mrb[0].mxu0
      %v645 = vpop.f32.mrb[0].mxu0
      %v646 = vadd.f32 0.0, %v645
      %v647 = vpop.f32.mrb[0].mxu0
      %648 = vdwg.mxu0
      %v649 = vadd.f32 %v504, %v611
      %v650 = vadd.f32 %v507, %v614
      %v651 = vadd.f32 %v512, %v619
      %v652 = vadd.f32 %v515, %v622
      %v653 = vadd.f32 %v520, %v627
      %v654 = vadd.f32 %v523, %v630
      %v655 = vadd.f32 %v528, %v635
      %v656 = vadd.f32 %v531, %v638
      %v657 = vadd.f32 %v536, %v643
      %v658 = vadd.f32 %v539, %v646
      %v659 = vld [vmem:[%s273 + $0x4] sm:$0xe]
      %v660 = vld [vmem:[%s273 + $0x8] sm:$0xf]
      %v661 = vld [vmem:[%s273 + $0xc] sm:$0xf]
      %v662 = vld [vmem:[%s273 + $0x10] sm:$0xf]
      %v663 = vld [vmem:[%s273 + $0x14] sm:$0xf]
      %v664 = vld [vmem:[%s273 + $0x18] sm:$0xf]
      %v665 = vld [vmem:[%s273 + $0x1c] sm:$0xf]
      %v666 = vld [vmem:[%s273 + $0x20] sm:$0xf]
      %v667 = vld [vmem:[%s273 + $0x24] sm:$0xf]
      %v668 = vld [vmem:[%s273 + $0x28] sm:$0xf]
      %s669 = scalar_lea.vmem %s1, 12
      %v670 = vld [vmem:[%s669] sm:$0xf]
      %v681 = vunpack.c.l.b16 %v659
      %v682 = vunpack.c.l.b16 %v660
      %v683 = vunpack.c.l.b16 %v661
      %v684 = vunpack.c.l.b16 %v662
      %v685 = vunpack.c.l.b16 %v663
      %v686 = vunpack.c.l.b16 %v664
      %v687 = vunpack.c.l.b16 %v665
      %v688 = vunpack.c.l.b16 %v666
      %v689 = vunpack.c.l.b16 %v667
      %v690 = vunpack.c.l.b16 %v668
      %v691 = vpack.c.b16 %v682, %v681
      %v692 = vpack.c.b16 %v684, %v683
      %v693 = vpack.c.b16 %v686, %v685
      %v694 = vpack.c.b16 %v688, %v687
      %v695 = vpack.c.b16 %v690, %v689
      %v696 = vrot.slane %v691, 1
      %v697 = vrot.slane %v692, 1
      %v698 = vsel %vm548, %v696, %v697
      %v699 = vrot.slane %v693, 1
      %v700 = vsel %vm548, %v697, %v699
      %v701 = vrot.slane %v694, 1
      %v702 = vsel %vm548, %v699, %v701
      %v703 = vrot.slane %v695, 1
      %v704 = vsel %vm548, %v701, %v703
      %v706 = vsel %vm359, %v698, 0
      %v709 = vsel %vm359, %v700, 0
      %v712 = vsel %vm359, %v702, 0
      %v715 = vsel %vm359, %v704, 0
      %v718 = vsel %vm359, %v703, 0
      %v721 = vsel %vm375, %v670, 0
      %723 = vmatprep.subr.bf16.mxu0 0
      %724 = vmatpush1.bf16.msra.mxu0 %v721
      %725 = vmatprep.subr.bf16.mxu0 0
      %726 = vmatpush1.bf16.msra.mxu0 0
      %727 = vmatprep.subr.bf16.mxu0 0
      %728 = vmatpush1.bf16.msra.mxu0 0
      %729 = vmatprep.subr.bf16.mxu0 0
      %730 = vmatpush1.bf16.msra.mxu0 0
      %731 = vmatprep.subr.bf16.mxu0 0
      %732 = vmatpush1.bf16.msra.mxu0 0
      %733 = vmatprep.subr.bf16.mxu0 0
      %734 = vmatpush1.bf16.msra.mxu0 0
      %735 = vmatprep.subr.bf16.mxu0 0
      %736 = vmatpush1.bf16.msra.mxu0 0
      %737 = vmatprep.subr.bf16.mxu0 0
      %738 = vmatpush1.bf16.msra.mxu0 0
      %739 = vmatprep.subr.bf16.mxu0 0
      %740 = vmatpush1.bf16.msra.mxu0 0
      %741 = vmatprep.subr.bf16.mxu0 0
      %742 = vmatpush1.bf16.msra.mxu0 0
      %743 = vmatprep.subr.bf16.mxu0 0
      %744 = vmatpush1.bf16.msra.mxu0 0
      %745 = vmatprep.subr.bf16.mxu0 0
      %746 = vmatpush1.bf16.msra.mxu0 0
      %747 = vmatprep.subr.bf16.mxu0 0
      %748 = vmatpush1.bf16.msra.mxu0 0
      %749 = vmatprep.subr.bf16.mxu0 0
      %750 = vmatpush1.bf16.msra.mxu0 0
      %751 = vmatprep.subr.bf16.mxu0 0
      %752 = vmatpush1.bf16.msra.mxu0 0
      %753 = vmatprep.subr.bf16.mxu0 0
      %754 = vmatpush1.bf16.msra.mxu0 0
      %755 = vmatprep.mubr.bf16.mxu0 0
      %756 = vmatmul.mubr.bf16.gmra.mrb[0].mxu0 %v706
      %v757 = vpop.f32.mrb[0].mxu0
      %v758 = vadd.f32 0.0, %v757
      %v759 = vpop.f32.mrb[0].mxu0
      %v760 = vpop.f32.mrb[0].mxu0
      %v761 = vadd.f32 0.0, %v760
      %v762 = vpop.f32.mrb[0].mxu0
      %763 = vmatprep.mubr.bf16.mxu0 0
      %764 = vmatmul.mubr.bf16.gmra.mrb[0].mxu0 %v709
      %v765 = vpop.f32.mrb[0].mxu0
      %v766 = vadd.f32 0.0, %v765
      %v767 = vpop.f32.mrb[0].mxu0
      %v768 = vpop.f32.mrb[0].mxu0
      %v769 = vadd.f32 0.0, %v768
      %v770 = vpop.f32.mrb[0].mxu0
      %771 = vmatprep.mubr.bf16.mxu0 0
      %772 = vmatmul.mubr.bf16.gmra.mrb[0].mxu0 %v712
      %v773 = vpop.f32.mrb[0].mxu0
      %v774 = vadd.f32 0.0, %v773
      %v775 = vpop.f32.mrb[0].mxu0
      %v776 = vpop.f32.mrb[0].mxu0
      %v777 = vadd.f32 0.0, %v776
      %v778 = vpop.f32.mrb[0].mxu0
      %779 = vmatprep.mubr.bf16.mxu0 0
      %780 = vmatmul.mubr.bf16.gmra.mrb[0].mxu0 %v715
      %v781 = vpop.f32.mrb[0].mxu0
      %v782 = vadd.f32 0.0, %v781
      %v783 = vpop.f32.mrb[0].mxu0
      %v784 = vpop.f32.mrb[0].mxu0
      %v785 = vadd.f32 0.0, %v784
      %v786 = vpop.f32.mrb[0].mxu0
      %787 = vmatprep.mubr.bf16.mxu0 0
      %788 = vmatmul.mubr.bf16.gmra.mrb[0].mxu0 %v718
      %v789 = vpop.f32.mrb[0].mxu0
      %v790 = vadd.f32 0.0, %v789
      %v791 = vpop.f32.mrb[0].mxu0
      %v792 = vpop.f32.mrb[0].mxu0
      %v793 = vadd.f32 0.0, %v792
      %v794 = vpop.f32.mrb[0].mxu0
      %795 = vdwg.mxu0
      %v796 = vadd.f32 %v649, %v758
      %v797 = vadd.f32 %v650, %v761
      %v798 = vadd.f32 %v651, %v766
      %v799 = vadd.f32 %v652, %v769
      %v800 = vadd.f32 %v653, %v774
      %v801 = vadd.f32 %v654, %v777
      %v802 = vadd.f32 %v655, %v782
      %v803 = vadd.f32 %v656, %v785
      %v804 = vadd.f32 %v657, %v790
      %v805 = vadd.f32 %v658, %v793
      %v806 = vld [vmem:[%s273 + $0x4] sm:$0xe]
      %v807 = vld [vmem:[%s273 + $0x8] sm:$0xf]
      %v808 = vld [vmem:[%s273 + $0xc] sm:$0xf]
      %v809 = vld [vmem:[%s273 + $0x10] sm:$0xf]
      %v810 = vld [vmem:[%s273 + $0x14] sm:$0xf]
      %v811 = vld [vmem:[%s273 + $0x18] sm:$0xf]
      %v812 = vld [vmem:[%s273 + $0x1c] sm:$0xf]
      %v813 = vld [vmem:[%s273 + $0x20] sm:$0xf]
      %v814 = vld [vmem:[%s273 + $0x24] sm:$0xf]
      %v815 = vld [vmem:[%s273 + $0x28] sm:$0xf]
      %v816 = vld [vmem:[%s273 + $0x2c] sm:$0x1]
      %s817 = scalar_lea.vmem %s1, 16
      %v818 = vld [vmem:[%s817] sm:$0xf]
      %v830 = vunpack.c.l.b16 %v806
      %v831 = vunpack.c.l.b16 %v807
      %v832 = vunpack.c.l.b16 %v808
      %v833 = vunpack.c.l.b16 %v809
      %v834 = vunpack.c.l.b16 %v810
      %v835 = vunpack.c.l.b16 %v811
      %v836 = vunpack.c.l.b16 %v812
      %v837 = vunpack.c.l.b16 %v813
      %v838 = vunpack.c.l.b16 %v814
      %v839 = vunpack.c.l.b16 %v815
      %v840 = vunpack.c.l.b16 %v816
      %v841 = vpack.c.b16 %v831, %v830
      %v842 = vpack.c.b16 %v833, %v832
      %v843 = vpack.c.b16 %v835, %v834
      %v844 = vpack.c.b16 %v837, %v836
      %v845 = vpack.c.b16 %v839, %v838
      %v846 = vpack.c.b16 %v840, %v840
      %vm847 = vsmask.f32 6400
      %v849 = vshrl.u32 %v841, 16
      %v851 = vrot.slane %v849, 1
      %v852 = vshll.u32 %v841, 16
      %v854 = vrot.slane %v852, 2
      %v855 = vor.u32 %v851, %v854
      %v857 = vshrl.u32 %v842, 16
      %v859 = vrot.slane %v857, 1
      %v860 = vshll.u32 %v842, 16
      %v862 = vrot.slane %v860, 2
      %v863 = vor.u32 %v859, %v862
      %v864 = vsel %vm847, %v855, %v863
      %v866 = vshrl.u32 %v843, 16
      %v868 = vrot.slane %v866, 1
      %v869 = vshll.u32 %v843, 16
      %v871 = vrot.slane %v869, 2
      %v872 = vor.u32 %v868, %v871
      %v873 = vsel %vm847, %v863, %v872
      %v875 = vshrl.u32 %v844, 16
      %v877 = vrot.slane %v875, 1
      %v878 = vshll.u32 %v844, 16
      %v880 = vrot.slane %v878, 2
      %v881 = vor.u32 %v877, %v880
      %v882 = vsel %vm847, %v872, %v881
      %v884 = vshrl.u32 %v845, 16
      %v886 = vrot.slane %v884, 1
      %v887 = vshll.u32 %v845, 16
      %v889 = vrot.slane %v887, 2
      %v890 = vor.u32 %v886, %v889
      %v891 = vsel %vm847, %v881, %v890
      %v893 = vshll.u32 %v846, 16
      %v895 = vrot.slane %v893, 2
      %v896 = vsel %vm847, %v890, %v895
      %v898 = vsel %vm359, %v864, 0
      %v901 = vsel %vm359, %v873, 0
      %v904 = vsel %vm359, %v882, 0
      %v907 = vsel %vm359, %v891, 0
      %v910 = vsel %vm359, %v896, 0
      %v913 = vsel %vm375, %v818, 0
      %915 = vmatprep.subr.bf16.mxu0 0
      %916 = vmatpush1.bf16.msra.mxu0 %v913
      %917 = vmatprep.subr.bf16.mxu0 0
      %918 = vmatpush1.bf16.msra.mxu0 0
      %919 = vmatprep.subr.bf16.mxu0 0
      %920 = vmatpush1.bf16.msra.mxu0 0
      %921 = vmatprep.subr.bf16.mxu0 0
      %922 = vmatpush1.bf16.msra.mxu0 0
      %923 = vmatprep.subr.bf16.mxu0 0
      %924 = vmatpush1.bf16.msra.mxu0 0
      %925 = vmatprep.subr.bf16.mxu0 0
      %926 = vmatpush1.bf16.msra.mxu0 0
      %927 = vmatprep.subr.bf16.mxu0 0
      %928 = vmatpush1.bf16.msra.mxu0 0
      %929 = vmatprep.subr.bf16.mxu0 0
      %930 = vmatpush1.bf16.msra.mxu0 0
      %931 = vmatprep.subr.bf16.mxu0 0
      %932 = vmatpush1.bf16.msra.mxu0 0
      %933 = vmatprep.subr.bf16.mxu0 0
      %934 = vmatpush1.bf16.msra.mxu0 0
      %935 = vmatprep.subr.bf16.mxu0 0
      %936 = vmatpush1.bf16.msra.mxu0 0
      %937 = vmatprep.subr.bf16.mxu0 0
      %938 = vmatpush1.bf16.msra.mxu0 0
      %939 = vmatprep.subr.bf16.mxu0 0
      %940 = vmatpush1.bf16.msra.mxu0 0
      %941 = vmatprep.subr.bf16.mxu0 0
      %942 = vmatpush1.bf16.msra.mxu0 0
      %943 = vmatprep.subr.bf16.mxu0 0
      %944 = vmatpush1.bf16.msra.mxu0 0
      %945 = vmatprep.subr.bf16.mxu0 0
      %946 = vmatpush1.bf16.msra.mxu0 0
      %947 = vmatprep.mubr.bf16.mxu0 0
      %948 = vmatmul.mubr.bf16.gmra.mrb[0].mxu0 %v898
      %v949 = vpop.f32.mrb[0].mxu0
      %v950 = vadd.f32 0.0, %v949
      %v951 = vpop.f32.mrb[0].mxu0
      %v952 = vpop.f32.mrb[0].mxu0
      %v953 = vadd.f32 0.0, %v952
      %v954 = vpop.f32.mrb[0].mxu0
      %955 = vmatprep.mubr.bf16.mxu0 0
      %956 = vmatmul.mubr.bf16.gmra.mrb[0].mxu0 %v901
      %v957 = vpop.f32.mrb[0].mxu0
      %v958 = vadd.f32 0.0, %v957
      %v959 = vpop.f32.mrb[0].mxu0
      %v960 = vpop.f32.mrb[0].mxu0
      %v961 = vadd.f32 0.0, %v960
      %v962 = vpop.f32.mrb[0].mxu0
      %963 = vmatprep.mubr.bf16.mxu0 0
      %964 = vmatmul.mubr.bf16.gmra.mrb[0].mxu0 %v904
      %v965 = vpop.f32.mrb[0].mxu0
      %v966 = vadd.f32 0.0, %v965
      %v967 = vpop.f32.mrb[0].mxu0
      %v968 = vpop.f32.mrb[0].mxu0
      %v969 = vadd.f32 0.0, %v968
      %v970 = vpop.f32.mrb[0].mxu0
      %971 = vmatprep.mubr.bf16.mxu0 0
      %972 = vmatmul.mubr.bf16.gmra.mrb[0].mxu0 %v907
      %v973 = vpop.f32.mrb[0].mxu0
      %v974 = vadd.f32 0.0, %v973
      %v975 = vpop.f32.mrb[0].mxu0
      %v976 = vpop.f32.mrb[0].mxu0
      %v977 = vadd.f32 0.0, %v976
      %v978 = vpop.f32.mrb[0].mxu0
      %979 = vmatprep.mubr.bf16.mxu0 0
      %980 = vmatmul.mubr.bf16.gmra.mrb[0].mxu0 %v910
      %v981 = vpop.f32.mrb[0].mxu0
      %v982 = vadd.f32 0.0, %v981
      %v983 = vpop.f32.mrb[0].mxu0
      %v984 = vpop.f32.mrb[0].mxu0
      %v985 = vadd.f32 0.0, %v984
      %v986 = vpop.f32.mrb[0].mxu0
      %987 = vdwg.mxu0
      %v988 = vadd.f32 %v796, %v950
      %v989 = vadd.f32 %v797, %v953
      %v990 = vadd.f32 %v798, %v958
      %v991 = vadd.f32 %v799, %v961
      %v992 = vadd.f32 %v800, %v966
      %v993 = vadd.f32 %v801, %v969
      %v994 = vadd.f32 %v802, %v974
      %v995 = vadd.f32 %v803, %v977
      %v996 = vadd.f32 %v804, %v982
      %v997 = vadd.f32 %v805, %v985
      %v998 = vld [vmem:[%s273 + $0x4] sm:$0xc]
      %s999 = scalar_lea.vmem %s1, 20
      %v1000 = vld [vmem:[%s999] sm:$0xf]
      %v1002 = vunpack.c.l.b16 %v998
      %v1003 = vpack.c.b16 %v831, %v1002
      %vm1004 = vcmask 1045504
      %v1005 = vrot.slane %v1003, 2
      %v1006 = vrot.slane %v842, 2
      %v1007 = vsel %vm1004, %v1005, %v1006
      %v1008 = vrot.slane %v843, 2
      %v1009 = vsel %vm1004, %v1006, %v1008
      %v1010 = vrot.slane %v844, 2
      %v1011 = vsel %vm1004, %v1008, %v1010
      %v1012 = vrot.slane %v845, 2
      %v1013 = vsel %vm1004, %v1010, %v1012
      %v1014 = vrot.slane %v846, 2
      %v1015 = vsel %vm1004, %v1012, %v1014
      %v1017 = vsel %vm359, %v1007, 0
      %v1020 = vsel %vm359, %v1009, 0
      %v1023 = vsel %vm359, %v1011, 0
      %v1026 = vsel %vm359, %v1013, 0
      %v1029 = vsel %vm359, %v1015, 0
      %v1032 = vsel %vm375, %v1000, 0
      %1034 = vmatprep.subr.bf16.mxu0 0
      %1035 = vmatpush1.bf16.msra.mxu0 %v1032
      %1036 = vmatprep.subr.bf16.mxu0 0
      %1037 = vmatpush1.bf16.msra.mxu0 0
      %1038 = vmatprep.subr.bf16.mxu0 0
      %1039 = vmatpush1.bf16.msra.mxu0 0
      %1040 = vmatprep.subr.bf16.mxu0 0
      %1041 = vmatpush1.bf16.msra.mxu0 0
      %1042 = vmatprep.subr.bf16.mxu0 0
      %1043 = vmatpush1.bf16.msra.mxu0 0
      %1044 = vmatprep.subr.bf16.mxu0 0
      %1045 = vmatpush1.bf16.msra.mxu0 0
      %1046 = vmatprep.subr.bf16.mxu0 0
      %1047 = vmatpush1.bf16.msra.mxu0 0
      %1048 = vmatprep.subr.bf16.mxu0 0
      %1049 = vmatpush1.bf16.msra.mxu0 0
      %1050 = vmatprep.subr.bf16.mxu0 0
      %1051 = vmatpush1.bf16.msra.mxu0 0
      %1052 = vmatprep.subr.bf16.mxu0 0
      %1053 = vmatpush1.bf16.msra.mxu0 0
      %1054 = vmatprep.subr.bf16.mxu0 0
      %1055 = vmatpush1.bf16.msra.mxu0 0
      %1056 = vmatprep.subr.bf16.mxu0 0
      %1057 = vmatpush1.bf16.msra.mxu0 0
      %1058 = vmatprep.subr.bf16.mxu0 0
      %1059 = vmatpush1.bf16.msra.mxu0 0
      %1060 = vmatprep.subr.bf16.mxu0 0
      %1061 = vmatpush1.bf16.msra.mxu0 0
      %1062 = vmatprep.subr.bf16.mxu0 0
      %1063 = vmatpush1.bf16.msra.mxu0 0
      %1064 = vmatprep.subr.bf16.mxu0 0
      %1065 = vmatpush1.bf16.msra.mxu0 0
      %1066 = vmatprep.mubr.bf16.mxu0 0
      %1067 = vmatmul.mubr.bf16.gmra.mrb[0].mxu0 %v1017
      %v1068 = vpop.f32.mrb[0].mxu0
      %v1069 = vadd.f32 0.0, %v1068
      %v1070 = vpop.f32.mrb[0].mxu0
      %v1071 = vpop.f32.mrb[0].mxu0
      %v1072 = vadd.f32 0.0, %v1071
      %v1073 = vpop.f32.mrb[0].mxu0
      %1074 = vmatprep.mubr.bf16.mxu0 0
      %1075 = vmatmul.mubr.bf16.gmra.mrb[0].mxu0 %v1020
      %v1076 = vpop.f32.mrb[0].mxu0
      %v1077 = vadd.f32 0.0, %v1076
      %v1078 = vpop.f32.mrb[0].mxu0
      %v1079 = vpop.f32.mrb[0].mxu0
      %v1080 = vadd.f32 0.0, %v1079
      %v1081 = vpop.f32.mrb[0].mxu0
      %1082 = vmatprep.mubr.bf16.mxu0 0
      %1083 = vmatmul.mubr.bf16.gmra.mrb[0].mxu0 %v1023
      %v1084 = vpop.f32.mrb[0].mxu0
      %v1085 = vadd.f32 0.0, %v1084
      %v1086 = vpop.f32.mrb[0].mxu0
      %v1087 = vpop.f32.mrb[0].mxu0
      %v1088 = vadd.f32 0.0, %v1087
      %v1089 = vpop.f32.mrb[0].mxu0
      %1090 = vmatprep.mubr.bf16.mxu0 0
      %1091 = vmatmul.mubr.bf16.gmra.mrb[0].mxu0 %v1026
      %v1092 = vpop.f32.mrb[0].mxu0
      %v1093 = vadd.f32 0.0, %v1092
      %v1094 = vpop.f32.mrb[0].mxu0
      %v1095 = vpop.f32.mrb[0].mxu0
      %v1096 = vadd.f32 0.0, %v1095
      %v1097 = vpop.f32.mrb[0].mxu0
      %1098 = vmatprep.mubr.bf16.mxu0 0
      %1099 = vmatmul.mubr.bf16.gmra.mrb[0].mxu0 %v1029
      %v1100 = vpop.f32.mrb[0].mxu0
      %v1101 = vadd.f32 0.0, %v1100
      %v1102 = vpop.f32.mrb[0].mxu0
      %v1103 = vpop.f32.mrb[0].mxu0
      %v1104 = vadd.f32 0.0, %v1103
      %v1105 = vpop.f32.mrb[0].mxu0
      %1106 = vdwg.mxu0
      %v1107 = vadd.f32 %v988, %v1069
      %v1108 = vadd.f32 %v989, %v1072
      %v1109 = vadd.f32 %v990, %v1077
      %v1110 = vadd.f32 %v991, %v1080
      %v1111 = vadd.f32 %v992, %v1085
      %v1112 = vadd.f32 %v993, %v1088
      %v1113 = vadd.f32 %v994, %v1093
      %v1114 = vadd.f32 %v995, %v1096
      %v1115 = vadd.f32 %v996, %v1101
      %v1116 = vadd.f32 %v997, %v1104
      %v1117 = vld [vmem:[%s273 + $0x8] sm:$0xc]
      %v1118 = vld [vmem:[%s273 + $0xc] sm:$0xf]
      %v1119 = vld [vmem:[%s273 + $0x10] sm:$0xf]
      %v1120 = vld [vmem:[%s273 + $0x14] sm:$0xf]
      %v1121 = vld [vmem:[%s273 + $0x18] sm:$0xf]
      %v1122 = vld [vmem:[%s273 + $0x1c] sm:$0xf]
      %v1123 = vld [vmem:[%s273 + $0x20] sm:$0xf]
      %v1124 = vld [vmem:[%s273 + $0x24] sm:$0xf]
      %v1125 = vld [vmem:[%s273 + $0x28] sm:$0xf]
      %v1126 = vld [vmem:[%s273 + $0x2c] sm:$0xf]
      %v1127 = vld [vmem:[%s273 + $0x30] sm:$0x1]
      %s1128 = scalar_lea.vmem %s1, 24
      %v1129 = vld [vmem:[%s1128] sm:$0xf]
      %v1141 = vunpack.c.l.b16 %v1117
      %v1142 = vunpack.c.l.b16 %v1118
      %v1143 = vunpack.c.l.b16 %v1119
      %v1144 = vunpack.c.l.b16 %v1120
      %v1145 = vunpack.c.l.b16 %v1121
      %v1146 = vunpack.c.l.b16 %v1122
      %v1147 = vunpack.c.l.b16 %v1123
      %v1148 = vunpack.c.l.b16 %v1124
      %v1149 = vunpack.c.l.b16 %v1125
      %v1150 = vunpack.c.l.b16 %v1126
      %v1151 = vunpack.c.l.b16 %v1127
      %v1152 = vpack.c.b16 %v1142, %v1141
      %v1153 = vpack.c.b16 %v1144, %v1143
      %v1154 = vpack.c.b16 %v1146, %v1145
      %v1155 = vpack.c.b16 %v1148, %v1147
      %v1156 = vpack.c.b16 %v1150, %v1149
      %v1157 = vpack.c.b16 %v1151, %v1151
      %v1158 = vrot.slane %v1152, 2
      %v1159 = vrot.slane %v1153, 2
      %v1160 = vsel %vm1004, %v1158, %v1159
      %v1161 = vrot.slane %v1154, 2
      %v1162 = vsel %vm1004, %v1159, %v1161
      %v1163 = vrot.slane %v1155, 2
      %v1164 = vsel %vm1004, %v1161, %v1163
      %v1165 = vrot.slane %v1156, 2
      %v1166 = vsel %vm1004, %v1163, %v1165
      %v1167 = vrot.slane %v1157, 2
      %v1168 = vsel %vm1004, %v1165, %v1167
      %v1170 = vsel %vm359, %v1160, 0
      %v1173 = vsel %vm359, %v1162, 0
      %v1176 = vsel %vm359, %v1164, 0
      %v1179 = vsel %vm359, %v1166, 0
      %v1182 = vsel %vm359, %v1168, 0
      %v1185 = vsel %vm375, %v1129, 0
      %1187 = vmatprep.subr.bf16.mxu0 0
      %1188 = vmatpush1.bf16.msra.mxu0 %v1185
      %1189 = vmatprep.subr.bf16.mxu0 0
      %1190 = vmatpush1.bf16.msra.mxu0 0
      %1191 = vmatprep.subr.bf16.mxu0 0
      %1192 = vmatpush1.bf16.msra.mxu0 0
      %1193 = vmatprep.subr.bf16.mxu0 0
      %1194 = vmatpush1.bf16.msra.mxu0 0
      %1195 = vmatprep.subr.bf16.mxu0 0
      %1196 = vmatpush1.bf16.msra.mxu0 0
      %1197 = vmatprep.subr.bf16.mxu0 0
      %1198 = vmatpush1.bf16.msra.mxu0 0
      %1199 = vmatprep.subr.bf16.mxu0 0
      %1200 = vmatpush1.bf16.msra.mxu0 0
      %1201 = vmatprep.subr.bf16.mxu0 0
      %1202 = vmatpush1.bf16.msra.mxu0 0
      %1203 = vmatprep.subr.bf16.mxu0 0
      %1204 = vmatpush1.bf16.msra.mxu0 0
      %1205 = vmatprep.subr.bf16.mxu0 0
      %1206 = vmatpush1.bf16.msra.mxu0 0
      %1207 = vmatprep.subr.bf16.mxu0 0
      %1208 = vmatpush1.bf16.msra.mxu0 0
      %1209 = vmatprep.subr.bf16.mxu0 0
      %1210 = vmatpush1.bf16.msra.mxu0 0
      %1211 = vmatprep.subr.bf16.mxu0 0
      %1212 = vmatpush1.bf16.msra.mxu0 0
      %1213 = vmatprep.subr.bf16.mxu0 0
      %1214 = vmatpush1.bf16.msra.mxu0 0
      %1215 = vmatprep.subr.bf16.mxu0 0
      %1216 = vmatpush1.bf16.msra.mxu0 0
      %1217 = vmatprep.subr.bf16.mxu0 0
      %1218 = vmatpush1.bf16.msra.mxu0 0
      %1219 = vmatprep.mubr.bf16.mxu0 0
      %1220 = vmatmul.mubr.bf16.gmra.mrb[0].mxu0 %v1170
      %v1221 = vpop.f32.mrb[0].mxu0
      %v1222 = vadd.f32 0.0, %v1221
      %v1223 = vpop.f32.mrb[0].mxu0
      %v1224 = vpop.f32.mrb[0].mxu0
      %v1225 = vadd.f32 0.0, %v1224
      %v1226 = vpop.f32.mrb[0].mxu0
      %1227 = vmatprep.mubr.bf16.mxu0 0
      %1228 = vmatmul.mubr.bf16.gmra.mrb[0].mxu0 %v1173
      %v1229 = vpop.f32.mrb[0].mxu0
      %v1230 = vadd.f32 0.0, %v1229
      %v1231 = vpop.f32.mrb[0].mxu0
      %v1232 = vpop.f32.mrb[0].mxu0
      %v1233 = vadd.f32 0.0, %v1232
      %v1234 = vpop.f32.mrb[0].mxu0
      %1235 = vmatprep.mubr.bf16.mxu0 0
      %1236 = vmatmul.mubr.bf16.gmra.mrb[0].mxu0 %v1176
      %v1237 = vpop.f32.mrb[0].mxu0
      %v1238 = vadd.f32 0.0, %v1237
      %v1239 = vpop.f32.mrb[0].mxu0
      %v1240 = vpop.f32.mrb[0].mxu0
      %v1241 = vadd.f32 0.0, %v1240
      %v1242 = vpop.f32.mrb[0].mxu0
      %1243 = vmatprep.mubr.bf16.mxu0 0
      %1244 = vmatmul.mubr.bf16.gmra.mrb[0].mxu0 %v1179
      %v1245 = vpop.f32.mrb[0].mxu0
      %v1246 = vadd.f32 0.0, %v1245
      %v1247 = vpop.f32.mrb[0].mxu0
      %v1248 = vpop.f32.mrb[0].mxu0
      %v1249 = vadd.f32 0.0, %v1248
      %v1250 = vpop.f32.mrb[0].mxu0
      %1251 = vmatprep.mubr.bf16.mxu0 0
      %1252 = vmatmul.mubr.bf16.gmra.mrb[0].mxu0 %v1182
      %v1253 = vpop.f32.mrb[0].mxu0
      %v1254 = vadd.f32 0.0, %v1253
      %v1255 = vpop.f32.mrb[0].mxu0
      %v1256 = vpop.f32.mrb[0].mxu0
      %v1257 = vadd.f32 0.0, %v1256
      %v1258 = vpop.f32.mrb[0].mxu0
      %1259 = vdwg.mxu0
      %v1260 = vadd.f32 %v1107, %v1222
      %v1261 = vadd.f32 %v1108, %v1225
      %v1262 = vadd.f32 %v1109, %v1230
      %v1263 = vadd.f32 %v1110, %v1233
      %v1264 = vadd.f32 %v1111, %v1238
      %v1265 = vadd.f32 %v1112, %v1241
      %v1266 = vadd.f32 %v1113, %v1246
      %v1267 = vadd.f32 %v1114, %v1249
      %v1268 = vadd.f32 %v1115, %v1254
      %v1269 = vadd.f32 %v1116, %v1257
      %v1270 = vld [vmem:[%s273 + $0x30] sm:$0x3]
      %s1271 = scalar_lea.vmem %s1, 28
      %v1272 = vld [vmem:[%s1271] sm:$0xf]
      %v1274 = vunpack.c.l.b16 %v1270
      %v1275 = vpack.c.b16 %v1274, %v1274
      %vm1276 = vsmask.f32 5376
      %v1278 = vshrl.u32 %v1152, 16
      %v1280 = vrot.slane %v1278, 2
      %v1281 = vshll.u32 %v1152, 16
      %v1283 = vrot.slane %v1281, 3
      %v1284 = vor.u32 %v1280, %v1283
      %v1286 = vshrl.u32 %v1153, 16
      %v1288 = vrot.slane %v1286, 2
      %v1289 = vshll.u32 %v1153, 16
      %v1291 = vrot.slane %v1289, 3
      %v1292 = vor.u32 %v1288, %v1291
      %v1293 = vsel %vm1276, %v1284, %v1292
      %v1295 = vshrl.u32 %v1154, 16
      %v1297 = vrot.slane %v1295, 2
      %v1298 = vshll.u32 %v1154, 16
      %v1300 = vrot.slane %v1298, 3
      %v1301 = vor.u32 %v1297, %v1300
      %v1302 = vsel %vm1276, %v1292, %v1301
      %v1304 = vshrl.u32 %v1155, 16
      %v1306 = vrot.slane %v1304, 2
      %v1307 = vshll.u32 %v1155, 16
      %v1309 = vrot.slane %v1307, 3
      %v1310 = vor.u32 %v1306, %v1309
      %v1311 = vsel %vm1276, %v1301, %v1310
      %v1313 = vshrl.u32 %v1156, 16
      %v1315 = vrot.slane %v1313, 2
      %v1316 = vshll.u32 %v1156, 16
      %v1318 = vrot.slane %v1316, 3
      %v1319 = vor.u32 %v1315, %v1318
      %v1320 = vsel %vm1276, %v1310, %v1319
      %v1322 = vshrl.u32 %v1275, 16
      %v1324 = vrot.slane %v1322, 2
      %v1325 = vshll.u32 %v1275, 16
      %v1327 = vrot.slane %v1325, 3
      %v1328 = vor.u32 %v1324, %v1327
      %v1329 = vsel %vm1276, %v1319, %v1328
      %v1331 = vsel %vm359, %v1293, 0
      %v1334 = vsel %vm359, %v1302, 0
      %v1337 = vsel %vm359, %v1311, 0
      %v1340 = vsel %vm359, %v1320, 0
      %v1343 = vsel %vm359, %v1329, 0
      %v1346 = vsel %vm375, %v1272, 0
      %1348 = vmatprep.subr.bf16.mxu0 0
      %1349 = vmatpush1.bf16.msra.mxu0 %v1346
      %1350 = vmatprep.subr.bf16.mxu0 0
      %1351 = vmatpush1.bf16.msra.mxu0 0
      %1352 = vmatprep.subr.bf16.mxu0 0
      %1353 = vmatpush1.bf16.msra.mxu0 0
      %1354 = vmatprep.subr.bf16.mxu0 0
      %1355 = vmatpush1.bf16.msra.mxu0 0
      %1356 = vmatprep.subr.bf16.mxu0 0
      %1357 = vmatpush1.bf16.msra.mxu0 0
      %1358 = vmatprep.subr.bf16.mxu0 0
      %1359 = vmatpush1.bf16.msra.mxu0 0
      %1360 = vmatprep.subr.bf16.mxu0 0
      %1361 = vmatpush1.bf16.msra.mxu0 0
      %1362 = vmatprep.subr.bf16.mxu0 0
      %1363 = vmatpush1.bf16.msra.mxu0 0
      %1364 = vmatprep.subr.bf16.mxu0 0
      %1365 = vmatpush1.bf16.msra.mxu0 0
      %1366 = vmatprep.subr.bf16.mxu0 0
      %1367 = vmatpush1.bf16.msra.mxu0 0
      %1368 = vmatprep.subr.bf16.mxu0 0
      %1369 = vmatpush1.bf16.msra.mxu0 0
      %1370 = vmatprep.subr.bf16.mxu0 0
      %1371 = vmatpush1.bf16.msra.mxu0 0
      %1372 = vmatprep.subr.bf16.mxu0 0
      %1373 = vmatpush1.bf16.msra.mxu0 0
      %1374 = vmatprep.subr.bf16.mxu0 0
      %1375 = vmatpush1.bf16.msra.mxu0 0
      %1376 = vmatprep.subr.bf16.mxu0 0
      %1377 = vmatpush1.bf16.msra.mxu0 0
      %1378 = vmatprep.subr.bf16.mxu0 0
      %1379 = vmatpush1.bf16.msra.mxu0 0
      %1380 = vmatprep.mubr.bf16.mxu0 0
      %1381 = vmatmul.mubr.bf16.gmra.mrb[0].mxu0 %v1331
      %v1382 = vpop.f32.mrb[0].mxu0
      %v1383 = vadd.f32 0.0, %v1382
      %v1384 = vpop.f32.mrb[0].mxu0
      %v1385 = vpop.f32.mrb[0].mxu0
      %v1386 = vadd.f32 0.0, %v1385
      %v1387 = vpop.f32.mrb[0].mxu0
      %1388 = vmatprep.mubr.bf16.mxu0 0
      %1389 = vmatmul.mubr.bf16.gmra.mrb[0].mxu0 %v1334
      %v1390 = vpop.f32.mrb[0].mxu0
      %v1391 = vadd.f32 0.0, %v1390
      %v1392 = vpop.f32.mrb[0].mxu0
      %v1393 = vpop.f32.mrb[0].mxu0
      %v1394 = vadd.f32 0.0, %v1393
      %v1395 = vpop.f32.mrb[0].mxu0
      %1396 = vmatprep.mubr.bf16.mxu0 0
      %1397 = vmatmul.mubr.bf16.gmra.mrb[0].mxu0 %v1337
      %v1398 = vpop.f32.mrb[0].mxu0
      %v1399 = vadd.f32 0.0, %v1398
      %v1400 = vpop.f32.mrb[0].mxu0
      %v1401 = vpop.f32.mrb[0].mxu0
      %v1402 = vadd.f32 0.0, %v1401
      %v1403 = vpop.f32.mrb[0].mxu0
      %1404 = vmatprep.mubr.bf16.mxu0 0
      %1405 = vmatmul.mubr.bf16.gmra.mrb[0].mxu0 %v1340
      %v1406 = vpop.f32.mrb[0].mxu0
      %v1407 = vadd.f32 0.0, %v1406
      %v1408 = vpop.f32.mrb[0].mxu0
      %v1409 = vpop.f32.mrb[0].mxu0
      %v1410 = vadd.f32 0.0, %v1409
      %v1411 = vpop.f32.mrb[0].mxu0
      %1412 = vmatprep.mubr.bf16.mxu0 0
      %1413 = vmatmul.mubr.bf16.gmra.mrb[0].mxu0 %v1343
      %v1414 = vpop.f32.mrb[0].mxu0
      %v1415 = vadd.f32 0.0, %v1414
      %v1416 = vpop.f32.mrb[0].mxu0
      %v1417 = vpop.f32.mrb[0].mxu0
      %v1418 = vadd.f32 0.0, %v1417
      %v1419 = vpop.f32.mrb[0].mxu0
      %1420 = vdwg.mxu0
      %v1421 = vadd.f32 %v1260, %v1383
      %v1422 = vadd.f32 %v1261, %v1386
      %v1423 = vadd.f32 %v1262, %v1391
      %v1424 = vadd.f32 %v1263, %v1394
      %v1425 = vadd.f32 %v1264, %v1399
      %v1426 = vadd.f32 %v1265, %v1402
      %v1427 = vadd.f32 %v1266, %v1407
      %v1428 = vadd.f32 %v1267, %v1410
      %v1429 = vadd.f32 %v1268, %v1415
      %v1430 = vadd.f32 %v1269, %v1418
      %v1431 = vld [vmem:[%s273 + $0x8] sm:$0x8]
      %s1432 = scalar_lea.vmem %s1, 32
      %v1433 = vld [vmem:[%s1432] sm:$0xf]
      %v1435 = vunpack.c.l.b16 %v1431
      %v1436 = vpack.c.b16 %v1142, %v1435
      %vm1437 = vcmask 1044480
      %v1438 = vrot.slane %v1436, 3
      %v1439 = vrot.slane %v1153, 3
      %v1440 = vsel %vm1437, %v1438, %v1439
      %v1441 = vrot.slane %v1154, 3
      %v1442 = vsel %vm1437, %v1439, %v1441
      %v1443 = vrot.slane %v1155, 3
      %v1444 = vsel %vm1437, %v1441, %v1443
      %v1445 = vrot.slane %v1156, 3
      %v1446 = vsel %vm1437, %v1443, %v1445
      %v1447 = vrot.slane %v1275, 3
      %v1448 = vsel %vm1437, %v1445, %v1447
      %v1450 = vsel %vm359, %v1440, 0
      %v1453 = vsel %vm359, %v1442, 0
      %v1456 = vsel %vm359, %v1444, 0
      %v1459 = vsel %vm359, %v1446, 0
      %v1462 = vsel %vm359, %v1448, 0
      %v1465 = vsel %vm375, %v1433, 0
      %1467 = vmatprep.subr.bf16.mxu0 0
      %1468 = vmatpush1.bf16.msra.mxu0 %v1465
      %1469 = vmatprep.subr.bf16.mxu0 0
      %1470 = vmatpush1.bf16.msra.mxu0 0
      %1471 = vmatprep.subr.bf16.mxu0 0
      %1472 = vmatpush1.bf16.msra.mxu0 0
      %1473 = vmatprep.subr.bf16.mxu0 0
      %1474 = vmatpush1.bf16.msra.mxu0 0
      %1475 = vmatprep.subr.bf16.mxu0 0
      %1476 = vmatpush1.bf16.msra.mxu0 0
      %1477 = vmatprep.subr.bf16.mxu0 0
      %1478 = vmatpush1.bf16.msra.mxu0 0
      %1479 = vmatprep.subr.bf16.mxu0 0
      %1480 = vmatpush1.bf16.msra.mxu0 0
      %1481 = vmatprep.subr.bf16.mxu0 0
      %1482 = vmatpush1.bf16.msra.mxu0 0
      %1483 = vmatprep.subr.bf16.mxu0 0
      %1484 = vmatpush1.bf16.msra.mxu0 0
      %1485 = vmatprep.subr.bf16.mxu0 0
      %1486 = vmatpush1.bf16.msra.mxu0 0
      %1487 = vmatprep.subr.bf16.mxu0 0
      %1488 = vmatpush1.bf16.msra.mxu0 0
      %1489 = vmatprep.subr.bf16.mxu0 0
      %1490 = vmatpush1.bf16.msra.mxu0 0
      %1491 = vmatprep.subr.bf16.mxu0 0
      %1492 = vmatpush1.bf16.msra.mxu0 0
      %1493 = vmatprep.subr.bf16.mxu0 0
      %1494 = vmatpush1.bf16.msra.mxu0 0
      %1495 = vmatprep.subr.bf16.mxu0 0
      %1496 = vmatpush1.bf16.msra.mxu0 0
      %1497 = vmatprep.subr.bf16.mxu0 0
      %1498 = vmatpush1.bf16.msra.mxu0 0
      %1499 = vmatprep.mubr.bf16.mxu0 0
      %1500 = vmatmul.mubr.bf16.gmra.mrb[0].mxu0 %v1450
      %v1501 = vpop.f32.mrb[0].mxu0
      %v1502 = vadd.f32 0.0, %v1501
      %v1503 = vpop.f32.mrb[0].mxu0
      %v1504 = vpop.f32.mrb[0].mxu0
      %v1505 = vadd.f32 0.0, %v1504
      %v1506 = vpop.f32.mrb[0].mxu0
      %1507 = vmatprep.mubr.bf16.mxu0 0
      %1508 = vmatmul.mubr.bf16.gmra.mrb[0].mxu0 %v1453
      %v1509 = vpop.f32.mrb[0].mxu0
      %v1510 = vadd.f32 0.0, %v1509
      %v1511 = vpop.f32.mrb[0].mxu0
      %v1512 = vpop.f32.mrb[0].mxu0
      %v1513 = vadd.f32 0.0, %v1512
      %v1514 = vpop.f32.mrb[0].mxu0
      %1515 = vmatprep.mubr.bf16.mxu0 0
      %1516 = vmatmul.mubr.bf16.gmra.mrb[0].mxu0 %v1456
      %v1517 = vpop.f32.mrb[0].mxu0
      %v1518 = vadd.f32 0.0, %v1517
      %v1519 = vpop.f32.mrb[0].mxu0
      %v1520 = vpop.f32.mrb[0].mxu0
      %v1521 = vadd.f32 0.0, %v1520
      %v1522 = vpop.f32.mrb[0].mxu0
      %1523 = vmatprep.mubr.bf16.mxu0 0
      %1524 = vmatmul.mubr.bf16.gmra.mrb[0].mxu0 %v1459
      %v1525 = vpop.f32.mrb[0].mxu0
      %v1526 = vadd.f32 0.0, %v1525
      %v1527 = vpop.f32.mrb[0].mxu0
      %v1528 = vpop.f32.mrb[0].mxu0
      %v1529 = vadd.f32 0.0, %v1528
      %v1530 = vpop.f32.mrb[0].mxu0
      %1531 = vmatprep.mubr.bf16.mxu0 0
      %1532 = vmatmul.mubr.bf16.gmra.mrb[0].mxu0 %v1462
      %v1533 = vpop.f32.mrb[0].mxu0
      %v1534 = vadd.f32 0.0, %v1533
      %v1535 = vpop.f32.mrb[0].mxu0
      %v1536 = vpop.f32.mrb[0].mxu0
      %v1537 = vadd.f32 0.0, %v1536
      %v1538 = vpop.f32.mrb[0].mxu0
      %1539 = vdwg.mxu0
      %v1540 = vadd.f32 %v1421, %v1502
      %v1541 = vadd.f32 %v1422, %v1505
      %v1542 = vadd.f32 %v1423, %v1510
      %v1543 = vadd.f32 %v1424, %v1513
      %v1544 = vadd.f32 %v1425, %v1518
      %v1545 = vadd.f32 %v1426, %v1521
      %v1546 = vadd.f32 %v1427, %v1526
      %v1547 = vadd.f32 %v1428, %v1529
      %v1548 = vadd.f32 %v1429, %v1534
      %v1549 = vadd.f32 %v1430, %v1537
      %v1550 = vld [vmem:[%s2] sm:$0x1]
      %v1552 = vlaneseq
      %v1553 = vshrl.u32 %v1552, 7
      %v1554 = vsub.s32 0, %v1553
      %v1555 = vrot.slane %v1550, %v1554
      %v1557 = vadd.f32 %v1540, %v1555
      %v1558 = vadd.f32 %v1541, %v1555
      %v1559 = vadd.f32 %v1542, %v1555
      %v1560 = vadd.f32 %v1543, %v1555
      %v1561 = vadd.f32 %v1544, %v1555
      %v1562 = vadd.f32 %v1545, %v1555
      %v1563 = vadd.f32 %v1546, %v1555
      %v1564 = vadd.f32 %v1547, %v1555
      %v1565 = vadd.f32 %v1548, %v1555
      %v1566 = vadd.f32 %v1549, %v1555
      %v1567 = vmax.f32 %v1557, 0.0
      %v1568 = vmax.f32 %v1558, 0.0
      %v1569 = vmax.f32 %v1559, 0.0
      %v1570 = vmax.f32 %v1560, 0.0
      %v1571 = vmax.f32 %v1561, 0.0
      %v1572 = vmax.f32 %v1562, 0.0
      %v1573 = vmax.f32 %v1563, 0.0
      %v1574 = vmax.f32 %v1564, 0.0
      %v1575 = vmax.f32 %v1565, 0.0
      %v1576 = vmax.f32 %v1566, 0.0
      %v1577 = vpack.c.bf16 %v1568, %v1567
      %v1578 = vpack.c.bf16 %v1570, %v1569
      %v1579 = vpack.c.bf16 %v1572, %v1571
      %v1580 = vpack.c.bf16 %v1574, %v1573
      %v1581 = vpack.c.bf16 %v1576, %v1575
      %v1582 = vld [vmem:[%s5] sm:$0xf]
      %v1583 = vld [vmem:[%s5 + $0x4] sm:$0xf]
      %v1584 = vld [vmem:[%s5 + $0x8] sm:$0xf]
      %v1585 = vld [vmem:[%s5 + $0xc] sm:$0xf]
      %v1586 = vld [vmem:[%s5 + $0x10] sm:$0xf]
      %v1587 = vld [vmem:[%s5 + $0x14] sm:$0xf]
      %v1588 = vld [vmem:[%s5 + $0x18] sm:$0xf]
      %v1589 = vld [vmem:[%s5 + $0x1c] sm:$0xf]
      %v1590 = vld [vmem:[%s5 + $0x20] sm:$0xf]
      %v1591 = vld [vmem:[%s5 + $0x24] sm:$0xf]
      %v1592 = vld [vmem:[%s5 + $0x28] sm:$0xf]
      %v1593 = vld [vmem:[%s5 + $0x2c] sm:$0xf]
      %v1594 = vld [vmem:[%s5 + $0x30] sm:$0xf]
      %v1595 = vld [vmem:[%s5 + $0x34] sm:$0xf]
      %v1610 = vunpack.c.l.b16 %v1582
      %v1611 = vunpack.c.l.b16 %v1583
      %v1612 = vunpack.c.l.b16 %v1584
      %v1613 = vunpack.c.l.b16 %v1585
      %v1614 = vunpack.c.l.b16 %v1586
      %v1615 = vunpack.c.l.b16 %v1587
      %v1616 = vunpack.c.l.b16 %v1588
      %v1617 = vunpack.c.l.b16 %v1589
      %v1618 = vunpack.c.l.b16 %v1590
      %v1619 = vunpack.c.l.b16 %v1591
      %v1620 = vunpack.c.l.b16 %v1592
      %v1621 = vunpack.c.l.b16 %v1593
      %v1622 = vunpack.c.l.b16 %v1594
      %v1623 = vunpack.c.l.b16 %v1595
      %v1624 = vpack.c.b16 %v1611, %v1610
      %v1625 = vpack.c.b16 %v1613, %v1612
      %v1626 = vpack.c.b16 %v1615, %v1614
      %v1627 = vpack.c.b16 %v1617, %v1616
      %v1628 = vpack.c.b16 %v1619, %v1618
      %v1629 = vpack.c.b16 %v1621, %v1620
      %v1630 = vpack.c.b16 %v1623, %v1622
      %vm1631 = vcmask 637952
      %v1633 = vsel %vm1631, %v1624, 0
      %v1636 = vsel %vm1631, %v1625, 0
      %v1639 = vsel %vm1631, %v1626, 0
      %v1642 = vsel %vm1631, %v1627, 0
      %v1645 = vsel %vm1631, %v1628, 0
      %v1648 = vsel %vm1631, %v1629, 0
      %v1651 = vsel %vm1631, %v1630, 0
      %vm1653 = vcmask 1046528
      %v1655 = vsel %vm1653, %v1581, 0
      %1657 = vmatprep.subr.bf16.mxu0 0
      %1658 = vmatpush1.bf16.msra.mxu0 %v1577
      %1659 = vmatprep.subr.bf16.mxu0 0
      %1660 = vmatpush1.bf16.msra.mxu0 %v1578
      %1661 = vmatprep.subr.bf16.mxu0 0
      %1662 = vmatpush1.bf16.msra.mxu0 %v1579
      %1663 = vmatprep.subr.bf16.mxu0 0
      %1664 = vmatpush1.bf16.msra.mxu0 %v1580
      %1665 = vmatprep.subr.bf16.mxu0 0
      %1666 = vmatpush1.bf16.msra.mxu0 %v1655
      %1667 = vmatprep.subr.bf16.mxu0 0
      %1668 = vmatpush1.bf16.msra.mxu0 0
      %1669 = vmatprep.subr.bf16.mxu0 0
      %1670 = vmatpush1.bf16.msra.mxu0 0
      %1671 = vmatprep.subr.bf16.mxu0 0
      %1672 = vmatpush1.bf16.msra.mxu0 0
      %1673 = vmatprep.subr.bf16.mxu0 0
      %1674 = vmatpush1.bf16.msra.mxu0 0
      %1675 = vmatprep.subr.bf16.mxu0 0
      %1676 = vmatpush1.bf16.msra.mxu0 0
      %1677 = vmatprep.subr.bf16.mxu0 0
      %1678 = vmatpush1.bf16.msra.mxu0 0
      %1679 = vmatprep.subr.bf16.mxu0 0
      %1680 = vmatpush1.bf16.msra.mxu0 0
      %1681 = vmatprep.subr.bf16.mxu0 0
      %1682 = vmatpush1.bf16.msra.mxu0 0
      %1683 = vmatprep.subr.bf16.mxu0 0
      %1684 = vmatpush1.bf16.msra.mxu0 0
      %1685 = vmatprep.subr.bf16.mxu0 0
      %1686 = vmatpush1.bf16.msra.mxu0 0
      %1687 = vmatprep.subr.bf16.mxu0 0
      %1688 = vmatpush1.bf16.msra.mxu0 0
      %1689 = vmatprep.mubr.bf16.mxu0 0
      %1690 = vmatmul.mubr.bf16.gmra.mrb[0].mxu0 %v1633
      %v1691 = vpop.f32.mrb[0].mxu0
      %v1692 = vadd.f32 0.0, %v1691
      %v1693 = vpop.f32.mrb[0].mxu0
      %v1694 = vpop.f32.mrb[0].mxu0
      %v1695 = vadd.f32 0.0, %v1694
      %v1696 = vpop.f32.mrb[0].mxu0
      %1697 = vmatprep.mubr.bf16.mxu0 0
      %1698 = vmatmul.mubr.bf16.gmra.mrb[0].mxu0 %v1636
      %v1699 = vpop.f32.mrb[0].mxu0
      %v1700 = vadd.f32 0.0, %v1699
      %v1701 = vpop.f32.mrb[0].mxu0
      %v1702 = vpop.f32.mrb[0].mxu0
      %v1703 = vadd.f32 0.0, %v1702
      %v1704 = vpop.f32.mrb[0].mxu0
      %1705 = vmatprep.mubr.bf16.mxu0 0
      %1706 = vmatmul.mubr.bf16.gmra.mrb[0].mxu0 %v1639
      %v1707 = vpop.f32.mrb[0].mxu0
      %v1708 = vadd.f32 0.0, %v1707
      %v1709 = vpop.f32.mrb[0].mxu0
      %v1710 = vpop.f32.mrb[0].mxu0
      %v1711 = vadd.f32 0.0, %v1710
      %v1712 = vpop.f32.mrb[0].mxu0
      %1713 = vmatprep.mubr.bf16.mxu0 0
      %1714 = vmatmul.mubr.bf16.gmra.mrb[0].mxu0 %v1642
      %v1715 = vpop.f32.mrb[0].mxu0
      %v1716 = vadd.f32 0.0, %v1715
      %v1717 = vpop.f32.mrb[0].mxu0
      %v1718 = vpop.f32.mrb[0].mxu0
      %v1719 = vadd.f32 0.0, %v1718
      %v1720 = vpop.f32.mrb[0].mxu0
      %1721 = vmatprep.mubr.bf16.mxu0 0
      %1722 = vmatmul.mubr.bf16.gmra.mrb[0].mxu0 %v1645
      %v1723 = vpop.f32.mrb[0].mxu0
      %v1724 = vadd.f32 0.0, %v1723
      %v1725 = vpop.f32.mrb[0].mxu0
      %v1726 = vpop.f32.mrb[0].mxu0
      %v1727 = vadd.f32 0.0, %v1726
      %v1728 = vpop.f32.mrb[0].mxu0
      %1729 = vmatprep.mubr.bf16.mxu0 0
      %1730 = vmatmul.mubr.bf16.gmra.mrb[0].mxu0 %v1648
      %v1731 = vpop.f32.mrb[0].mxu0
      %v1732 = vadd.f32 0.0, %v1731
      %v1733 = vpop.f32.mrb[0].mxu0
      %v1734 = vpop.f32.mrb[0].mxu0
      %v1735 = vadd.f32 0.0, %v1734
      %v1736 = vpop.f32.mrb[0].mxu0
      %1737 = vmatprep.mubr.bf16.mxu0 0
      %1738 = vmatmul.mubr.bf16.gmra.mrb[0].mxu0 %v1651
      %v1739 = vpop.f32.mrb[0].mxu0
      %v1740 = vadd.f32 0.0, %v1739
      %v1741 = vpop.f32.mrb[0].mxu0
      %v1742 = vpop.f32.mrb[0].mxu0
      %v1743 = vadd.f32 0.0, %v1742
      %v1744 = vpop.f32.mrb[0].mxu0
      %1745 = vdwg.mxu0
      %v1746 = vpack.c.bf16 %v1695, %v1692
      %v1747 = vpack.c.bf16 %v1703, %v1700
      %v1748 = vpack.c.bf16 %v1711, %v1708
      %v1749 = vpack.c.bf16 %v1719, %v1716
      %v1750 = vpack.c.bf16 %v1727, %v1724
      %v1751 = vpack.c.bf16 %v1735, %v1732
      %v1752 = vpack.c.bf16 %v1743, %v1740
      %v1753 = vld [vmem:[%s3] sm:$0xf]
      %s1754 = scalar_lea.vmem %s3, 4
      %v1755 = vld [vmem:[%s1754] sm:$0xf]
      %v1757 = vshrl.u32 %v1746, 16
      %v1759 = vshll.u32 %v1746, 16
      %v1761 = vrot.slane %v1759, 1
      %v1762 = vor.u32 %v1757, %v1761
      %v1764 = vshll.u32 %v1747, 16
      %v1766 = vrot.slane %v1764, 1
      %v1767 = vsel %vm319, %v1762, %v1766
      %v1768 = vshrl.u32 %v1747, 16
      %v1770 = vor.u32 %v1768, %v1766
      %v1772 = vshll.u32 %v1748, 16
      %v1774 = vrot.slane %v1772, 1
      %v1775 = vsel %vm319, %v1770, %v1774
      %v1776 = vshrl.u32 %v1748, 16
      %v1778 = vor.u32 %v1776, %v1774
      %v1780 = vshll.u32 %v1749, 16
      %v1782 = vrot.slane %v1780, 1
      %v1783 = vsel %vm319, %v1778, %v1782
      %v1784 = vshrl.u32 %v1749, 16
      %v1786 = vor.u32 %v1784, %v1782
      %v1788 = vshll.u32 %v1750, 16
      %v1790 = vrot.slane %v1788, 1
      %v1791 = vsel %vm319, %v1786, %v1790
      %v1792 = vshrl.u32 %v1750, 16
      %v1794 = vor.u32 %v1792, %v1790
      %v1796 = vsel %vm359, %v1767, 0
      %v1799 = vsel %vm359, %v1775, 0
      %v1802 = vsel %vm359, %v1783, 0
      %v1805 = vsel %vm359, %v1791, 0
      %v1808 = vsel %vm359, %v1794, 0
      %v1811 = vsel %vm375, %v1755, 0
      %1813 = vmatprep.subr.bf16.mxu0 0
      %1814 = vmatpush1.bf16.msra.mxu0 %v1811
      %1815 = vmatprep.subr.bf16.mxu0 0
      %1816 = vmatpush1.bf16.msra.mxu0 0
      %1817 = vmatprep.subr.bf16.mxu0 0
      %1818 = vmatpush1.bf16.msra.mxu0 0
      %1819 = vmatprep.subr.bf16.mxu0 0
      %1820 = vmatpush1.bf16.msra.mxu0 0
      %1821 = vmatprep.subr.bf16.mxu0 0
      %1822 = vmatpush1.bf16.msra.mxu0 0
      %1823 = vmatprep.subr.bf16.mxu0 0
      %1824 = vmatpush1.bf16.msra.mxu0 0
      %1825 = vmatprep.subr.bf16.mxu0 0
      %1826 = vmatpush1.bf16.msra.mxu0 0
      %1827 = vmatprep.subr.bf16.mxu0 0
      %1828 = vmatpush1.bf16.msra.mxu0 0
      %1829 = vmatprep.subr.bf16.mxu0 0
      %1830 = vmatpush1.bf16.msra.mxu0 0
      %1831 = vmatprep.subr.bf16.mxu0 0
      %1832 = vmatpush1.bf16.msra.mxu0 0
      %1833 = vmatprep.subr.bf16.mxu0 0
      %1834 = vmatpush1.bf16.msra.mxu0 0
      %1835 = vmatprep.subr.bf16.mxu0 0
      %1836 = vmatpush1.bf16.msra.mxu0 0
      %1837 = vmatprep.subr.bf16.mxu0 0
      %1838 = vmatpush1.bf16.msra.mxu0 0
      %1839 = vmatprep.subr.bf16.mxu0 0
      %1840 = vmatpush1.bf16.msra.mxu0 0
      %1841 = vmatprep.subr.bf16.mxu0 0
      %1842 = vmatpush1.bf16.msra.mxu0 0
      %1843 = vmatprep.subr.bf16.mxu0 0
      %1844 = vmatpush1.bf16.msra.mxu0 0
      %1845 = vmatprep.mubr.bf16.mxu0 0
      %1846 = vmatmul.mubr.bf16.gmra.mrb[0].mxu0 %v1796
      %v1847 = vpop.f32.mrb[0].mxu0
      %v1848 = vadd.f32 0.0, %v1847
      %v1849 = vpop.f32.mrb[0].mxu0
      %v1850 = vpop.f32.mrb[0].mxu0
      %v1851 = vadd.f32 0.0, %v1850
      %v1852 = vpop.f32.mrb[0].mxu0
      %1853 = vmatprep.mubr.bf16.mxu0 0
      %1854 = vmatmul.mubr.bf16.gmra.mrb[0].mxu0 %v1799
      %v1855 = vpop.f32.mrb[0].mxu0
      %v1856 = vadd.f32 0.0, %v1855
      %v1857 = vpop.f32.mrb[0].mxu0
      %v1858 = vpop.f32.mrb[0].mxu0
      %v1859 = vadd.f32 0.0, %v1858
      %v1860 = vpop.f32.mrb[0].mxu0
      %1861 = vmatprep.mubr.bf16.mxu0 0
      %1862 = vmatmul.mubr.bf16.gmra.mrb[0].mxu0 %v1802
      %v1863 = vpop.f32.mrb[0].mxu0
      %v1864 = vadd.f32 0.0, %v1863
      %v1865 = vpop.f32.mrb[0].mxu0
      %v1866 = vpop.f32.mrb[0].mxu0
      %v1867 = vadd.f32 0.0, %v1866
      %v1868 = vpop.f32.mrb[0].mxu0
      %1869 = vmatprep.mubr.bf16.mxu0 0
      %1870 = vmatmul.mubr.bf16.gmra.mrb[0].mxu0 %v1805
      %v1871 = vpop.f32.mrb[0].mxu0
      %v1872 = vadd.f32 0.0, %v1871
      %v1873 = vpop.f32.mrb[0].mxu0
      %v1874 = vpop.f32.mrb[0].mxu0
      %v1875 = vadd.f32 0.0, %v1874
      %v1876 = vpop.f32.mrb[0].mxu0
      %1877 = vmatprep.mubr.bf16.mxu0 0
      %1878 = vmatmul.mubr.bf16.gmra.mrb[0].mxu0 %v1808
      %v1879 = vpop.f32.mrb[0].mxu0
      %v1880 = vadd.f32 0.0, %v1879
      %v1881 = vpop.f32.mrb[0].mxu0
      %v1882 = vpop.f32.mrb[0].mxu0
      %v1883 = vadd.f32 0.0, %v1882
      %v1884 = vpop.f32.mrb[0].mxu0
      %1885 = vdwg.mxu0
      %v1886 = vsel %vm359, %v1746, 0
      %v1888 = vsel %vm359, %v1747, 0
      %v1890 = vsel %vm359, %v1748, 0
      %v1892 = vsel %vm359, %v1749, 0
      %v1894 = vsel %vm359, %v1750, 0
      %v1897 = vsel %vm375, %v1753, 0
      %1899 = vmatprep.subr.bf16.mxu0 0
      %1900 = vmatpush1.bf16.msra.mxu0 %v1897
      %1901 = vmatprep.subr.bf16.mxu0 0
      %1902 = vmatpush1.bf16.msra.mxu0 0
      %1903 = vmatprep.subr.bf16.mxu0 0
      %1904 = vmatpush1.bf16.msra.mxu0 0
      %1905 = vmatprep.subr.bf16.mxu0 0
      %1906 = vmatpush1.bf16.msra.mxu0 0
      %1907 = vmatprep.subr.bf16.mxu0 0
      %1908 = vmatpush1.bf16.msra.mxu0 0
      %1909 = vmatprep.subr.bf16.mxu0 0
      %1910 = vmatpush1.bf16.msra.mxu0 0
      %1911 = vmatprep.subr.bf16.mxu0 0
      %1912 = vmatpush1.bf16.msra.mxu0 0
      %1913 = vmatprep.subr.bf16.mxu0 0
      %1914 = vmatpush1.bf16.msra.mxu0 0
      %1915 = vmatprep.subr.bf16.mxu0 0
      %1916 = vmatpush1.bf16.msra.mxu0 0
      %1917 = vmatprep.subr.bf16.mxu0 0
      %1918 = vmatpush1.bf16.msra.mxu0 0
      %1919 = vmatprep.subr.bf16.mxu0 0
      %1920 = vmatpush1.bf16.msra.mxu0 0
      %1921 = vmatprep.subr.bf16.mxu0 0
      %1922 = vmatpush1.bf16.msra.mxu0 0
      %1923 = vmatprep.subr.bf16.mxu0 0
      %1924 = vmatpush1.bf16.msra.mxu0 0
      %1925 = vmatprep.subr.bf16.mxu0 0
      %1926 = vmatpush1.bf16.msra.mxu0 0
      %1927 = vmatprep.subr.bf16.mxu0 0
      %1928 = vmatpush1.bf16.msra.mxu0 0
      %1929 = vmatprep.subr.bf16.mxu0 0
      %1930 = vmatpush1.bf16.msra.mxu0 0
      %1931 = vmatprep.mubr.bf16.mxu0 0
      %1932 = vmatmul.mubr.bf16.gmra.mrb[0].mxu0 %v1886
      %v1933 = vpop.f32.mrb[0].mxu0
      %v1934 = vadd.f32 %v1848, %v1933
      %v1935 = vpop.f32.mrb[0].mxu0
      %v1936 = vpop.f32.mrb[0].mxu0
      %v1937 = vadd.f32 %v1851, %v1936
      %v1938 = vpop.f32.mrb[0].mxu0
      %1939 = vmatprep.mubr.bf16.mxu0 0
      %1940 = vmatmul.mubr.bf16.gmra.mrb[0].mxu0 %v1888
      %v1941 = vpop.f32.mrb[0].mxu0
      %v1942 = vadd.f32 %v1856, %v1941
      %v1943 = vpop.f32.mrb[0].mxu0
      %v1944 = vpop.f32.mrb[0].mxu0
      %v1945 = vadd.f32 %v1859, %v1944
      %v1946 = vpop.f32.mrb[0].mxu0
      %1947 = vmatprep.mubr.bf16.mxu0 0
      %1948 = vmatmul.mubr.bf16.gmra.mrb[0].mxu0 %v1890
      %v1949 = vpop.f32.mrb[0].mxu0
      %v1950 = vadd.f32 %v1864, %v1949
      %v1951 = vpop.f32.mrb[0].mxu0
      %v1952 = vpop.f32.mrb[0].mxu0
      %v1953 = vadd.f32 %v1867, %v1952
      %v1954 = vpop.f32.mrb[0].mxu0
      %1955 = vmatprep.mubr.bf16.mxu0 0
      %1956 = vmatmul.mubr.bf16.gmra.mrb[0].mxu0 %v1892
      %v1957 = vpop.f32.mrb[0].mxu0
      %v1958 = vadd.f32 %v1872, %v1957
      %v1959 = vpop.f32.mrb[0].mxu0
      %v1960 = vpop.f32.mrb[0].mxu0
      %v1961 = vadd.f32 %v1875, %v1960
      %v1962 = vpop.f32.mrb[0].mxu0
      %1963 = vmatprep.mubr.bf16.mxu0 0
      %1964 = vmatmul.mubr.bf16.gmra.mrb[0].mxu0 %v1894
      %v1965 = vpop.f32.mrb[0].mxu0
      %v1966 = vadd.f32 %v1880, %v1965
      %v1967 = vpop.f32.mrb[0].mxu0
      %v1968 = vpop.f32.mrb[0].mxu0
      %v1969 = vadd.f32 %v1883, %v1968
      %v1970 = vpop.f32.mrb[0].mxu0
      %1971 = vdwg.mxu0
      %s1972 = scalar_lea.vmem %s3, 8
      %v1973 = vld [vmem:[%s1972] sm:$0xf]
      %v1979 = vrot.slane %v1746, 1
      %v1980 = vrot.slane %v1747, 1
      %v1981 = vsel %vm548, %v1979, %v1980
      %v1982 = vrot.slane %v1748, 1
      %v1983 = vsel %vm548, %v1980, %v1982
      %v1984 = vrot.slane %v1749, 1
      %v1985 = vsel %vm548, %v1982, %v1984
      %v1986 = vrot.slane %v1750, 1
      %v1987 = vsel %vm548, %v1984, %v1986
      %v1989 = vsel %vm359, %v1981, 0
      %v1992 = vsel %vm359, %v1983, 0
      %v1995 = vsel %vm359, %v1985, 0
      %v1998 = vsel %vm359, %v1987, 0
      %v2001 = vsel %vm359, %v1986, 0
      %v2004 = vsel %vm375, %v1973, 0
      %2006 = vmatprep.subr.bf16.mxu0 0
      %2007 = vmatpush1.bf16.msra.mxu0 %v2004
      %2008 = vmatprep.subr.bf16.mxu0 0
      %2009 = vmatpush1.bf16.msra.mxu0 0
      %2010 = vmatprep.subr.bf16.mxu0 0
      %2011 = vmatpush1.bf16.msra.mxu0 0
      %2012 = vmatprep.subr.bf16.mxu0 0
      %2013 = vmatpush1.bf16.msra.mxu0 0
      %2014 = vmatprep.subr.bf16.mxu0 0
      %2015 = vmatpush1.bf16.msra.mxu0 0
      %2016 = vmatprep.subr.bf16.mxu0 0
      %2017 = vmatpush1.bf16.msra.mxu0 0
      %2018 = vmatprep.subr.bf16.mxu0 0
      %2019 = vmatpush1.bf16.msra.mxu0 0
      %2020 = vmatprep.subr.bf16.mxu0 0
      %2021 = vmatpush1.bf16.msra.mxu0 0
      %2022 = vmatprep.subr.bf16.mxu0 0
      %2023 = vmatpush1.bf16.msra.mxu0 0
      %2024 = vmatprep.subr.bf16.mxu0 0
      %2025 = vmatpush1.bf16.msra.mxu0 0
      %2026 = vmatprep.subr.bf16.mxu0 0
      %2027 = vmatpush1.bf16.msra.mxu0 0
      %2028 = vmatprep.subr.bf16.mxu0 0
      %2029 = vmatpush1.bf16.msra.mxu0 0
      %2030 = vmatprep.subr.bf16.mxu0 0
      %2031 = vmatpush1.bf16.msra.mxu0 0
      %2032 = vmatprep.subr.bf16.mxu0 0
      %2033 = vmatpush1.bf16.msra.mxu0 0
      %2034 = vmatprep.subr.bf16.mxu0 0
      %2035 = vmatpush1.bf16.msra.mxu0 0
      %2036 = vmatprep.subr.bf16.mxu0 0
      %2037 = vmatpush1.bf16.msra.mxu0 0
      %2038 = vmatprep.mubr.bf16.mxu0 0
      %2039 = vmatmul.mubr.bf16.gmra.mrb[0].mxu0 %v1989
      %v2040 = vpop.f32.mrb[0].mxu0
      %v2041 = vadd.f32 0.0, %v2040
      %v2042 = vpop.f32.mrb[0].mxu0
      %v2043 = vpop.f32.mrb[0].mxu0
      %v2044 = vadd.f32 0.0, %v2043
      %v2045 = vpop.f32.mrb[0].mxu0
      %2046 = vmatprep.mubr.bf16.mxu0 0
      %2047 = vmatmul.mubr.bf16.gmra.mrb[0].mxu0 %v1992
      %v2048 = vpop.f32.mrb[0].mxu0
      %v2049 = vadd.f32 0.0, %v2048
      %v2050 = vpop.f32.mrb[0].mxu0
      %v2051 = vpop.f32.mrb[0].mxu0
      %v2052 = vadd.f32 0.0, %v2051
      %v2053 = vpop.f32.mrb[0].mxu0
      %2054 = vmatprep.mubr.bf16.mxu0 0
      %2055 = vmatmul.mubr.bf16.gmra.mrb[0].mxu0 %v1995
      %v2056 = vpop.f32.mrb[0].mxu0
      %v2057 = vadd.f32 0.0, %v2056
      %v2058 = vpop.f32.mrb[0].mxu0
      %v2059 = vpop.f32.mrb[0].mxu0
      %v2060 = vadd.f32 0.0, %v2059
      %v2061 = vpop.f32.mrb[0].mxu0
      %2062 = vmatprep.mubr.bf16.mxu0 0
      %2063 = vmatmul.mubr.bf16.gmra.mrb[0].mxu0 %v1998
      %v2064 = vpop.f32.mrb[0].mxu0
      %v2065 = vadd.f32 0.0, %v2064
      %v2066 = vpop.f32.mrb[0].mxu0
      %v2067 = vpop.f32.mrb[0].mxu0
      %v2068 = vadd.f32 0.0, %v2067
      %v2069 = vpop.f32.mrb[0].mxu0
      %2070 = vmatprep.mubr.bf16.mxu0 0
      %2071 = vmatmul.mubr.bf16.gmra.mrb[0].mxu0 %v2001
      %v2072 = vpop.f32.mrb[0].mxu0
      %v2073 = vadd.f32 0.0, %v2072
      %v2074 = vpop.f32.mrb[0].mxu0
      %v2075 = vpop.f32.mrb[0].mxu0
      %v2076 = vadd.f32 0.0, %v2075
      %v2077 = vpop.f32.mrb[0].mxu0
      %2078 = vdwg.mxu0
      %v2079 = vadd.f32 %v1934, %v2041
      %v2080 = vadd.f32 %v1937, %v2044
      %v2081 = vadd.f32 %v1942, %v2049
      %v2082 = vadd.f32 %v1945, %v2052
      %v2083 = vadd.f32 %v1950, %v2057
      %v2084 = vadd.f32 %v1953, %v2060
      %v2085 = vadd.f32 %v1958, %v2065
      %v2086 = vadd.f32 %v1961, %v2068
      %v2087 = vadd.f32 %v1966, %v2073
      %v2088 = vadd.f32 %v1969, %v2076
      %s2089 = scalar_lea.vmem %s3, 12
      %v2090 = vld [vmem:[%s2089] sm:$0xf]
      %vm2092 = vcmask 1042432
      %v2093 = vrot.slane %v1746, 5
      %v2094 = vrot.slane %v1747, 5
      %v2095 = vsel %vm2092, %v2093, %v2094
      %v2096 = vrot.slane %v1748, 5
      %v2097 = vsel %vm2092, %v2094, %v2096
      %v2098 = vrot.slane %v1749, 5
      %v2099 = vsel %vm2092, %v2096, %v2098
      %v2100 = vrot.slane %v1750, 5
      %v2101 = vsel %vm2092, %v2098, %v2100
      %v2102 = vrot.slane %v1751, 5
      %v2103 = vsel %vm2092, %v2100, %v2102
      %v2105 = vsel %vm359, %v2095, 0
      %v2108 = vsel %vm359, %v2097, 0
      %v2111 = vsel %vm359, %v2099, 0
      %v2114 = vsel %vm359, %v2101, 0
      %v2117 = vsel %vm359, %v2103, 0
      %v2120 = vsel %vm375, %v2090, 0
      %2122 = vmatprep.subr.bf16.mxu0 0
      %2123 = vmatpush1.bf16.msra.mxu0 %v2120
      %2124 = vmatprep.subr.bf16.mxu0 0
      %2125 = vmatpush1.bf16.msra.mxu0 0
      %2126 = vmatprep.subr.bf16.mxu0 0
      %2127 = vmatpush1.bf16.msra.mxu0 0
      %2128 = vmatprep.subr.bf16.mxu0 0
      %2129 = vmatpush1.bf16.msra.mxu0 0
      %2130 = vmatprep.subr.bf16.mxu0 0
      %2131 = vmatpush1.bf16.msra.mxu0 0
      %2132 = vmatprep.subr.bf16.mxu0 0
      %2133 = vmatpush1.bf16.msra.mxu0 0
      %2134 = vmatprep.subr.bf16.mxu0 0
      %2135 = vmatpush1.bf16.msra.mxu0 0
      %2136 = vmatprep.subr.bf16.mxu0 0
      %2137 = vmatpush1.bf16.msra.mxu0 0
      %2138 = vmatprep.subr.bf16.mxu0 0
      %2139 = vmatpush1.bf16.msra.mxu0 0
      %2140 = vmatprep.subr.bf16.mxu0 0
      %2141 = vmatpush1.bf16.msra.mxu0 0
      %2142 = vmatprep.subr.bf16.mxu0 0
      %2143 = vmatpush1.bf16.msra.mxu0 0
      %2144 = vmatprep.subr.bf16.mxu0 0
      %2145 = vmatpush1.bf16.msra.mxu0 0
      %2146 = vmatprep.subr.bf16.mxu0 0
      %2147 = vmatpush1.bf16.msra.mxu0 0
      %2148 = vmatprep.subr.bf16.mxu0 0
      %2149 = vmatpush1.bf16.msra.mxu0 0
      %2150 = vmatprep.subr.bf16.mxu0 0
      %2151 = vmatpush1.bf16.msra.mxu0 0
      %2152 = vmatprep.subr.bf16.mxu0 0
      %2153 = vmatpush1.bf16.msra.mxu0 0
      %2154 = vmatprep.mubr.bf16.mxu0 0
      %2155 = vmatmul.mubr.bf16.gmra.mrb[0].mxu0 %v2105
      %v2156 = vpop.f32.mrb[0].mxu0
      %v2157 = vadd.f32 0.0, %v2156
      %v2158 = vpop.f32.mrb[0].mxu0
      %v2159 = vpop.f32.mrb[0].mxu0
      %v2160 = vadd.f32 0.0, %v2159
      %v2161 = vpop.f32.mrb[0].mxu0
      %2162 = vmatprep.mubr.bf16.mxu0 0
      %2163 = vmatmul.mubr.bf16.gmra.mrb[0].mxu0 %v2108
      %v2164 = vpop.f32.mrb[0].mxu0
      %v2165 = vadd.f32 0.0, %v2164
      %v2166 = vpop.f32.mrb[0].mxu0
      %v2167 = vpop.f32.mrb[0].mxu0
      %v2168 = vadd.f32 0.0, %v2167
      %v2169 = vpop.f32.mrb[0].mxu0
      %2170 = vmatprep.mubr.bf16.mxu0 0
      %2171 = vmatmul.mubr.bf16.gmra.mrb[0].mxu0 %v2111
      %v2172 = vpop.f32.mrb[0].mxu0
      %v2173 = vadd.f32 0.0, %v2172
      %v2174 = vpop.f32.mrb[0].mxu0
      %v2175 = vpop.f32.mrb[0].mxu0
      %v2176 = vadd.f32 0.0, %v2175
      %v2177 = vpop.f32.mrb[0].mxu0
      %2178 = vmatprep.mubr.bf16.mxu0 0
      %2179 = vmatmul.mubr.bf16.gmra.mrb[0].mxu0 %v2114
      %v2180 = vpop.f32.mrb[0].mxu0
      %v2181 = vadd.f32 0.0, %v2180
      %v2182 = vpop.f32.mrb[0].mxu0
      %v2183 = vpop.f32.mrb[0].mxu0
      %v2184 = vadd.f32 0.0, %v2183
      %v2185 = vpop.f32.mrb[0].mxu0
      %2186 = vmatprep.mubr.bf16.mxu0 0
      %2187 = vmatmul.mubr.bf16.gmra.mrb[0].mxu0 %v2117
      %v2188 = vpop.f32.mrb[0].mxu0
      %v2189 = vadd.f32 0.0, %v2188
      %v2190 = vpop.f32.mrb[0].mxu0
      %v2191 = vpop.f32.mrb[0].mxu0
      %v2192 = vadd.f32 0.0, %v2191
      %v2193 = vpop.f32.mrb[0].mxu0
      %2194 = vdwg.mxu0
      %v2195 = vadd.f32 %v2079, %v2157
      %v2196 = vadd.f32 %v2080, %v2160
      %v2197 = vadd.f32 %v2081, %v2165
      %v2198 = vadd.f32 %v2082, %v2168
      %v2199 = vadd.f32 %v2083, %v2173
      %v2200 = vadd.f32 %v2084, %v2176
      %v2201 = vadd.f32 %v2085, %v2181
      %v2202 = vadd.f32 %v2086, %v2184
      %v2203 = vadd.f32 %v2087, %v2189
      %v2204 = vadd.f32 %v2088, %v2192
      %s2205 = scalar_lea.vmem %s3, 16
      %v2206 = vld [vmem:[%s2205] sm:$0xf]
      %vm2207 = vsmask.f32 2304
      %v2208 = vrot.slane %v1757, 5
      %v2209 = vrot.slane %v1759, 6
      %v2210 = vor.u32 %v2208, %v2209
      %v2211 = vrot.slane %v1768, 5
      %v2212 = vrot.slane %v1764, 6
      %v2213 = vor.u32 %v2211, %v2212
      %v2214 = vsel %vm2207, %v2210, %v2213
      %v2215 = vrot.slane %v1776, 5
      %v2216 = vrot.slane %v1772, 6
      %v2217 = vor.u32 %v2215, %v2216
      %v2218 = vsel %vm2207, %v2213, %v2217
      %v2219 = vrot.slane %v1784, 5
      %v2220 = vrot.slane %v1780, 6
      %v2221 = vor.u32 %v2219, %v2220
      %v2222 = vsel %vm2207, %v2217, %v2221
      %v2223 = vrot.slane %v1792, 5
      %v2224 = vrot.slane %v1788, 6
      %v2225 = vor.u32 %v2223, %v2224
      %v2226 = vsel %vm2207, %v2221, %v2225
      %v2228 = vshrl.u32 %v1751, 16
      %v2230 = vrot.slane %v2228, 5
      %v2231 = vshll.u32 %v1751, 16
      %v2233 = vrot.slane %v2231, 6
      %v2234 = vor.u32 %v2230, %v2233
      %v2235 = vsel %vm2207, %v2225, %v2234
      %v2237 = vsel %vm359, %v2214, 0
      %v2240 = vsel %vm359, %v2218, 0
      %v2243 = vsel %vm359, %v2222, 0
      %v2246 = vsel %vm359, %v2226, 0
      %v2249 = vsel %vm359, %v2235, 0
      %v2252 = vsel %vm375, %v2206, 0
      %2254 = vmatprep.subr.bf16.mxu0 0
      %2255 = vmatpush1.bf16.msra.mxu0 %v2252
      %2256 = vmatprep.subr.bf16.mxu0 0
      %2257 = vmatpush1.bf16.msra.mxu0 0
      %2258 = vmatprep.subr.bf16.mxu0 0
      %2259 = vmatpush1.bf16.msra.mxu0 0
      %2260 = vmatprep.subr.bf16.mxu0 0
      %2261 = vmatpush1.bf16.msra.mxu0 0
      %2262 = vmatprep.subr.bf16.mxu0 0
      %2263 = vmatpush1.bf16.msra.mxu0 0
      %2264 = vmatprep.subr.bf16.mxu0 0
      %2265 = vmatpush1.bf16.msra.mxu0 0
      %2266 = vmatprep.subr.bf16.mxu0 0
      %2267 = vmatpush1.bf16.msra.mxu0 0
      %2268 = vmatprep.subr.bf16.mxu0 0
      %2269 = vmatpush1.bf16.msra.mxu0 0
      %2270 = vmatprep.subr.bf16.mxu0 0
      %2271 = vmatpush1.bf16.msra.mxu0 0
      %2272 = vmatprep.subr.bf16.mxu0 0
      %2273 = vmatpush1.bf16.msra.mxu0 0
      %2274 = vmatprep.subr.bf16.mxu0 0
      %2275 = vmatpush1.bf16.msra.mxu0 0
      %2276 = vmatprep.subr.bf16.mxu0 0
      %2277 = vmatpush1.bf16.msra.mxu0 0
      %2278 = vmatprep.subr.bf16.mxu0 0
      %2279 = vmatpush1.bf16.msra.mxu0 0
      %2280 = vmatprep.subr.bf16.mxu0 0
      %2281 = vmatpush1.bf16.msra.mxu0 0
      %2282 = vmatprep.subr.bf16.mxu0 0
      %2283 = vmatpush1.bf16.msra.mxu0 0
      %2284 = vmatprep.subr.bf16.mxu0 0
      %2285 = vmatpush1.bf16.msra.mxu0 0
      %2286 = vmatprep.mubr.bf16.mxu0 0
      %2287 = vmatmul.mubr.bf16.gmra.mrb[0].mxu0 %v2237
      %v2288 = vpop.f32.mrb[0].mxu0
      %v2289 = vadd.f32 0.0, %v2288
      %v2290 = vpop.f32.mrb[0].mxu0
      %v2291 = vpop.f32.mrb[0].mxu0
      %v2292 = vadd.f32 0.0, %v2291
      %v2293 = vpop.f32.mrb[0].mxu0
      %2294 = vmatprep.mubr.bf16.mxu0 0
      %2295 = vmatmul.mubr.bf16.gmra.mrb[0].mxu0 %v2240
      %v2296 = vpop.f32.mrb[0].mxu0
      %v2297 = vadd.f32 0.0, %v2296
      %v2298 = vpop.f32.mrb[0].mxu0
      %v2299 = vpop.f32.mrb[0].mxu0
      %v2300 = vadd.f32 0.0, %v2299
      %v2301 = vpop.f32.mrb[0].mxu0
      %2302 = vmatprep.mubr.bf16.mxu0 0
      %2303 = vmatmul.mubr.bf16.gmra.mrb[0].mxu0 %v2243
      %v2304 = vpop.f32.mrb[0].mxu0
      %v2305 = vadd.f32 0.0, %v2304
      %v2306 = vpop.f32.mrb[0].mxu0
      %v2307 = vpop.f32.mrb[0].mxu0
      %v2308 = vadd.f32 0.0, %v2307
      %v2309 = vpop.f32.mrb[0].mxu0
      %2310 = vmatprep.mubr.bf16.mxu0 0
      %2311 = vmatmul.mubr.bf16.gmra.mrb[0].mxu0 %v2246
      %v2312 = vpop.f32.mrb[0].mxu0
      %v2313 = vadd.f32 0.0, %v2312
      %v2314 = vpop.f32.mrb[0].mxu0
      %v2315 = vpop.f32.mrb[0].mxu0
      %v2316 = vadd.f32 0.0, %v2315
      %v2317 = vpop.f32.mrb[0].mxu0
      %2318 = vmatprep.mubr.bf16.mxu0 0
      %2319 = vmatmul.mubr.bf16.gmra.mrb[0].mxu0 %v2249
      %v2320 = vpop.f32.mrb[0].mxu0
      %v2321 = vadd.f32 0.0, %v2320
      %v2322 = vpop.f32.mrb[0].mxu0
      %v2323 = vpop.f32.mrb[0].mxu0
      %v2324 = vadd.f32 0.0, %v2323
      %v2325 = vpop.f32.mrb[0].mxu0
      %2326 = vdwg.mxu0
      %v2327 = vadd.f32 %v2195, %v2289
      %v2328 = vadd.f32 %v2196, %v2292
      %v2329 = vadd.f32 %v2197, %v2297
      %v2330 = vadd.f32 %v2198, %v2300
      %v2331 = vadd.f32 %v2199, %v2305
      %v2332 = vadd.f32 %v2200, %v2308
      %v2333 = vadd.f32 %v2201, %v2313
      %v2334 = vadd.f32 %v2202, %v2316
      %v2335 = vadd.f32 %v2203, %v2321
      %v2336 = vadd.f32 %v2204, %v2324
      %s2337 = scalar_lea.vmem %s3, 20
      %v2338 = vld [vmem:[%s2337] sm:$0xf]
      %vm2339 = vcmask 1041408
      %v2340 = vrot.slane %v1746, 6
      %v2341 = vrot.slane %v1747, 6
      %v2342 = vsel %vm2339, %v2340, %v2341
      %v2343 = vrot.slane %v1748, 6
      %v2344 = vsel %vm2339, %v2341, %v2343
      %v2345 = vrot.slane %v1749, 6
      %v2346 = vsel %vm2339, %v2343, %v2345
      %v2347 = vrot.slane %v1750, 6
      %v2348 = vsel %vm2339, %v2345, %v2347
      %v2349 = vrot.slane %v1751, 6
      %v2350 = vsel %vm2339, %v2347, %v2349
      %v2352 = vsel %vm359, %v2342, 0
      %v2355 = vsel %vm359, %v2344, 0
      %v2358 = vsel %vm359, %v2346, 0
      %v2361 = vsel %vm359, %v2348, 0
      %v2364 = vsel %vm359, %v2350, 0
      %v2367 = vsel %vm375, %v2338, 0
      %2369 = vmatprep.subr.bf16.mxu0 0
      %2370 = vmatpush1.bf16.msra.mxu0 %v2367
      %2371 = vmatprep.subr.bf16.mxu0 0
      %2372 = vmatpush1.bf16.msra.mxu0 0
      %2373 = vmatprep.subr.bf16.mxu0 0
      %2374 = vmatpush1.bf16.msra.mxu0 0
      %2375 = vmatprep.subr.bf16.mxu0 0
      %2376 = vmatpush1.bf16.msra.mxu0 0
      %2377 = vmatprep.subr.bf16.mxu0 0
      %2378 = vmatpush1.bf16.msra.mxu0 0
      %2379 = vmatprep.subr.bf16.mxu0 0
      %2380 = vmatpush1.bf16.msra.mxu0 0
      %2381 = vmatprep.subr.bf16.mxu0 0
      %2382 = vmatpush1.bf16.msra.mxu0 0
      %2383 = vmatprep.subr.bf16.mxu0 0
      %2384 = vmatpush1.bf16.msra.mxu0 0
      %2385 = vmatprep.subr.bf16.mxu0 0
      %2386 = vmatpush1.bf16.msra.mxu0 0
      %2387 = vmatprep.subr.bf16.mxu0 0
      %2388 = vmatpush1.bf16.msra.mxu0 0
      %2389 = vmatprep.subr.bf16.mxu0 0
      %2390 = vmatpush1.bf16.msra.mxu0 0
      %2391 = vmatprep.subr.bf16.mxu0 0
      %2392 = vmatpush1.bf16.msra.mxu0 0
      %2393 = vmatprep.subr.bf16.mxu0 0
      %2394 = vmatpush1.bf16.msra.mxu0 0
      %2395 = vmatprep.subr.bf16.mxu0 0
      %2396 = vmatpush1.bf16.msra.mxu0 0
      %2397 = vmatprep.subr.bf16.mxu0 0
      %2398 = vmatpush1.bf16.msra.mxu0 0
      %2399 = vmatprep.subr.bf16.mxu0 0
      %2400 = vmatpush1.bf16.msra.mxu0 0
      %2401 = vmatprep.mubr.bf16.mxu0 0
      %2402 = vmatmul.mubr.bf16.gmra.mrb[0].mxu0 %v2352
      %v2403 = vpop.f32.mrb[0].mxu0
      %v2404 = vadd.f32 0.0, %v2403
      %v2405 = vpop.f32.mrb[0].mxu0
      %v2406 = vpop.f32.mrb[0].mxu0
      %v2407 = vadd.f32 0.0, %v2406
      %v2408 = vpop.f32.mrb[0].mxu0
      %2409 = vmatprep.mubr.bf16.mxu0 0
      %2410 = vmatmul.mubr.bf16.gmra.mrb[0].mxu0 %v2355
      %v2411 = vpop.f32.mrb[0].mxu0
      %v2412 = vadd.f32 0.0, %v2411
      %v2413 = vpop.f32.mrb[0].mxu0
      %v2414 = vpop.f32.mrb[0].mxu0
      %v2415 = vadd.f32 0.0, %v2414
      %v2416 = vpop.f32.mrb[0].mxu0
      %2417 = vmatprep.mubr.bf16.mxu0 0
      %2418 = vmatmul.mubr.bf16.gmra.mrb[0].mxu0 %v2358
      %v2419 = vpop.f32.mrb[0].mxu0
      %v2420 = vadd.f32 0.0, %v2419
      %v2421 = vpop.f32.mrb[0].mxu0
      %v2422 = vpop.f32.mrb[0].mxu0
      %v2423 = vadd.f32 0.0, %v2422
      %v2424 = vpop.f32.mrb[0].mxu0
      %2425 = vmatprep.mubr.bf16.mxu0 0
      %2426 = vmatmul.mubr.bf16.gmra.mrb[0].mxu0 %v2361
      %v2427 = vpop.f32.mrb[0].mxu0
      %v2428 = vadd.f32 0.0, %v2427
      %v2429 = vpop.f32.mrb[0].mxu0
      %v2430 = vpop.f32.mrb[0].mxu0
      %v2431 = vadd.f32 0.0, %v2430
      %v2432 = vpop.f32.mrb[0].mxu0
      %2433 = vmatprep.mubr.bf16.mxu0 0
      %2434 = vmatmul.mubr.bf16.gmra.mrb[0].mxu0 %v2364
      %v2435 = vpop.f32.mrb[0].mxu0
      %v2436 = vadd.f32 0.0, %v2435
      %v2437 = vpop.f32.mrb[0].mxu0
      %v2438 = vpop.f32.mrb[0].mxu0
      %v2439 = vadd.f32 0.0, %v2438
      %v2440 = vpop.f32.mrb[0].mxu0
      %2441 = vdwg.mxu0
      %v2442 = vadd.f32 %v2327, %v2404
      %v2443 = vadd.f32 %v2328, %v2407
      %v2444 = vadd.f32 %v2329, %v2412
      %v2445 = vadd.f32 %v2330, %v2415
      %v2446 = vadd.f32 %v2331, %v2420
      %v2447 = vadd.f32 %v2332, %v2423
      %v2448 = vadd.f32 %v2333, %v2428
      %v2449 = vadd.f32 %v2334, %v2431
      %v2450 = vadd.f32 %v2335, %v2436
      %v2451 = vadd.f32 %v2336, %v2439
      %s2452 = scalar_lea.vmem %s3, 24
      %v2453 = vld [vmem:[%s2452] sm:$0xf]
      %v2455 = vrot.slane %v1747, 2
      %v2456 = vrot.slane %v1748, 2
      %v2457 = vsel %vm1004, %v2455, %v2456
      %v2458 = vrot.slane %v1749, 2
      %v2459 = vsel %vm1004, %v2456, %v2458
      %v2460 = vrot.slane %v1750, 2
      %v2461 = vsel %vm1004, %v2458, %v2460
      %v2462 = vrot.slane %v1751, 2
      %v2463 = vsel %vm1004, %v2460, %v2462
      %v2464 = vrot.slane %v1752, 2
      %v2465 = vsel %vm1004, %v2462, %v2464
      %v2467 = vsel %vm359, %v2457, 0
      %v2470 = vsel %vm359, %v2459, 0
      %v2473 = vsel %vm359, %v2461, 0
      %v2476 = vsel %vm359, %v2463, 0
      %v2479 = vsel %vm359, %v2465, 0
      %v2482 = vsel %vm375, %v2453, 0
      %2484 = vmatprep.subr.bf16.mxu0 0
      %2485 = vmatpush1.bf16.msra.mxu0 %v2482
      %2486 = vmatprep.subr.bf16.mxu0 0
      %2487 = vmatpush1.bf16.msra.mxu0 0
      %2488 = vmatprep.subr.bf16.mxu0 0
      %2489 = vmatpush1.bf16.msra.mxu0 0
      %2490 = vmatprep.subr.bf16.mxu0 0
      %2491 = vmatpush1.bf16.msra.mxu0 0
      %2492 = vmatprep.subr.bf16.mxu0 0
      %2493 = vmatpush1.bf16.msra.mxu0 0
      %2494 = vmatprep.subr.bf16.mxu0 0
      %2495 = vmatpush1.bf16.msra.mxu0 0
      %2496 = vmatprep.subr.bf16.mxu0 0
      %2497 = vmatpush1.bf16.msra.mxu0 0
      %2498 = vmatprep.subr.bf16.mxu0 0
      %2499 = vmatpush1.bf16.msra.mxu0 0
      %2500 = vmatprep.subr.bf16.mxu0 0
      %2501 = vmatpush1.bf16.msra.mxu0 0
      %2502 = vmatprep.subr.bf16.mxu0 0
      %2503 = vmatpush1.bf16.msra.mxu0 0
      %2504 = vmatprep.subr.bf16.mxu0 0
      %2505 = vmatpush1.bf16.msra.mxu0 0
      %2506 = vmatprep.subr.bf16.mxu0 0
      %2507 = vmatpush1.bf16.msra.mxu0 0
      %2508 = vmatprep.subr.bf16.mxu0 0
      %2509 = vmatpush1.bf16.msra.mxu0 0
      %2510 = vmatprep.subr.bf16.mxu0 0
      %2511 = vmatpush1.bf16.msra.mxu0 0
      %2512 = vmatprep.subr.bf16.mxu0 0
      %2513 = vmatpush1.bf16.msra.mxu0 0
      %2514 = vmatprep.subr.bf16.mxu0 0
      %2515 = vmatpush1.bf16.msra.mxu0 0
      %2516 = vmatprep.mubr.bf16.mxu0 0
      %2517 = vmatmul.mubr.bf16.gmra.mrb[0].mxu0 %v2467
      %v2518 = vpop.f32.mrb[0].mxu0
      %v2519 = vadd.f32 0.0, %v2518
      %v2520 = vpop.f32.mrb[0].mxu0
      %v2521 = vpop.f32.mrb[0].mxu0
      %v2522 = vadd.f32 0.0, %v2521
      %v2523 = vpop.f32.mrb[0].mxu0
      %2524 = vmatprep.mubr.bf16.mxu0 0
      %2525 = vmatmul.mubr.bf16.gmra.mrb[0].mxu0 %v2470
      %v2526 = vpop.f32.mrb[0].mxu0
      %v2527 = vadd.f32 0.0, %v2526
      %v2528 = vpop.f32.mrb[0].mxu0
      %v2529 = vpop.f32.mrb[0].mxu0
      %v2530 = vadd.f32 0.0, %v2529
      %v2531 = vpop.f32.mrb[0].mxu0
      %2532 = vmatprep.mubr.bf16.mxu0 0
      %2533 = vmatmul.mubr.bf16.gmra.mrb[0].mxu0 %v2473
      %v2534 = vpop.f32.mrb[0].mxu0
      %v2535 = vadd.f32 0.0, %v2534
      %v2536 = vpop.f32.mrb[0].mxu0
      %v2537 = vpop.f32.mrb[0].mxu0
      %v2538 = vadd.f32 0.0, %v2537
      %v2539 = vpop.f32.mrb[0].mxu0
      %2540 = vmatprep.mubr.bf16.mxu0 0
      %2541 = vmatmul.mubr.bf16.gmra.mrb[0].mxu0 %v2476
      %v2542 = vpop.f32.mrb[0].mxu0
      %v2543 = vadd.f32 0.0, %v2542
      %v2544 = vpop.f32.mrb[0].mxu0
      %v2545 = vpop.f32.mrb[0].mxu0
      %v2546 = vadd.f32 0.0, %v2545
      %v2547 = vpop.f32.mrb[0].mxu0
      %2548 = vmatprep.mubr.bf16.mxu0 0
      %2549 = vmatmul.mubr.bf16.gmra.mrb[0].mxu0 %v2479
      %v2550 = vpop.f32.mrb[0].mxu0
      %v2551 = vadd.f32 0.0, %v2550
      %v2552 = vpop.f32.mrb[0].mxu0
      %v2553 = vpop.f32.mrb[0].mxu0
      %v2554 = vadd.f32 0.0, %v2553
      %v2555 = vpop.f32.mrb[0].mxu0
      %2556 = vdwg.mxu0
      %v2557 = vadd.f32 %v2442, %v2519
      %v2558 = vadd.f32 %v2443, %v2522
      %v2559 = vadd.f32 %v2444, %v2527
      %v2560 = vadd.f32 %v2445, %v2530
      %v2561 = vadd.f32 %v2446, %v2535
      %v2562 = vadd.f32 %v2447, %v2538
      %v2563 = vadd.f32 %v2448, %v2543
      %v2564 = vadd.f32 %v2449, %v2546
      %v2565 = vadd.f32 %v2450, %v2551
      %v2566 = vadd.f32 %v2451, %v2554
      %s2567 = scalar_lea.vmem %s3, 28
      %v2568 = vld [vmem:[%s2567] sm:$0xf]
      %v2569 = vrot.slane %v1768, 2
      %v2570 = vrot.slane %v1764, 3
      %v2571 = vor.u32 %v2569, %v2570
      %v2572 = vrot.slane %v1776, 2
      %v2573 = vrot.slane %v1772, 3
      %v2574 = vor.u32 %v2572, %v2573
      %v2575 = vsel %vm1276, %v2571, %v2574
      %v2576 = vrot.slane %v1784, 2
      %v2577 = vrot.slane %v1780, 3
      %v2578 = vor.u32 %v2576, %v2577
      %v2579 = vsel %vm1276, %v2574, %v2578
      %v2580 = vrot.slane %v1792, 2
      %v2581 = vrot.slane %v1788, 3
      %v2582 = vor.u32 %v2580, %v2581
      %v2583 = vsel %vm1276, %v2578, %v2582
      %v2584 = vrot.slane %v2228, 2
      %v2585 = vrot.slane %v2231, 3
      %v2586 = vor.u32 %v2584, %v2585
      %v2587 = vsel %vm1276, %v2582, %v2586
      %v2589 = vshrl.u32 %v1752, 16
      %v2591 = vrot.slane %v2589, 2
      %v2592 = vshll.u32 %v1752, 16
      %v2594 = vrot.slane %v2592, 3
      %v2595 = vor.u32 %v2591, %v2594
      %v2596 = vsel %vm1276, %v2586, %v2595
      %v2598 = vsel %vm359, %v2575, 0
      %v2601 = vsel %vm359, %v2579, 0
      %v2604 = vsel %vm359, %v2583, 0
      %v2607 = vsel %vm359, %v2587, 0
      %v2610 = vsel %vm359, %v2596, 0
      %v2613 = vsel %vm375, %v2568, 0
      %2615 = vmatprep.subr.bf16.mxu0 0
      %2616 = vmatpush1.bf16.msra.mxu0 %v2613
      %2617 = vmatprep.subr.bf16.mxu0 0
      %2618 = vmatpush1.bf16.msra.mxu0 0
      %2619 = vmatprep.subr.bf16.mxu0 0
      %2620 = vmatpush1.bf16.msra.mxu0 0
      %2621 = vmatprep.subr.bf16.mxu0 0
      %2622 = vmatpush1.bf16.msra.mxu0 0
      %2623 = vmatprep.subr.bf16.mxu0 0
      %2624 = vmatpush1.bf16.msra.mxu0 0
      %2625 = vmatprep.subr.bf16.mxu0 0
      %2626 = vmatpush1.bf16.msra.mxu0 0
      %2627 = vmatprep.subr.bf16.mxu0 0
      %2628 = vmatpush1.bf16.msra.mxu0 0
      %2629 = vmatprep.subr.bf16.mxu0 0
      %2630 = vmatpush1.bf16.msra.mxu0 0
      %2631 = vmatprep.subr.bf16.mxu0 0
      %2632 = vmatpush1.bf16.msra.mxu0 0
      %2633 = vmatprep.subr.bf16.mxu0 0
      %2634 = vmatpush1.bf16.msra.mxu0 0
      %2635 = vmatprep.subr.bf16.mxu0 0
      %2636 = vmatpush1.bf16.msra.mxu0 0
      %2637 = vmatprep.subr.bf16.mxu0 0
      %2638 = vmatpush1.bf16.msra.mxu0 0
      %2639 = vmatprep.subr.bf16.mxu0 0
      %2640 = vmatpush1.bf16.msra.mxu0 0
      %2641 = vmatprep.subr.bf16.mxu0 0
      %2642 = vmatpush1.bf16.msra.mxu0 0
      %2643 = vmatprep.subr.bf16.mxu0 0
      %2644 = vmatpush1.bf16.msra.mxu0 0
      %2645 = vmatprep.subr.bf16.mxu0 0
      %2646 = vmatpush1.bf16.msra.mxu0 0
      %2647 = vmatprep.mubr.bf16.mxu0 0
      %2648 = vmatmul.mubr.bf16.gmra.mrb[0].mxu0 %v2598
      %v2649 = vpop.f32.mrb[0].mxu0
      %v2650 = vadd.f32 0.0, %v2649
      %v2651 = vpop.f32.mrb[0].mxu0
      %v2652 = vpop.f32.mrb[0].mxu0
      %v2653 = vadd.f32 0.0, %v2652
      %v2654 = vpop.f32.mrb[0].mxu0
      %2655 = vmatprep.mubr.bf16.mxu0 0
      %2656 = vmatmul.mubr.bf16.gmra.mrb[0].mxu0 %v2601
      %v2657 = vpop.f32.mrb[0].mxu0
      %v2658 = vadd.f32 0.0, %v2657
      %v2659 = vpop.f32.mrb[0].mxu0
      %v2660 = vpop.f32.mrb[0].mxu0
      %v2661 = vadd.f32 0.0, %v2660
      %v2662 = vpop.f32.mrb[0].mxu0
      %2663 = vmatprep.mubr.bf16.mxu0 0
      %2664 = vmatmul.mubr.bf16.gmra.mrb[0].mxu0 %v2604
      %v2665 = vpop.f32.mrb[0].mxu0
      %v2666 = vadd.f32 0.0, %v2665
      %v2667 = vpop.f32.mrb[0].mxu0
      %v2668 = vpop.f32.mrb[0].mxu0
      %v2669 = vadd.f32 0.0, %v2668
      %v2670 = vpop.f32.mrb[0].mxu0
      %2671 = vmatprep.mubr.bf16.mxu0 0
      %2672 = vmatmul.mubr.bf16.gmra.mrb[0].mxu0 %v2607
      %v2673 = vpop.f32.mrb[0].mxu0
      %v2674 = vadd.f32 0.0, %v2673
      %v2675 = vpop.f32.mrb[0].mxu0
      %v2676 = vpop.f32.mrb[0].mxu0
      %v2677 = vadd.f32 0.0, %v2676
      %v2678 = vpop.f32.mrb[0].mxu0
      %2679 = vmatprep.mubr.bf16.mxu0 0
      %2680 = vmatmul.mubr.bf16.gmra.mrb[0].mxu0 %v2610
      %v2681 = vpop.f32.mrb[0].mxu0
      %v2682 = vadd.f32 0.0, %v2681
      %v2683 = vpop.f32.mrb[0].mxu0
      %v2684 = vpop.f32.mrb[0].mxu0
      %v2685 = vadd.f32 0.0, %v2684
      %v2686 = vpop.f32.mrb[0].mxu0
      %2687 = vdwg.mxu0
      %v2688 = vadd.f32 %v2557, %v2650
      %v2689 = vadd.f32 %v2558, %v2653
      %v2690 = vadd.f32 %v2559, %v2658
      %v2691 = vadd.f32 %v2560, %v2661
      %v2692 = vadd.f32 %v2561, %v2666
      %v2693 = vadd.f32 %v2562, %v2669
      %v2694 = vadd.f32 %v2563, %v2674
      %v2695 = vadd.f32 %v2564, %v2677
      %v2696 = vadd.f32 %v2565, %v2682
      %v2697 = vadd.f32 %v2566, %v2685
      %s2698 = scalar_lea.vmem %s3, 32
      %v2699 = vld [vmem:[%s2698] sm:$0xf]
      %v2700 = vrot.slane %v1747, 3
      %v2701 = vrot.slane %v1748, 3
      %v2702 = vsel %vm1437, %v2700, %v2701
      %v2703 = vrot.slane %v1749, 3
      %v2704 = vsel %vm1437, %v2701, %v2703
      %v2705 = vrot.slane %v1750, 3
      %v2706 = vsel %vm1437, %v2703, %v2705
      %v2707 = vrot.slane %v1751, 3
      %v2708 = vsel %vm1437, %v2705, %v2707
      %v2709 = vrot.slane %v1752, 3
      %v2710 = vsel %vm1437, %v2707, %v2709
      %v2712 = vsel %vm359, %v2702, 0
      %v2715 = vsel %vm359, %v2704, 0
      %v2718 = vsel %vm359, %v2706, 0
      %v2721 = vsel %vm359, %v2708, 0
      %v2724 = vsel %vm359, %v2710, 0
      %v2727 = vsel %vm375, %v2699, 0
      %2729 = vmatprep.subr.bf16.mxu0 0
      %2730 = vmatpush1.bf16.msra.mxu0 %v2727
      %2731 = vmatprep.subr.bf16.mxu0 0
      %2732 = vmatpush1.bf16.msra.mxu0 0
      %2733 = vmatprep.subr.bf16.mxu0 0
      %2734 = vmatpush1.bf16.msra.mxu0 0
      %2735 = vmatprep.subr.bf16.mxu0 0
      %2736 = vmatpush1.bf16.msra.mxu0 0
      %2737 = vmatprep.subr.bf16.mxu0 0
      %2738 = vmatpush1.bf16.msra.mxu0 0
      %2739 = vmatprep.subr.bf16.mxu0 0
      %2740 = vmatpush1.bf16.msra.mxu0 0
      %2741 = vmatprep.subr.bf16.mxu0 0
      %2742 = vmatpush1.bf16.msra.mxu0 0
      %2743 = vmatprep.subr.bf16.mxu0 0
      %2744 = vmatpush1.bf16.msra.mxu0 0
      %2745 = vmatprep.subr.bf16.mxu0 0
      %2746 = vmatpush1.bf16.msra.mxu0 0
      %2747 = vmatprep.subr.bf16.mxu0 0
      %2748 = vmatpush1.bf16.msra.mxu0 0
      %2749 = vmatprep.subr.bf16.mxu0 0
      %2750 = vmatpush1.bf16.msra.mxu0 0
      %2751 = vmatprep.subr.bf16.mxu0 0
      %2752 = vmatpush1.bf16.msra.mxu0 0
      %2753 = vmatprep.subr.bf16.mxu0 0
      %2754 = vmatpush1.bf16.msra.mxu0 0
      %2755 = vmatprep.subr.bf16.mxu0 0
      %2756 = vmatpush1.bf16.msra.mxu0 0
      %2757 = vmatprep.subr.bf16.mxu0 0
      %2758 = vmatpush1.bf16.msra.mxu0 0
      %2759 = vmatprep.subr.bf16.mxu0 0
      %2760 = vmatpush1.bf16.msra.mxu0 0
      %2761 = vmatprep.mubr.bf16.mxu0 0
      %2762 = vmatmul.mubr.bf16.gmra.mrb[0].mxu0 %v2712
      %v2763 = vpop.f32.mrb[0].mxu0
      %v2764 = vadd.f32 0.0, %v2763
      %v2765 = vpop.f32.mrb[0].mxu0
      %v2766 = vpop.f32.mrb[0].mxu0
      %v2767 = vadd.f32 0.0, %v2766
      %v2768 = vpop.f32.mrb[0].mxu0
      %2769 = vmatprep.mubr.bf16.mxu0 0
      %2770 = vmatmul.mubr.bf16.gmra.mrb[0].mxu0 %v2715
      %v2771 = vpop.f32.mrb[0].mxu0
      %v2772 = vadd.f32 0.0, %v2771
      %v2773 = vpop.f32.mrb[0].mxu0
      %v2774 = vpop.f32.mrb[0].mxu0
      %v2775 = vadd.f32 0.0, %v2774
      %v2776 = vpop.f32.mrb[0].mxu0
      %2777 = vmatprep.mubr.bf16.mxu0 0
      %2778 = vmatmul.mubr.bf16.gmra.mrb[0].mxu0 %v2718
      %v2779 = vpop.f32.mrb[0].mxu0
      %v2780 = vadd.f32 0.0, %v2779
      %v2781 = vpop.f32.mrb[0].mxu0
      %v2782 = vpop.f32.mrb[0].mxu0
      %v2783 = vadd.f32 0.0, %v2782
      %v2784 = vpop.f32.mrb[0].mxu0
      %2785 = vmatprep.mubr.bf16.mxu0 0
      %2786 = vmatmul.mubr.bf16.gmra.mrb[0].mxu0 %v2721
      %v2787 = vpop.f32.mrb[0].mxu0
      %v2788 = vadd.f32 0.0, %v2787
      %v2789 = vpop.f32.mrb[0].mxu0
      %v2790 = vpop.f32.mrb[0].mxu0
      %v2791 = vadd.f32 0.0, %v2790
      %v2792 = vpop.f32.mrb[0].mxu0
      %2793 = vmatprep.mubr.bf16.mxu0 0
      %2794 = vmatmul.mubr.bf16.gmra.mrb[0].mxu0 %v2724
      %v2795 = vpop.f32.mrb[0].mxu0
      %v2796 = vadd.f32 0.0, %v2795
      %v2797 = vpop.f32.mrb[0].mxu0
      %v2798 = vpop.f32.mrb[0].mxu0
      %v2799 = vadd.f32 0.0, %v2798
      %v2800 = vpop.f32.mrb[0].mxu0
      %2801 = vdwg.mxu0
      %v2802 = vadd.f32 %v2688, %v2764
      %v2803 = vadd.f32 %v2689, %v2767
      %v2804 = vadd.f32 %v2690, %v2772
      %v2805 = vadd.f32 %v2691, %v2775
      %v2806 = vadd.f32 %v2692, %v2780
      %v2807 = vadd.f32 %v2693, %v2783
      %v2808 = vadd.f32 %v2694, %v2788
      %v2809 = vadd.f32 %v2695, %v2791
      %v2810 = vadd.f32 %v2696, %v2796
      %v2811 = vadd.f32 %v2697, %v2799
      %v2812 = vld [vmem:[%s4] sm:$0x1]
      %v2814 = vlaneseq
      %v2815 = vshrl.u32 %v2814, 7
      %v2816 = vsub.s32 0, %v2815
      %v2817 = vrot.slane %v2812, %v2816
      %v2819 = vadd.f32 %v2802, %v2817
      %v2820 = vadd.f32 %v2803, %v2817
      %v2821 = vadd.f32 %v2804, %v2817
      %v2822 = vadd.f32 %v2805, %v2817
      %v2823 = vadd.f32 %v2806, %v2817
      %v2824 = vadd.f32 %v2807, %v2817
      %v2825 = vadd.f32 %v2808, %v2817
      %v2826 = vadd.f32 %v2809, %v2817
      %v2827 = vadd.f32 %v2810, %v2817
      %v2828 = vadd.f32 %v2811, %v2817
      %v2829 = vpack.c.bf16 %v2820, %v2819
      %v2830 = vpack.c.bf16 %v2822, %v2821
      %v2831 = vpack.c.bf16 %v2824, %v2823
      %v2832 = vpack.c.bf16 %v2826, %v2825
      %v2833 = vpack.c.bf16 %v2828, %v2827
      %v2834 = vld [vmem:[%s6] sm:$0xf]
      %v2835 = vld [vmem:[%s6 + $0x4] sm:$0xf]
      %v2836 = vld [vmem:[%s6 + $0x8] sm:$0xf]
      %v2837 = vld [vmem:[%s6 + $0xc] sm:$0xf]
      %v2838 = vld [vmem:[%s6 + $0x10] sm:$0xf]
      %v2839 = vld [vmem:[%s6 + $0x14] sm:$0xf]
      %v2840 = vld [vmem:[%s6 + $0x18] sm:$0xf]
      %v2841 = vld [vmem:[%s6 + $0x1c] sm:$0xf]
      %v2842 = vld [vmem:[%s6 + $0x20] sm:$0xf]
      %v2843 = vld [vmem:[%s6 + $0x24] sm:$0xf]
      %v2844 = vld [vmem:[%s6 + $0x28] sm:$0xf]
      %v2845 = vld [vmem:[%s6 + $0x2c] sm:$0xf]
      %v2846 = vld [vmem:[%s6 + $0x30] sm:$0xf]
      %v2847 = vld [vmem:[%s6 + $0x34] sm:$0xf]
      %v2848 = vld [vmem:[%s273] sm:$0xf]
      %v2849 = vld [vmem:[%s273 + $0x4] sm:$0xf]
      %v2850 = vld [vmem:[%s273 + $0x8] sm:$0xf]
      %v2851 = vld [vmem:[%s273 + $0xc] sm:$0xf]
      %v2852 = vld [vmem:[%s273 + $0x10] sm:$0xf]
      %v2853 = vld [vmem:[%s273 + $0x14] sm:$0xf]
      %v2854 = vld [vmem:[%s273 + $0x18] sm:$0xf]
      %v2855 = vld [vmem:[%s273 + $0x1c] sm:$0xf]
      %v2856 = vld [vmem:[%s273 + $0x20] sm:$0xf]
      %v2857 = vld [vmem:[%s273 + $0x24] sm:$0xf]
      %v2858 = vld [vmem:[%s273 + $0x28] sm:$0xf]
      %v2859 = vld [vmem:[%s273 + $0x2c] sm:$0xf]
      %v2860 = vld [vmem:[%s273 + $0x30] sm:$0xf]
      %v2861 = vld [vmem:[%s273 + $0x34] sm:$0xf]
      %v2862 = vunpack.c.l.bf16 %v2848
      %v2863 = vunpack.c.l.bf16 %v2849
      %v2864 = vunpack.c.l.bf16 %v2850
      %v2865 = vunpack.c.l.bf16 %v2851
      %v2866 = vunpack.c.l.bf16 %v2852
      %v2867 = vunpack.c.l.bf16 %v2853
      %v2868 = vunpack.c.l.bf16 %v2854
      %v2869 = vunpack.c.l.bf16 %v2855
      %v2870 = vunpack.c.l.bf16 %v2856
      %v2871 = vunpack.c.l.bf16 %v2857
      %v2872 = vunpack.c.l.bf16 %v2858
      %v2873 = vunpack.c.l.bf16 %v2859
      %v2874 = vunpack.c.l.bf16 %v2860
      %v2875 = vunpack.c.l.bf16 %v2861
      %v2890 = vunpack.c.l.b16 %v2834
      %v2891 = vunpack.c.l.b16 %v2835
      %v2892 = vunpack.c.l.b16 %v2836
      %v2893 = vunpack.c.l.b16 %v2837
      %v2894 = vunpack.c.l.b16 %v2838
      %v2895 = vunpack.c.l.b16 %v2839
      %v2896 = vunpack.c.l.b16 %v2840
      %v2897 = vunpack.c.l.b16 %v2841
      %v2898 = vunpack.c.l.b16 %v2842
      %v2899 = vunpack.c.l.b16 %v2843
      %v2900 = vunpack.c.l.b16 %v2844
      %v2901 = vunpack.c.l.b16 %v2845
      %v2902 = vunpack.c.l.b16 %v2846
      %v2903 = vunpack.c.l.b16 %v2847
      %v2904 = vpack.c.b16 %v2891, %v2890
      %v2905 = vpack.c.b16 %v2893, %v2892
      %v2906 = vpack.c.b16 %v2895, %v2894
      %v2907 = vpack.c.b16 %v2897, %v2896
      %v2908 = vpack.c.b16 %v2899, %v2898
      %v2909 = vpack.c.b16 %v2901, %v2900
      %v2910 = vpack.c.b16 %v2903, %v2902
      %v2912 = vsel %vm1631, %v2904, 0
      %v2915 = vsel %vm1631, %v2905, 0
      %v2918 = vsel %vm1631, %v2906, 0
      %v2921 = vsel %vm1631, %v2907, 0
      %v2924 = vsel %vm1631, %v2908, 0
      %v2927 = vsel %vm1631, %v2909, 0
      %v2930 = vsel %vm1631, %v2910, 0
      %v2933 = vsel %vm1653, %v2833, 0
      %2935 = vmatprep.subr.bf16.mxu0 0
      %2936 = vmatpush1.bf16.msra.mxu0 %v2829
      %2937 = vmatprep.subr.bf16.mxu0 0
      %2938 = vmatpush1.bf16.msra.mxu0 %v2830
      %2939 = vmatprep.subr.bf16.mxu0 0
      %2940 = vmatpush1.bf16.msra.mxu0 %v2831
      %2941 = vmatprep.subr.bf16.mxu0 0
      %2942 = vmatpush1.bf16.msra.mxu0 %v2832
      %2943 = vmatprep.subr.bf16.mxu0 0
      %2944 = vmatpush1.bf16.msra.mxu0 %v2933
      %2945 = vmatprep.subr.bf16.mxu0 0
      %2946 = vmatpush1.bf16.msra.mxu0 0
      %2947 = vmatprep.subr.bf16.mxu0 0
      %2948 = vmatpush1.bf16.msra.mxu0 0
      %2949 = vmatprep.subr.bf16.mxu0 0
      %2950 = vmatpush1.bf16.msra.mxu0 0
      %2951 = vmatprep.subr.bf16.mxu0 0
      %2952 = vmatpush1.bf16.msra.mxu0 0
      %2953 = vmatprep.subr.bf16.mxu0 0
      %2954 = vmatpush1.bf16.msra.mxu0 0
      %2955 = vmatprep.subr.bf16.mxu0 0
      %2956 = vmatpush1.bf16.msra.mxu0 0
      %2957 = vmatprep.subr.bf16.mxu0 0
      %2958 = vmatpush1.bf16.msra.mxu0 0
      %2959 = vmatprep.subr.bf16.mxu0 0
      %2960 = vmatpush1.bf16.msra.mxu0 0
      %2961 = vmatprep.subr.bf16.mxu0 0
      %2962 = vmatpush1.bf16.msra.mxu0 0
      %2963 = vmatprep.subr.bf16.mxu0 0
      %2964 = vmatpush1.bf16.msra.mxu0 0
      %2965 = vmatprep.subr.bf16.mxu0 0
      %2966 = vmatpush1.bf16.msra.mxu0 0
      %2967 = vmatprep.mubr.bf16.mxu0 0
      %2968 = vmatmul.mubr.bf16.gmra.mrb[0].mxu0 %v2912
      %v2969 = vpop.f32.mrb[0].mxu0
      %v2970 = vadd.f32 %v2862, %v2969
      %v2971 = vpop.f32.mrb[0].mxu0
      %v2972 = vpop.f32.mrb[0].mxu0
      %v2973 = vadd.f32 %v2863, %v2972
      %v2974 = vpop.f32.mrb[0].mxu0
      %2975 = vmatprep.mubr.bf16.mxu0 0
      %2976 = vmatmul.mubr.bf16.gmra.mrb[0].mxu0 %v2915
      %v2977 = vpop.f32.mrb[0].mxu0
      %v2978 = vadd.f32 %v2864, %v2977
      %v2979 = vpop.f32.mrb[0].mxu0
      %v2980 = vpop.f32.mrb[0].mxu0
      %v2981 = vadd.f32 %v2865, %v2980
      %v2982 = vpop.f32.mrb[0].mxu0
      %2983 = vmatprep.mubr.bf16.mxu0 0
      %2984 = vmatmul.mubr.bf16.gmra.mrb[0].mxu0 %v2918
      %v2985 = vpop.f32.mrb[0].mxu0
      %v2986 = vadd.f32 %v2866, %v2985
      %v2987 = vpop.f32.mrb[0].mxu0
      %v2988 = vpop.f32.mrb[0].mxu0
      %v2989 = vadd.f32 %v2867, %v2988
      %v2990 = vpop.f32.mrb[0].mxu0
      %2991 = vmatprep.mubr.bf16.mxu0 0
      %2992 = vmatmul.mubr.bf16.gmra.mrb[0].mxu0 %v2921
      %v2993 = vpop.f32.mrb[0].mxu0
      %v2994 = vadd.f32 %v2868, %v2993
      %v2995 = vpop.f32.mrb[0].mxu0
      %v2996 = vpop.f32.mrb[0].mxu0
      %v2997 = vadd.f32 %v2869, %v2996
      %v2998 = vpop.f32.mrb[0].mxu0
      %2999 = vmatprep.mubr.bf16.mxu0 0
      %3000 = vmatmul.mubr.bf16.gmra.mrb[0].mxu0 %v2924
      %v3001 = vpop.f32.mrb[0].mxu0
      %v3002 = vadd.f32 %v2870, %v3001
      %v3003 = vpop.f32.mrb[0].mxu0
      %v3004 = vpop.f32.mrb[0].mxu0
      %v3005 = vadd.f32 %v2871, %v3004
      %v3006 = vpop.f32.mrb[0].mxu0
      %3007 = vmatprep.mubr.bf16.mxu0 0
      %3008 = vmatmul.mubr.bf16.gmra.mrb[0].mxu0 %v2927
      %v3009 = vpop.f32.mrb[0].mxu0
      %v3010 = vadd.f32 %v2872, %v3009
      %v3011 = vpop.f32.mrb[0].mxu0
      %v3012 = vpop.f32.mrb[0].mxu0
      %v3013 = vadd.f32 %v2873, %v3012
      %v3014 = vpop.f32.mrb[0].mxu0
      %3015 = vmatprep.mubr.bf16.mxu0 0
      %3016 = vmatmul.mubr.bf16.gmra.mrb[0].mxu0 %v2930
      %v3017 = vpop.f32.mrb[0].mxu0
      %v3018 = vadd.f32 %v2874, %v3017
      %v3019 = vpop.f32.mrb[0].mxu0
      %v3020 = vpop.f32.mrb[0].mxu0
      %v3021 = vadd.f32 %v2875, %v3020
      %v3022 = vpop.f32.mrb[0].mxu0
      %3023 = vdwg.mxu0
      %v3024 = vmax.f32 %v2970, 0.0
      %v3025 = vmax.f32 %v2973, 0.0
      %v3026 = vmax.f32 %v2978, 0.0
      %v3027 = vmax.f32 %v2981, 0.0
      %v3028 = vmax.f32 %v2986, 0.0
      %v3029 = vmax.f32 %v2989, 0.0
      %v3030 = vmax.f32 %v2994, 0.0
      %v3031 = vmax.f32 %v2997, 0.0
      %v3032 = vmax.f32 %v3002, 0.0
      %v3033 = vmax.f32 %v3005, 0.0
      %v3034 = vmax.f32 %v3010, 0.0
      %v3035 = vmax.f32 %v3013, 0.0
      %v3036 = vmax.f32 %v3018, 0.0
      %v3037 = vmax.f32 %v3021, 0.0
      %v3038 = vpack.c.bf16 %v3025, %v3024
      %v3039 = vpack.c.bf16 %v3027, %v3026
      %v3040 = vpack.c.bf16 %v3029, %v3028
      %v3041 = vpack.c.bf16 %v3031, %v3030
      %v3042 = vpack.c.bf16 %v3033, %v3032
      %v3043 = vpack.c.bf16 %v3035, %v3034
      %v3044 = vpack.c.bf16 %v3037, %v3036
      %v3052 = vunpack.c.l.b16 %v3038
      %v3053 = vunpack.c.h.b16 %v3038
      %v3054 = vunpack.c.l.b16 %v3039
      %v3055 = vunpack.c.h.b16 %v3039
      %v3056 = vunpack.c.l.b16 %v3040
      %v3057 = vunpack.c.h.b16 %v3040
      %v3058 = vunpack.c.l.b16 %v3041
      %v3059 = vunpack.c.h.b16 %v3041
      %v3060 = vunpack.c.l.b16 %v3042
      %v3061 = vunpack.c.h.b16 %v3042
      %v3062 = vunpack.c.l.b16 %v3043
      %v3063 = vunpack.c.h.b16 %v3043
      %v3064 = vunpack.c.l.b16 %v3044
      %v3065 = vunpack.c.h.b16 %v3044
      %v3066 = vpack.c.b16 %v3052, %v3052
      %v3067 = vpack.c.b16 %v3053, %v3053
      %v3068 = vpack.c.b16 %v3054, %v3054
      %v3069 = vpack.c.b16 %v3055, %v3055
      %v3070 = vpack.c.b16 %v3056, %v3056
      %v3071 = vpack.c.b16 %v3057, %v3057
      %v3072 = vpack.c.b16 %v3058, %v3058
      %v3073 = vpack.c.b16 %v3059, %v3059
      %v3074 = vpack.c.b16 %v3060, %v3060
      %v3075 = vpack.c.b16 %v3061, %v3061
      %v3076 = vpack.c.b16 %v3062, %v3062
      %v3077 = vpack.c.b16 %v3063, %v3063
      %v3078 = vpack.c.b16 %v3064, %v3064
      %v3079 = vpack.c.b16 %v3065, %v3065
      %vm3094 = vcmask 60416
      %3095 = vst.msk [vmem:[%s278] sm:$0xf] %vm3094, %v3066
      %3096 = vst.msk [vmem:[%s278 + $0x4] sm:$0xf] %vm3094, %v3067
      %3097 = vst.msk [vmem:[%s278 + $0x8] sm:$0xf] %vm3094, %v3068
      %3098 = vst.msk [vmem:[%s278 + $0xc] sm:$0xf] %vm3094, %v3069
      %3099 = vst.msk [vmem:[%s278 + $0x10] sm:$0xf] %vm3094, %v3070
      %3100 = vst.msk [vmem:[%s278 + $0x14] sm:$0xf] %vm3094, %v3071
      %3101 = vst.msk [vmem:[%s278 + $0x18] sm:$0xf] %vm3094, %v3072
      %3102 = vst.msk [vmem:[%s278 + $0x1c] sm:$0xf] %vm3094, %v3073
      %3103 = vst.msk [vmem:[%s278 + $0x20] sm:$0xf] %vm3094, %v3074
      %3104 = vst.msk [vmem:[%s278 + $0x24] sm:$0xf] %vm3094, %v3075
      %3105 = vst.msk [vmem:[%s278 + $0x28] sm:$0xf] %vm3094, %v3076
      %3106 = vst.msk [vmem:[%s278 + $0x2c] sm:$0xf] %vm3094, %v3077
      %3107 = vst.msk [vmem:[%s278 + $0x30] sm:$0xf] %vm3094, %v3078
      %3108 = vst.msk [vmem:[%s278 + $0x34] sm:$0xf] %vm3094, %v3079
      %p3109 = scmp.lt.s32.totalorder %s18, 1
      %s3110 = scalar_select %p3109, %s18, 1
      %s3111 = smul.addr %s3110, 14
      %s3112 = smul.addr %s3111, 4
      %s3113 = scalar_lea.vmem %s7, %s3112
      // Predicated region
      $region49: #{_lambda_.6} parent=47 // pred_check
        %p3114 = pneg %p188
      $region50: #{_lambda_.6} parent=47 // pred_check_branch
        %3116 = sbr.rel (%p3114) target = $region52
      $region51: #{_lambda_.6} parent=47 // pred_region
        _
      $region52: #{_lambda_.6} parent=47 // pred_fallthru
        _
    $region48: #{_lambda_.6} parent=5 // pred_fallthru
      _
    %p3117 = scmp.le.s32.totalorder 2, %s13
    // Predicated region
    $region53: #{_lambda_.6} parent=5 // pred_check
      %p3118 = pneg %p3117
    $region54: #{_lambda_.6} parent=5 // pred_check_branch
      %3120 = sbr.rel (%p3118) target = $region56
    $region55: #{_lambda_.6} parent=5 // pred_region
      %s3121 = ssub.s32 %s13, 2
      // Predicated region
      $region57: #{_lambda_.6} parent=55 // pred_check
        %p3122 = pneg %p194
      $region58: #{_lambda_.6} parent=55 // pred_check_branch
        %3124 = sbr.rel (%p3122) target = $region60
      $region59: #{_lambda_.6} parent=55 // pred_region
        %p3125 = scmp.lt.s32.totalorder %s19, 1
        %s3126 = scalar_select %p3125, %s19, 1
        %s3127 = smul.addr %s3126, 14
        %s3128 = smul.addr %s3127, 4
        %s3129 = scalar_lea.vmem %s7, %s3128
      $region60: #{_lambda_.6} parent=55 // pred_fallthru
        _
    $region56: #{_lambda_.6} parent=5 // pred_fallthru
      _
  $region6: #{_lambda_.6} parent=0 // loop_footer
    %s17 = sadd.s32 1, %s13
  $region7: #{_lambda_.6} parent=0 // loop_footer_branch
    %12 = sbr.rel target = $region3
  $region8: #{_lambda_.6} parent=0 // loop_exit
    _

// kernel: _lambda_.9
$region0: #{_lambda_.9}
  #allocation0 [shape = 'u32[]', space=smem, size = 0x4, offset = 0x4, fixed_abs, tag = 'smem constant byte address 0x4 - core index']
  #allocation1 [shape = 'u32[144,128]{1,0:T(1,128)}', space=vmem, size = 0x12000, scoped, tag = 'internal scratch']
  %s0 = inlined_call_operand.vmem [shape: bf16[2,48,16], index: 0, kind: input, shape index: {}]
  %s1 = inlined_call_operand.vmem [shape: bf16[9,16,16], index: 1, kind: input, shape index: {}]
  %s2 = inlined_call_operand.vmem [shape: f32[1,16], index: 2, kind: input, shape index: {}, may-alias: {2,4}]
  %s3 = inlined_call_operand.vmem [shape: bf16[9,16,16], index: 3, kind: input, shape index: {}]
  %s4 = inlined_call_operand.vmem [shape: f32[1,16], index: 4, kind: input, shape index: {}, may-alias: {2,4}]
  %s5 = inlined_call_operand.vmem [shape: bf16[48,22], index: 5, kind: input, shape index: {}, may-alias: {5,6}]
  %s6 = inlined_call_operand.vmem [shape: bf16[48,22], index: 6, kind: input, shape index: {}, may-alias: {5,6}]
  %s7 = inlined_call_operand.vmem [shape: bf16[2,48,16], index: 7, kind: output, shape index: {}]
  %s8 = sld [smem:[#allocation0]]
  $region61: #{_lambda_.9} parent=0
    _
  %s10 = ssub.s32 1, %s8
  %s11 = scalar_select 0, %s10, %s8
  loop: start=0, step=1, limit=4
  $region2: #{_lambda_.9} parent=0 // loop_pre_header
    _
  $region3: #{_lambda_.9} parent=0 // loop_header
    %s13 = sphi 0, %s17
    %p14 = scmp.ge.s32.totalorder %s13, 4
    %s23 = sphi 0, %s25
    %s26 = sphi 0, %s23
    %s27 = sphi 0, %s26
    %s43 = sphi 0, %s27
    %s47 = sphi 0, %s47
    %s49 = sphi 0, %s47
    %s50 = sphi 0, %s49
    %s64 = sphi 0, %s50
    %s68 = sphi 0, %s68
    %s70 = sphi 0, %s68
    %s71 = sphi 0, %s70
    %s85 = sphi 0, %s71
    %s89 = sphi 0, %s89
    %s91 = sphi 0, %s89
    %s92 = sphi 0, %s91
    %s106 = sphi 0, %s92
    %s110 = sphi 0, %s110
    %s112 = sphi 0, %s110
    %s113 = sphi 0, %s112
    %s127 = sphi 0, %s113
    %s131 = sphi 0, %s131
    %s133 = sphi 0, %s131
    %s134 = sphi 0, %s133
    %s148 = sphi 0, %s134
    %s152 = sphi 0, %s152
    %s154 = sphi 0, %s152
    %s155 = sphi 0, %s154
    %s169 = sphi 0, %s155
    %s175 = sphi 0, %s177
    %s178 = sphi 0, %s175
    %s179 = sphi 0, %s178
    %s195 = sphi 0, %s179
  $region4: #{_lambda_.9} parent=0 // loop_header_branch
    %16 = sbr.rel (%p14) target = $region8
  $region5: #{_lambda_.9} parent=0 // loop_body
    %s18 = ssub.s32 %s13, 1
    %s19 = ssub.s32 %s13, 2
    %s20 = sadd.s32 %s13, 1
    %s21 = ssub.s32 %s13, %s20
    %p22 = scmp.eq.s32.totalorder %s21, 0
    %s24 = sadd.s32 %s23, 1
    %s25 = scalar_select %p22, %s23, %s24
    %p28 = pneg %p22
    %p29 = scmp.eq.s32.totalorder %s13, 1
    %p30 = por %p28, %p29
    %p31 = scmp.ne.s32.totalorder %s23, %s26
    %p32 = scmp.eq.s32.totalorder %s13, 0
    %p33 = por %p31, %p32
    %p34 = scmp.ne.s32.totalorder %s23, %s26
    %p35 = scmp.eq.s32.totalorder %s18, 1
    %p36 = por %p34, %p35
    %p37 = scmp.ne.s32.totalorder %s26, %s27
    %p38 = scmp.eq.s32.totalorder %s18, 0
    %p39 = por %p37, %p38
    %p40 = scmp.ne.s32.totalorder %s26, %s27
    %p41 = scmp.eq.s32.totalorder %s19, 1
    %p42 = por %p40, %p41
    %p44 = scmp.ne.s32.totalorder %s27, %s43
    %p45 = scmp.eq.s32.totalorder %s19, 0
    %p46 = por %p44, %p45
    %s48 = sadd.s32 %s47, 1
    %p51 = scmp.eq.s32.totalorder %s13, 1
    %p52 = scmp.ne.s32.totalorder %s47, %s49
    %p53 = scmp.eq.s32.totalorder %s13, 0
    %p54 = por %p52, %p53
    %p55 = scmp.ne.s32.totalorder %s47, %s49
    %p56 = scmp.eq.s32.totalorder %s18, 1
    %p57 = por %p55, %p56
    %p58 = scmp.ne.s32.totalorder %s49, %s50
    %p59 = scmp.eq.s32.totalorder %s18, 0
    %p60 = por %p58, %p59
    %p61 = scmp.ne.s32.totalorder %s49, %s50
    %p62 = scmp.eq.s32.totalorder %s19, 1
    %p63 = por %p61, %p62
    %p65 = scmp.ne.s32.totalorder %s50, %s64
    %p66 = scmp.eq.s32.totalorder %s19, 0
    %p67 = por %p65, %p66
    %s69 = sadd.s32 %s68, 1
    %p72 = scmp.eq.s32.totalorder %s13, 1
    %p73 = scmp.ne.s32.totalorder %s68, %s70
    %p74 = scmp.eq.s32.totalorder %s13, 0
    %p75 = por %p73, %p74
    %p76 = scmp.ne.s32.totalorder %s68, %s70
    %p77 = scmp.eq.s32.totalorder %s18, 1
    %p78 = por %p76, %p77
    %p79 = scmp.ne.s32.totalorder %s70, %s71
    %p80 = scmp.eq.s32.totalorder %s18, 0
    %p81 = por %p79, %p80
    %p82 = scmp.ne.s32.totalorder %s70, %s71
    %p83 = scmp.eq.s32.totalorder %s19, 1
    %p84 = por %p82, %p83
    %p86 = scmp.ne.s32.totalorder %s71, %s85
    %p87 = scmp.eq.s32.totalorder %s19, 0
    %p88 = por %p86, %p87
    %s90 = sadd.s32 %s89, 1
    %p93 = scmp.eq.s32.totalorder %s13, 1
    %p94 = scmp.ne.s32.totalorder %s89, %s91
    %p95 = scmp.eq.s32.totalorder %s13, 0
    %p96 = por %p94, %p95
    %p97 = scmp.ne.s32.totalorder %s89, %s91
    %p98 = scmp.eq.s32.totalorder %s18, 1
    %p99 = por %p97, %p98
    %p100 = scmp.ne.s32.totalorder %s91, %s92
    %p101 = scmp.eq.s32.totalorder %s18, 0
    %p102 = por %p100, %p101
    %p103 = scmp.ne.s32.totalorder %s91, %s92
    %p104 = scmp.eq.s32.totalorder %s19, 1
    %p105 = por %p103, %p104
    %p107 = scmp.ne.s32.totalorder %s92, %s106
    %p108 = scmp.eq.s32.totalorder %s19, 0
    %p109 = por %p107, %p108
    %s111 = sadd.s32 %s110, 1
    %p114 = scmp.eq.s32.totalorder %s13, 1
    %p115 = scmp.ne.s32.totalorder %s110, %s112
    %p116 = scmp.eq.s32.totalorder %s13, 0
    %p117 = por %p115, %p116
    %p118 = scmp.ne.s32.totalorder %s110, %s112
    %p119 = scmp.eq.s32.totalorder %s18, 1
    %p120 = por %p118, %p119
    %p121 = scmp.ne.s32.totalorder %s112, %s113
    %p122 = scmp.eq.s32.totalorder %s18, 0
    %p123 = por %p121, %p122
    %p124 = scmp.ne.s32.totalorder %s112, %s113
    %p125 = scmp.eq.s32.totalorder %s19, 1
    %p126 = por %p124, %p125
    %p128 = scmp.ne.s32.totalorder %s113, %s127
    %p129 = scmp.eq.s32.totalorder %s19, 0
    %p130 = por %p128, %p129
    %s132 = sadd.s32 %s131, 1
    %p135 = scmp.eq.s32.totalorder %s13, 1
    %p136 = scmp.ne.s32.totalorder %s131, %s133
    %p137 = scmp.eq.s32.totalorder %s13, 0
    %p138 = por %p136, %p137
    %p139 = scmp.ne.s32.totalorder %s131, %s133
    %p140 = scmp.eq.s32.totalorder %s18, 1
    %p141 = por %p139, %p140
    %p142 = scmp.ne.s32.totalorder %s133, %s134
    %p143 = scmp.eq.s32.totalorder %s18, 0
    %p144 = por %p142, %p143
    %p145 = scmp.ne.s32.totalorder %s133, %s134
    %p146 = scmp.eq.s32.totalorder %s19, 1
    %p147 = por %p145, %p146
    %p149 = scmp.ne.s32.totalorder %s134, %s148
    %p150 = scmp.eq.s32.totalorder %s19, 0
    %p151 = por %p149, %p150
    %s153 = sadd.s32 %s152, 1
    %p156 = scmp.eq.s32.totalorder %s13, 1
    %p157 = scmp.ne.s32.totalorder %s152, %s154
    %p158 = scmp.eq.s32.totalorder %s13, 0
    %p159 = por %p157, %p158
    %p160 = scmp.ne.s32.totalorder %s152, %s154
    %p161 = scmp.eq.s32.totalorder %s18, 1
    %p162 = por %p160, %p161
    %p163 = scmp.ne.s32.totalorder %s154, %s155
    %p164 = scmp.eq.s32.totalorder %s18, 0
    %p165 = por %p163, %p164
    %p166 = scmp.ne.s32.totalorder %s154, %s155
    %p167 = scmp.eq.s32.totalorder %s19, 1
    %p168 = por %p166, %p167
    %p170 = scmp.ne.s32.totalorder %s155, %s169
    %p171 = scmp.eq.s32.totalorder %s19, 0
    %p172 = por %p170, %p171
    %s173 = ssub.s32 %s13, %s20
    %p174 = scmp.eq.s32.totalorder %s173, 0
    %s176 = sadd.s32 %s175, 1
    %s177 = scalar_select %p174, %s175, %s176
    %p180 = pneg %p174
    %p181 = scmp.eq.s32.totalorder %s13, 1
    %p182 = por %p180, %p181
    %p183 = scmp.ne.s32.totalorder %s175, %s178
    %p184 = scmp.eq.s32.totalorder %s13, 0
    %p185 = por %p183, %p184
    %p186 = scmp.ne.s32.totalorder %s175, %s178
    %p187 = scmp.eq.s32.totalorder %s18, 1
    %p188 = por %p186, %p187
    %p189 = scmp.ne.s32.totalorder %s178, %s179
    %p190 = scmp.eq.s32.totalorder %s18, 0
    %p191 = por %p189, %p190
    %p192 = scmp.ne.s32.totalorder %s178, %s179
    %p193 = scmp.eq.s32.totalorder %s19, 1
    %p194 = por %p192, %p193
    %p196 = scmp.ne.s32.totalorder %s179, %s195
    %p197 = scmp.eq.s32.totalorder %s19, 0
    %p198 = por %p196, %p197
    %p199 = scmp.le.s32.totalorder 1, %s13
    %p200 = scmp.lt.s32.totalorder %s13, 3
    %p201 = pnand %p199, %p200
    %p202 = pneg %p201
    // Predicated region
    $region9: #{_lambda_.9} parent=5 // pred_check
      _
    $region10: #{_lambda_.9} parent=5 // pred_check_branch
      %204 = sbr.rel (%p201) target = $region12
    $region11: #{_lambda_.9} parent=5 // pred_region
      %s205 = ssub.s32 %s13, 1
      // Predicated region
      $region13: #{_lambda_.9} parent=11 // pred_check
        %p206 = pneg %p60
      $region14: #{_lambda_.9} parent=11 // pred_check_branch
        %208 = sbr.rel (%p206) target = $region16
      $region15: #{_lambda_.9} parent=11 // pred_region
        _
      $region16: #{_lambda_.9} parent=11 // pred_fallthru
        _
      // Predicated region
      $region17: #{_lambda_.9} parent=11 // pred_check
        %p209 = pneg %p81
      $region18: #{_lambda_.9} parent=11 // pred_check_branch
        %211 = sbr.rel (%p209) target = $region20
      $region19: #{_lambda_.9} parent=11 // pred_region
        _
      $region20: #{_lambda_.9} parent=11 // pred_fallthru
        _
      // Predicated region
      $region21: #{_lambda_.9} parent=11 // pred_check
        %p212 = pneg %p102
      $region22: #{_lambda_.9} parent=11 // pred_check_branch
        %214 = sbr.rel (%p212) target = $region24
      $region23: #{_lambda_.9} parent=11 // pred_region
        _
      $region24: #{_lambda_.9} parent=11 // pred_fallthru
        _
      // Predicated region
      $region25: #{_lambda_.9} parent=11 // pred_check
        %p215 = pneg %p123
      $region26: #{_lambda_.9} parent=11 // pred_check_branch
        %217 = sbr.rel (%p215) target = $region28
      $region27: #{_lambda_.9} parent=11 // pred_region
        _
      $region28: #{_lambda_.9} parent=11 // pred_fallthru
        _
      // Predicated region
      $region29: #{_lambda_.9} parent=11 // pred_check
        %p218 = pneg %p144
      $region30: #{_lambda_.9} parent=11 // pred_check_branch
        %220 = sbr.rel (%p218) target = $region32
      $region31: #{_lambda_.9} parent=11 // pred_region
        _
      $region32: #{_lambda_.9} parent=11 // pred_fallthru
        _
      // Predicated region
      $region33: #{_lambda_.9} parent=11 // pred_check
        %p221 = pneg %p165
      $region34: #{_lambda_.9} parent=11 // pred_check_branch
        %223 = sbr.rel (%p221) target = $region36
      $region35: #{_lambda_.9} parent=11 // pred_region
        _
      $region36: #{_lambda_.9} parent=11 // pred_fallthru
        _
    $region12: #{_lambda_.9} parent=5 // pred_fallthru
      _
    %p224 = scmp.lt.s32.totalorder %s13, 2
    // Predicated region
    $region37: #{_lambda_.9} parent=5 // pred_check
      %p225 = pneg %p224
    $region38: #{_lambda_.9} parent=5 // pred_check_branch
      %227 = sbr.rel (%p225) target = $region40
    $region39: #{_lambda_.9} parent=5 // pred_region
      // Predicated region
      $region41: #{_lambda_.9} parent=39 // pred_check
        %p228 = pneg %p33
      $region42: #{_lambda_.9} parent=39 // pred_check_branch
        %230 = sbr.rel (%p228) target = $region44
      $region43: #{_lambda_.9} parent=39 // pred_region
        %p231 = scmp.lt.s32.totalorder %s13, 1
        %s232 = scalar_select %p231, %s13, 1
        %s233 = smul.addr %s232, 6
        %s234 = smul.addr %s233, 4
        %s235 = scalar_lea.vmem %s0, %s234
      $region44: #{_lambda_.9} parent=39 // pred_fallthru
        _
    $region40: #{_lambda_.9} parent=5 // pred_fallthru
      _
    %p236 = scmp.le.s32.totalorder 1, %s13
    %p237 = scmp.lt.s32.totalorder %s13, 3
    %p238 = pnand %p236, %p237
    %p239 = pneg %p238
    // Predicated region
    $region45: #{_lambda_.9} parent=5 // pred_check
      _
    $region46: #{_lambda_.9} parent=5 // pred_check_branch
      %241 = sbr.rel (%p238) target = $region48
    $region47: #{_lambda_.9} parent=5 // pred_region
      %s242 = ssub.s32 %s13, 1
      %p243 = scmp.lt.s32.totalorder %s18, 1
      %s244 = scalar_select %p243, %s18, 1
      %s245 = smul.addr %s244, 6
      %s246 = smul.addr %s245, 4
      %s247 = scalar_lea.vmem %s0, %s246
      %p248 = pneg %p39
      %p249 = pneg %p36
      %p250 = pneg %p60
      %p251 = pneg %p57
      %p252 = pneg %p81
      %p253 = pneg %p78
      %p254 = pneg %p102
      %p255 = pneg %p99
      %p256 = pneg %p123
      %p257 = pneg %p120
      %p258 = pneg %p144
      %p259 = pneg %p141
      %p260 = pneg %p165
      %p261 = pneg %p162
      %p262 = pneg %p191
      %p263 = pneg %p188
      %p264 = scmp.lt.s32.totalorder %s18, 1
      %s265 = scalar_select %p264, %s18, 1
      %s266 = smul.addr %s265, 6
      %s267 = smul.addr %s266, 4
      %s268 = scalar_lea.vmem %s7, %s267
      %p269 = scmp.lt.s32.totalorder %s18, 1
      %s270 = scalar_select %p269, %s18, 1
      %s271 = smul.addr %s270, 6
      %s272 = smul.addr %s271, 4
      %s273 = scalar_lea.vmem %s0, %s272
      %p274 = scmp.lt.s32.totalorder %s18, 1
      %s275 = scalar_select %p274, %s18, 1
      %s276 = smul.addr %s275, 6
      %s277 = smul.addr %s276, 4
      %s278 = scalar_lea.vmem %s7, %s277
      %v280 = vld [vmem:[%s273] sm:$0xf]
      %v281 = vld [vmem:[%s273 + $0x4] sm:$0xf]
      %v282 = vld [vmem:[%s273 + $0x8] sm:$0x7]
      %v283 = vld [vmem:[%s1] sm:$0xf]
      %v284 = vld [vmem:[%s1 + $0x4] sm:$0xf]
      %v285 = vld [vmem:[%s273 + $0x8] sm:$0xf]
      %s286 = scalar_lea.vmem %s1, 8
      %v287 = vld [vmem:[%s286] sm:$0xf]
      %v288 = vld [vmem:[%s286 + $0x4] sm:$0xf]
      %v292 = vunpack.c.l.b16 %v280
      %v293 = vunpack.c.l.b16 %v281
      %v294 = vunpack.c.l.b16 %v285
      %v295 = vpack.c.b16 %v293, %v292
      %v296 = vpack.c.b16 %v294, %v294
      %vm297 = vsmask.f32 7424
      %v299 = vshrl.u32 %v295, 16
      %v301 = vshll.u32 %v295, 16
      %v303 = vrot.slane %v301, 1
      %v304 = vor.u32 %v299, %v303
      %v306 = vshll.u32 %v296, 16
      %v308 = vrot.slane %v306, 1
      %v309 = vsel %vm297, %v304, %v308
      %v310 = vshrl.u32 %v296, 16
      %v312 = vor.u32 %v310, %v308
      %v315 = vunpack.c.l.b16 %v287
      %v316 = vunpack.c.l.b16 %v288
      %v317 = vpack.c.b16 %v316, %v315
      %vm319 = vcmask 130048
      %v321 = vsel %vm319, %v309, 0
      %v324 = vsel %vm319, %v312, 0
      %326 = vmatprep.subr.bf16.mxu0 0
      %327 = vmatpush1.bf16.msra.mxu0 %v317
      %328 = vmatprep.subr.bf16.mxu0 0
      %329 = vmatpush1.bf16.msra.mxu0 0
      %330 = vmatprep.subr.bf16.mxu0 0
      %331 = vmatpush1.bf16.msra.mxu0 0
      %332 = vmatprep.subr.bf16.mxu0 0
      %333 = vmatpush1.bf16.msra.mxu0 0
      %334 = vmatprep.subr.bf16.mxu0 0
      %335 = vmatpush1.bf16.msra.mxu0 0
      %336 = vmatprep.subr.bf16.mxu0 0
      %337 = vmatpush1.bf16.msra.mxu0 0
      %338 = vmatprep.subr.bf16.mxu0 0
      %339 = vmatpush1.bf16.msra.mxu0 0
      %340 = vmatprep.subr.bf16.mxu0 0
      %341 = vmatpush1.bf16.msra.mxu0 0
      %342 = vmatprep.subr.bf16.mxu0 0
      %343 = vmatpush1.bf16.msra.mxu0 0
      %344 = vmatprep.subr.bf16.mxu0 0
      %345 = vmatpush1.bf16.msra.mxu0 0
      %346 = vmatprep.subr.bf16.mxu0 0
      %347 = vmatpush1.bf16.msra.mxu0 0
      %348 = vmatprep.subr.bf16.mxu0 0
      %349 = vmatpush1.bf16.msra.mxu0 0
      %350 = vmatprep.subr.bf16.mxu0 0
      %351 = vmatpush1.bf16.msra.mxu0 0
      %352 = vmatprep.subr.bf16.mxu0 0
      %353 = vmatpush1.bf16.msra.mxu0 0
      %354 = vmatprep.subr.bf16.mxu0 0
      %355 = vmatpush1.bf16.msra.mxu0 0
      %356 = vmatprep.subr.bf16.mxu0 0
      %357 = vmatpush1.bf16.msra.mxu0 0
      %358 = vmatprep.mubr.bf16.mxu0 0
      %359 = vmatmul.mubr.bf16.gmra.mrb[0].mxu0 %v321
      %v360 = vpop.f32.mrb[0].mxu0
      %v361 = vadd.f32 0.0, %v360
      %v362 = vpop.f32.mrb[0].mxu0
      %v363 = vpop.f32.mrb[0].mxu0
      %v364 = vadd.f32 0.0, %v363
      %v365 = vpop.f32.mrb[0].mxu0
      %366 = vmatprep.mubr.bf16.mxu0 0
      %367 = vmatmul.mubr.bf16.gmra.mrb[0].mxu0 %v324
      %v368 = vpop.f32.mrb[0].mxu0
      %v369 = vadd.f32 0.0, %v368
      %v370 = vpop.f32.mrb[0].mxu0
      %v371 = vpop.f32.mrb[0].mxu0
      %v372 = vpop.f32.mrb[0].mxu0
      %373 = vdwg.mxu0
      %v375 = vunpack.c.l.b16 %v282
      %v376 = vpack.c.b16 %v375, %v375
      %v379 = vunpack.c.l.b16 %v283
      %v380 = vunpack.c.l.b16 %v284
      %v381 = vpack.c.b16 %v380, %v379
      %v383 = vsel %vm319, %v295, 0
      %v386 = vsel %vm319, %v376, 0
      %388 = vmatprep.subr.bf16.mxu0 0
      %389 = vmatpush1.bf16.msra.mxu0 %v381
      %390 = vmatprep.subr.bf16.mxu0 0
      %391 = vmatpush1.bf16.msra.mxu0 0
      %392 = vmatprep.subr.bf16.mxu0 0
      %393 = vmatpush1.bf16.msra.mxu0 0
      %394 = vmatprep.subr.bf16.mxu0 0
      %395 = vmatpush1.bf16.msra.mxu0 0
      %396 = vmatprep.subr.bf16.mxu0 0
      %397 = vmatpush1.bf16.msra.mxu0 0
      %398 = vmatprep.subr.bf16.mxu0 0
      %399 = vmatpush1.bf16.msra.mxu0 0
      %400 = vmatprep.subr.bf16.mxu0 0
      %401 = vmatpush1.bf16.msra.mxu0 0
      %402 = vmatprep.subr.bf16.mxu0 0
      %403 = vmatpush1.bf16.msra.mxu0 0
      %404 = vmatprep.subr.bf16.mxu0 0
      %405 = vmatpush1.bf16.msra.mxu0 0
      %406 = vmatprep.subr.bf16.mxu0 0
      %407 = vmatpush1.bf16.msra.mxu0 0
      %408 = vmatprep.subr.bf16.mxu0 0
      %409 = vmatpush1.bf16.msra.mxu0 0
      %410 = vmatprep.subr.bf16.mxu0 0
      %411 = vmatpush1.bf16.msra.mxu0 0
      %412 = vmatprep.subr.bf16.mxu0 0
      %413 = vmatpush1.bf16.msra.mxu0 0
      %414 = vmatprep.subr.bf16.mxu0 0
      %415 = vmatpush1.bf16.msra.mxu0 0
      %416 = vmatprep.subr.bf16.mxu0 0
      %417 = vmatpush1.bf16.msra.mxu0 0
      %418 = vmatprep.subr.bf16.mxu0 0
      %419 = vmatpush1.bf16.msra.mxu0 0
      %420 = vmatprep.mubr.bf16.mxu0 0
      %421 = vmatmul.mubr.bf16.gmra.mrb[0].mxu0 %v383
      %v422 = vpop.f32.mrb[0].mxu0
      %v423 = vadd.f32 %v361, %v422
      %v424 = vpop.f32.mrb[0].mxu0
      %v425 = vpop.f32.mrb[0].mxu0
      %v426 = vadd.f32 %v364, %v425
      %v427 = vpop.f32.mrb[0].mxu0
      %428 = vmatprep.mubr.bf16.mxu0 0
      %429 = vmatmul.mubr.bf16.gmra.mrb[0].mxu0 %v386
      %v430 = vpop.f32.mrb[0].mxu0
      %v431 = vadd.f32 %v369, %v430
      %v432 = vpop.f32.mrb[0].mxu0
      %v433 = vpop.f32.mrb[0].mxu0
      %v434 = vpop.f32.mrb[0].mxu0
      %435 = vdwg.mxu0
      %v436 = vld [vmem:[%s273] sm:$0xe]
      %s437 = scalar_lea.vmem %s1, 16
      %v438 = vld [vmem:[%s437] sm:$0xf]
      %v439 = vld [vmem:[%s437 + $0x4] sm:$0xf]
      %v441 = vunpack.c.l.b16 %v436
      %v442 = vpack.c.b16 %v293, %v441
      %vm443 = vcmask 1046528
      %v444 = vrot.slane %v442, 1
      %v445 = vrot.slane %v296, 1
      %v446 = vsel %vm443, %v444, %v445
      %v449 = vunpack.c.l.b16 %v438
      %v450 = vunpack.c.l.b16 %v439
      %v451 = vpack.c.b16 %v450, %v449
      %v454 = vsel %vm319, %v446, 0
      %v457 = vsel %vm319, %v445, 0
      %459 = vmatprep.subr.bf16.mxu0 0
      %460 = vmatpush1.bf16.msra.mxu0 %v451
      %461 = vmatprep.subr.bf16.mxu0 0
      %462 = vmatpush1.bf16.msra.mxu0 0
      %463 = vmatprep.subr.bf16.mxu0 0
      %464 = vmatpush1.bf16.msra.mxu0 0
      %465 = vmatprep.subr.bf16.mxu0 0
      %466 = vmatpush1.bf16.msra.mxu0 0
      %467 = vmatprep.subr.bf16.mxu0 0
      %468 = vmatpush1.bf16.msra.mxu0 0
      %469 = vmatprep.subr.bf16.mxu0 0
      %470 = vmatpush1.bf16.msra.mxu0 0
      %471 = vmatprep.subr.bf16.mxu0 0
      %472 = vmatpush1.bf16.msra.mxu0 0
      %473 = vmatprep.subr.bf16.mxu0 0
      %474 = vmatpush1.bf16.msra.mxu0 0
      %475 = vmatprep.subr.bf16.mxu0 0
      %476 = vmatpush1.bf16.msra.mxu0 0
      %477 = vmatprep.subr.bf16.mxu0 0
      %478 = vmatpush1.bf16.msra.mxu0 0
      %479 = vmatprep.subr.bf16.mxu0 0
      %480 = vmatpush1.bf16.msra.mxu0 0
      %481 = vmatprep.subr.bf16.mxu0 0
      %482 = vmatpush1.bf16.msra.mxu0 0
      %483 = vmatprep.subr.bf16.mxu0 0
      %484 = vmatpush1.bf16.msra.mxu0 0
      %485 = vmatprep.subr.bf16.mxu0 0
      %486 = vmatpush1.bf16.msra.mxu0 0
      %487 = vmatprep.subr.bf16.mxu0 0
      %488 = vmatpush1.bf16.msra.mxu0 0
      %489 = vmatprep.subr.bf16.mxu0 0
      %490 = vmatpush1.bf16.msra.mxu0 0
      %491 = vmatprep.mubr.bf16.mxu0 0
      %492 = vmatmul.mubr.bf16.gmra.mrb[0].mxu0 %v454
      %v493 = vpop.f32.mrb[0].mxu0
      %v494 = vadd.f32 0.0, %v493
      %v495 = vpop.f32.mrb[0].mxu0
      %v496 = vpop.f32.mrb[0].mxu0
      %v497 = vadd.f32 0.0, %v496
      %v498 = vpop.f32.mrb[0].mxu0
      %499 = vmatprep.mubr.bf16.mxu0 0
      %500 = vmatmul.mubr.bf16.gmra.mrb[0].mxu0 %v457
      %v501 = vpop.f32.mrb[0].mxu0
      %v502 = vadd.f32 0.0, %v501
      %v503 = vpop.f32.mrb[0].mxu0
      %v504 = vpop.f32.mrb[0].mxu0
      %v505 = vpop.f32.mrb[0].mxu0
      %506 = vdwg.mxu0
      %v507 = vadd.f32 %v423, %v494
      %v508 = vadd.f32 %v426, %v497
      %v509 = vadd.f32 %v431, %v502
      %v510 = vld [vmem:[%s273] sm:$0x8]
      %v511 = vld [vmem:[%s273 + $0x4] sm:$0xf]
      %v512 = vld [vmem:[%s273 + $0x8] sm:$0xf]
      %v513 = vld [vmem:[%s273 + $0xc] sm:$0x3]
      %s514 = scalar_lea.vmem %s1, 24
      %v515 = vld [vmem:[%s514] sm:$0xf]
      %v516 = vld [vmem:[%s514 + $0x4] sm:$0xf]
      %v521 = vunpack.c.l.b16 %v510
      %v522 = vunpack.c.l.b16 %v511
      %v523 = vunpack.c.l.b16 %v512
      %v524 = vunpack.c.l.b16 %v513
      %v525 = vpack.c.b16 %v522, %v521
      %v526 = vpack.c.b16 %v524, %v523
      %vm527 = vcmask 1044480
      %v528 = vrot.slane %v525, 3
      %v529 = vrot.slane %v526, 3
      %v530 = vsel %vm527, %v528, %v529
      %v533 = vunpack.c.l.b16 %v515
      %v534 = vunpack.c.l.b16 %v516
      %v535 = vpack.c.b16 %v534, %v533
      %v538 = vsel %vm319, %v530, 0
      %v541 = vsel %vm319, %v529, 0
      %543 = vmatprep.subr.bf16.mxu0 0
      %544 = vmatpush1.bf16.msra.mxu0 %v535
      %545 = vmatprep.subr.bf16.mxu0 0
      %546 = vmatpush1.bf16.msra.mxu0 0
      %547 = vmatprep.subr.bf16.mxu0 0
      %548 = vmatpush1.bf16.msra.mxu0 0
      %549 = vmatprep.subr.bf16.mxu0 0
      %550 = vmatpush1.bf16.msra.mxu0 0
      %551 = vmatprep.subr.bf16.mxu0 0
      %552 = vmatpush1.bf16.msra.mxu0 0
      %553 = vmatprep.subr.bf16.mxu0 0
      %554 = vmatpush1.bf16.msra.mxu0 0
      %555 = vmatprep.subr.bf16.mxu0 0
      %556 = vmatpush1.bf16.msra.mxu0 0
      %557 = vmatprep.subr.bf16.mxu0 0
      %558 = vmatpush1.bf16.msra.mxu0 0
      %559 = vmatprep.subr.bf16.mxu0 0
      %560 = vmatpush1.bf16.msra.mxu0 0
      %561 = vmatprep.subr.bf16.mxu0 0
      %562 = vmatpush1.bf16.msra.mxu0 0
      %563 = vmatprep.subr.bf16.mxu0 0
      %564 = vmatpush1.bf16.msra.mxu0 0
      %565 = vmatprep.subr.bf16.mxu0 0
      %566 = vmatpush1.bf16.msra.mxu0 0
      %567 = vmatprep.subr.bf16.mxu0 0
      %568 = vmatpush1.bf16.msra.mxu0 0
      %569 = vmatprep.subr.bf16.mxu0 0
      %570 = vmatpush1.bf16.msra.mxu0 0
      %571 = vmatprep.subr.bf16.mxu0 0
      %572 = vmatpush1.bf16.msra.mxu0 0
      %573 = vmatprep.subr.bf16.mxu0 0
      %574 = vmatpush1.bf16.msra.mxu0 0
      %575 = vmatprep.mubr.bf16.mxu0 0
      %576 = vmatmul.mubr.bf16.gmra.mrb[0].mxu0 %v538
      %v577 = vpop.f32.mrb[0].mxu0
      %v578 = vadd.f32 0.0, %v577
      %v579 = vpop.f32.mrb[0].mxu0
      %v580 = vpop.f32.mrb[0].mxu0
      %v581 = vadd.f32 0.0, %v580
      %v582 = vpop.f32.mrb[0].mxu0
      %583 = vmatprep.mubr.bf16.mxu0 0
      %584 = vmatmul.mubr.bf16.gmra.mrb[0].mxu0 %v541
      %v585 = vpop.f32.mrb[0].mxu0
      %v586 = vadd.f32 0.0, %v585
      %v587 = vpop.f32.mrb[0].mxu0
      %v588 = vpop.f32.mrb[0].mxu0
      %v589 = vpop.f32.mrb[0].mxu0
      %590 = vdwg.mxu0
      %v591 = vadd.f32 %v507, %v578
      %v592 = vadd.f32 %v508, %v581
      %v593 = vadd.f32 %v509, %v586
      %v594 = vld [vmem:[%s273 + $0xc] sm:$0x7]
      %s595 = scalar_lea.vmem %s1, 32
      %v596 = vld [vmem:[%s595] sm:$0xf]
      %v597 = vld [vmem:[%s595 + $0x4] sm:$0xf]
      %v599 = vunpack.c.l.b16 %v594
      %v600 = vpack.c.b16 %v599, %v523
      %vm601 = vsmask.f32 4352
      %v603 = vshrl.u32 %v525, 16
      %v605 = vrot.slane %v603, 3
      %v606 = vshll.u32 %v525, 16
      %v608 = vrot.slane %v606, 4
      %v609 = vor.u32 %v605, %v608
      %v611 = vshrl.u32 %v600, 16
      %v613 = vrot.slane %v611, 3
      %v614 = vshll.u32 %v600, 16
      %v616 = vrot.slane %v614, 4
      %v617 = vor.u32 %v613, %v616
      %v618 = vsel %vm601, %v609, %v617
      %v621 = vunpack.c.l.b16 %v596
      %v622 = vunpack.c.l.b16 %v597
      %v623 = vpack.c.b16 %v622, %v621
      %v626 = vsel %vm319, %v618, 0
      %v629 = vsel %vm319, %v617, 0
      %631 = vmatprep.subr.bf16.mxu0 0
      %632 = vmatpush1.bf16.msra.mxu0 %v623
      %633 = vmatprep.subr.bf16.mxu0 0
      %634 = vmatpush1.bf16.msra.mxu0 0
      %635 = vmatprep.subr.bf16.mxu0 0
      %636 = vmatpush1.bf16.msra.mxu0 0
      %637 = vmatprep.subr.bf16.mxu0 0
      %638 = vmatpush1.bf16.msra.mxu0 0
      %639 = vmatprep.subr.bf16.mxu0 0
      %640 = vmatpush1.bf16.msra.mxu0 0
      %641 = vmatprep.subr.bf16.mxu0 0
      %642 = vmatpush1.bf16.msra.mxu0 0
      %643 = vmatprep.subr.bf16.mxu0 0
      %644 = vmatpush1.bf16.msra.mxu0 0
      %645 = vmatprep.subr.bf16.mxu0 0
      %646 = vmatpush1.bf16.msra.mxu0 0
      %647 = vmatprep.subr.bf16.mxu0 0
      %648 = vmatpush1.bf16.msra.mxu0 0
      %649 = vmatprep.subr.bf16.mxu0 0
      %650 = vmatpush1.bf16.msra.mxu0 0
      %651 = vmatprep.subr.bf16.mxu0 0
      %652 = vmatpush1.bf16.msra.mxu0 0
      %653 = vmatprep.subr.bf16.mxu0 0
      %654 = vmatpush1.bf16.msra.mxu0 0
      %655 = vmatprep.subr.bf16.mxu0 0
      %656 = vmatpush1.bf16.msra.mxu0 0
      %657 = vmatprep.subr.bf16.mxu0 0
      %658 = vmatpush1.bf16.msra.mxu0 0
      %659 = vmatprep.subr.bf16.mxu0 0
      %660 = vmatpush1.bf16.msra.mxu0 0
      %661 = vmatprep.subr.bf16.mxu0 0
      %662 = vmatpush1.bf16.msra.mxu0 0
      %663 = vmatprep.mubr.bf16.mxu0 0
      %664 = vmatmul.mubr.bf16.gmra.mrb[0].mxu0 %v626
      %v665 = vpop.f32.mrb[0].mxu0
      %v666 = vadd.f32 0.0, %v665
      %v667 = vpop.f32.mrb[0].mxu0
      %v668 = vpop.f32.mrb[0].mxu0
      %v669 = vadd.f32 0.0, %v668
      %v670 = vpop.f32.mrb[0].mxu0
      %671 = vmatprep.mubr.bf16.mxu0 0
      %672 = vmatmul.mubr.bf16.gmra.mrb[0].mxu0 %v629
      %v673 = vpop.f32.mrb[0].mxu0
      %v674 = vadd.f32 0.0, %v673
      %v675 = vpop.f32.mrb[0].mxu0
      %v676 = vpop.f32.mrb[0].mxu0
      %v677 = vpop.f32.mrb[0].mxu0
      %678 = vdwg.mxu0
      %v679 = vadd.f32 %v591, %v666
      %v680 = vadd.f32 %v592, %v669
      %v681 = vadd.f32 %v593, %v674
      %s682 = scalar_lea.vmem %s1, 40
      %v683 = vld [vmem:[%s682] sm:$0xf]
      %v684 = vld [vmem:[%s682 + $0x4] sm:$0xf]
      %v685 = vpack.c.b16 %v523, %v522
      %v686 = vpack.c.b16 %v599, %v599
      %v689 = vunpack.c.l.b16 %v683
      %v690 = vunpack.c.l.b16 %v684
      %v691 = vpack.c.b16 %v690, %v689
      %v694 = vsel %vm319, %v685, 0
      %v697 = vsel %vm319, %v686, 0
      %699 = vmatprep.subr.bf16.mxu0 0
      %700 = vmatpush1.bf16.msra.mxu0 %v691
      %701 = vmatprep.subr.bf16.mxu0 0
      %702 = vmatpush1.bf16.msra.mxu0 0
      %703 = vmatprep.subr.bf16.mxu0 0
      %704 = vmatpush1.bf16.msra.mxu0 0
      %705 = vmatprep.subr.bf16.mxu0 0
      %706 = vmatpush1.bf16.msra.mxu0 0
      %707 = vmatprep.subr.bf16.mxu0 0
      %708 = vmatpush1.bf16.msra.mxu0 0
      %709 = vmatprep.subr.bf16.mxu0 0
      %710 = vmatpush1.bf16.msra.mxu0 0
      %711 = vmatprep.subr.bf16.mxu0 0
      %712 = vmatpush1.bf16.msra.mxu0 0
      %713 = vmatprep.subr.bf16.mxu0 0
      %714 = vmatpush1.bf16.msra.mxu0 0
      %715 = vmatprep.subr.bf16.mxu0 0
      %716 = vmatpush1.bf16.msra.mxu0 0
      %717 = vmatprep.subr.bf16.mxu0 0
      %718 = vmatpush1.bf16.msra.mxu0 0
      %719 = vmatprep.subr.bf16.mxu0 0
      %720 = vmatpush1.bf16.msra.mxu0 0
      %721 = vmatprep.subr.bf16.mxu0 0
      %722 = vmatpush1.bf16.msra.mxu0 0
      %723 = vmatprep.subr.bf16.mxu0 0
      %724 = vmatpush1.bf16.msra.mxu0 0
      %725 = vmatprep.subr.bf16.mxu0 0
      %726 = vmatpush1.bf16.msra.mxu0 0
      %727 = vmatprep.subr.bf16.mxu0 0
      %728 = vmatpush1.bf16.msra.mxu0 0
      %729 = vmatprep.subr.bf16.mxu0 0
      %730 = vmatpush1.bf16.msra.mxu0 0
      %731 = vmatprep.mubr.bf16.mxu0 0
      %732 = vmatmul.mubr.bf16.gmra.mrb[0].mxu0 %v694
      %v733 = vpop.f32.mrb[0].mxu0
      %v734 = vadd.f32 0.0, %v733
      %v735 = vpop.f32.mrb[0].mxu0
      %v736 = vpop.f32.mrb[0].mxu0
      %v737 = vadd.f32 0.0, %v736
      %v738 = vpop.f32.mrb[0].mxu0
      %739 = vmatprep.mubr.bf16.mxu0 0
      %740 = vmatmul.mubr.bf16.gmra.mrb[0].mxu0 %v697
      %v741 = vpop.f32.mrb[0].mxu0
      %v742 = vadd.f32 0.0, %v741
      %v743 = vpop.f32.mrb[0].mxu0
      %v744 = vpop.f32.mrb[0].mxu0
      %v745 = vpop.f32.mrb[0].mxu0
      %746 = vdwg.mxu0
      %v747 = vadd.f32 %v679, %v734
      %v748 = vadd.f32 %v680, %v737
      %v749 = vadd.f32 %v681, %v742
      %v750 = vld [vmem:[%s273 + $0x4] sm:$0xc]
      %v751 = vld [vmem:[%s273 + $0x8] sm:$0xf]
      %v752 = vld [vmem:[%s273 + $0xc] sm:$0xf]
      %v753 = vld [vmem:[%s273 + $0x10] sm:$0x1]
      %s754 = scalar_lea.vmem %s1, 48
      %v755 = vld [vmem:[%s754] sm:$0xf]
      %v756 = vld [vmem:[%s754 + $0x4] sm:$0xf]
      %v761 = vunpack.c.l.b16 %v750
      %v762 = vunpack.c.l.b16 %v751
      %v763 = vunpack.c.l.b16 %v752
      %v764 = vunpack.c.l.b16 %v753
      %v765 = vpack.c.b16 %v762, %v761
      %v766 = vpack.c.b16 %v764, %v763
      %vm767 = vcmask 1045504
      %v768 = vrot.slane %v765, 2
      %v769 = vrot.slane %v766, 2
      %v770 = vsel %vm767, %v768, %v769
      %v773 = vunpack.c.l.b16 %v755
      %v774 = vunpack.c.l.b16 %v756
      %v775 = vpack.c.b16 %v774, %v773
      %v778 = vsel %vm319, %v770, 0
      %v781 = vsel %vm319, %v769, 0
      %783 = vmatprep.subr.bf16.mxu0 0
      %784 = vmatpush1.bf16.msra.mxu0 %v775
      %785 = vmatprep.subr.bf16.mxu0 0
      %786 = vmatpush1.bf16.msra.mxu0 0
      %787 = vmatprep.subr.bf16.mxu0 0
      %788 = vmatpush1.bf16.msra.mxu0 0
      %789 = vmatprep.subr.bf16.mxu0 0
      %790 = vmatpush1.bf16.msra.mxu0 0
      %791 = vmatprep.subr.bf16.mxu0 0
      %792 = vmatpush1.bf16.msra.mxu0 0
      %793 = vmatprep.subr.bf16.mxu0 0
      %794 = vmatpush1.bf16.msra.mxu0 0
      %795 = vmatprep.subr.bf16.mxu0 0
      %796 = vmatpush1.bf16.msra.mxu0 0
      %797 = vmatprep.subr.bf16.mxu0 0
      %798 = vmatpush1.bf16.msra.mxu0 0
      %799 = vmatprep.subr.bf16.mxu0 0
      %800 = vmatpush1.bf16.msra.mxu0 0
      %801 = vmatprep.subr.bf16.mxu0 0
      %802 = vmatpush1.bf16.msra.mxu0 0
      %803 = vmatprep.subr.bf16.mxu0 0
      %804 = vmatpush1.bf16.msra.mxu0 0
      %805 = vmatprep.subr.bf16.mxu0 0
      %806 = vmatpush1.bf16.msra.mxu0 0
      %807 = vmatprep.subr.bf16.mxu0 0
      %808 = vmatpush1.bf16.msra.mxu0 0
      %809 = vmatprep.subr.bf16.mxu0 0
      %810 = vmatpush1.bf16.msra.mxu0 0
      %811 = vmatprep.subr.bf16.mxu0 0
      %812 = vmatpush1.bf16.msra.mxu0 0
      %813 = vmatprep.subr.bf16.mxu0 0
      %814 = vmatpush1.bf16.msra.mxu0 0
      %815 = vmatprep.mubr.bf16.mxu0 0
      %816 = vmatmul.mubr.bf16.gmra.mrb[0].mxu0 %v778
      %v817 = vpop.f32.mrb[0].mxu0
      %v818 = vadd.f32 0.0, %v817
      %v819 = vpop.f32.mrb[0].mxu0
      %v820 = vpop.f32.mrb[0].mxu0
      %v821 = vadd.f32 0.0, %v820
      %v822 = vpop.f32.mrb[0].mxu0
      %823 = vmatprep.mubr.bf16.mxu0 0
      %824 = vmatmul.mubr.bf16.gmra.mrb[0].mxu0 %v781
      %v825 = vpop.f32.mrb[0].mxu0
      %v826 = vadd.f32 0.0, %v825
      %v827 = vpop.f32.mrb[0].mxu0
      %v828 = vpop.f32.mrb[0].mxu0
      %v829 = vpop.f32.mrb[0].mxu0
      %830 = vdwg.mxu0
      %v831 = vadd.f32 %v747, %v818
      %v832 = vadd.f32 %v748, %v821
      %v833 = vadd.f32 %v749, %v826
      %v834 = vld [vmem:[%s273 + $0x10] sm:$0x3]
      %s835 = scalar_lea.vmem %s1, 56
      %v836 = vld [vmem:[%s835] sm:$0xf]
      %v837 = vld [vmem:[%s835 + $0x4] sm:$0xf]
      %v839 = vunpack.c.l.b16 %v834
      %v840 = vpack.c.b16 %v839, %v763
      %vm841 = vsmask.f32 5376
      %v843 = vshrl.u32 %v765, 16
      %v845 = vrot.slane %v843, 2
      %v846 = vshll.u32 %v765, 16
      %v848 = vrot.slane %v846, 3
      %v849 = vor.u32 %v845, %v848
      %v851 = vshrl.u32 %v840, 16
      %v853 = vrot.slane %v851, 2
      %v854 = vshll.u32 %v840, 16
      %v856 = vrot.slane %v854, 3
      %v857 = vor.u32 %v853, %v856
      %v858 = vsel %vm841, %v849, %v857
      %v861 = vunpack.c.l.b16 %v836
      %v862 = vunpack.c.l.b16 %v837
      %v863 = vpack.c.b16 %v862, %v861
      %v866 = vsel %vm319, %v858, 0
      %v869 = vsel %vm319, %v857, 0
      %871 = vmatprep.subr.bf16.mxu0 0
      %872 = vmatpush1.bf16.msra.mxu0 %v863
      %873 = vmatprep.subr.bf16.mxu0 0
      %874 = vmatpush1.bf16.msra.mxu0 0
      %875 = vmatprep.subr.bf16.mxu0 0
      %876 = vmatpush1.bf16.msra.mxu0 0
      %877 = vmatprep.subr.bf16.mxu0 0
      %878 = vmatpush1.bf16.msra.mxu0 0
      %879 = vmatprep.subr.bf16.mxu0 0
      %880 = vmatpush1.bf16.msra.mxu0 0
      %881 = vmatprep.subr.bf16.mxu0 0
      %882 = vmatpush1.bf16.msra.mxu0 0
      %883 = vmatprep.subr.bf16.mxu0 0
      %884 = vmatpush1.bf16.msra.mxu0 0
      %885 = vmatprep.subr.bf16.mxu0 0
      %886 = vmatpush1.bf16.msra.mxu0 0
      %887 = vmatprep.subr.bf16.mxu0 0
      %888 = vmatpush1.bf16.msra.mxu0 0
      %889 = vmatprep.subr.bf16.mxu0 0
      %890 = vmatpush1.bf16.msra.mxu0 0
      %891 = vmatprep.subr.bf16.mxu0 0
      %892 = vmatpush1.bf16.msra.mxu0 0
      %893 = vmatprep.subr.bf16.mxu0 0
      %894 = vmatpush1.bf16.msra.mxu0 0
      %895 = vmatprep.subr.bf16.mxu0 0
      %896 = vmatpush1.bf16.msra.mxu0 0
      %897 = vmatprep.subr.bf16.mxu0 0
      %898 = vmatpush1.bf16.msra.mxu0 0
      %899 = vmatprep.subr.bf16.mxu0 0
      %900 = vmatpush1.bf16.msra.mxu0 0
      %901 = vmatprep.subr.bf16.mxu0 0
      %902 = vmatpush1.bf16.msra.mxu0 0
      %903 = vmatprep.mubr.bf16.mxu0 0
      %904 = vmatmul.mubr.bf16.gmra.mrb[0].mxu0 %v866
      %v905 = vpop.f32.mrb[0].mxu0
      %v906 = vadd.f32 0.0, %v905
      %v907 = vpop.f32.mrb[0].mxu0
      %v908 = vpop.f32.mrb[0].mxu0
      %v909 = vadd.f32 0.0, %v908
      %v910 = vpop.f32.mrb[0].mxu0
      %911 = vmatprep.mubr.bf16.mxu0 0
      %912 = vmatmul.mubr.bf16.gmra.mrb[0].mxu0 %v869
      %v913 = vpop.f32.mrb[0].mxu0
      %v914 = vadd.f32 0.0, %v913
      %v915 = vpop.f32.mrb[0].mxu0
      %v916 = vpop.f32.mrb[0].mxu0
      %v917 = vpop.f32.mrb[0].mxu0
      %918 = vdwg.mxu0
      %v919 = vadd.f32 %v831, %v906
      %v920 = vadd.f32 %v832, %v909
      %v921 = vadd.f32 %v833, %v914
      %v922 = vld [vmem:[%s273 + $0x4] sm:$0x8]
      %s923 = scalar_lea.vmem %s1, 64
      %v924 = vld [vmem:[%s923] sm:$0xf]
      %v925 = vld [vmem:[%s923 + $0x4] sm:$0xf]
      %v927 = vunpack.c.l.b16 %v922
      %v928 = vpack.c.b16 %v762, %v927
      %v929 = vrot.slane %v928, 3
      %v930 = vrot.slane %v840, 3
      %v931 = vsel %vm527, %v929, %v930
      %v934 = vunpack.c.l.b16 %v924
      %v935 = vunpack.c.l.b16 %v925
      %v936 = vpack.c.b16 %v935, %v934
      %v939 = vsel %vm319, %v931, 0
      %v942 = vsel %vm319, %v930, 0
      %944 = vmatprep.subr.bf16.mxu0 0
      %945 = vmatpush1.bf16.msra.mxu0 %v936
      %946 = vmatprep.subr.bf16.mxu0 0
      %947 = vmatpush1.bf16.msra.mxu0 0
      %948 = vmatprep.subr.bf16.mxu0 0
      %949 = vmatpush1.bf16.msra.mxu0 0
      %950 = vmatprep.subr.bf16.mxu0 0
      %951 = vmatpush1.bf16.msra.mxu0 0
      %952 = vmatprep.subr.bf16.mxu0 0
      %953 = vmatpush1.bf16.msra.mxu0 0
      %954 = vmatprep.subr.bf16.mxu0 0
      %955 = vmatpush1.bf16.msra.mxu0 0
      %956 = vmatprep.subr.bf16.mxu0 0
      %957 = vmatpush1.bf16.msra.mxu0 0
      %958 = vmatprep.subr.bf16.mxu0 0
      %959 = vmatpush1.bf16.msra.mxu0 0
      %960 = vmatprep.subr.bf16.mxu0 0
      %961 = vmatpush1.bf16.msra.mxu0 0
      %962 = vmatprep.subr.bf16.mxu0 0
      %963 = vmatpush1.bf16.msra.mxu0 0
      %964 = vmatprep.subr.bf16.mxu0 0
      %965 = vmatpush1.bf16.msra.mxu0 0
      %966 = vmatprep.subr.bf16.mxu0 0
      %967 = vmatpush1.bf16.msra.mxu0 0
      %968 = vmatprep.subr.bf16.mxu0 0
      %969 = vmatpush1.bf16.msra.mxu0 0
      %970 = vmatprep.subr.bf16.mxu0 0
      %971 = vmatpush1.bf16.msra.mxu0 0
      %972 = vmatprep.subr.bf16.mxu0 0
      %973 = vmatpush1.bf16.msra.mxu0 0
      %974 = vmatprep.subr.bf16.mxu0 0
      %975 = vmatpush1.bf16.msra.mxu0 0
      %976 = vmatprep.mubr.bf16.mxu0 0
      %977 = vmatmul.mubr.bf16.gmra.mrb[0].mxu0 %v939
      %v978 = vpop.f32.mrb[0].mxu0
      %v979 = vadd.f32 0.0, %v978
      %v980 = vpop.f32.mrb[0].mxu0
      %v981 = vpop.f32.mrb[0].mxu0
      %v982 = vadd.f32 0.0, %v981
      %v983 = vpop.f32.mrb[0].mxu0
      %984 = vmatprep.mubr.bf16.mxu0 0
      %985 = vmatmul.mubr.bf16.gmra.mrb[0].mxu0 %v942
      %v986 = vpop.f32.mrb[0].mxu0
      %v987 = vadd.f32 0.0, %v986
      %v988 = vpop.f32.mrb[0].mxu0
      %v989 = vpop.f32.mrb[0].mxu0
      %v990 = vpop.f32.mrb[0].mxu0
      %991 = vdwg.mxu0
      %v992 = vadd.f32 %v919, %v979
      %v993 = vadd.f32 %v920, %v982
      %v994 = vadd.f32 %v921, %v987
      %v995 = vld [vmem:[%s2] sm:$0x1]
      %v997 = vlaneseq
      %v998 = vshrl.u32 %v997, 7
      %v999 = vsub.s32 0, %v998
      %v1000 = vrot.slane %v995, %v999
      %v1002 = vadd.f32 %v992, %v1000
      %v1003 = vadd.f32 %v993, %v1000
      %v1004 = vadd.f32 %v994, %v1000
      %v1005 = vmax.f32 %v1002, 0.0
      %v1006 = vmax.f32 %v1003, 0.0
      %v1007 = vmax.f32 %v1004, 0.0
      %v1008 = vpack.c.bf16 %v1006, %v1005
      %v1009 = vpack.c.bf16 %v1007, %v1007
      %v1010 = vld [vmem:[%s5] sm:$0xf]
      %v1011 = vld [vmem:[%s5 + $0x4] sm:$0xf]
      %v1012 = vld [vmem:[%s5 + $0x8] sm:$0xf]
      %v1013 = vld [vmem:[%s5 + $0xc] sm:$0xf]
      %v1014 = vld [vmem:[%s5 + $0x10] sm:$0xf]
      %v1015 = vld [vmem:[%s5 + $0x14] sm:$0xf]
      %v1022 = vunpack.c.l.b16 %v1010
      %v1023 = vunpack.c.l.b16 %v1011
      %v1024 = vunpack.c.l.b16 %v1012
      %v1025 = vunpack.c.l.b16 %v1013
      %v1026 = vunpack.c.l.b16 %v1014
      %v1027 = vunpack.c.l.b16 %v1015
      %v1028 = vpack.c.b16 %v1023, %v1022
      %v1029 = vpack.c.b16 %v1025, %v1024
      %v1030 = vpack.c.b16 %v1027, %v1026
      %vm1031 = vcmask 179200
      %v1033 = vsel %vm1031, %v1028, 0
      %v1036 = vsel %vm1031, %v1029, 0
      %v1039 = vsel %vm1031, %v1030, 0
      %vm1041 = vcmask 1042432
      %v1043 = vsel %vm1041, %v1009, 0
      %1045 = vmatprep.subr.bf16.mxu0 0
      %1046 = vmatpush1.bf16.msra.mxu0 %v1008
      %1047 = vmatprep.subr.bf16.mxu0 0
      %1048 = vmatpush1.bf16.msra.mxu0 %v1043
      %1049 = vmatprep.subr.bf16.mxu0 0
      %1050 = vmatpush1.bf16.msra.mxu0 0
      %1051 = vmatprep.subr.bf16.mxu0 0
      %1052 = vmatpush1.bf16.msra.mxu0 0
      %1053 = vmatprep.subr.bf16.mxu0 0
      %1054 = vmatpush1.bf16.msra.mxu0 0
      %1055 = vmatprep.subr.bf16.mxu0 0
      %1056 = vmatpush1.bf16.msra.mxu0 0
      %1057 = vmatprep.subr.bf16.mxu0 0
      %1058 = vmatpush1.bf16.msra.mxu0 0
      %1059 = vmatprep.subr.bf16.mxu0 0
      %1060 = vmatpush1.bf16.msra.mxu0 0
      %1061 = vmatprep.subr.bf16.mxu0 0
      %1062 = vmatpush1.bf16.msra.mxu0 0
      %1063 = vmatprep.subr.bf16.mxu0 0
      %1064 = vmatpush1.bf16.msra.mxu0 0
      %1065 = vmatprep.subr.bf16.mxu0 0
      %1066 = vmatpush1.bf16.msra.mxu0 0
      %1067 = vmatprep.subr.bf16.mxu0 0
      %1068 = vmatpush1.bf16.msra.mxu0 0
      %1069 = vmatprep.subr.bf16.mxu0 0
      %1070 = vmatpush1.bf16.msra.mxu0 0
      %1071 = vmatprep.subr.bf16.mxu0 0
      %1072 = vmatpush1.bf16.msra.mxu0 0
      %1073 = vmatprep.subr.bf16.mxu0 0
      %1074 = vmatpush1.bf16.msra.mxu0 0
      %1075 = vmatprep.subr.bf16.mxu0 0
      %1076 = vmatpush1.bf16.msra.mxu0 0
      %1077 = vmatprep.mubr.bf16.mxu0 0
      %1078 = vmatmul.mubr.bf16.gmra.mrb[0].mxu0 %v1033
      %v1079 = vpop.f32.mrb[0].mxu0
      %v1080 = vadd.f32 0.0, %v1079
      %v1081 = vpop.f32.mrb[0].mxu0
      %v1082 = vpop.f32.mrb[0].mxu0
      %v1083 = vadd.f32 0.0, %v1082
      %v1084 = vpop.f32.mrb[0].mxu0
      %1085 = vmatprep.mubr.bf16.mxu0 0
      %1086 = vmatmul.mubr.bf16.gmra.mrb[0].mxu0 %v1036
      %v1087 = vpop.f32.mrb[0].mxu0
      %v1088 = vadd.f32 0.0, %v1087
      %v1089 = vpop.f32.mrb[0].mxu0
      %v1090 = vpop.f32.mrb[0].mxu0
      %v1091 = vadd.f32 0.0, %v1090
      %v1092 = vpop.f32.mrb[0].mxu0
      %1093 = vmatprep.mubr.bf16.mxu0 0
      %1094 = vmatmul.mubr.bf16.gmra.mrb[0].mxu0 %v1039
      %v1095 = vpop.f32.mrb[0].mxu0
      %v1096 = vadd.f32 0.0, %v1095
      %v1097 = vpop.f32.mrb[0].mxu0
      %v1098 = vpop.f32.mrb[0].mxu0
      %v1099 = vadd.f32 0.0, %v1098
      %v1100 = vpop.f32.mrb[0].mxu0
      %1101 = vdwg.mxu0
      %v1102 = vpack.c.bf16 %v1083, %v1080
      %v1103 = vpack.c.bf16 %v1091, %v1088
      %v1104 = vpack.c.bf16 %v1099, %v1096
      %v1105 = vld [vmem:[%s3] sm:$0xf]
      %v1106 = vld [vmem:[%s3 + $0x4] sm:$0xf]
      %s1107 = scalar_lea.vmem %s3, 8
      %v1108 = vld [vmem:[%s1107] sm:$0xf]
      %v1109 = vld [vmem:[%s1107 + $0x4] sm:$0xf]
      %v1111 = vshrl.u32 %v1102, 16
      %v1113 = vshll.u32 %v1102, 16
      %v1115 = vrot.slane %v1113, 1
      %v1116 = vor.u32 %v1111, %v1115
      %v1118 = vshll.u32 %v1103, 16
      %v1120 = vrot.slane %v1118, 1
      %v1121 = vsel %vm297, %v1116, %v1120
      %v1122 = vshrl.u32 %v1103, 16
      %v1124 = vor.u32 %v1122, %v1120
      %v1127 = vunpack.c.l.b16 %v1108
      %v1128 = vunpack.c.l.b16 %v1109
      %v1129 = vpack.c.b16 %v1128, %v1127
      %v1132 = vsel %vm319, %v1121, 0
      %v1135 = vsel %vm319, %v1124, 0
      %1137 = vmatprep.subr.bf16.mxu0 0
      %1138 = vmatpush1.bf16.msra.mxu0 %v1129
      %1139 = vmatprep.subr.bf16.mxu0 0
      %1140 = vmatpush1.bf16.msra.mxu0 0
      %1141 = vmatprep.subr.bf16.mxu0 0
      %1142 = vmatpush1.bf16.msra.mxu0 0
      %1143 = vmatprep.subr.bf16.mxu0 0
      %1144 = vmatpush1.bf16.msra.mxu0 0
      %1145 = vmatprep.subr.bf16.mxu0 0
      %1146 = vmatpush1.bf16.msra.mxu0 0
      %1147 = vmatprep.subr.bf16.mxu0 0
      %1148 = vmatpush1.bf16.msra.mxu0 0
      %1149 = vmatprep.subr.bf16.mxu0 0
      %1150 = vmatpush1.bf16.msra.mxu0 0
      %1151 = vmatprep.subr.bf16.mxu0 0
      %1152 = vmatpush1.bf16.msra.mxu0 0
      %1153 = vmatprep.subr.bf16.mxu0 0
      %1154 = vmatpush1.bf16.msra.mxu0 0
      %1155 = vmatprep.subr.bf16.mxu0 0
      %1156 = vmatpush1.bf16.msra.mxu0 0
      %1157 = vmatprep.subr.bf16.mxu0 0
      %1158 = vmatpush1.bf16.msra.mxu0 0
      %1159 = vmatprep.subr.bf16.mxu0 0
      %1160 = vmatpush1.bf16.msra.mxu0 0
      %1161 = vmatprep.subr.bf16.mxu0 0
      %1162 = vmatpush1.bf16.msra.mxu0 0
      %1163 = vmatprep.subr.bf16.mxu0 0
      %1164 = vmatpush1.bf16.msra.mxu0 0
      %1165 = vmatprep.subr.bf16.mxu0 0
      %1166 = vmatpush1.bf16.msra.mxu0 0
      %1167 = vmatprep.subr.bf16.mxu0 0
      %1168 = vmatpush1.bf16.msra.mxu0 0
      %1169 = vmatprep.mubr.bf16.mxu0 0
      %1170 = vmatmul.mubr.bf16.gmra.mrb[0].mxu0 %v1132
      %v1171 = vpop.f32.mrb[0].mxu0
      %v1172 = vadd.f32 0.0, %v1171
      %v1173 = vpop.f32.mrb[0].mxu0
      %v1174 = vpop.f32.mrb[0].mxu0
      %v1175 = vadd.f32 0.0, %v1174
      %v1176 = vpop.f32.mrb[0].mxu0
      %1177 = vmatprep.mubr.bf16.mxu0 0
      %1178 = vmatmul.mubr.bf16.gmra.mrb[0].mxu0 %v1135
      %v1179 = vpop.f32.mrb[0].mxu0
      %v1180 = vadd.f32 0.0, %v1179
      %v1181 = vpop.f32.mrb[0].mxu0
      %v1182 = vpop.f32.mrb[0].mxu0
      %v1183 = vpop.f32.mrb[0].mxu0
      %1184 = vdwg.mxu0
      %v1187 = vunpack.c.l.b16 %v1105
      %v1188 = vunpack.c.l.b16 %v1106
      %v1189 = vpack.c.b16 %v1188, %v1187
      %v1191 = vsel %vm319, %v1102, 0
      %v1193 = vsel %vm319, %v1103, 0
      %1195 = vmatprep.subr.bf16.mxu0 0
      %1196 = vmatpush1.bf16.msra.mxu0 %v1189
      %1197 = vmatprep.subr.bf16.mxu0 0
      %1198 = vmatpush1.bf16.msra.mxu0 0
      %1199 = vmatprep.subr.bf16.mxu0 0
      %1200 = vmatpush1.bf16.msra.mxu0 0
      %1201 = vmatprep.subr.bf16.mxu0 0
      %1202 = vmatpush1.bf16.msra.mxu0 0
      %1203 = vmatprep.subr.bf16.mxu0 0
      %1204 = vmatpush1.bf16.msra.mxu0 0
      %1205 = vmatprep.subr.bf16.mxu0 0
      %1206 = vmatpush1.bf16.msra.mxu0 0
      %1207 = vmatprep.subr.bf16.mxu0 0
      %1208 = vmatpush1.bf16.msra.mxu0 0
      %1209 = vmatprep.subr.bf16.mxu0 0
      %1210 = vmatpush1.bf16.msra.mxu0 0
      %1211 = vmatprep.subr.bf16.mxu0 0
      %1212 = vmatpush1.bf16.msra.mxu0 0
      %1213 = vmatprep.subr.bf16.mxu0 0
      %1214 = vmatpush1.bf16.msra.mxu0 0
      %1215 = vmatprep.subr.bf16.mxu0 0
      %1216 = vmatpush1.bf16.msra.mxu0 0
      %1217 = vmatprep.subr.bf16.mxu0 0
      %1218 = vmatpush1.bf16.msra.mxu0 0
      %1219 = vmatprep.subr.bf16.mxu0 0
      %1220 = vmatpush1.bf16.msra.mxu0 0
      %1221 = vmatprep.subr.bf16.mxu0 0
      %1222 = vmatpush1.bf16.msra.mxu0 0
      %1223 = vmatprep.subr.bf16.mxu0 0
      %1224 = vmatpush1.bf16.msra.mxu0 0
      %1225 = vmatprep.subr.bf16.mxu0 0
      %1226 = vmatpush1.bf16.msra.mxu0 0
      %1227 = vmatprep.mubr.bf16.mxu0 0
      %1228 = vmatmul.mubr.bf16.gmra.mrb[0].mxu0 %v1191
      %v1229 = vpop.f32.mrb[0].mxu0
      %v1230 = vadd.f32 %v1172, %v1229
      %v1231 = vpop.f32.mrb[0].mxu0
      %v1232 = vpop.f32.mrb[0].mxu0
      %v1233 = vadd.f32 %v1175, %v1232
      %v1234 = vpop.f32.mrb[0].mxu0
      %1235 = vmatprep.mubr.bf16.mxu0 0
      %1236 = vmatmul.mubr.bf16.gmra.mrb[0].mxu0 %v1193
      %v1237 = vpop.f32.mrb[0].mxu0
      %v1238 = vadd.f32 %v1180, %v1237
      %v1239 = vpop.f32.mrb[0].mxu0
      %v1240 = vpop.f32.mrb[0].mxu0
      %v1241 = vpop.f32.mrb[0].mxu0
      %1242 = vdwg.mxu0
      %s1243 = scalar_lea.vmem %s3, 16
      %v1244 = vld [vmem:[%s1243] sm:$0xf]
      %v1245 = vld [vmem:[%s1243 + $0x4] sm:$0xf]
      %v1248 = vrot.slane %v1102, 1
      %v1249 = vrot.slane %v1103, 1
      %v1250 = vsel %vm443, %v1248, %v1249
      %v1253 = vunpack.c.l.b16 %v1244
      %v1254 = vunpack.c.l.b16 %v1245
      %v1255 = vpack.c.b16 %v1254, %v1253
      %v1258 = vsel %vm319, %v1250, 0
      %v1261 = vsel %vm319, %v1249, 0
      %1263 = vmatprep.subr.bf16.mxu0 0
      %1264 = vmatpush1.bf16.msra.mxu0 %v1255
      %1265 = vmatprep.subr.bf16.mxu0 0
      %1266 = vmatpush1.bf16.msra.mxu0 0
      %1267 = vmatprep.subr.bf16.mxu0 0
      %1268 = vmatpush1.bf16.msra.mxu0 0
      %1269 = vmatprep.subr.bf16.mxu0 0
      %1270 = vmatpush1.bf16.msra.mxu0 0
      %1271 = vmatprep.subr.bf16.mxu0 0
      %1272 = vmatpush1.bf16.msra.mxu0 0
      %1273 = vmatprep.subr.bf16.mxu0 0
      %1274 = vmatpush1.bf16.msra.mxu0 0
      %1275 = vmatprep.subr.bf16.mxu0 0
      %1276 = vmatpush1.bf16.msra.mxu0 0
      %1277 = vmatprep.subr.bf16.mxu0 0
      %1278 = vmatpush1.bf16.msra.mxu0 0
      %1279 = vmatprep.subr.bf16.mxu0 0
      %1280 = vmatpush1.bf16.msra.mxu0 0
      %1281 = vmatprep.subr.bf16.mxu0 0
      %1282 = vmatpush1.bf16.msra.mxu0 0
      %1283 = vmatprep.subr.bf16.mxu0 0
      %1284 = vmatpush1.bf16.msra.mxu0 0
      %1285 = vmatprep.subr.bf16.mxu0 0
      %1286 = vmatpush1.bf16.msra.mxu0 0
      %1287 = vmatprep.subr.bf16.mxu0 0
      %1288 = vmatpush1.bf16.msra.mxu0 0
      %1289 = vmatprep.subr.bf16.mxu0 0
      %1290 = vmatpush1.bf16.msra.mxu0 0
      %1291 = vmatprep.subr.bf16.mxu0 0
      %1292 = vmatpush1.bf16.msra.mxu0 0
      %1293 = vmatprep.subr.bf16.mxu0 0
      %1294 = vmatpush1.bf16.msra.mxu0 0
      %1295 = vmatprep.mubr.bf16.mxu0 0
      %1296 = vmatmul.mubr.bf16.gmra.mrb[0].mxu0 %v1258
      %v1297 = vpop.f32.mrb[0].mxu0
      %v1298 = vadd.f32 0.0, %v1297
      %v1299 = vpop.f32.mrb[0].mxu0
      %v1300 = vpop.f32.mrb[0].mxu0
      %v1301 = vadd.f32 0.0, %v1300
      %v1302 = vpop.f32.mrb[0].mxu0
      %1303 = vmatprep.mubr.bf16.mxu0 0
      %1304 = vmatmul.mubr.bf16.gmra.mrb[0].mxu0 %v1261
      %v1305 = vpop.f32.mrb[0].mxu0
      %v1306 = vadd.f32 0.0, %v1305
      %v1307 = vpop.f32.mrb[0].mxu0
      %v1308 = vpop.f32.mrb[0].mxu0
      %v1309 = vpop.f32.mrb[0].mxu0
      %1310 = vdwg.mxu0
      %v1311 = vadd.f32 %v1230, %v1298
      %v1312 = vadd.f32 %v1233, %v1301
      %v1313 = vadd.f32 %v1238, %v1306
      %s1314 = scalar_lea.vmem %s3, 24
      %v1315 = vld [vmem:[%s1314] sm:$0xf]
      %v1316 = vld [vmem:[%s1314 + $0x4] sm:$0xf]
      %v1317 = vrot.slane %v1102, 3
      %v1318 = vrot.slane %v1103, 3
      %v1319 = vsel %vm527, %v1317, %v1318
      %v1322 = vunpack.c.l.b16 %v1315
      %v1323 = vunpack.c.l.b16 %v1316
      %v1324 = vpack.c.b16 %v1323, %v1322
      %v1327 = vsel %vm319, %v1319, 0
      %v1330 = vsel %vm319, %v1318, 0
      %1332 = vmatprep.subr.bf16.mxu0 0
      %1333 = vmatpush1.bf16.msra.mxu0 %v1324
      %1334 = vmatprep.subr.bf16.mxu0 0
      %1335 = vmatpush1.bf16.msra.mxu0 0
      %1336 = vmatprep.subr.bf16.mxu0 0
      %1337 = vmatpush1.bf16.msra.mxu0 0
      %1338 = vmatprep.subr.bf16.mxu0 0
      %1339 = vmatpush1.bf16.msra.mxu0 0
      %1340 = vmatprep.subr.bf16.mxu0 0
      %1341 = vmatpush1.bf16.msra.mxu0 0
      %1342 = vmatprep.subr.bf16.mxu0 0
      %1343 = vmatpush1.bf16.msra.mxu0 0
      %1344 = vmatprep.subr.bf16.mxu0 0
      %1345 = vmatpush1.bf16.msra.mxu0 0
      %1346 = vmatprep.subr.bf16.mxu0 0
      %1347 = vmatpush1.bf16.msra.mxu0 0
      %1348 = vmatprep.subr.bf16.mxu0 0
      %1349 = vmatpush1.bf16.msra.mxu0 0
      %1350 = vmatprep.subr.bf16.mxu0 0
      %1351 = vmatpush1.bf16.msra.mxu0 0
      %1352 = vmatprep.subr.bf16.mxu0 0
      %1353 = vmatpush1.bf16.msra.mxu0 0
      %1354 = vmatprep.subr.bf16.mxu0 0
      %1355 = vmatpush1.bf16.msra.mxu0 0
      %1356 = vmatprep.subr.bf16.mxu0 0
      %1357 = vmatpush1.bf16.msra.mxu0 0
      %1358 = vmatprep.subr.bf16.mxu0 0
      %1359 = vmatpush1.bf16.msra.mxu0 0
      %1360 = vmatprep.subr.bf16.mxu0 0
      %1361 = vmatpush1.bf16.msra.mxu0 0
      %1362 = vmatprep.subr.bf16.mxu0 0
      %1363 = vmatpush1.bf16.msra.mxu0 0
      %1364 = vmatprep.mubr.bf16.mxu0 0
      %1365 = vmatmul.mubr.bf16.gmra.mrb[0].mxu0 %v1327
      %v1366 = vpop.f32.mrb[0].mxu0
      %v1367 = vadd.f32 0.0, %v1366
      %v1368 = vpop.f32.mrb[0].mxu0
      %v1369 = vpop.f32.mrb[0].mxu0
      %v1370 = vadd.f32 0.0, %v1369
      %v1371 = vpop.f32.mrb[0].mxu0
      %1372 = vmatprep.mubr.bf16.mxu0 0
      %1373 = vmatmul.mubr.bf16.gmra.mrb[0].mxu0 %v1330
      %v1374 = vpop.f32.mrb[0].mxu0
      %v1375 = vadd.f32 0.0, %v1374
      %v1376 = vpop.f32.mrb[0].mxu0
      %v1377 = vpop.f32.mrb[0].mxu0
      %v1378 = vpop.f32.mrb[0].mxu0
      %1379 = vdwg.mxu0
      %v1380 = vadd.f32 %v1311, %v1367
      %v1381 = vadd.f32 %v1312, %v1370
      %v1382 = vadd.f32 %v1313, %v1375
      %s1383 = scalar_lea.vmem %s3, 32
      %v1384 = vld [vmem:[%s1383] sm:$0xf]
      %v1385 = vld [vmem:[%s1383 + $0x4] sm:$0xf]
      %v1386 = vrot.slane %v1111, 3
      %v1387 = vrot.slane %v1113, 4
      %v1388 = vor.u32 %v1386, %v1387
      %v1389 = vrot.slane %v1122, 3
      %v1390 = vrot.slane %v1118, 4
      %v1391 = vor.u32 %v1389, %v1390
      %v1392 = vsel %vm601, %v1388, %v1391
      %v1395 = vunpack.c.l.b16 %v1384
      %v1396 = vunpack.c.l.b16 %v1385
      %v1397 = vpack.c.b16 %v1396, %v1395
      %v1400 = vsel %vm319, %v1392, 0
      %v1403 = vsel %vm319, %v1391, 0
      %1405 = vmatprep.subr.bf16.mxu0 0
      %1406 = vmatpush1.bf16.msra.mxu0 %v1397
      %1407 = vmatprep.subr.bf16.mxu0 0
      %1408 = vmatpush1.bf16.msra.mxu0 0
      %1409 = vmatprep.subr.bf16.mxu0 0
      %1410 = vmatpush1.bf16.msra.mxu0 0
      %1411 = vmatprep.subr.bf16.mxu0 0
      %1412 = vmatpush1.bf16.msra.mxu0 0
      %1413 = vmatprep.subr.bf16.mxu0 0
      %1414 = vmatpush1.bf16.msra.mxu0 0
      %1415 = vmatprep.subr.bf16.mxu0 0
      %1416 = vmatpush1.bf16.msra.mxu0 0
      %1417 = vmatprep.subr.bf16.mxu0 0
      %1418 = vmatpush1.bf16.msra.mxu0 0
      %1419 = vmatprep.subr.bf16.mxu0 0
      %1420 = vmatpush1.bf16.msra.mxu0 0
      %1421 = vmatprep.subr.bf16.mxu0 0
      %1422 = vmatpush1.bf16.msra.mxu0 0
      %1423 = vmatprep.subr.bf16.mxu0 0
      %1424 = vmatpush1.bf16.msra.mxu0 0
      %1425 = vmatprep.subr.bf16.mxu0 0
      %1426 = vmatpush1.bf16.msra.mxu0 0
      %1427 = vmatprep.subr.bf16.mxu0 0
      %1428 = vmatpush1.bf16.msra.mxu0 0
      %1429 = vmatprep.subr.bf16.mxu0 0
      %1430 = vmatpush1.bf16.msra.mxu0 0
      %1431 = vmatprep.subr.bf16.mxu0 0
      %1432 = vmatpush1.bf16.msra.mxu0 0
      %1433 = vmatprep.subr.bf16.mxu0 0
      %1434 = vmatpush1.bf16.msra.mxu0 0
      %1435 = vmatprep.subr.bf16.mxu0 0
      %1436 = vmatpush1.bf16.msra.mxu0 0
      %1437 = vmatprep.mubr.bf16.mxu0 0
      %1438 = vmatmul.mubr.bf16.gmra.mrb[0].mxu0 %v1400
      %v1439 = vpop.f32.mrb[0].mxu0
      %v1440 = vadd.f32 0.0, %v1439
      %v1441 = vpop.f32.mrb[0].mxu0
      %v1442 = vpop.f32.mrb[0].mxu0
      %v1443 = vadd.f32 0.0, %v1442
      %v1444 = vpop.f32.mrb[0].mxu0
      %1445 = vmatprep.mubr.bf16.mxu0 0
      %1446 = vmatmul.mubr.bf16.gmra.mrb[0].mxu0 %v1403
      %v1447 = vpop.f32.mrb[0].mxu0
      %v1448 = vadd.f32 0.0, %v1447
      %v1449 = vpop.f32.mrb[0].mxu0
      %v1450 = vpop.f32.mrb[0].mxu0
      %v1451 = vpop.f32.mrb[0].mxu0
      %1452 = vdwg.mxu0
      %v1453 = vadd.f32 %v1380, %v1440
      %v1454 = vadd.f32 %v1381, %v1443
      %v1455 = vadd.f32 %v1382, %v1448
      %s1456 = scalar_lea.vmem %s3, 40
      %v1457 = vld [vmem:[%s1456] sm:$0xf]
      %v1458 = vld [vmem:[%s1456 + $0x4] sm:$0xf]
      %vm1459 = vcmask 1043456
      %v1460 = vrot.slane %v1102, 4
      %v1461 = vrot.slane %v1103, 4
      %v1462 = vsel %vm1459, %v1460, %v1461
      %v1465 = vunpack.c.l.b16 %v1457
      %v1466 = vunpack.c.l.b16 %v1458
      %v1467 = vpack.c.b16 %v1466, %v1465
      %v1470 = vsel %vm319, %v1462, 0
      %v1473 = vsel %vm319, %v1461, 0
      %1475 = vmatprep.subr.bf16.mxu0 0
      %1476 = vmatpush1.bf16.msra.mxu0 %v1467
      %1477 = vmatprep.subr.bf16.mxu0 0
      %1478 = vmatpush1.bf16.msra.mxu0 0
      %1479 = vmatprep.subr.bf16.mxu0 0
      %1480 = vmatpush1.bf16.msra.mxu0 0
      %1481 = vmatprep.subr.bf16.mxu0 0
      %1482 = vmatpush1.bf16.msra.mxu0 0
      %1483 = vmatprep.subr.bf16.mxu0 0
      %1484 = vmatpush1.bf16.msra.mxu0 0
      %1485 = vmatprep.subr.bf16.mxu0 0
      %1486 = vmatpush1.bf16.msra.mxu0 0
      %1487 = vmatprep.subr.bf16.mxu0 0
      %1488 = vmatpush1.bf16.msra.mxu0 0
      %1489 = vmatprep.subr.bf16.mxu0 0
      %1490 = vmatpush1.bf16.msra.mxu0 0
      %1491 = vmatprep.subr.bf16.mxu0 0
      %1492 = vmatpush1.bf16.msra.mxu0 0
      %1493 = vmatprep.subr.bf16.mxu0 0
      %1494 = vmatpush1.bf16.msra.mxu0 0
      %1495 = vmatprep.subr.bf16.mxu0 0
      %1496 = vmatpush1.bf16.msra.mxu0 0
      %1497 = vmatprep.subr.bf16.mxu0 0
      %1498 = vmatpush1.bf16.msra.mxu0 0
      %1499 = vmatprep.subr.bf16.mxu0 0
      %1500 = vmatpush1.bf16.msra.mxu0 0
      %1501 = vmatprep.subr.bf16.mxu0 0
      %1502 = vmatpush1.bf16.msra.mxu0 0
      %1503 = vmatprep.subr.bf16.mxu0 0
      %1504 = vmatpush1.bf16.msra.mxu0 0
      %1505 = vmatprep.subr.bf16.mxu0 0
      %1506 = vmatpush1.bf16.msra.mxu0 0
      %1507 = vmatprep.mubr.bf16.mxu0 0
      %1508 = vmatmul.mubr.bf16.gmra.mrb[0].mxu0 %v1470
      %v1509 = vpop.f32.mrb[0].mxu0
      %v1510 = vadd.f32 0.0, %v1509
      %v1511 = vpop.f32.mrb[0].mxu0
      %v1512 = vpop.f32.mrb[0].mxu0
      %v1513 = vadd.f32 0.0, %v1512
      %v1514 = vpop.f32.mrb[0].mxu0
      %1515 = vmatprep.mubr.bf16.mxu0 0
      %1516 = vmatmul.mubr.bf16.gmra.mrb[0].mxu0 %v1473
      %v1517 = vpop.f32.mrb[0].mxu0
      %v1518 = vadd.f32 0.0, %v1517
      %v1519 = vpop.f32.mrb[0].mxu0
      %v1520 = vpop.f32.mrb[0].mxu0
      %v1521 = vpop.f32.mrb[0].mxu0
      %1522 = vdwg.mxu0
      %v1523 = vadd.f32 %v1453, %v1510
      %v1524 = vadd.f32 %v1454, %v1513
      %v1525 = vadd.f32 %v1455, %v1518
      %s1526 = scalar_lea.vmem %s3, 48
      %v1527 = vld [vmem:[%s1526] sm:$0xf]
      %v1528 = vld [vmem:[%s1526 + $0x4] sm:$0xf]
      %vm1530 = vcmask 1041408
      %v1531 = vrot.slane %v1102, 6
      %v1532 = vrot.slane %v1103, 6
      %v1533 = vsel %vm1530, %v1531, %v1532
      %v1534 = vrot.slane %v1104, 6
      %v1535 = vsel %vm1530, %v1532, %v1534
      %v1538 = vunpack.c.l.b16 %v1527
      %v1539 = vunpack.c.l.b16 %v1528
      %v1540 = vpack.c.b16 %v1539, %v1538
      %v1543 = vsel %vm319, %v1533, 0
      %v1546 = vsel %vm319, %v1535, 0
      %1548 = vmatprep.subr.bf16.mxu0 0
      %1549 = vmatpush1.bf16.msra.mxu0 %v1540
      %1550 = vmatprep.subr.bf16.mxu0 0
      %1551 = vmatpush1.bf16.msra.mxu0 0
      %1552 = vmatprep.subr.bf16.mxu0 0
      %1553 = vmatpush1.bf16.msra.mxu0 0
      %1554 = vmatprep.subr.bf16.mxu0 0
      %1555 = vmatpush1.bf16.msra.mxu0 0
      %1556 = vmatprep.subr.bf16.mxu0 0
      %1557 = vmatpush1.bf16.msra.mxu0 0
      %1558 = vmatprep.subr.bf16.mxu0 0
      %1559 = vmatpush1.bf16.msra.mxu0 0
      %1560 = vmatprep.subr.bf16.mxu0 0
      %1561 = vmatpush1.bf16.msra.mxu0 0
      %1562 = vmatprep.subr.bf16.mxu0 0
      %1563 = vmatpush1.bf16.msra.mxu0 0
      %1564 = vmatprep.subr.bf16.mxu0 0
      %1565 = vmatpush1.bf16.msra.mxu0 0
      %1566 = vmatprep.subr.bf16.mxu0 0
      %1567 = vmatpush1.bf16.msra.mxu0 0
      %1568 = vmatprep.subr.bf16.mxu0 0
      %1569 = vmatpush1.bf16.msra.mxu0 0
      %1570 = vmatprep.subr.bf16.mxu0 0
      %1571 = vmatpush1.bf16.msra.mxu0 0
      %1572 = vmatprep.subr.bf16.mxu0 0
      %1573 = vmatpush1.bf16.msra.mxu0 0
      %1574 = vmatprep.subr.bf16.mxu0 0
      %1575 = vmatpush1.bf16.msra.mxu0 0
      %1576 = vmatprep.subr.bf16.mxu0 0
      %1577 = vmatpush1.bf16.msra.mxu0 0
      %1578 = vmatprep.subr.bf16.mxu0 0
      %1579 = vmatpush1.bf16.msra.mxu0 0
      %1580 = vmatprep.mubr.bf16.mxu0 0
      %1581 = vmatmul.mubr.bf16.gmra.mrb[0].mxu0 %v1543
      %v1582 = vpop.f32.mrb[0].mxu0
      %v1583 = vadd.f32 0.0, %v1582
      %v1584 = vpop.f32.mrb[0].mxu0
      %v1585 = vpop.f32.mrb[0].mxu0
      %v1586 = vadd.f32 0.0, %v1585
      %v1587 = vpop.f32.mrb[0].mxu0
      %1588 = vmatprep.mubr.bf16.mxu0 0
      %1589 = vmatmul.mubr.bf16.gmra.mrb[0].mxu0 %v1546
      %v1590 = vpop.f32.mrb[0].mxu0
      %v1591 = vadd.f32 0.0, %v1590
      %v1592 = vpop.f32.mrb[0].mxu0
      %v1593 = vpop.f32.mrb[0].mxu0
      %v1594 = vpop.f32.mrb[0].mxu0
      %1595 = vdwg.mxu0
      %v1596 = vadd.f32 %v1523, %v1583
      %v1597 = vadd.f32 %v1524, %v1586
      %v1598 = vadd.f32 %v1525, %v1591
      %s1599 = scalar_lea.vmem %s3, 56
      %v1600 = vld [vmem:[%s1599] sm:$0xf]
      %v1601 = vld [vmem:[%s1599 + $0x4] sm:$0xf]
      %vm1602 = vsmask.f32 1280
      %v1603 = vrot.slane %v1111, 6
      %v1604 = vrot.slane %v1113, 7
      %v1605 = vor.u32 %v1603, %v1604
      %v1606 = vrot.slane %v1122, 6
      %v1607 = vrot.slane %v1118, 7
      %v1608 = vor.u32 %v1606, %v1607
      %v1609 = vsel %vm1602, %v1605, %v1608
      %v1611 = vshrl.u32 %v1104, 16
      %v1613 = vrot.slane %v1611, 6
      %v1614 = vshll.u32 %v1104, 16
      %v1616 = vrot.slane %v1614, 7
      %v1617 = vor.u32 %v1613, %v1616
      %v1618 = vsel %vm1602, %v1608, %v1617
      %v1621 = vunpack.c.l.b16 %v1600
      %v1622 = vunpack.c.l.b16 %v1601
      %v1623 = vpack.c.b16 %v1622, %v1621
      %v1626 = vsel %vm319, %v1609, 0
      %v1629 = vsel %vm319, %v1618, 0
      %1631 = vmatprep.subr.bf16.mxu0 0
      %1632 = vmatpush1.bf16.msra.mxu0 %v1623
      %1633 = vmatprep.subr.bf16.mxu0 0
      %1634 = vmatpush1.bf16.msra.mxu0 0
      %1635 = vmatprep.subr.bf16.mxu0 0
      %1636 = vmatpush1.bf16.msra.mxu0 0
      %1637 = vmatprep.subr.bf16.mxu0 0
      %1638 = vmatpush1.bf16.msra.mxu0 0
      %1639 = vmatprep.subr.bf16.mxu0 0
      %1640 = vmatpush1.bf16.msra.mxu0 0
      %1641 = vmatprep.subr.bf16.mxu0 0
      %1642 = vmatpush1.bf16.msra.mxu0 0
      %1643 = vmatprep.subr.bf16.mxu0 0
      %1644 = vmatpush1.bf16.msra.mxu0 0
      %1645 = vmatprep.subr.bf16.mxu0 0
      %1646 = vmatpush1.bf16.msra.mxu0 0
      %1647 = vmatprep.subr.bf16.mxu0 0
      %1648 = vmatpush1.bf16.msra.mxu0 0
      %1649 = vmatprep.subr.bf16.mxu0 0
      %1650 = vmatpush1.bf16.msra.mxu0 0
      %1651 = vmatprep.subr.bf16.mxu0 0
      %1652 = vmatpush1.bf16.msra.mxu0 0
      %1653 = vmatprep.subr.bf16.mxu0 0
      %1654 = vmatpush1.bf16.msra.mxu0 0
      %1655 = vmatprep.subr.bf16.mxu0 0
      %1656 = vmatpush1.bf16.msra.mxu0 0
      %1657 = vmatprep.subr.bf16.mxu0 0
      %1658 = vmatpush1.bf16.msra.mxu0 0
      %1659 = vmatprep.subr.bf16.mxu0 0
      %1660 = vmatpush1.bf16.msra.mxu0 0
      %1661 = vmatprep.subr.bf16.mxu0 0
      %1662 = vmatpush1.bf16.msra.mxu0 0
      %1663 = vmatprep.mubr.bf16.mxu0 0
      %1664 = vmatmul.mubr.bf16.gmra.mrb[0].mxu0 %v1626
      %v1665 = vpop.f32.mrb[0].mxu0
      %v1666 = vadd.f32 0.0, %v1665
      %v1667 = vpop.f32.mrb[0].mxu0
      %v1668 = vpop.f32.mrb[0].mxu0
      %v1669 = vadd.f32 0.0, %v1668
      %v1670 = vpop.f32.mrb[0].mxu0
      %1671 = vmatprep.mubr.bf16.mxu0 0
      %1672 = vmatmul.mubr.bf16.gmra.mrb[0].mxu0 %v1629
      %v1673 = vpop.f32.mrb[0].mxu0
      %v1674 = vadd.f32 0.0, %v1673
      %v1675 = vpop.f32.mrb[0].mxu0
      %v1676 = vpop.f32.mrb[0].mxu0
      %v1677 = vpop.f32.mrb[0].mxu0
      %1678 = vdwg.mxu0
      %v1679 = vadd.f32 %v1596, %v1666
      %v1680 = vadd.f32 %v1597, %v1669
      %v1681 = vadd.f32 %v1598, %v1674
      %s1682 = scalar_lea.vmem %s3, 64
      %v1683 = vld [vmem:[%s1682] sm:$0xf]
      %v1684 = vld [vmem:[%s1682 + $0x4] sm:$0xf]
      %vm1685 = vcmask 1040384
      %v1686 = vrot.slane %v1102, 7
      %v1687 = vrot.slane %v1103, 7
      %v1688 = vsel %vm1685, %v1686, %v1687
      %v1689 = vrot.slane %v1104, 7
      %v1690 = vsel %vm1685, %v1687, %v1689
      %v1693 = vunpack.c.l.b16 %v1683
      %v1694 = vunpack.c.l.b16 %v1684
      %v1695 = vpack.c.b16 %v1694, %v1693
      %v1698 = vsel %vm319, %v1688, 0
      %v1701 = vsel %vm319, %v1690, 0
      %1703 = vmatprep.subr.bf16.mxu0 0
      %1704 = vmatpush1.bf16.msra.mxu0 %v1695
      %1705 = vmatprep.subr.bf16.mxu0 0
      %1706 = vmatpush1.bf16.msra.mxu0 0
      %1707 = vmatprep.subr.bf16.mxu0 0
      %1708 = vmatpush1.bf16.msra.mxu0 0
      %1709 = vmatprep.subr.bf16.mxu0 0
      %1710 = vmatpush1.bf16.msra.mxu0 0
      %1711 = vmatprep.subr.bf16.mxu0 0
      %1712 = vmatpush1.bf16.msra.mxu0 0
      %1713 = vmatprep.subr.bf16.mxu0 0
      %1714 = vmatpush1.bf16.msra.mxu0 0
      %1715 = vmatprep.subr.bf16.mxu0 0
      %1716 = vmatpush1.bf16.msra.mxu0 0
      %1717 = vmatprep.subr.bf16.mxu0 0
      %1718 = vmatpush1.bf16.msra.mxu0 0
      %1719 = vmatprep.subr.bf16.mxu0 0
      %1720 = vmatpush1.bf16.msra.mxu0 0
      %1721 = vmatprep.subr.bf16.mxu0 0
      %1722 = vmatpush1.bf16.msra.mxu0 0
      %1723 = vmatprep.subr.bf16.mxu0 0
      %1724 = vmatpush1.bf16.msra.mxu0 0
      %1725 = vmatprep.subr.bf16.mxu0 0
      %1726 = vmatpush1.bf16.msra.mxu0 0
      %1727 = vmatprep.subr.bf16.mxu0 0
      %1728 = vmatpush1.bf16.msra.mxu0 0
      %1729 = vmatprep.subr.bf16.mxu0 0
      %1730 = vmatpush1.bf16.msra.mxu0 0
      %1731 = vmatprep.subr.bf16.mxu0 0
      %1732 = vmatpush1.bf16.msra.mxu0 0
      %1733 = vmatprep.subr.bf16.mxu0 0
      %1734 = vmatpush1.bf16.msra.mxu0 0
      %1735 = vmatprep.mubr.bf16.mxu0 0
      %1736 = vmatmul.mubr.bf16.gmra.mrb[0].mxu0 %v1698
      %v1737 = vpop.f32.mrb[0].mxu0
      %v1738 = vadd.f32 0.0, %v1737
      %v1739 = vpop.f32.mrb[0].mxu0
      %v1740 = vpop.f32.mrb[0].mxu0
      %v1741 = vadd.f32 0.0, %v1740
      %v1742 = vpop.f32.mrb[0].mxu0
      %1743 = vmatprep.mubr.bf16.mxu0 0
      %1744 = vmatmul.mubr.bf16.gmra.mrb[0].mxu0 %v1701
      %v1745 = vpop.f32.mrb[0].mxu0
      %v1746 = vadd.f32 0.0, %v1745
      %v1747 = vpop.f32.mrb[0].mxu0
      %v1748 = vpop.f32.mrb[0].mxu0
      %v1749 = vpop.f32.mrb[0].mxu0
      %1750 = vdwg.mxu0
      %v1751 = vadd.f32 %v1679, %v1738
      %v1752 = vadd.f32 %v1680, %v1741
      %v1753 = vadd.f32 %v1681, %v1746
      %v1754 = vld [vmem:[%s4] sm:$0x1]
      %v1756 = vlaneseq
      %v1757 = vshrl.u32 %v1756, 7
      %v1758 = vsub.s32 0, %v1757
      %v1759 = vrot.slane %v1754, %v1758
      %v1761 = vadd.f32 %v1751, %v1759
      %v1762 = vadd.f32 %v1752, %v1759
      %v1763 = vadd.f32 %v1753, %v1759
      %v1764 = vpack.c.bf16 %v1762, %v1761
      %v1765 = vpack.c.bf16 %v1763, %v1763
      %v1766 = vld [vmem:[%s6] sm:$0xf]
      %v1767 = vld [vmem:[%s6 + $0x4] sm:$0xf]
      %v1768 = vld [vmem:[%s6 + $0x8] sm:$0xf]
      %v1769 = vld [vmem:[%s6 + $0xc] sm:$0xf]
      %v1770 = vld [vmem:[%s6 + $0x10] sm:$0xf]
      %v1771 = vld [vmem:[%s6 + $0x14] sm:$0xf]
      %v1772 = vld [vmem:[%s273] sm:$0xf]
      %v1773 = vld [vmem:[%s273 + $0x4] sm:$0xf]
      %v1774 = vld [vmem:[%s273 + $0x8] sm:$0xf]
      %v1775 = vld [vmem:[%s273 + $0xc] sm:$0xf]
      %v1776 = vld [vmem:[%s273 + $0x10] sm:$0xf]
      %v1777 = vld [vmem:[%s273 + $0x14] sm:$0xf]
      %v1778 = vunpack.c.l.bf16 %v1772
      %v1779 = vunpack.c.l.bf16 %v1773
      %v1780 = vunpack.c.l.bf16 %v1774
      %v1781 = vunpack.c.l.bf16 %v1775
      %v1782 = vunpack.c.l.bf16 %v1776
      %v1783 = vunpack.c.l.bf16 %v1777
      %v1790 = vunpack.c.l.b16 %v1766
      %v1791 = vunpack.c.l.b16 %v1767
      %v1792 = vunpack.c.l.b16 %v1768
      %v1793 = vunpack.c.l.b16 %v1769
      %v1794 = vunpack.c.l.b16 %v1770
      %v1795 = vunpack.c.l.b16 %v1771
      %v1796 = vpack.c.b16 %v1791, %v1790
      %v1797 = vpack.c.b16 %v1793, %v1792
      %v1798 = vpack.c.b16 %v1795, %v1794
      %v1800 = vsel %vm1031, %v1796, 0
      %v1803 = vsel %vm1031, %v1797, 0
      %v1806 = vsel %vm1031, %v1798, 0
      %v1809 = vsel %vm1041, %v1765, 0
      %1811 = vmatprep.subr.bf16.mxu0 0
      %1812 = vmatpush1.bf16.msra.mxu0 %v1764
      %1813 = vmatprep.subr.bf16.mxu0 0
      %1814 = vmatpush1.bf16.msra.mxu0 %v1809
      %1815 = vmatprep.subr.bf16.mxu0 0
      %1816 = vmatpush1.bf16.msra.mxu0 0
      %1817 = vmatprep.subr.bf16.mxu0 0
      %1818 = vmatpush1.bf16.msra.mxu0 0
      %1819 = vmatprep.subr.bf16.mxu0 0
      %1820 = vmatpush1.bf16.msra.mxu0 0
      %1821 = vmatprep.subr.bf16.mxu0 0
      %1822 = vmatpush1.bf16.msra.mxu0 0
      %1823 = vmatprep.subr.bf16.mxu0 0
      %1824 = vmatpush1.bf16.msra.mxu0 0
      %1825 = vmatprep.subr.bf16.mxu0 0
      %1826 = vmatpush1.bf16.msra.mxu0 0
      %1827 = vmatprep.subr.bf16.mxu0 0
      %1828 = vmatpush1.bf16.msra.mxu0 0
      %1829 = vmatprep.subr.bf16.mxu0 0
      %1830 = vmatpush1.bf16.msra.mxu0 0
      %1831 = vmatprep.subr.bf16.mxu0 0
      %1832 = vmatpush1.bf16.msra.mxu0 0
      %1833 = vmatprep.subr.bf16.mxu0 0
      %1834 = vmatpush1.bf16.msra.mxu0 0
      %1835 = vmatprep.subr.bf16.mxu0 0
      %1836 = vmatpush1.bf16.msra.mxu0 0
      %1837 = vmatprep.subr.bf16.mxu0 0
      %1838 = vmatpush1.bf16.msra.mxu0 0
      %1839 = vmatprep.subr.bf16.mxu0 0
      %1840 = vmatpush1.bf16.msra.mxu0 0
      %1841 = vmatprep.subr.bf16.mxu0 0
      %1842 = vmatpush1.bf16.msra.mxu0 0
      %1843 = vmatprep.mubr.bf16.mxu0 0
      %1844 = vmatmul.mubr.bf16.gmra.mrb[0].mxu0 %v1800
      %v1845 = vpop.f32.mrb[0].mxu0
      %v1846 = vadd.f32 %v1778, %v1845
      %v1847 = vpop.f32.mrb[0].mxu0
      %v1848 = vpop.f32.mrb[0].mxu0
      %v1849 = vadd.f32 %v1779, %v1848
      %v1850 = vpop.f32.mrb[0].mxu0
      %1851 = vmatprep.mubr.bf16.mxu0 0
      %1852 = vmatmul.mubr.bf16.gmra.mrb[0].mxu0 %v1803
      %v1853 = vpop.f32.mrb[0].mxu0
      %v1854 = vadd.f32 %v1780, %v1853
      %v1855 = vpop.f32.mrb[0].mxu0
      %v1856 = vpop.f32.mrb[0].mxu0
      %v1857 = vadd.f32 %v1781, %v1856
      %v1858 = vpop.f32.mrb[0].mxu0
      %1859 = vmatprep.mubr.bf16.mxu0 0
      %1860 = vmatmul.mubr.bf16.gmra.mrb[0].mxu0 %v1806
      %v1861 = vpop.f32.mrb[0].mxu0
      %v1862 = vadd.f32 %v1782, %v1861
      %v1863 = vpop.f32.mrb[0].mxu0
      %v1864 = vpop.f32.mrb[0].mxu0
      %v1865 = vadd.f32 %v1783, %v1864
      %v1866 = vpop.f32.mrb[0].mxu0
      %1867 = vdwg.mxu0
      %v1868 = vmax.f32 %v1846, 0.0
      %v1869 = vmax.f32 %v1849, 0.0
      %v1870 = vmax.f32 %v1854, 0.0
      %v1871 = vmax.f32 %v1857, 0.0
      %v1872 = vmax.f32 %v1862, 0.0
      %v1873 = vmax.f32 %v1865, 0.0
      %v1874 = vpack.c.bf16 %v1869, %v1868
      %v1875 = vpack.c.bf16 %v1871, %v1870
      %v1876 = vpack.c.bf16 %v1873, %v1872
      %v1880 = vunpack.c.l.b16 %v1874
      %v1881 = vunpack.c.h.b16 %v1874
      %v1882 = vunpack.c.l.b16 %v1875
      %v1883 = vunpack.c.h.b16 %v1875
      %v1884 = vunpack.c.l.b16 %v1876
      %v1885 = vunpack.c.h.b16 %v1876
      %v1886 = vpack.c.b16 %v1880, %v1880
      %v1887 = vpack.c.b16 %v1881, %v1881
      %v1888 = vpack.c.b16 %v1882, %v1882
      %v1889 = vpack.c.b16 %v1883, %v1883
      %v1890 = vpack.c.b16 %v1884, %v1884
      %v1891 = vpack.c.b16 %v1885, %v1885
      %vm1898 = vcmask 125952
      %1899 = vst.msk [vmem:[%s278] sm:$0xf] %vm1898, %v1886
      %1900 = vst.msk [vmem:[%s278 + $0x4] sm:$0xf] %vm1898, %v1887
      %1901 = vst.msk [vmem:[%s278 + $0x8] sm:$0xf] %vm1898, %v1888
      %1902 = vst.msk [vmem:[%s278 + $0xc] sm:$0xf] %vm1898, %v1889
      %1903 = vst.msk [vmem:[%s278 + $0x10] sm:$0xf] %vm1898, %v1890
      %1904 = vst.msk [vmem:[%s278 + $0x14] sm:$0xf] %vm1898, %v1891
      %p1905 = scmp.lt.s32.totalorder %s18, 1
      %s1906 = scalar_select %p1905, %s18, 1
      %s1907 = smul.addr %s1906, 6
      %s1908 = smul.addr %s1907, 4
      %s1909 = scalar_lea.vmem %s7, %s1908
      // Predicated region
      $region49: #{_lambda_.9} parent=47 // pred_check
        %p1910 = pneg %p188
      $region50: #{_lambda_.9} parent=47 // pred_check_branch
        %1912 = sbr.rel (%p1910) target = $region52
      $region51: #{_lambda_.9} parent=47 // pred_region
        _
      $region52: #{_lambda_.9} parent=47 // pred_fallthru
        _
    $region48: #{_lambda_.9} parent=5 // pred_fallthru
      _
    %p1913 = scmp.le.s32.totalorder 2, %s13
    // Predicated region
    $region53: #{_lambda_.9} parent=5 // pred_check
      %p1914 = pneg %p1913
    $region54: #{_lambda_.9} parent=5 // pred_check_branch
      %1916 = sbr.rel (%p1914) target = $region56
    $region55: #{_lambda_.9} parent=5 // pred_region
      %s1917 = ssub.s32 %s13, 2
      // Predicated region
      $region57: #{_lambda_.9} parent=55 // pred_check
        %p1918 = pneg %p194
      $region58: #{_lambda_.9} parent=55 // pred_check_branch
        %1920 = sbr.rel (%p1918) target = $region60
      $region59: #{_lambda_.9} parent=55 // pred_region
        %p1921 = scmp.lt.s32.totalorder %s19, 1
        %s1922 = scalar_select %p1921, %s19, 1
        %s1923 = smul.addr %s1922, 6
        %s1924 = smul.addr %s1923, 4
        %s1925 = scalar_lea.vmem %s7, %s1924
      $region60: #{_lambda_.9} parent=55 // pred_fallthru
        _
    $region56: #{_lambda_.9} parent=5 // pred_fallthru
      _
  $region6: #{_lambda_.9} parent=0 // loop_footer
    %s17 = sadd.s32 1, %s13
  $region7: #{_lambda_.9} parent=0 // loop_footer_branch
    %12 = sbr.rel target = $region3
  $region8: #{_lambda_.9} parent=0 // loop_exit
    _

</llo_original>
